<compile_context>
chip_gen: v7x
topology: tpu7x:2x2x1
jax: 0.10.0
libtpu: 0.0.40
codegen_flags: <defaults>
</compile_context>

<pallas_src>
from functools import partial

import jax
import jax.numpy as jnp
from jax import lax
from jax.experimental import pallas as pl
from jax.experimental.pallas import tpu as pltpu


def _dts_kernel(x_ref, ew_ref, eh_ref, o_ref, *, bs, c_out, compute_dtype,
                precision):
    # x_ref : (1, C, Hc, W)            one batch element, one H-chunk
    # ew_ref: (bs, W, W*bs)            Ew[b2, w, w*bs + b2] = 1
    # eh_ref: (bs, Hc*bs, Hc)          Eh[b1, h*bs + b1, h] = 1
    # o_ref : (1, c_out, Hc*bs, W*bs)
    hc, _w = x_ref.shape[2], x_ref.shape[3]
    hbs, wbs = eh_ref.shape[1], ew_ref.shape[2]
    f32 = jnp.float32

    ew = ew_ref[...].astype(compute_dtype)                      # (bs, W, W*bs)
    # Hoist the broadcast of Eh over the c_out batch dim out of the loops
    # (JAX does not CSE broadcast_in_dim).
    ehb = jnp.broadcast_to(eh_ref[...][:, None, :, :],
                           (bs, c_out, hbs, hc)).astype(compute_dtype)

    acc = jnp.zeros((c_out, hbs, wbs), f32)
    for b1 in range(bs):                                        # static, tiny
        z = jnp.zeros((c_out, hc, wbs), f32)
        for b2 in range(bs):                                    # static, tiny
            g = b1 * bs + b2
            # Leading-axis channel slice of whole (Hc, W) tiles -> free.
            xg = x_ref[0, g * c_out:(g + 1) * c_out, :, :].astype(compute_dtype)
            # Width interleave: (c,h,w) x (w,v) -> (c,h,v), v = w*bs + b2.
            z = z + lax.dot_general(
                xg, ew[b2], (((2,), (0,)), ((), ())),
                preferred_element_type=f32, precision=precision)
        # Height interleave, batched over c (keeps natural (c,u,v) order,
        # no in-kernel transpose): (c,u,h) x (c,h,v) -> (c,u,v), u = h*bs + b1.
        acc = acc + lax.dot_general(
            ehb[b1], z.astype(compute_dtype), (((2,), (1,)), ((0,), (0,))),
            preferred_element_type=f32, precision=precision)
    o_ref[0] = acc.astype(o_ref.dtype)


def _lane_interleave_onehots(n, bs, dtype=jnp.float32):
    """E[b] has shape (n, n*bs) with E[b][i, i*bs + b] = 1 (everything else 0)."""
    idx = jnp.arange(n) * bs
    return jnp.stack(
        [jax.nn.one_hot(idx + b, n * bs, dtype=dtype) for b in range(bs)], axis=0)


def _auto_h_block(H, C, W, bs, itemsize, vmem_budget_bytes=8 << 20):
    """Largest multiple-of-8 divisor of H whose (double-buffered, lane-padded)
    input+output chunk stays within a conservative VMEM budget.  Falls back to
    the full H when H is not a multiple of 8 (full-extent blocks are always
    legal)."""
    if H % 8 != 0:
        return H
    c_out = C // (bs * bs)
    lane = lambda n: ((n + 127) // 128) * 128
    best = 8
    for hb in range(8, H + 1, 8):
        if H % hb:
            continue
        per_step = 2 * itemsize * (C * hb * lane(W)
                                   + c_out * hb * bs * lane(W * bs))
        if per_step <= vmem_budget_bytes:
            best = hb
    return best


def depth_to_space(x, block_size, h_block=None):
    N, C, H, W = x.shape
    bs = block_size
    assert C % (bs * bs) == 0, "C must be divisible by block_size**2"
    c_out = C // (bs * bs)

    if h_block is None:
        h_block = _auto_h_block(H, C, W, bs, jnp.dtype(x.dtype).itemsize)
    assert H % h_block == 0 and (h_block == H or h_block % 8 == 0)

    # Kronecker factors of the depth-to-space permutation (a few KiB total).
    ew = _lane_interleave_onehots(W, bs)                              # (bs, W, W*bs)
    eh = jnp.swapaxes(_lane_interleave_onehots(h_block, bs), 1, 2)    # (bs, Hc*bs, Hc)

    # f32 inputs: HIGHEST keeps the copy bit-exact (0/1 weights, f32 values).
    # bf16 inputs: native single-pass MXU is already exact for bf16 * 1.0.
    if x.dtype == jnp.float32:
        compute_dtype, precision = jnp.float32, lax.Precision.HIGHEST
    else:
        compute_dtype, precision = x.dtype, lax.Precision.DEFAULT

    grid = (N, H // h_block)
    kernel = partial(_dts_kernel, bs=bs, c_out=c_out,
                     compute_dtype=compute_dtype, precision=precision)

    return pl.pallas_call(
        kernel,
        out_shape=jax.ShapeDtypeStruct((N, c_out, H * bs, W * bs), x.dtype),
        grid_spec=pltpu.PrefetchScalarGridSpec(
            num_scalar_prefetch=0,
            grid=grid,
            in_specs=[
                pl.BlockSpec((1, C, h_block, W), lambda n, hi: (n, 0, hi, 0)),
                # Tiny constant one-hot factors (double buffering them costs
                # only a few KiB, so no special pipeline_mode is needed).
                pl.BlockSpec((bs, W, W * bs), lambda n, hi: (0, 0, 0)),
                pl.BlockSpec((bs, h_block * bs, h_block), lambda n, hi: (0, 0, 0)),
            ],
            out_specs=pl.BlockSpec((1, c_out, h_block * bs, W * bs),
                                   lambda n, hi: (n, 0, hi, 0)),
        ),
        compiler_params=pltpu.CompilerParams(
            dimension_semantics=("parallel", "parallel")),
    )(x, ew, eh)


def depth_to_space_ref(x, bs):
    """Pure-JAX reference matching the PyTorch module exactly."""
    N, C, H, W = x.shape
    c_out = C // (bs * bs)
    y = x.reshape(N, bs, bs, c_out, H, W)
    y = jnp.transpose(y, (0, 3, 4, 1, 5, 2))
    return y.reshape(N, c_out, H * bs, W * bs)


if __name__ == "__main__":
    key = jax.random.PRNGKey(0)
    N, C, H, W = 2, 32, 16, 16
    block_size = 2

    x = jax.random.normal(key, (N, C, H, W), dtype=jnp.float32)

    # f32 path (HIGHEST precision -> exact copy), explicit H tiling -> grid (2, 2).
    out = depth_to_space(x, block_size, h_block=8)
    out = jax.block_until_ready(out)
    ref = depth_to_space_ref(x, block_size)
    assert out.shape == (N, C // block_size ** 2, H * block_size, W * block_size)
    assert out.dtype == x.dtype
    assert jnp.allclose(out, ref, rtol=1e-6, atol=1e-6), "f32 mismatch vs reference"

    # bf16 path (native single-pass MXU), auto h_block (single H chunk here).
    xb = x.astype(jnp.bfloat16)
    outb = jax.block_until_ready(depth_to_space(xb, block_size))
    refb = depth_to_space_ref(xb, block_size)
    assert outb.dtype == jnp.bfloat16
    assert jnp.allclose(outb.astype(jnp.float32), refb.astype(jnp.float32),
                        rtol=1e-2, atol=1e-2), "bf16 mismatch vs reference"

    print("KERNEL_OK")
</pallas_src>

<mosaic_0001>
module attributes {stable_mosaic.version = 11 : i64} {
  func.func @_dts_kernel(%arg0: i32, %arg1: i32, %arg2: memref<1x32x8x16xf32, #tpu.memory_space<vmem>>, %arg3: memref<2x16x32xf32, #tpu.memory_space<vmem>>, %arg4: memref<2x16x8xf32, #tpu.memory_space<vmem>>, %arg5: memref<1x8x16x32xf32, #tpu.memory_space<vmem>>) attributes {dimension_semantics = [#tpu.dimension_semantics<parallel>, #tpu.dimension_semantics<parallel>], iteration_bounds = array<i64: 2, 2>, scalar_prefetch = 0 : i64, scratch_operands = 0 : i64, tpu.core_type = #tpu.core_type<tc>, window_params = [{transform_indices = @transform_0, window_bounds = array<i64: 1, 32, 8, 16>}, {pipeline_mode = #tpu.pipeline_mode<synchronous>, transform_indices = @transform_1, window_bounds = array<i64: 2, 16, 32>}, {pipeline_mode = #tpu.pipeline_mode<synchronous>, transform_indices = @transform_2, window_bounds = array<i64: 2, 16, 8>}, {transform_indices = @transform_3, window_bounds = array<i64: 1, 8, 16, 32>}]} {
    %c0 = arith.constant 0 : index
    %c0_0 = arith.constant 0 : index
    %c0_1 = arith.constant 0 : index
    %0 = vector.load %arg3[%c0, %c0_0, %c0_1] : memref<2x16x32xf32, #tpu.memory_space<vmem>>, vector<2x16x32xf32>
    %c0_2 = arith.constant 0 : index
    %c0_3 = arith.constant 0 : index
    %c0_4 = arith.constant 0 : index
    %1 = vector.load %arg4[%c0_2, %c0_3, %c0_4] : memref<2x16x8xf32, #tpu.memory_space<vmem>>, vector<2x16x8xf32>
    %2 = vector.shape_cast %1 : vector<2x16x8xf32> to vector<2x1x16x8xf32>
    %3 = vector.shape_cast %2 : vector<2x1x16x8xf32> to vector<2x1x16x8xf32>
    %4 = vector.broadcast %3 : vector<2x1x16x8xf32> to vector<2x8x16x8xf32>
    %cst = arith.constant 0.000000e+00 : f32
    %5 = vector.broadcast %cst : f32 to vector<8x16x32xf32>
    %cst_5 = arith.constant 0.000000e+00 : f32
    %6 = vector.broadcast %cst_5 : f32 to vector<8x8x32xf32>
    %c0_6 = arith.constant 0 : index
    %c0_7 = arith.constant 0 : index
    %c0_8 = arith.constant 0 : index
    %c0_9 = arith.constant 0 : index
    %7 = vector.load %arg2[%c0_6, %c0_7, %c0_8, %c0_9] : memref<1x32x8x16xf32, #tpu.memory_space<vmem>>, vector<1x8x8x16xf32>
    %8 = vector.shape_cast %7 : vector<1x8x8x16xf32> to vector<8x8x16xf32>
    %9 = vector.extract_strided_slice %0 {offsets = [0, 0, 0], sizes = [1, 16, 32], strides = [1, 1, 1]} : vector<2x16x32xf32> to vector<1x16x32xf32>
    %10 = vector.shape_cast %9 : vector<1x16x32xf32> to vector<16x32xf32>
    %cst_10 = arith.constant dense<0.000000e+00> : vector<8x8x32xf32>
    %11 = tpu.matmul %8, %10, %cst_10 {dimension_numbers = #tpu.dot_dimension_numbers<[2], [0], [0, 1], [1], [0, 0, 0, 1, 1, 1], [], []>, precision = #tpu.contract_precision<fp32>} : vector<8x8x16xf32>, vector<16x32xf32>, vector<8x8x32xf32> -> vector<8x8x32xf32>
    %12 = arith.addf %6, %11 : vector<8x8x32xf32>
    %c0_11 = arith.constant 0 : index
    %c8 = arith.constant 8 : index
    %c0_12 = arith.constant 0 : index
    %c0_13 = arith.constant 0 : index
    %13 = vector.load %arg2[%c0_11, %c8, %c0_12, %c0_13] : memref<1x32x8x16xf32, #tpu.memory_space<vmem>>, vector<1x8x8x16xf32>
    %14 = vector.shape_cast %13 : vector<1x8x8x16xf32> to vector<8x8x16xf32>
    %15 = vector.extract_strided_slice %0 {offsets = [1, 0, 0], sizes = [1, 16, 32], strides = [1, 1, 1]} : vector<2x16x32xf32> to vector<1x16x32xf32>
    %16 = vector.shape_cast %15 : vector<1x16x32xf32> to vector<16x32xf32>
    %cst_14 = arith.constant dense<0.000000e+00> : vector<8x8x32xf32>
    %17 = tpu.matmul %14, %16, %cst_14 {dimension_numbers = #tpu.dot_dimension_numbers<[2], [0], [0, 1], [1], [0, 0, 0, 1, 1, 1], [], []>, precision = #tpu.contract_precision<fp32>} : vector<8x8x16xf32>, vector<16x32xf32>, vector<8x8x32xf32> -> vector<8x8x32xf32>
    %18 = arith.addf %12, %17 : vector<8x8x32xf32>
    %19 = vector.extract_strided_slice %4 {offsets = [0, 0, 0, 0], sizes = [1, 8, 16, 8], strides = [1, 1, 1, 1]} : vector<2x8x16x8xf32> to vector<1x8x16x8xf32>
    %20 = vector.shape_cast %19 : vector<1x8x16x8xf32> to vector<8x16x8xf32>
    %cst_15 = arith.constant dense<0.000000e+00> : vector<8x16x32xf32>
    %21 = tpu.matmul %20, %18, %cst_15 {dimension_numbers = #tpu.dot_dimension_numbers<[2], [1], [1], [2], [0, 0, 0, 1, 1, 2], [0], [0]>, precision = #tpu.contract_precision<fp32>} : vector<8x16x8xf32>, vector<8x8x32xf32>, vector<8x16x32xf32> -> vector<8x16x32xf32>
    %22 = arith.addf %5, %21 : vector<8x16x32xf32>
    %cst_16 = arith.constant 0.000000e+00 : f32
    %23 = vector.broadcast %cst_16 : f32 to vector<8x8x32xf32>
    %c0_17 = arith.constant 0 : index
    %c16 = arith.constant 16 : index
    %c0_18 = arith.constant 0 : index
    %c0_19 = arith.constant 0 : index
    %24 = vector.load %arg2[%c0_17, %c16, %c0_18, %c0_19] : memref<1x32x8x16xf32, #tpu.memory_space<vmem>>, vector<1x8x8x16xf32>
    %25 = vector.shape_cast %24 : vector<1x8x8x16xf32> to vector<8x8x16xf32>
    %26 = vector.extract_strided_slice %0 {offsets = [0, 0, 0], sizes = [1, 16, 32], strides = [1, 1, 1]} : vector<2x16x32xf32> to vector<1x16x32xf32>
    %27 = vector.shape_cast %26 : vector<1x16x32xf32> to vector<16x32xf32>
    %cst_20 = arith.constant dense<0.000000e+00> : vector<8x8x32xf32>
    %28 = tpu.matmul %25, %27, %cst_20 {dimension_numbers = #tpu.dot_dimension_numbers<[2], [0], [0, 1], [1], [0, 0, 0, 1, 1, 1], [], []>, precision = #tpu.contract_precision<fp32>} : vector<8x8x16xf32>, vector<16x32xf32>, vector<8x8x32xf32> -> vector<8x8x32xf32>
    %29 = arith.addf %23, %28 : vector<8x8x32xf32>
    %c0_21 = arith.constant 0 : index
    %c24 = arith.constant 24 : index
    %c0_22 = arith.constant 0 : index
    %c0_23 = arith.constant 0 : index
    %30 = vector.load %arg2[%c0_21, %c24, %c0_22, %c0_23] : memref<1x32x8x16xf32, #tpu.memory_space<vmem>>, vector<1x8x8x16xf32>
    %31 = vector.shape_cast %30 : vector<1x8x8x16xf32> to vector<8x8x16xf32>
    %32 = vector.extract_strided_slice %0 {offsets = [1, 0, 0], sizes = [1, 16, 32], strides = [1, 1, 1]} : vector<2x16x32xf32> to vector<1x16x32xf32>
    %33 = vector.shape_cast %32 : vector<1x16x32xf32> to vector<16x32xf32>
    %cst_24 = arith.constant dense<0.000000e+00> : vector<8x8x32xf32>
    %34 = tpu.matmul %31, %33, %cst_24 {dimension_numbers = #tpu.dot_dimension_numbers<[2], [0], [0, 1], [1], [0, 0, 0, 1, 1, 1], [], []>, precision = #tpu.contract_precision<fp32>} : vector<8x8x16xf32>, vector<16x32xf32>, vector<8x8x32xf32> -> vector<8x8x32xf32>
    %35 = arith.addf %29, %34 : vector<8x8x32xf32>
    %36 = vector.extract_strided_slice %4 {offsets = [1, 0, 0, 0], sizes = [1, 8, 16, 8], strides = [1, 1, 1, 1]} : vector<2x8x16x8xf32> to vector<1x8x16x8xf32>
    %37 = vector.shape_cast %36 : vector<1x8x16x8xf32> to vector<8x16x8xf32>
    %cst_25 = arith.constant dense<0.000000e+00> : vector<8x16x32xf32>
    %38 = tpu.matmul %37, %35, %cst_25 {dimension_numbers = #tpu.dot_dimension_numbers<[2], [1], [1], [2], [0, 0, 0, 1, 1, 2], [0], [0]>, precision = #tpu.contract_precision<fp32>} : vector<8x16x8xf32>, vector<8x8x32xf32>, vector<8x16x32xf32> -> vector<8x16x32xf32>
    %39 = arith.addf %22, %38 : vector<8x16x32xf32>
    %c0_26 = arith.constant 0 : index
    %c0_27 = arith.constant 0 : index
    %c0_28 = arith.constant 0 : index
    %c0_29 = arith.constant 0 : index
    %40 = vector.load %arg5[%c0_26, %c0_27, %c0_28, %c0_29] : memref<1x8x16x32xf32, #tpu.memory_space<vmem>>, vector<1x8x16x32xf32>
    %41 = vector.shape_cast %40 : vector<1x8x16x32xf32> to vector<8x16x32xf32>
    %42 = vector.shape_cast %39 : vector<8x16x32xf32> to vector<1x8x16x32xf32>
    tpu.vector_store %arg5[%c0_26, %c0_27, %c0_28, %c0_29], %42 {strides = array<i32>} : memref<1x8x16x32xf32, #tpu.memory_space<vmem>>, vector<1x8x16x32xf32>,
    return
  }
  func.func @transform_0(%arg0: i32, %arg1: i32) -> (i32, i32, i32, i32) {
    %c0_i32 = arith.constant 0 : i32
    %c0_i32_0 = arith.constant 0 : i32
    %c0_i32_1 = arith.constant 0 : i32
    return %arg0, %c0_i32, %arg1, %c0_i32_0 : i32, i32, i32, i32
  }
  func.func @transform_1(%arg0: i32, %arg1: i32) -> (i32, i32, i32) {
    %c0_i32 = arith.constant 0 : i32
    %c0_i32_0 = arith.constant 0 : i32
    %c0_i32_1 = arith.constant 0 : i32
    %c0_i32_2 = arith.constant 0 : i32
    return %c0_i32, %c0_i32_0, %c0_i32_1 : i32, i32, i32
  }
  func.func @transform_2(%arg0: i32, %arg1: i32) -> (i32, i32, i32) {
    %c0_i32 = arith.constant 0 : i32
    %c0_i32_0 = arith.constant 0 : i32
    %c0_i32_1 = arith.constant 0 : i32
    %c0_i32_2 = arith.constant 0 : i32
    return %c0_i32, %c0_i32_0, %c0_i32_1 : i32, i32, i32
  }
  func.func @transform_3(%arg0: i32, %arg1: i32) -> (i32, i32, i32, i32) {
    %c0_i32 = arith.constant 0 : i32
    %c0_i32_0 = arith.constant 0 : i32
    %c0_i32_1 = arith.constant 0 : i32
    return %arg0, %c0_i32, %arg1, %c0_i32_0 : i32, i32, i32, i32
  }
}

</mosaic_0001>

<llo_original>
// kernel: tpu_custom_call.1
$region0: #{tpu_custom_call.1}
  #allocation0 [shape = 'u32[]', space=smem, size = 0x4, offset = 0x4, fixed_abs, tag = 'smem constant byte address 0x4 - core index']
  #allocation1 [shape = 'u32[144,128]{1,0:T(1,128)}', space=vmem, size = 0x12000, scoped, tag = 'internal scratch']
  #allocation5 [shape = 's32[]', space=sflag, size = 0x4, offset = 0, fixed_abs, tag = 'sflag constant byte address 0x0 - dummy sync flag']
  %s0 = inlined_call_operand.vmem [shape: f32[2,32,16,16], index: 0, kind: input, shape index: {}]
  %s1 = inlined_call_operand.vmem [shape: f32[2,16,32], index: 1, kind: input, shape index: {}]
  %s2 = inlined_call_operand.vmem [shape: f32[2,16,8], index: 2, kind: input, shape index: {}]
  %s3 = inlined_call_operand.hbm [shape: f32[2,8,32,32], index: 3, kind: output, shape index: {}]
  %s4 = sld [smem:[#allocation0]]
  $region83: #{tpu_custom_call.1} parent=0
    _
  %s6 = ssub.s32 1, %s4
  %s7 = scalar_select 0, %s6, %s4
  $region1: #{tpu_custom_call.1} parent=0
    #allocation2 [shape = 'u8[262144]{0}', space=vmem, size = 0x40000, scoped, tag = 'input window, operand 0']
    #allocation3 [shape = 'u8[131072]{0}', space=vmem, size = 0x20000, scoped, tag = 'output window, operand 0']
    #allocation4 [shape = 's32[2]{0}', space=sflag, size = 0x8, scoped, tag = 'scoped memory for tpu_custom_call.1']
    %8 = vsyncpa [#allocation4], 0
    %s9 = scalar_lea.sflag [#allocation4], 1
    %10 = vsyncpa %s9, 0
    loop: start=0, step=1, limit=6
    $region2: #{tpu_custom_call.1} parent=1 // loop_pre_header
      _
    $region3: #{tpu_custom_call.1} parent=1 // loop_header
      %s12 = sphi 0, %s16
      %p13 = scmp.ge.s32.totalorder %s12, 6
      %s19 = sphi 0, %s31
      %s20 = sphi 0, %s27
      %s21 = sphi 0, %s19
      %s22 = sphi 0, %s20
      %s23 = sphi 0, %s21
      %s24 = sphi 0, %s22
      %s36 = sphi 0, %s38
      %s39 = sphi 0, %s36
      %s40 = sphi 0, %s39
      %s56 = sphi 0, %s40
      %s60 = sphi 0, %s60
      %s62 = sphi 0, %s60
      %s63 = sphi 0, %s62
      %s77 = sphi 0, %s63
      %s81 = sphi 0, %s81
      %s83 = sphi 0, %s81
      %s84 = sphi 0, %s83
      %s98 = sphi 0, %s84
      %s106 = sphi 0, %s108
      %s109 = sphi 0, %s106
      %s110 = sphi 0, %s109
      %s126 = sphi 0, %s110
    $region4: #{tpu_custom_call.1} parent=1 // loop_header_branch
      %15 = sbr.rel (%p13) target = $region8
    $region5: #{tpu_custom_call.1} parent=1 // loop_body
      %s17 = ssub.s32 %s12, 1
      %s18 = ssub.s32 %s12, 2
      %s25 = sadd.s32 1, %s20
      %p26 = scmp.ge.s32.totalorder %s25, 2
      %s27 = scalar_select %p26, 0, %s25
      %s28 = sadd.s32 1, %s19
      %s29 = scalar_select %p26, %s28, %s19
      %p30 = scmp.ge.s32.totalorder %s29, 2
      %s31 = scalar_select %p30, 0, %s29
      %s32 = ssub.s32 %s19, %s31
      %s33 = ssub.s32 %s20, %s27
      %s34 = sor.u32 %s32, %s33
      %p35 = scmp.eq.s32.totalorder %s34, 0
      %s37 = sadd.s32 %s36, 1
      %s38 = scalar_select %p35, %s36, %s37
      %p41 = pneg %p35
      %p42 = scmp.eq.s32.totalorder %s12, 3
      %p43 = por %p41, %p42
      %p44 = scmp.ne.s32.totalorder %s36, %s39
      %p45 = scmp.eq.s32.totalorder %s12, 0
      %p46 = por %p44, %p45
      %p47 = scmp.ne.s32.totalorder %s36, %s39
      %p48 = scmp.eq.s32.totalorder %s17, 3
      %p49 = por %p47, %p48
      %p50 = scmp.ne.s32.totalorder %s39, %s40
      %p51 = scmp.eq.s32.totalorder %s17, 0
      %p52 = por %p50, %p51
      %p53 = scmp.ne.s32.totalorder %s39, %s40
      %p54 = scmp.eq.s32.totalorder %s18, 3
      %p55 = por %p53, %p54
      %p57 = scmp.ne.s32.totalorder %s40, %s56
      %p58 = scmp.eq.s32.totalorder %s18, 0
      %p59 = por %p57, %p58
      %s61 = sadd.s32 %s60, 1
      %p64 = scmp.eq.s32.totalorder %s12, 3
      %p65 = scmp.ne.s32.totalorder %s60, %s62
      %p66 = scmp.eq.s32.totalorder %s12, 0
      %p67 = por %p65, %p66
      %p68 = scmp.ne.s32.totalorder %s60, %s62
      %p69 = scmp.eq.s32.totalorder %s17, 3
      %p70 = por %p68, %p69
      %p71 = scmp.ne.s32.totalorder %s62, %s63
      %p72 = scmp.eq.s32.totalorder %s17, 0
      %p73 = por %p71, %p72
      %p74 = scmp.ne.s32.totalorder %s62, %s63
      %p75 = scmp.eq.s32.totalorder %s18, 3
      %p76 = por %p74, %p75
      %p78 = scmp.ne.s32.totalorder %s63, %s77
      %p79 = scmp.eq.s32.totalorder %s18, 0
      %p80 = por %p78, %p79
      %s82 = sadd.s32 %s81, 1
      %p85 = scmp.eq.s32.totalorder %s12, 3
      %p86 = scmp.ne.s32.totalorder %s81, %s83
      %p87 = scmp.eq.s32.totalorder %s12, 0
      %p88 = por %p86, %p87
      %p89 = scmp.ne.s32.totalorder %s81, %s83
      %p90 = scmp.eq.s32.totalorder %s17, 3
      %p91 = por %p89, %p90
      %p92 = scmp.ne.s32.totalorder %s83, %s84
      %p93 = scmp.eq.s32.totalorder %s17, 0
      %p94 = por %p92, %p93
      %p95 = scmp.ne.s32.totalorder %s83, %s84
      %p96 = scmp.eq.s32.totalorder %s18, 3
      %p97 = por %p95, %p96
      %p99 = scmp.ne.s32.totalorder %s84, %s98
      %p100 = scmp.eq.s32.totalorder %s18, 0
      %p101 = por %p99, %p100
      %s102 = ssub.s32 %s19, %s31
      %s103 = ssub.s32 %s20, %s27
      %s104 = sor.u32 %s102, %s103
      %p105 = scmp.eq.s32.totalorder %s104, 0
      %s107 = sadd.s32 %s106, 1
      %s108 = scalar_select %p105, %s106, %s107
      %p111 = pneg %p105
      %p112 = scmp.eq.s32.totalorder %s12, 3
      %p113 = por %p111, %p112
      %p114 = scmp.ne.s32.totalorder %s106, %s109
      %p115 = scmp.eq.s32.totalorder %s12, 0
      %p116 = por %p114, %p115
      %p117 = scmp.ne.s32.totalorder %s106, %s109
      %p118 = scmp.eq.s32.totalorder %s17, 3
      %p119 = por %p117, %p118
      %p120 = scmp.ne.s32.totalorder %s109, %s110
      %p121 = scmp.eq.s32.totalorder %s17, 0
      %p122 = por %p120, %p121
      %p123 = scmp.ne.s32.totalorder %s109, %s110
      %p124 = scmp.eq.s32.totalorder %s18, 3
      %p125 = por %p123, %p124
      %p127 = scmp.ne.s32.totalorder %s110, %s126
      %p128 = scmp.eq.s32.totalorder %s18, 0
      %p129 = por %p127, %p128
      %p130 = scmp.le.s32.totalorder 1, %s12
      %p131 = scmp.lt.s32.totalorder %s12, 5
      %p132 = pnand %p130, %p131
      %p133 = pneg %p132
      // Predicated region
      $region9: #{tpu_custom_call.1} parent=5 // pred_check
        _
      $region10: #{tpu_custom_call.1} parent=5 // pred_check_branch
        %135 = sbr.rel (%p132) target = $region12
      $region11: #{tpu_custom_call.1} parent=5 // pred_region
        %s136 = ssub.s32 %s12, 1
        // Predicated region
        $region13: #{tpu_custom_call.1} parent=11 // pred_check
          %p137 = pneg %p73
        $region14: #{tpu_custom_call.1} parent=11 // pred_check_branch
          %139 = sbr.rel (%p137) target = $region16
        $region15: #{tpu_custom_call.1} parent=11 // pred_region
          _
        $region16: #{tpu_custom_call.1} parent=11 // pred_fallthru
          _
        // Predicated region
        $region17: #{tpu_custom_call.1} parent=11 // pred_check
          %p140 = pneg %p94
        $region18: #{tpu_custom_call.1} parent=11 // pred_check_branch
          %142 = sbr.rel (%p140) target = $region20
        $region19: #{tpu_custom_call.1} parent=11 // pred_region
          _
        $region20: #{tpu_custom_call.1} parent=11 // pred_fallthru
          _
      $region12: #{tpu_custom_call.1} parent=5 // pred_fallthru
        _
      %p143 = scmp.lt.s32.totalorder %s12, 4
      // Predicated region
      $region21: #{tpu_custom_call.1} parent=5 // pred_check
        %p144 = pneg %p143
      $region22: #{tpu_custom_call.1} parent=5 // pred_check_branch
        %146 = sbr.rel (%p144) target = $region24
      $region23: #{tpu_custom_call.1} parent=5 // pred_region
        // Predicated region
        $region25: #{tpu_custom_call.1} parent=23 // pred_check
          %p147 = pneg %p46
        $region26: #{tpu_custom_call.1} parent=23 // pred_check_branch
          %149 = sbr.rel (%p147) target = $region28
        $region27: #{tpu_custom_call.1} parent=23 // pred_region
          %s150 = sand.u32 %s36, 1
          %s151 = sand.u32 %s36, 1
          %s152 = smul.addr %s151, 256
          %s153 = scalar_lea.vmem [#allocation2], %s152
          %s154 = smul.addr %s19, 64
          %s155 = sadd.s32 %s20, %s154
          %s156 = smul.addr %s155, 8
          %s157 = scalar_lea.vmem %s0, %s156
          // Predicated region
          $region29: #{tpu_custom_call.1} parent=27 // pred_check
            _
          $region30: #{tpu_custom_call.1} parent=27 // pred_check_branch
            %159 = sbr.rel (0) target = $region32
          $region31: #{tpu_custom_call.1} parent=27 // pred_region
            // Predicated region
            $region33: #{tpu_custom_call.1} parent=31 // pred_check
              _
            $region34: #{tpu_custom_call.1} parent=31 // pred_check_branch
              %161 = sbr.rel (0) target = $region36
            $region35: #{tpu_custom_call.1} parent=31 // pred_region
              // Predicated region
              $region48: #{tpu_custom_call.1} parent=35 // pred_check
                _
              $region49: #{tpu_custom_call.1} parent=35 // pred_check_branch
                %238 = sbr.rel (0) target = $region51
              $region50: #{tpu_custom_call.1} parent=35 // pred_region
                loop: start=0, step=1, limit=1
                $region52: #{tpu_custom_call.1} parent=50 // loop_pre_header
                  _
                $region53: #{tpu_custom_call.1} parent=50 // loop_header
                  %s240 = sphi 0, %s244
                  %p241 = scmp.ge.s32.totalorder %s240, 1
                  %s245 = sphi %s157, %s157
                  %s246 = sphi %s153, %s153
                $region54: #{tpu_custom_call.1} parent=50 // loop_header_branch
                  %243 = sbr.rel (%p241) target = $region58
                $region55: #{tpu_custom_call.1} parent=50 // loop_body
                  %v247 = vld [vmem:[%s245] sm:$0xff]
                  %248 = vst [vmem:[%s246] sm:$0xff] %v247
                  %v249 = vld [vmem:[%s245 + $0x10] sm:$0xff]
                  %250 = vst [vmem:[%s246 + $0x8] sm:$0xff] %v249
                  %v251 = vld [vmem:[%s245 + $0x20] sm:$0xff]
                  %252 = vst [vmem:[%s246 + $0x10] sm:$0xff] %v251
                  %v253 = vld [vmem:[%s245 + $0x30] sm:$0xff]
                  %254 = vst [vmem:[%s246 + $0x18] sm:$0xff] %v253
                  %v255 = vld [vmem:[%s245 + $0x40] sm:$0xff]
                  %256 = vst [vmem:[%s246 + $0x20] sm:$0xff] %v255
                  %v257 = vld [vmem:[%s245 + $0x50] sm:$0xff]
                  %258 = vst [vmem:[%s246 + $0x28] sm:$0xff] %v257
                  %v259 = vld [vmem:[%s245 + $0x60] sm:$0xff]
                  %260 = vst [vmem:[%s246 + $0x30] sm:$0xff] %v259
                  %v261 = vld [vmem:[%s245 + $0x70] sm:$0xff]
                  %262 = vst [vmem:[%s246 + $0x38] sm:$0xff] %v261
                  %v263 = vld [vmem:[%s245 + $0x80] sm:$0xff]
                  %264 = vst [vmem:[%s246 + $0x40] sm:$0xff] %v263
                  %v265 = vld [vmem:[%s245 + $0x90] sm:$0xff]
                  %266 = vst [vmem:[%s246 + $0x48] sm:$0xff] %v265
                  %v267 = vld [vmem:[%s245 + $0xa0] sm:$0xff]
                  %268 = vst [vmem:[%s246 + $0x50] sm:$0xff] %v267
                  %v269 = vld [vmem:[%s245 + $0xb0] sm:$0xff]
                  %270 = vst [vmem:[%s246 + $0x58] sm:$0xff] %v269
                  %v271 = vld [vmem:[%s245 + $0xc0] sm:$0xff]
                  %272 = vst [vmem:[%s246 + $0x60] sm:$0xff] %v271
                  %v273 = vld [vmem:[%s245 + $0xd0] sm:$0xff]
                  %274 = vst [vmem:[%s246 + $0x68] sm:$0xff] %v273
                  %v275 = vld [vmem:[%s245 + $0xe0] sm:$0xff]
                  %276 = vst [vmem:[%s246 + $0x70] sm:$0xff] %v275
                  %v277 = vld [vmem:[%s245 + $0xf0] sm:$0xff]
                  %278 = vst [vmem:[%s246 + $0x78] sm:$0xff] %v277
                  %v279 = vld [vmem:[%s245 + $0x100] sm:$0xff]
                  %280 = vst [vmem:[%s246 + $0x80] sm:$0xff] %v279
                  %v281 = vld [vmem:[%s245 + $0x110] sm:$0xff]
                  %282 = vst [vmem:[%s246 + $0x88] sm:$0xff] %v281
                  %v283 = vld [vmem:[%s245 + $0x120] sm:$0xff]
                  %284 = vst [vmem:[%s246 + $0x90] sm:$0xff] %v283
                  %v285 = vld [vmem:[%s245 + $0x130] sm:$0xff]
                  %286 = vst [vmem:[%s246 + $0x98] sm:$0xff] %v285
                  %v287 = vld [vmem:[%s245 + $0x140] sm:$0xff]
                  %288 = vst [vmem:[%s246 + $0xa0] sm:$0xff] %v287
                  %v289 = vld [vmem:[%s245 + $0x150] sm:$0xff]
                  %290 = vst [vmem:[%s246 + $0xa8] sm:$0xff] %v289
                  %v291 = vld [vmem:[%s245 + $0x160] sm:$0xff]
                  %292 = vst [vmem:[%s246 + $0xb0] sm:$0xff] %v291
                  %v293 = vld [vmem:[%s245 + $0x170] sm:$0xff]
                  %294 = vst [vmem:[%s246 + $0xb8] sm:$0xff] %v293
                  %v295 = vld [vmem:[%s245 + $0x180] sm:$0xff]
                  %296 = vst [vmem:[%s246 + $0xc0] sm:$0xff] %v295
                  %v297 = vld [vmem:[%s245 + $0x190] sm:$0xff]
                  %298 = vst [vmem:[%s246 + $0xc8] sm:$0xff] %v297
                  %v299 = vld [vmem:[%s245 + $0x1a0] sm:$0xff]
                  %300 = vst [vmem:[%s246 + $0xd0] sm:$0xff] %v299
                  %v301 = vld [vmem:[%s245 + $0x1b0] sm:$0xff]
                  %302 = vst [vmem:[%s246 + $0xd8] sm:$0xff] %v301
                  %v303 = vld [vmem:[%s245 + $0x1c0] sm:$0xff]
                  %304 = vst [vmem:[%s246 + $0xe0] sm:$0xff] %v303
                  %v305 = vld [vmem:[%s245 + $0x1d0] sm:$0xff]
                  %306 = vst [vmem:[%s246 + $0xe8] sm:$0xff] %v305
                  %v307 = vld [vmem:[%s245 + $0x1e0] sm:$0xff]
                  %308 = vst [vmem:[%s246 + $0xf0] sm:$0xff] %v307
                  %v309 = vld [vmem:[%s245 + $0x1f0] sm:$0xff]
                  %310 = vst [vmem:[%s246 + $0xf8] sm:$0xff] %v309
                $region56: #{tpu_custom_call.1} parent=50 // loop_footer
                  %s244 = sadd.s32 1, %s240
                $region57: #{tpu_custom_call.1} parent=50 // loop_footer_branch
                  %239 = sbr.rel target = $region53
                $region58: #{tpu_custom_call.1} parent=50 // loop_exit
                  _
              $region51: #{tpu_custom_call.1} parent=35 // pred_fallthru
                _
              // Predicated region
              $region59: #{tpu_custom_call.1} parent=35 // pred_check
                _
              $region60: #{tpu_custom_call.1} parent=35 // pred_check_branch
                %312 = sbr.rel target = $region62
              $region61: #{tpu_custom_call.1} parent=35 // pred_region
                _
              $region62: #{tpu_custom_call.1} parent=35 // pred_fallthru
                _
            $region36: #{tpu_custom_call.1} parent=31 // pred_fallthru
              _
            // Predicated region
            $region37: #{tpu_custom_call.1} parent=31 // pred_check
              _
            $region38: #{tpu_custom_call.1} parent=31 // pred_check_branch
              %163 = sbr.rel target = $region40
            $region39: #{tpu_custom_call.1} parent=31 // pred_region
              loop: start=0, step=1, limit=1
              $region41: #{tpu_custom_call.1} parent=39 // loop_pre_header
                _
              $region42: #{tpu_custom_call.1} parent=39 // loop_header
                %s166 = sphi 0, %s170
                %p167 = scmp.ge.s32.totalorder %s166, 1
                %s171 = sphi %s157, %s157
                %s172 = sphi %s153, %s153
              $region43: #{tpu_custom_call.1} parent=39 // loop_header_branch
                %169 = sbr.rel (%p167) target = $region47
              $region44: #{tpu_custom_call.1} parent=39 // loop_body
                %v173 = vld [vmem:[%s171] sm:$0xff]
                %174 = vst [vmem:[%s172] sm:$0xff] %v173
                %v175 = vld [vmem:[%s171 + $0x10] sm:$0xff]
                %176 = vst [vmem:[%s172 + $0x8] sm:$0xff] %v175
                %v177 = vld [vmem:[%s171 + $0x20] sm:$0xff]
                %178 = vst [vmem:[%s172 + $0x10] sm:$0xff] %v177
                %v179 = vld [vmem:[%s171 + $0x30] sm:$0xff]
                %180 = vst [vmem:[%s172 + $0x18] sm:$0xff] %v179
                %v181 = vld [vmem:[%s171 + $0x40] sm:$0xff]
                %182 = vst [vmem:[%s172 + $0x20] sm:$0xff] %v181
                %v183 = vld [vmem:[%s171 + $0x50] sm:$0xff]
                %184 = vst [vmem:[%s172 + $0x28] sm:$0xff] %v183
                %v185 = vld [vmem:[%s171 + $0x60] sm:$0xff]
                %186 = vst [vmem:[%s172 + $0x30] sm:$0xff] %v185
                %v187 = vld [vmem:[%s171 + $0x70] sm:$0xff]
                %188 = vst [vmem:[%s172 + $0x38] sm:$0xff] %v187
                %v189 = vld [vmem:[%s171 + $0x80] sm:$0xff]
                %190 = vst [vmem:[%s172 + $0x40] sm:$0xff] %v189
                %v191 = vld [vmem:[%s171 + $0x90] sm:$0xff]
                %192 = vst [vmem:[%s172 + $0x48] sm:$0xff] %v191
                %v193 = vld [vmem:[%s171 + $0xa0] sm:$0xff]
                %194 = vst [vmem:[%s172 + $0x50] sm:$0xff] %v193
                %v195 = vld [vmem:[%s171 + $0xb0] sm:$0xff]
                %196 = vst [vmem:[%s172 + $0x58] sm:$0xff] %v195
                %v197 = vld [vmem:[%s171 + $0xc0] sm:$0xff]
                %198 = vst [vmem:[%s172 + $0x60] sm:$0xff] %v197
                %v199 = vld [vmem:[%s171 + $0xd0] sm:$0xff]
                %200 = vst [vmem:[%s172 + $0x68] sm:$0xff] %v199
                %v201 = vld [vmem:[%s171 + $0xe0] sm:$0xff]
                %202 = vst [vmem:[%s172 + $0x70] sm:$0xff] %v201
                %v203 = vld [vmem:[%s171 + $0xf0] sm:$0xff]
                %204 = vst [vmem:[%s172 + $0x78] sm:$0xff] %v203
                %v205 = vld [vmem:[%s171 + $0x100] sm:$0xff]
                %206 = vst [vmem:[%s172 + $0x80] sm:$0xff] %v205
                %v207 = vld [vmem:[%s171 + $0x110] sm:$0xff]
                %208 = vst [vmem:[%s172 + $0x88] sm:$0xff] %v207
                %v209 = vld [vmem:[%s171 + $0x120] sm:$0xff]
                %210 = vst [vmem:[%s172 + $0x90] sm:$0xff] %v209
                %v211 = vld [vmem:[%s171 + $0x130] sm:$0xff]
                %212 = vst [vmem:[%s172 + $0x98] sm:$0xff] %v211
                %v213 = vld [vmem:[%s171 + $0x140] sm:$0xff]
                %214 = vst [vmem:[%s172 + $0xa0] sm:$0xff] %v213
                %v215 = vld [vmem:[%s171 + $0x150] sm:$0xff]
                %216 = vst [vmem:[%s172 + $0xa8] sm:$0xff] %v215
                %v217 = vld [vmem:[%s171 + $0x160] sm:$0xff]
                %218 = vst [vmem:[%s172 + $0xb0] sm:$0xff] %v217
                %v219 = vld [vmem:[%s171 + $0x170] sm:$0xff]
                %220 = vst [vmem:[%s172 + $0xb8] sm:$0xff] %v219
                %v221 = vld [vmem:[%s171 + $0x180] sm:$0xff]
                %222 = vst [vmem:[%s172 + $0xc0] sm:$0xff] %v221
                %v223 = vld [vmem:[%s171 + $0x190] sm:$0xff]
                %224 = vst [vmem:[%s172 + $0xc8] sm:$0xff] %v223
                %v225 = vld [vmem:[%s171 + $0x1a0] sm:$0xff]
                %226 = vst [vmem:[%s172 + $0xd0] sm:$0xff] %v225
                %v227 = vld [vmem:[%s171 + $0x1b0] sm:$0xff]
                %228 = vst [vmem:[%s172 + $0xd8] sm:$0xff] %v227
                %v229 = vld [vmem:[%s171 + $0x1c0] sm:$0xff]
                %230 = vst [vmem:[%s172 + $0xe0] sm:$0xff] %v229
                %v231 = vld [vmem:[%s171 + $0x1d0] sm:$0xff]
                %232 = vst [vmem:[%s172 + $0xe8] sm:$0xff] %v231
                %v233 = vld [vmem:[%s171 + $0x1e0] sm:$0xff]
                %234 = vst [vmem:[%s172 + $0xf0] sm:$0xff] %v233
                %v235 = vld [vmem:[%s171 + $0x1f0] sm:$0xff]
                %236 = vst [vmem:[%s172 + $0xf8] sm:$0xff] %v235
              $region45: #{tpu_custom_call.1} parent=39 // loop_footer
                %s170 = sadd.s32 1, %s166
              $region46: #{tpu_custom_call.1} parent=39 // loop_footer_branch
                %165 = sbr.rel target = $region42
              $region47: #{tpu_custom_call.1} parent=39 // loop_exit
                _
            $region40: #{tpu_custom_call.1} parent=31 // pred_fallthru
              _
          $region32: #{tpu_custom_call.1} parent=27 // pred_fallthru
            _
          %313 = vnop
        $region28: #{tpu_custom_call.1} parent=23 // pred_fallthru
          _
      $region24: #{tpu_custom_call.1} parent=5 // pred_fallthru
        _
      %p314 = scmp.le.s32.totalorder 1, %s12
      %p315 = scmp.lt.s32.totalorder %s12, 5
      %p316 = pnand %p314, %p315
      %p317 = pneg %p316
      // Predicated region
      $region63: #{tpu_custom_call.1} parent=5 // pred_check
        _
      $region64: #{tpu_custom_call.1} parent=5 // pred_check_branch
        %319 = sbr.rel (%p316) target = $region66
      $region65: #{tpu_custom_call.1} parent=5 // pred_region
        %s320 = ssub.s32 %s12, 1
        %s321 = sand.u32 %s39, 1
        %s322 = sand.u32 %s39, 1
        %s323 = smul.addr %s322, 256
        %s324 = scalar_lea.vmem [#allocation2], %s323
        // Predicated region
        $region67: #{tpu_custom_call.1} parent=65 // pred_check
          %p325 = pneg %p52
        $region68: #{tpu_custom_call.1} parent=65 // pred_check_branch
          %327 = sbr.rel (%p325) target = $region70
        $region69: #{tpu_custom_call.1} parent=65 // pred_region
          _
        $region70: #{tpu_custom_call.1} parent=65 // pred_fallthru
          _
        %s328 = sand.u32 %s39, 1
        %s329 = sand.u32 %s39, 1
        %s330 = smul.addr %s329, 256
        %s331 = scalar_lea.vmem [#allocation2], %s330
        %p332 = pneg %p52
        %p333 = pneg %p49
        %p334 = pneg %p73
        %p335 = pneg %p70
        %p336 = pneg %p94
        %p337 = pneg %p91
        %p338 = pneg %p122
        %p339 = pneg %p119
        %s340 = sand.u32 %s109, 1
        %s341 = scalar_lea.sflag [#allocation4], %s340
        %s342 = sand.u32 %s109, 1
        %s343 = smul.addr %s342, 128
        %s344 = scalar_lea.vmem [#allocation3], %s343
        %s345 = smul.u32 2, %s22
        %v346 = vld [vmem:[%s1] sm:$0xff]
        %v347 = vld [vmem:[%s1 + $0x8] sm:$0xff]
        %v348 = vld [vmem:[%s1 + $0x10] sm:$0xff]
        %v349 = vld [vmem:[%s1 + $0x18] sm:$0xff]
        %v350 = vld [vmem:[%s2] sm:$0xff]
        %v351 = vld [vmem:[%s2 + $0x8] sm:$0xff]
        %v352 = vld [vmem:[%s2 + $0x10] sm:$0xff]
        %v353 = vld [vmem:[%s2 + $0x18] sm:$0xff]
        %v354 = vld [vmem:[%s324] sm:$0xff]
        %v355 = vld [vmem:[%s324 + $0x8] sm:$0xff]
        %v356 = vld [vmem:[%s324 + $0x10] sm:$0xff]
        %v357 = vld [vmem:[%s324 + $0x18] sm:$0xff]
        %v358 = vld [vmem:[%s324 + $0x20] sm:$0xff]
        %v359 = vld [vmem:[%s324 + $0x28] sm:$0xff]
        %v360 = vld [vmem:[%s324 + $0x30] sm:$0xff]
        %v361 = vld [vmem:[%s324 + $0x38] sm:$0xff]
        %s362 = scalar_lea.vmem %s324, 64 [#allocation2]
        %v363 = vld [vmem:[%s362] sm:$0xff]
        %v364 = vld [vmem:[%s362 + $0x8] sm:$0xff]
        %v365 = vld [vmem:[%s362 + $0x10] sm:$0xff]
        %v366 = vld [vmem:[%s362 + $0x18] sm:$0xff]
        %v367 = vld [vmem:[%s362 + $0x20] sm:$0xff]
        %v368 = vld [vmem:[%s362 + $0x28] sm:$0xff]
        %v369 = vld [vmem:[%s362 + $0x30] sm:$0xff]
        %v370 = vld [vmem:[%s362 + $0x38] sm:$0xff]
        %vm371 = vcmask 130048
        %v373 = vsel %vm371, %v363, 0
        %v376 = vsel %vm371, %v364, 0
        %v379 = vsel %vm371, %v365, 0
        %v382 = vsel %vm371, %v366, 0
        %v385 = vsel %vm371, %v367, 0
        %v388 = vsel %vm371, %v368, 0
        %v391 = vsel %vm371, %v369, 0
        %v394 = vsel %vm371, %v370, 0
        %396 = vmatprep.subr.mxu0 0.0
        %v397 = vand.u32 %v348, 4294901760
        %398 = vmatpush1.msra.mxu0 %v397
        %399 = vmatprep.subr.mxu0 0.0
        %v400 = vand.u32 %v349, 4294901760
        %401 = vmatpush1.msra.mxu0 %v400
        %402 = vmatprep.subr.mxu0 0.0
        %403 = vmatpush1.msra.mxu0 0.0
        %404 = vmatprep.subr.mxu0 0.0
        %405 = vmatpush1.msra.mxu0 0.0
        %406 = vmatprep.subr.mxu0 0.0
        %407 = vmatpush1.msra.mxu0 0.0
        %408 = vmatprep.subr.mxu0 0.0
        %409 = vmatpush1.msra.mxu0 0.0
        %410 = vmatprep.subr.mxu0 0.0
        %411 = vmatpush1.msra.mxu0 0.0
        %412 = vmatprep.subr.mxu0 0.0
        %413 = vmatpush1.msra.mxu0 0.0
        %414 = vmatprep.subr.mxu0 0.0
        %415 = vmatpush1.msra.mxu0 0.0
        %416 = vmatprep.subr.mxu0 0.0
        %417 = vmatpush1.msra.mxu0 0.0
        %418 = vmatprep.subr.mxu0 0.0
        %419 = vmatpush1.msra.mxu0 0.0
        %420 = vmatprep.subr.mxu0 0.0
        %421 = vmatpush1.msra.mxu0 0.0
        %422 = vmatprep.subr.mxu0 0.0
        %423 = vmatpush1.msra.mxu0 0.0
        %424 = vmatprep.subr.mxu0 0.0
        %425 = vmatpush1.msra.mxu0 0.0
        %426 = vmatprep.subr.mxu0 0.0
        %427 = vmatpush1.msra.mxu0 0.0
        %428 = vmatprep.subr.mxu0 0.0
        %429 = vmatpush1.msra.mxu0 0.0
        %430 = vmatprep.subr.mxu0 0.0
        %431 = vmatpush1.msra.mxu0 0.0
        %432 = vmatprep.subr.mxu0 0.0
        %433 = vmatpush1.msra.mxu0 0.0
        %434 = vmatprep.subr.mxu0 0.0
        %435 = vmatpush1.msra.mxu0 0.0
        %436 = vmatprep.subr.mxu0 0.0
        %437 = vmatpush1.msra.mxu0 0.0
        %438 = vmatprep.subr.mxu0 0.0
        %439 = vmatpush1.msra.mxu0 0.0
        %440 = vmatprep.subr.mxu0 0.0
        %441 = vmatpush1.msra.mxu0 0.0
        %442 = vmatprep.subr.mxu0 0.0
        %443 = vmatpush1.msra.mxu0 0.0
        %444 = vmatprep.subr.mxu0 0.0
        %445 = vmatpush1.msra.mxu0 0.0
        %446 = vmatprep.subr.mxu0 0.0
        %447 = vmatpush1.msra.mxu0 0.0
        %448 = vmatprep.subr.mxu0 0.0
        %449 = vmatpush1.msra.mxu0 0.0
        %450 = vmatprep.subr.mxu0 0.0
        %451 = vmatpush1.msra.mxu0 0.0
        %452 = vmatprep.subr.mxu0 0.0
        %453 = vmatpush1.msra.mxu0 0.0
        %454 = vmatprep.subr.mxu0 0.0
        %455 = vmatpush1.msra.mxu0 0.0
        %456 = vmatprep.subr.mxu0 0.0
        %457 = vmatpush1.msra.mxu0 0.0
        %458 = vmatprep.subr.mxu0 0.0
        %459 = vmatpush1.msra.mxu0 0.0
        %460 = vmatprep.subr.mxu0 0.0
        %461 = vmatpush1.msra.mxu0 0.0
        %462 = vmatprep.mubr.f32.mxu0 0.0
        %v463 = vand.u32 %v373, 4294901760
        %v464 = vsub.f32 %v373, %v463
        %v465 = vand.u32 %v464, 4294901760
        %v466 = vsub.f32 %v464, %v465
        %v467 = vand.u32 %v466, 4294901760
        %468 = vmatmul.mubr.f32.gmra.mrb[0].mxu0 %v467
        %v469 = vpop.f32.mrb[0].mxu0
        %v470 = vadd.f32 0.0, %v469
        %v471 = vpop.f32.mrb[0].mxu0
        %472 = vmatprep.mubr.f32.mxu0 0.0
        %v473 = vand.u32 %v376, 4294901760
        %v474 = vsub.f32 %v376, %v473
        %v475 = vand.u32 %v474, 4294901760
        %v476 = vsub.f32 %v474, %v475
        %v477 = vand.u32 %v476, 4294901760
        %478 = vmatmul.mubr.f32.gmra.mrb[0].mxu0 %v477
        %v479 = vpop.f32.mrb[0].mxu0
        %v480 = vadd.f32 0.0, %v479
        %v481 = vpop.f32.mrb[0].mxu0
        %482 = vmatprep.mubr.f32.mxu0 0.0
        %v483 = vand.u32 %v379, 4294901760
        %v484 = vsub.f32 %v379, %v483
        %v485 = vand.u32 %v484, 4294901760
        %v486 = vsub.f32 %v484, %v485
        %v487 = vand.u32 %v486, 4294901760
        %488 = vmatmul.mubr.f32.gmra.mrb[0].mxu0 %v487
        %v489 = vpop.f32.mrb[0].mxu0
        %v490 = vadd.f32 0.0, %v489
        %v491 = vpop.f32.mrb[0].mxu0
        %492 = vmatprep.mubr.f32.mxu0 0.0
        %v493 = vand.u32 %v382, 4294901760
        %v494 = vsub.f32 %v382, %v493
        %v495 = vand.u32 %v494, 4294901760
        %v496 = vsub.f32 %v494, %v495
        %v497 = vand.u32 %v496, 4294901760
        %498 = vmatmul.mubr.f32.gmra.mrb[0].mxu0 %v497
        %v499 = vpop.f32.mrb[0].mxu0
        %v500 = vadd.f32 0.0, %v499
        %v501 = vpop.f32.mrb[0].mxu0
        %502 = vmatprep.mubr.f32.mxu0 0.0
        %v503 = vand.u32 %v385, 4294901760
        %v504 = vsub.f32 %v385, %v503
        %v505 = vand.u32 %v504, 4294901760
        %v506 = vsub.f32 %v504, %v505
        %v507 = vand.u32 %v506, 4294901760
        %508 = vmatmul.mubr.f32.gmra.mrb[0].mxu0 %v507
        %v509 = vpop.f32.mrb[0].mxu0
        %v510 = vadd.f32 0.0, %v509
        %v511 = vpop.f32.mrb[0].mxu0
        %512 = vmatprep.mubr.f32.mxu0 0.0
        %v513 = vand.u32 %v388, 4294901760
        %v514 = vsub.f32 %v388, %v513
        %v515 = vand.u32 %v514, 4294901760
        %v516 = vsub.f32 %v514, %v515
        %v517 = vand.u32 %v516, 4294901760
        %518 = vmatmul.mubr.f32.gmra.mrb[0].mxu0 %v517
        %v519 = vpop.f32.mrb[0].mxu0
        %v520 = vadd.f32 0.0, %v519
        %v521 = vpop.f32.mrb[0].mxu0
        %522 = vmatprep.mubr.f32.mxu0 0.0
        %v523 = vand.u32 %v391, 4294901760
        %v524 = vsub.f32 %v391, %v523
        %v525 = vand.u32 %v524, 4294901760
        %v526 = vsub.f32 %v524, %v525
        %v527 = vand.u32 %v526, 4294901760
        %528 = vmatmul.mubr.f32.gmra.mrb[0].mxu0 %v527
        %v529 = vpop.f32.mrb[0].mxu0
        %v530 = vadd.f32 0.0, %v529
        %v531 = vpop.f32.mrb[0].mxu0
        %532 = vmatprep.mubr.f32.mxu0 0.0
        %v533 = vand.u32 %v394, 4294901760
        %v534 = vsub.f32 %v394, %v533
        %v535 = vand.u32 %v534, 4294901760
        %v536 = vsub.f32 %v534, %v535
        %v537 = vand.u32 %v536, 4294901760
        %538 = vmatmul.mubr.f32.gmra.mrb[0].mxu0 %v537
        %v539 = vpop.f32.mrb[0].mxu0
        %v540 = vadd.f32 0.0, %v539
        %v541 = vpop.f32.mrb[0].mxu0
        %542 = vdwg.mxu0
        %543 = vmatprep.subr.mxu0 0.0
        %v544 = vand.u32 %v348, 4294901760
        %v545 = vsub.f32 %v348, %v544
        %v546 = vand.u32 %v545, 4294901760
        %v547 = vsub.f32 %v545, %v546
        %v548 = vand.u32 %v547, 4294901760
        %549 = vmatpush1.msra.mxu0 %v548
        %550 = vmatprep.subr.mxu0 0.0
        %v551 = vand.u32 %v349, 4294901760
        %v552 = vsub.f32 %v349, %v551
        %v553 = vand.u32 %v552, 4294901760
        %v554 = vsub.f32 %v552, %v553
        %v555 = vand.u32 %v554, 4294901760
        %556 = vmatpush1.msra.mxu0 %v555
        %557 = vmatprep.subr.mxu0 0.0
        %558 = vmatpush1.msra.mxu0 0.0
        %559 = vmatprep.subr.mxu0 0.0
        %560 = vmatpush1.msra.mxu0 0.0
        %561 = vmatprep.subr.mxu0 0.0
        %562 = vmatpush1.msra.mxu0 0.0
        %563 = vmatprep.subr.mxu0 0.0
        %564 = vmatpush1.msra.mxu0 0.0
        %565 = vmatprep.subr.mxu0 0.0
        %566 = vmatpush1.msra.mxu0 0.0
        %567 = vmatprep.subr.mxu0 0.0
        %568 = vmatpush1.msra.mxu0 0.0
        %569 = vmatprep.subr.mxu0 0.0
        %570 = vmatpush1.msra.mxu0 0.0
        %571 = vmatprep.subr.mxu0 0.0
        %572 = vmatpush1.msra.mxu0 0.0
        %573 = vmatprep.subr.mxu0 0.0
        %574 = vmatpush1.msra.mxu0 0.0
        %575 = vmatprep.subr.mxu0 0.0
        %576 = vmatpush1.msra.mxu0 0.0
        %577 = vmatprep.subr.mxu0 0.0
        %578 = vmatpush1.msra.mxu0 0.0
        %579 = vmatprep.subr.mxu0 0.0
        %580 = vmatpush1.msra.mxu0 0.0
        %581 = vmatprep.subr.mxu0 0.0
        %582 = vmatpush1.msra.mxu0 0.0
        %583 = vmatprep.subr.mxu0 0.0
        %584 = vmatpush1.msra.mxu0 0.0
        %585 = vmatprep.subr.mxu0 0.0
        %586 = vmatpush1.msra.mxu0 0.0
        %587 = vmatprep.subr.mxu0 0.0
        %588 = vmatpush1.msra.mxu0 0.0
        %589 = vmatprep.subr.mxu0 0.0
        %590 = vmatpush1.msra.mxu0 0.0
        %591 = vmatprep.subr.mxu0 0.0
        %592 = vmatpush1.msra.mxu0 0.0
        %593 = vmatprep.subr.mxu0 0.0
        %594 = vmatpush1.msra.mxu0 0.0
        %595 = vmatprep.subr.mxu0 0.0
        %596 = vmatpush1.msra.mxu0 0.0
        %597 = vmatprep.subr.mxu0 0.0
        %598 = vmatpush1.msra.mxu0 0.0
        %599 = vmatprep.subr.mxu0 0.0
        %600 = vmatpush1.msra.mxu0 0.0
        %601 = vmatprep.subr.mxu0 0.0
        %602 = vmatpush1.msra.mxu0 0.0
        %603 = vmatprep.subr.mxu0 0.0
        %604 = vmatpush1.msra.mxu0 0.0
        %605 = vmatprep.subr.mxu0 0.0
        %606 = vmatpush1.msra.mxu0 0.0
        %607 = vmatprep.subr.mxu0 0.0
        %608 = vmatpush1.msra.mxu0 0.0
        %609 = vmatprep.subr.mxu0 0.0
        %610 = vmatpush1.msra.mxu0 0.0
        %611 = vmatprep.subr.mxu0 0.0
        %612 = vmatpush1.msra.mxu0 0.0
        %613 = vmatprep.subr.mxu0 0.0
        %614 = vmatpush1.msra.mxu0 0.0
        %615 = vmatprep.subr.mxu0 0.0
        %616 = vmatpush1.msra.mxu0 0.0
        %617 = vmatprep.mubr.f32.mxu0 0.0
        %v618 = vand.u32 %v373, 4294901760
        %619 = vmatmul.mubr.f32.gmra.mrb[0].mxu0 %v618
        %v620 = vpop.f32.mrb[0].mxu0
        %v621 = vadd.f32 %v470, %v620
        %v622 = vpop.f32.mrb[0].mxu0
        %623 = vmatprep.mubr.f32.mxu0 0.0
        %v624 = vand.u32 %v376, 4294901760
        %625 = vmatmul.mubr.f32.gmra.mrb[0].mxu0 %v624
        %v626 = vpop.f32.mrb[0].mxu0
        %v627 = vadd.f32 %v480, %v626
        %v628 = vpop.f32.mrb[0].mxu0
        %629 = vmatprep.mubr.f32.mxu0 0.0
        %v630 = vand.u32 %v379, 4294901760
        %631 = vmatmul.mubr.f32.gmra.mrb[0].mxu0 %v630
        %v632 = vpop.f32.mrb[0].mxu0
        %v633 = vadd.f32 %v490, %v632
        %v634 = vpop.f32.mrb[0].mxu0
        %635 = vmatprep.mubr.f32.mxu0 0.0
        %v636 = vand.u32 %v382, 4294901760
        %637 = vmatmul.mubr.f32.gmra.mrb[0].mxu0 %v636
        %v638 = vpop.f32.mrb[0].mxu0
        %v639 = vadd.f32 %v500, %v638
        %v640 = vpop.f32.mrb[0].mxu0
        %641 = vmatprep.mubr.f32.mxu0 0.0
        %v642 = vand.u32 %v385, 4294901760
        %643 = vmatmul.mubr.f32.gmra.mrb[0].mxu0 %v642
        %v644 = vpop.f32.mrb[0].mxu0
        %v645 = vadd.f32 %v510, %v644
        %v646 = vpop.f32.mrb[0].mxu0
        %647 = vmatprep.mubr.f32.mxu0 0.0
        %v648 = vand.u32 %v388, 4294901760
        %649 = vmatmul.mubr.f32.gmra.mrb[0].mxu0 %v648
        %v650 = vpop.f32.mrb[0].mxu0
        %v651 = vadd.f32 %v520, %v650
        %v652 = vpop.f32.mrb[0].mxu0
        %653 = vmatprep.mubr.f32.mxu0 0.0
        %v654 = vand.u32 %v391, 4294901760
        %655 = vmatmul.mubr.f32.gmra.mrb[0].mxu0 %v654
        %v656 = vpop.f32.mrb[0].mxu0
        %v657 = vadd.f32 %v530, %v656
        %v658 = vpop.f32.mrb[0].mxu0
        %659 = vmatprep.mubr.f32.mxu0 0.0
        %v660 = vand.u32 %v394, 4294901760
        %661 = vmatmul.mubr.f32.gmra.mrb[0].mxu0 %v660
        %v662 = vpop.f32.mrb[0].mxu0
        %v663 = vadd.f32 %v540, %v662
        %v664 = vpop.f32.mrb[0].mxu0
        %665 = vdwg.mxu0
        %666 = vmatprep.subr.mxu0 0.0
        %v667 = vand.u32 %v348, 4294901760
        %v668 = vsub.f32 %v348, %v667
        %669 = vmatpush1.msra.mxu0 %v668
        %670 = vmatprep.subr.mxu0 0.0
        %v671 = vand.u32 %v349, 4294901760
        %v672 = vsub.f32 %v349, %v671
        %673 = vmatpush1.msra.mxu0 %v672
        %674 = vmatprep.subr.mxu0 0.0
        %675 = vmatpush1.msra.mxu0 0.0
        %676 = vmatprep.subr.mxu0 0.0
        %677 = vmatpush1.msra.mxu0 0.0
        %678 = vmatprep.subr.mxu0 0.0
        %679 = vmatpush1.msra.mxu0 0.0
        %680 = vmatprep.subr.mxu0 0.0
        %681 = vmatpush1.msra.mxu0 0.0
        %682 = vmatprep.subr.mxu0 0.0
        %683 = vmatpush1.msra.mxu0 0.0
        %684 = vmatprep.subr.mxu0 0.0
        %685 = vmatpush1.msra.mxu0 0.0
        %686 = vmatprep.subr.mxu0 0.0
        %687 = vmatpush1.msra.mxu0 0.0
        %688 = vmatprep.subr.mxu0 0.0
        %689 = vmatpush1.msra.mxu0 0.0
        %690 = vmatprep.subr.mxu0 0.0
        %691 = vmatpush1.msra.mxu0 0.0
        %692 = vmatprep.subr.mxu0 0.0
        %693 = vmatpush1.msra.mxu0 0.0
        %694 = vmatprep.subr.mxu0 0.0
        %695 = vmatpush1.msra.mxu0 0.0
        %696 = vmatprep.subr.mxu0 0.0
        %697 = vmatpush1.msra.mxu0 0.0
        %698 = vmatprep.subr.mxu0 0.0
        %699 = vmatpush1.msra.mxu0 0.0
        %700 = vmatprep.subr.mxu0 0.0
        %701 = vmatpush1.msra.mxu0 0.0
        %702 = vmatprep.subr.mxu0 0.0
        %703 = vmatpush1.msra.mxu0 0.0
        %704 = vmatprep.subr.mxu0 0.0
        %705 = vmatpush1.msra.mxu0 0.0
        %706 = vmatprep.subr.mxu0 0.0
        %707 = vmatpush1.msra.mxu0 0.0
        %708 = vmatprep.subr.mxu0 0.0
        %709 = vmatpush1.msra.mxu0 0.0
        %710 = vmatprep.subr.mxu0 0.0
        %711 = vmatpush1.msra.mxu0 0.0
        %712 = vmatprep.subr.mxu0 0.0
        %713 = vmatpush1.msra.mxu0 0.0
        %714 = vmatprep.subr.mxu0 0.0
        %715 = vmatpush1.msra.mxu0 0.0
        %716 = vmatprep.subr.mxu0 0.0
        %717 = vmatpush1.msra.mxu0 0.0
        %718 = vmatprep.subr.mxu0 0.0
        %719 = vmatpush1.msra.mxu0 0.0
        %720 = vmatprep.subr.mxu0 0.0
        %721 = vmatpush1.msra.mxu0 0.0
        %722 = vmatprep.subr.mxu0 0.0
        %723 = vmatpush1.msra.mxu0 0.0
        %724 = vmatprep.subr.mxu0 0.0
        %725 = vmatpush1.msra.mxu0 0.0
        %726 = vmatprep.subr.mxu0 0.0
        %727 = vmatpush1.msra.mxu0 0.0
        %728 = vmatprep.subr.mxu0 0.0
        %729 = vmatpush1.msra.mxu0 0.0
        %730 = vmatprep.subr.mxu0 0.0
        %731 = vmatpush1.msra.mxu0 0.0
        %732 = vmatprep.subr.mxu0 0.0
        %733 = vmatpush1.msra.mxu0 0.0
        %734 = vmatprep.mubr.f32.mxu0 0.0
        %v735 = vand.u32 %v373, 4294901760
        %v736 = vsub.f32 %v373, %v735
        %737 = vmatmul.mubr.f32.gmra.mrb[0].mxu0 %v736
        %v738 = vpop.f32.mrb[0].mxu0
        %v739 = vadd.f32 %v621, %v738
        %v740 = vpop.f32.mrb[0].mxu0
        %741 = vmatprep.mubr.f32.mxu0 0.0
        %v742 = vand.u32 %v376, 4294901760
        %v743 = vsub.f32 %v376, %v742
        %744 = vmatmul.mubr.f32.gmra.mrb[0].mxu0 %v743
        %v745 = vpop.f32.mrb[0].mxu0
        %v746 = vadd.f32 %v627, %v745
        %v747 = vpop.f32.mrb[0].mxu0
        %748 = vmatprep.mubr.f32.mxu0 0.0
        %v749 = vand.u32 %v379, 4294901760
        %v750 = vsub.f32 %v379, %v749
        %751 = vmatmul.mubr.f32.gmra.mrb[0].mxu0 %v750
        %v752 = vpop.f32.mrb[0].mxu0
        %v753 = vadd.f32 %v633, %v752
        %v754 = vpop.f32.mrb[0].mxu0
        %755 = vmatprep.mubr.f32.mxu0 0.0
        %v756 = vand.u32 %v382, 4294901760
        %v757 = vsub.f32 %v382, %v756
        %758 = vmatmul.mubr.f32.gmra.mrb[0].mxu0 %v757
        %v759 = vpop.f32.mrb[0].mxu0
        %v760 = vadd.f32 %v639, %v759
        %v761 = vpop.f32.mrb[0].mxu0
        %762 = vmatprep.mubr.f32.mxu0 0.0
        %v763 = vand.u32 %v385, 4294901760
        %v764 = vsub.f32 %v385, %v763
        %765 = vmatmul.mubr.f32.gmra.mrb[0].mxu0 %v764
        %v766 = vpop.f32.mrb[0].mxu0
        %v767 = vadd.f32 %v645, %v766
        %v768 = vpop.f32.mrb[0].mxu0
        %769 = vmatprep.mubr.f32.mxu0 0.0
        %v770 = vand.u32 %v388, 4294901760
        %v771 = vsub.f32 %v388, %v770
        %772 = vmatmul.mubr.f32.gmra.mrb[0].mxu0 %v771
        %v773 = vpop.f32.mrb[0].mxu0
        %v774 = vadd.f32 %v651, %v773
        %v775 = vpop.f32.mrb[0].mxu0
        %776 = vmatprep.mubr.f32.mxu0 0.0
        %v777 = vand.u32 %v391, 4294901760
        %v778 = vsub.f32 %v391, %v777
        %779 = vmatmul.mubr.f32.gmra.mrb[0].mxu0 %v778
        %v780 = vpop.f32.mrb[0].mxu0
        %v781 = vadd.f32 %v657, %v780
        %v782 = vpop.f32.mrb[0].mxu0
        %783 = vmatprep.mubr.f32.mxu0 0.0
        %v784 = vand.u32 %v394, 4294901760
        %v785 = vsub.f32 %v394, %v784
        %786 = vmatmul.mubr.f32.gmra.mrb[0].mxu0 %v785
        %v787 = vpop.f32.mrb[0].mxu0
        %v788 = vadd.f32 %v663, %v787
        %v789 = vpop.f32.mrb[0].mxu0
        %790 = vdwg.mxu0
        %791 = vmatprep.subr.mxu0 0.0
        %v792 = vand.u32 %v348, 4294901760
        %793 = vmatpush1.msra.mxu0 %v792
        %794 = vmatprep.subr.mxu0 0.0
        %v795 = vand.u32 %v349, 4294901760
        %796 = vmatpush1.msra.mxu0 %v795
        %797 = vmatprep.subr.mxu0 0.0
        %798 = vmatpush1.msra.mxu0 0.0
        %799 = vmatprep.subr.mxu0 0.0
        %800 = vmatpush1.msra.mxu0 0.0
        %801 = vmatprep.subr.mxu0 0.0
        %802 = vmatpush1.msra.mxu0 0.0
        %803 = vmatprep.subr.mxu0 0.0
        %804 = vmatpush1.msra.mxu0 0.0
        %805 = vmatprep.subr.mxu0 0.0
        %806 = vmatpush1.msra.mxu0 0.0
        %807 = vmatprep.subr.mxu0 0.0
        %808 = vmatpush1.msra.mxu0 0.0
        %809 = vmatprep.subr.mxu0 0.0
        %810 = vmatpush1.msra.mxu0 0.0
        %811 = vmatprep.subr.mxu0 0.0
        %812 = vmatpush1.msra.mxu0 0.0
        %813 = vmatprep.subr.mxu0 0.0
        %814 = vmatpush1.msra.mxu0 0.0
        %815 = vmatprep.subr.mxu0 0.0
        %816 = vmatpush1.msra.mxu0 0.0
        %817 = vmatprep.subr.mxu0 0.0
        %818 = vmatpush1.msra.mxu0 0.0
        %819 = vmatprep.subr.mxu0 0.0
        %820 = vmatpush1.msra.mxu0 0.0
        %821 = vmatprep.subr.mxu0 0.0
        %822 = vmatpush1.msra.mxu0 0.0
        %823 = vmatprep.subr.mxu0 0.0
        %824 = vmatpush1.msra.mxu0 0.0
        %825 = vmatprep.subr.mxu0 0.0
        %826 = vmatpush1.msra.mxu0 0.0
        %827 = vmatprep.subr.mxu0 0.0
        %828 = vmatpush1.msra.mxu0 0.0
        %829 = vmatprep.subr.mxu0 0.0
        %830 = vmatpush1.msra.mxu0 0.0
        %831 = vmatprep.subr.mxu0 0.0
        %832 = vmatpush1.msra.mxu0 0.0
        %833 = vmatprep.subr.mxu0 0.0
        %834 = vmatpush1.msra.mxu0 0.0
        %835 = vmatprep.subr.mxu0 0.0
        %836 = vmatpush1.msra.mxu0 0.0
        %837 = vmatprep.subr.mxu0 0.0
        %838 = vmatpush1.msra.mxu0 0.0
        %839 = vmatprep.subr.mxu0 0.0
        %840 = vmatpush1.msra.mxu0 0.0
        %841 = vmatprep.subr.mxu0 0.0
        %842 = vmatpush1.msra.mxu0 0.0
        %843 = vmatprep.subr.mxu0 0.0
        %844 = vmatpush1.msra.mxu0 0.0
        %845 = vmatprep.subr.mxu0 0.0
        %846 = vmatpush1.msra.mxu0 0.0
        %847 = vmatprep.subr.mxu0 0.0
        %848 = vmatpush1.msra.mxu0 0.0
        %849 = vmatprep.subr.mxu0 0.0
        %850 = vmatpush1.msra.mxu0 0.0
        %851 = vmatprep.subr.mxu0 0.0
        %852 = vmatpush1.msra.mxu0 0.0
        %853 = vmatprep.subr.mxu0 0.0
        %854 = vmatpush1.msra.mxu0 0.0
        %855 = vmatprep.subr.mxu0 0.0
        %856 = vmatpush1.msra.mxu0 0.0
        %857 = vmatprep.mubr.f32.mxu0 0.0
        %v858 = vand.u32 %v373, 4294901760
        %v859 = vsub.f32 %v373, %v858
        %v860 = vand.u32 %v859, 4294901760
        %861 = vmatmul.mubr.f32.gmra.mrb[0].mxu0 %v860
        %v862 = vpop.f32.mrb[0].mxu0
        %v863 = vadd.f32 %v739, %v862
        %v864 = vpop.f32.mrb[0].mxu0
        %865 = vmatprep.mubr.f32.mxu0 0.0
        %v866 = vand.u32 %v376, 4294901760
        %v867 = vsub.f32 %v376, %v866
        %v868 = vand.u32 %v867, 4294901760
        %869 = vmatmul.mubr.f32.gmra.mrb[0].mxu0 %v868
        %v870 = vpop.f32.mrb[0].mxu0
        %v871 = vadd.f32 %v746, %v870
        %v872 = vpop.f32.mrb[0].mxu0
        %873 = vmatprep.mubr.f32.mxu0 0.0
        %v874 = vand.u32 %v379, 4294901760
        %v875 = vsub.f32 %v379, %v874
        %v876 = vand.u32 %v875, 4294901760
        %877 = vmatmul.mubr.f32.gmra.mrb[0].mxu0 %v876
        %v878 = vpop.f32.mrb[0].mxu0
        %v879 = vadd.f32 %v753, %v878
        %v880 = vpop.f32.mrb[0].mxu0
        %881 = vmatprep.mubr.f32.mxu0 0.0
        %v882 = vand.u32 %v382, 4294901760
        %v883 = vsub.f32 %v382, %v882
        %v884 = vand.u32 %v883, 4294901760
        %885 = vmatmul.mubr.f32.gmra.mrb[0].mxu0 %v884
        %v886 = vpop.f32.mrb[0].mxu0
        %v887 = vadd.f32 %v760, %v886
        %v888 = vpop.f32.mrb[0].mxu0
        %889 = vmatprep.mubr.f32.mxu0 0.0
        %v890 = vand.u32 %v385, 4294901760
        %v891 = vsub.f32 %v385, %v890
        %v892 = vand.u32 %v891, 4294901760
        %893 = vmatmul.mubr.f32.gmra.mrb[0].mxu0 %v892
        %v894 = vpop.f32.mrb[0].mxu0
        %v895 = vadd.f32 %v767, %v894
        %v896 = vpop.f32.mrb[0].mxu0
        %897 = vmatprep.mubr.f32.mxu0 0.0
        %v898 = vand.u32 %v388, 4294901760
        %v899 = vsub.f32 %v388, %v898
        %v900 = vand.u32 %v899, 4294901760
        %901 = vmatmul.mubr.f32.gmra.mrb[0].mxu0 %v900
        %v902 = vpop.f32.mrb[0].mxu0
        %v903 = vadd.f32 %v774, %v902
        %v904 = vpop.f32.mrb[0].mxu0
        %905 = vmatprep.mubr.f32.mxu0 0.0
        %v906 = vand.u32 %v391, 4294901760
        %v907 = vsub.f32 %v391, %v906
        %v908 = vand.u32 %v907, 4294901760
        %909 = vmatmul.mubr.f32.gmra.mrb[0].mxu0 %v908
        %v910 = vpop.f32.mrb[0].mxu0
        %v911 = vadd.f32 %v781, %v910
        %v912 = vpop.f32.mrb[0].mxu0
        %913 = vmatprep.mubr.f32.mxu0 0.0
        %v914 = vand.u32 %v394, 4294901760
        %v915 = vsub.f32 %v394, %v914
        %v916 = vand.u32 %v915, 4294901760
        %917 = vmatmul.mubr.f32.gmra.mrb[0].mxu0 %v916
        %v918 = vpop.f32.mrb[0].mxu0
        %v919 = vadd.f32 %v788, %v918
        %v920 = vpop.f32.mrb[0].mxu0
        %921 = vdwg.mxu0
        %922 = vmatprep.subr.mxu0 0.0
        %v923 = vand.u32 %v348, 4294901760
        %v924 = vsub.f32 %v348, %v923
        %v925 = vand.u32 %v924, 4294901760
        %926 = vmatpush1.msra.mxu0 %v925
        %927 = vmatprep.subr.mxu0 0.0
        %v928 = vand.u32 %v349, 4294901760
        %v929 = vsub.f32 %v349, %v928
        %v930 = vand.u32 %v929, 4294901760
        %931 = vmatpush1.msra.mxu0 %v930
        %932 = vmatprep.subr.mxu0 0.0
        %933 = vmatpush1.msra.mxu0 0.0
        %934 = vmatprep.subr.mxu0 0.0
        %935 = vmatpush1.msra.mxu0 0.0
        %936 = vmatprep.subr.mxu0 0.0
        %937 = vmatpush1.msra.mxu0 0.0
        %938 = vmatprep.subr.mxu0 0.0
        %939 = vmatpush1.msra.mxu0 0.0
        %940 = vmatprep.subr.mxu0 0.0
        %941 = vmatpush1.msra.mxu0 0.0
        %942 = vmatprep.subr.mxu0 0.0
        %943 = vmatpush1.msra.mxu0 0.0
        %944 = vmatprep.subr.mxu0 0.0
        %945 = vmatpush1.msra.mxu0 0.0
        %946 = vmatprep.subr.mxu0 0.0
        %947 = vmatpush1.msra.mxu0 0.0
        %948 = vmatprep.subr.mxu0 0.0
        %949 = vmatpush1.msra.mxu0 0.0
        %950 = vmatprep.subr.mxu0 0.0
        %951 = vmatpush1.msra.mxu0 0.0
        %952 = vmatprep.subr.mxu0 0.0
        %953 = vmatpush1.msra.mxu0 0.0
        %954 = vmatprep.subr.mxu0 0.0
        %955 = vmatpush1.msra.mxu0 0.0
        %956 = vmatprep.subr.mxu0 0.0
        %957 = vmatpush1.msra.mxu0 0.0
        %958 = vmatprep.subr.mxu0 0.0
        %959 = vmatpush1.msra.mxu0 0.0
        %960 = vmatprep.subr.mxu0 0.0
        %961 = vmatpush1.msra.mxu0 0.0
        %962 = vmatprep.subr.mxu0 0.0
        %963 = vmatpush1.msra.mxu0 0.0
        %964 = vmatprep.subr.mxu0 0.0
        %965 = vmatpush1.msra.mxu0 0.0
        %966 = vmatprep.subr.mxu0 0.0
        %967 = vmatpush1.msra.mxu0 0.0
        %968 = vmatprep.subr.mxu0 0.0
        %969 = vmatpush1.msra.mxu0 0.0
        %970 = vmatprep.subr.mxu0 0.0
        %971 = vmatpush1.msra.mxu0 0.0
        %972 = vmatprep.subr.mxu0 0.0
        %973 = vmatpush1.msra.mxu0 0.0
        %974 = vmatprep.subr.mxu0 0.0
        %975 = vmatpush1.msra.mxu0 0.0
        %976 = vmatprep.subr.mxu0 0.0
        %977 = vmatpush1.msra.mxu0 0.0
        %978 = vmatprep.subr.mxu0 0.0
        %979 = vmatpush1.msra.mxu0 0.0
        %980 = vmatprep.subr.mxu0 0.0
        %981 = vmatpush1.msra.mxu0 0.0
        %982 = vmatprep.subr.mxu0 0.0
        %983 = vmatpush1.msra.mxu0 0.0
        %984 = vmatprep.subr.mxu0 0.0
        %985 = vmatpush1.msra.mxu0 0.0
        %986 = vmatprep.subr.mxu0 0.0
        %987 = vmatpush1.msra.mxu0 0.0
        %988 = vmatprep.subr.mxu0 0.0
        %989 = vmatpush1.msra.mxu0 0.0
        %990 = vmatprep.subr.mxu0 0.0
        %991 = vmatpush1.msra.mxu0 0.0
        %992 = vmatprep.mubr.f32.mxu0 0.0
        %v993 = vand.u32 %v373, 4294901760
        %994 = vmatmul.mubr.f32.gmra.mrb[0].mxu0 %v993
        %v995 = vpop.f32.mrb[0].mxu0
        %v996 = vadd.f32 %v863, %v995
        %v997 = vpop.f32.mrb[0].mxu0
        %998 = vmatprep.mubr.f32.mxu0 0.0
        %v999 = vand.u32 %v376, 4294901760
        %1000 = vmatmul.mubr.f32.gmra.mrb[0].mxu0 %v999
        %v1001 = vpop.f32.mrb[0].mxu0
        %v1002 = vadd.f32 %v871, %v1001
        %v1003 = vpop.f32.mrb[0].mxu0
        %1004 = vmatprep.mubr.f32.mxu0 0.0
        %v1005 = vand.u32 %v379, 4294901760
        %1006 = vmatmul.mubr.f32.gmra.mrb[0].mxu0 %v1005
        %v1007 = vpop.f32.mrb[0].mxu0
        %v1008 = vadd.f32 %v879, %v1007
        %v1009 = vpop.f32.mrb[0].mxu0
        %1010 = vmatprep.mubr.f32.mxu0 0.0
        %v1011 = vand.u32 %v382, 4294901760
        %1012 = vmatmul.mubr.f32.gmra.mrb[0].mxu0 %v1011
        %v1013 = vpop.f32.mrb[0].mxu0
        %v1014 = vadd.f32 %v887, %v1013
        %v1015 = vpop.f32.mrb[0].mxu0
        %1016 = vmatprep.mubr.f32.mxu0 0.0
        %v1017 = vand.u32 %v385, 4294901760
        %1018 = vmatmul.mubr.f32.gmra.mrb[0].mxu0 %v1017
        %v1019 = vpop.f32.mrb[0].mxu0
        %v1020 = vadd.f32 %v895, %v1019
        %v1021 = vpop.f32.mrb[0].mxu0
        %1022 = vmatprep.mubr.f32.mxu0 0.0
        %v1023 = vand.u32 %v388, 4294901760
        %1024 = vmatmul.mubr.f32.gmra.mrb[0].mxu0 %v1023
        %v1025 = vpop.f32.mrb[0].mxu0
        %v1026 = vadd.f32 %v903, %v1025
        %v1027 = vpop.f32.mrb[0].mxu0
        %1028 = vmatprep.mubr.f32.mxu0 0.0
        %v1029 = vand.u32 %v391, 4294901760
        %1030 = vmatmul.mubr.f32.gmra.mrb[0].mxu0 %v1029
        %v1031 = vpop.f32.mrb[0].mxu0
        %v1032 = vadd.f32 %v911, %v1031
        %v1033 = vpop.f32.mrb[0].mxu0
        %1034 = vmatprep.mubr.f32.mxu0 0.0
        %v1035 = vand.u32 %v394, 4294901760
        %1036 = vmatmul.mubr.f32.gmra.mrb[0].mxu0 %v1035
        %v1037 = vpop.f32.mrb[0].mxu0
        %v1038 = vadd.f32 %v919, %v1037
        %v1039 = vpop.f32.mrb[0].mxu0
        %1040 = vdwg.mxu0
        %1041 = vmatprep.subr.mxu0 0.0
        %v1042 = vand.u32 %v348, 4294901760
        %1043 = vmatpush1.msra.mxu0 %v1042
        %1044 = vmatprep.subr.mxu0 0.0
        %v1045 = vand.u32 %v349, 4294901760
        %1046 = vmatpush1.msra.mxu0 %v1045
        %1047 = vmatprep.subr.mxu0 0.0
        %1048 = vmatpush1.msra.mxu0 0.0
        %1049 = vmatprep.subr.mxu0 0.0
        %1050 = vmatpush1.msra.mxu0 0.0
        %1051 = vmatprep.subr.mxu0 0.0
        %1052 = vmatpush1.msra.mxu0 0.0
        %1053 = vmatprep.subr.mxu0 0.0
        %1054 = vmatpush1.msra.mxu0 0.0
        %1055 = vmatprep.subr.mxu0 0.0
        %1056 = vmatpush1.msra.mxu0 0.0
        %1057 = vmatprep.subr.mxu0 0.0
        %1058 = vmatpush1.msra.mxu0 0.0
        %1059 = vmatprep.subr.mxu0 0.0
        %1060 = vmatpush1.msra.mxu0 0.0
        %1061 = vmatprep.subr.mxu0 0.0
        %1062 = vmatpush1.msra.mxu0 0.0
        %1063 = vmatprep.subr.mxu0 0.0
        %1064 = vmatpush1.msra.mxu0 0.0
        %1065 = vmatprep.subr.mxu0 0.0
        %1066 = vmatpush1.msra.mxu0 0.0
        %1067 = vmatprep.subr.mxu0 0.0
        %1068 = vmatpush1.msra.mxu0 0.0
        %1069 = vmatprep.subr.mxu0 0.0
        %1070 = vmatpush1.msra.mxu0 0.0
        %1071 = vmatprep.subr.mxu0 0.0
        %1072 = vmatpush1.msra.mxu0 0.0
        %1073 = vmatprep.subr.mxu0 0.0
        %1074 = vmatpush1.msra.mxu0 0.0
        %1075 = vmatprep.subr.mxu0 0.0
        %1076 = vmatpush1.msra.mxu0 0.0
        %1077 = vmatprep.subr.mxu0 0.0
        %1078 = vmatpush1.msra.mxu0 0.0
        %1079 = vmatprep.subr.mxu0 0.0
        %1080 = vmatpush1.msra.mxu0 0.0
        %1081 = vmatprep.subr.mxu0 0.0
        %1082 = vmatpush1.msra.mxu0 0.0
        %1083 = vmatprep.subr.mxu0 0.0
        %1084 = vmatpush1.msra.mxu0 0.0
        %1085 = vmatprep.subr.mxu0 0.0
        %1086 = vmatpush1.msra.mxu0 0.0
        %1087 = vmatprep.subr.mxu0 0.0
        %1088 = vmatpush1.msra.mxu0 0.0
        %1089 = vmatprep.subr.mxu0 0.0
        %1090 = vmatpush1.msra.mxu0 0.0
        %1091 = vmatprep.subr.mxu0 0.0
        %1092 = vmatpush1.msra.mxu0 0.0
        %1093 = vmatprep.subr.mxu0 0.0
        %1094 = vmatpush1.msra.mxu0 0.0
        %1095 = vmatprep.subr.mxu0 0.0
        %1096 = vmatpush1.msra.mxu0 0.0
        %1097 = vmatprep.subr.mxu0 0.0
        %1098 = vmatpush1.msra.mxu0 0.0
        %1099 = vmatprep.subr.mxu0 0.0
        %1100 = vmatpush1.msra.mxu0 0.0
        %1101 = vmatprep.subr.mxu0 0.0
        %1102 = vmatpush1.msra.mxu0 0.0
        %1103 = vmatprep.subr.mxu0 0.0
        %1104 = vmatpush1.msra.mxu0 0.0
        %1105 = vmatprep.subr.mxu0 0.0
        %1106 = vmatpush1.msra.mxu0 0.0
        %1107 = vmatprep.mubr.f32.mxu0 0.0
        %v1108 = vand.u32 %v373, 4294901760
        %1109 = vmatmul.mubr.f32.gmra.mrb[0].mxu0 %v1108
        %v1110 = vpop.f32.mrb[0].mxu0
        %v1111 = vadd.f32 %v996, %v1110
        %v1112 = vpop.f32.mrb[0].mxu0
        %1113 = vmatprep.mubr.f32.mxu0 0.0
        %v1114 = vand.u32 %v376, 4294901760
        %1115 = vmatmul.mubr.f32.gmra.mrb[0].mxu0 %v1114
        %v1116 = vpop.f32.mrb[0].mxu0
        %v1117 = vadd.f32 %v1002, %v1116
        %v1118 = vpop.f32.mrb[0].mxu0
        %1119 = vmatprep.mubr.f32.mxu0 0.0
        %v1120 = vand.u32 %v379, 4294901760
        %1121 = vmatmul.mubr.f32.gmra.mrb[0].mxu0 %v1120
        %v1122 = vpop.f32.mrb[0].mxu0
        %v1123 = vadd.f32 %v1008, %v1122
        %v1124 = vpop.f32.mrb[0].mxu0
        %1125 = vmatprep.mubr.f32.mxu0 0.0
        %v1126 = vand.u32 %v382, 4294901760
        %1127 = vmatmul.mubr.f32.gmra.mrb[0].mxu0 %v1126
        %v1128 = vpop.f32.mrb[0].mxu0
        %v1129 = vadd.f32 %v1014, %v1128
        %v1130 = vpop.f32.mrb[0].mxu0
        %1131 = vmatprep.mubr.f32.mxu0 0.0
        %v1132 = vand.u32 %v385, 4294901760
        %1133 = vmatmul.mubr.f32.gmra.mrb[0].mxu0 %v1132
        %v1134 = vpop.f32.mrb[0].mxu0
        %v1135 = vadd.f32 %v1020, %v1134
        %v1136 = vpop.f32.mrb[0].mxu0
        %1137 = vmatprep.mubr.f32.mxu0 0.0
        %v1138 = vand.u32 %v388, 4294901760
        %1139 = vmatmul.mubr.f32.gmra.mrb[0].mxu0 %v1138
        %v1140 = vpop.f32.mrb[0].mxu0
        %v1141 = vadd.f32 %v1026, %v1140
        %v1142 = vpop.f32.mrb[0].mxu0
        %1143 = vmatprep.mubr.f32.mxu0 0.0
        %v1144 = vand.u32 %v391, 4294901760
        %1145 = vmatmul.mubr.f32.gmra.mrb[0].mxu0 %v1144
        %v1146 = vpop.f32.mrb[0].mxu0
        %v1147 = vadd.f32 %v1032, %v1146
        %v1148 = vpop.f32.mrb[0].mxu0
        %1149 = vmatprep.mubr.f32.mxu0 0.0
        %v1150 = vand.u32 %v394, 4294901760
        %1151 = vmatmul.mubr.f32.gmra.mrb[0].mxu0 %v1150
        %v1152 = vpop.f32.mrb[0].mxu0
        %v1153 = vadd.f32 %v1038, %v1152
        %v1154 = vpop.f32.mrb[0].mxu0
        %1155 = vdwg.mxu0
        %v1157 = vsel %vm371, %v354, 0
        %v1160 = vsel %vm371, %v355, 0
        %v1163 = vsel %vm371, %v356, 0
        %v1166 = vsel %vm371, %v357, 0
        %v1169 = vsel %vm371, %v358, 0
        %v1172 = vsel %vm371, %v359, 0
        %v1175 = vsel %vm371, %v360, 0
        %v1178 = vsel %vm371, %v361, 0
        %1180 = vmatprep.subr.mxu0 0.0
        %v1181 = vand.u32 %v346, 4294901760
        %1182 = vmatpush1.msra.mxu0 %v1181
        %1183 = vmatprep.subr.mxu0 0.0
        %v1184 = vand.u32 %v347, 4294901760
        %1185 = vmatpush1.msra.mxu0 %v1184
        %1186 = vmatprep.subr.mxu0 0.0
        %1187 = vmatpush1.msra.mxu0 0.0
        %1188 = vmatprep.subr.mxu0 0.0
        %1189 = vmatpush1.msra.mxu0 0.0
        %1190 = vmatprep.subr.mxu0 0.0
        %1191 = vmatpush1.msra.mxu0 0.0
        %1192 = vmatprep.subr.mxu0 0.0
        %1193 = vmatpush1.msra.mxu0 0.0
        %1194 = vmatprep.subr.mxu0 0.0
        %1195 = vmatpush1.msra.mxu0 0.0
        %1196 = vmatprep.subr.mxu0 0.0
        %1197 = vmatpush1.msra.mxu0 0.0
        %1198 = vmatprep.subr.mxu0 0.0
        %1199 = vmatpush1.msra.mxu0 0.0
        %1200 = vmatprep.subr.mxu0 0.0
        %1201 = vmatpush1.msra.mxu0 0.0
        %1202 = vmatprep.subr.mxu0 0.0
        %1203 = vmatpush1.msra.mxu0 0.0
        %1204 = vmatprep.subr.mxu0 0.0
        %1205 = vmatpush1.msra.mxu0 0.0
        %1206 = vmatprep.subr.mxu0 0.0
        %1207 = vmatpush1.msra.mxu0 0.0
        %1208 = vmatprep.subr.mxu0 0.0
        %1209 = vmatpush1.msra.mxu0 0.0
        %1210 = vmatprep.subr.mxu0 0.0
        %1211 = vmatpush1.msra.mxu0 0.0
        %1212 = vmatprep.subr.mxu0 0.0
        %1213 = vmatpush1.msra.mxu0 0.0
        %1214 = vmatprep.subr.mxu0 0.0
        %1215 = vmatpush1.msra.mxu0 0.0
        %1216 = vmatprep.subr.mxu0 0.0
        %1217 = vmatpush1.msra.mxu0 0.0
        %1218 = vmatprep.subr.mxu0 0.0
        %1219 = vmatpush1.msra.mxu0 0.0
        %1220 = vmatprep.subr.mxu0 0.0
        %1221 = vmatpush1.msra.mxu0 0.0
        %1222 = vmatprep.subr.mxu0 0.0
        %1223 = vmatpush1.msra.mxu0 0.0
        %1224 = vmatprep.subr.mxu0 0.0
        %1225 = vmatpush1.msra.mxu0 0.0
        %1226 = vmatprep.subr.mxu0 0.0
        %1227 = vmatpush1.msra.mxu0 0.0
        %1228 = vmatprep.subr.mxu0 0.0
        %1229 = vmatpush1.msra.mxu0 0.0
        %1230 = vmatprep.subr.mxu0 0.0
        %1231 = vmatpush1.msra.mxu0 0.0
        %1232 = vmatprep.subr.mxu0 0.0
        %1233 = vmatpush1.msra.mxu0 0.0
        %1234 = vmatprep.subr.mxu0 0.0
        %1235 = vmatpush1.msra.mxu0 0.0
        %1236 = vmatprep.subr.mxu0 0.0
        %1237 = vmatpush1.msra.mxu0 0.0
        %1238 = vmatprep.subr.mxu0 0.0
        %1239 = vmatpush1.msra.mxu0 0.0
        %1240 = vmatprep.subr.mxu0 0.0
        %1241 = vmatpush1.msra.mxu0 0.0
        %1242 = vmatprep.subr.mxu0 0.0
        %1243 = vmatpush1.msra.mxu0 0.0
        %1244 = vmatprep.subr.mxu0 0.0
        %1245 = vmatpush1.msra.mxu0 0.0
        %1246 = vmatprep.mubr.f32.mxu0 0.0
        %v1247 = vand.u32 %v1157, 4294901760
        %v1248 = vsub.f32 %v1157, %v1247
        %v1249 = vand.u32 %v1248, 4294901760
        %v1250 = vsub.f32 %v1248, %v1249
        %v1251 = vand.u32 %v1250, 4294901760
        %1252 = vmatmul.mubr.f32.gmra.mrb[0].mxu0 %v1251
        %v1253 = vpop.f32.mrb[0].mxu0
        %v1254 = vadd.f32 %v1111, %v1253
        %v1255 = vpop.f32.mrb[0].mxu0
        %1256 = vmatprep.mubr.f32.mxu0 0.0
        %v1257 = vand.u32 %v1160, 4294901760
        %v1258 = vsub.f32 %v1160, %v1257
        %v1259 = vand.u32 %v1258, 4294901760
        %v1260 = vsub.f32 %v1258, %v1259
        %v1261 = vand.u32 %v1260, 4294901760
        %1262 = vmatmul.mubr.f32.gmra.mrb[0].mxu0 %v1261
        %v1263 = vpop.f32.mrb[0].mxu0
        %v1264 = vadd.f32 %v1117, %v1263
        %v1265 = vpop.f32.mrb[0].mxu0
        %1266 = vmatprep.mubr.f32.mxu0 0.0
        %v1267 = vand.u32 %v1163, 4294901760
        %v1268 = vsub.f32 %v1163, %v1267
        %v1269 = vand.u32 %v1268, 4294901760
        %v1270 = vsub.f32 %v1268, %v1269
        %v1271 = vand.u32 %v1270, 4294901760
        %1272 = vmatmul.mubr.f32.gmra.mrb[0].mxu0 %v1271
        %v1273 = vpop.f32.mrb[0].mxu0
        %v1274 = vadd.f32 %v1123, %v1273
        %v1275 = vpop.f32.mrb[0].mxu0
        %1276 = vmatprep.mubr.f32.mxu0 0.0
        %v1277 = vand.u32 %v1166, 4294901760
        %v1278 = vsub.f32 %v1166, %v1277
        %v1279 = vand.u32 %v1278, 4294901760
        %v1280 = vsub.f32 %v1278, %v1279
        %v1281 = vand.u32 %v1280, 4294901760
        %1282 = vmatmul.mubr.f32.gmra.mrb[0].mxu0 %v1281
        %v1283 = vpop.f32.mrb[0].mxu0
        %v1284 = vadd.f32 %v1129, %v1283
        %v1285 = vpop.f32.mrb[0].mxu0
        %1286 = vmatprep.mubr.f32.mxu0 0.0
        %v1287 = vand.u32 %v1169, 4294901760
        %v1288 = vsub.f32 %v1169, %v1287
        %v1289 = vand.u32 %v1288, 4294901760
        %v1290 = vsub.f32 %v1288, %v1289
        %v1291 = vand.u32 %v1290, 4294901760
        %1292 = vmatmul.mubr.f32.gmra.mrb[0].mxu0 %v1291
        %v1293 = vpop.f32.mrb[0].mxu0
        %v1294 = vadd.f32 %v1135, %v1293
        %v1295 = vpop.f32.mrb[0].mxu0
        %1296 = vmatprep.mubr.f32.mxu0 0.0
        %v1297 = vand.u32 %v1172, 4294901760
        %v1298 = vsub.f32 %v1172, %v1297
        %v1299 = vand.u32 %v1298, 4294901760
        %v1300 = vsub.f32 %v1298, %v1299
        %v1301 = vand.u32 %v1300, 4294901760
        %1302 = vmatmul.mubr.f32.gmra.mrb[0].mxu0 %v1301
        %v1303 = vpop.f32.mrb[0].mxu0
        %v1304 = vadd.f32 %v1141, %v1303
        %v1305 = vpop.f32.mrb[0].mxu0
        %1306 = vmatprep.mubr.f32.mxu0 0.0
        %v1307 = vand.u32 %v1175, 4294901760
        %v1308 = vsub.f32 %v1175, %v1307
        %v1309 = vand.u32 %v1308, 4294901760
        %v1310 = vsub.f32 %v1308, %v1309
        %v1311 = vand.u32 %v1310, 4294901760
        %1312 = vmatmul.mubr.f32.gmra.mrb[0].mxu0 %v1311
        %v1313 = vpop.f32.mrb[0].mxu0
        %v1314 = vadd.f32 %v1147, %v1313
        %v1315 = vpop.f32.mrb[0].mxu0
        %1316 = vmatprep.mubr.f32.mxu0 0.0
        %v1317 = vand.u32 %v1178, 4294901760
        %v1318 = vsub.f32 %v1178, %v1317
        %v1319 = vand.u32 %v1318, 4294901760
        %v1320 = vsub.f32 %v1318, %v1319
        %v1321 = vand.u32 %v1320, 4294901760
        %1322 = vmatmul.mubr.f32.gmra.mrb[0].mxu0 %v1321
        %v1323 = vpop.f32.mrb[0].mxu0
        %v1324 = vadd.f32 %v1153, %v1323
        %v1325 = vpop.f32.mrb[0].mxu0
        %1326 = vdwg.mxu0
        %1327 = vmatprep.subr.mxu0 0.0
        %v1328 = vand.u32 %v346, 4294901760
        %v1329 = vsub.f32 %v346, %v1328
        %v1330 = vand.u32 %v1329, 4294901760
        %v1331 = vsub.f32 %v1329, %v1330
        %v1332 = vand.u32 %v1331, 4294901760
        %1333 = vmatpush1.msra.mxu0 %v1332
        %1334 = vmatprep.subr.mxu0 0.0
        %v1335 = vand.u32 %v347, 4294901760
        %v1336 = vsub.f32 %v347, %v1335
        %v1337 = vand.u32 %v1336, 4294901760
        %v1338 = vsub.f32 %v1336, %v1337
        %v1339 = vand.u32 %v1338, 4294901760
        %1340 = vmatpush1.msra.mxu0 %v1339
        %1341 = vmatprep.subr.mxu0 0.0
        %1342 = vmatpush1.msra.mxu0 0.0
        %1343 = vmatprep.subr.mxu0 0.0
        %1344 = vmatpush1.msra.mxu0 0.0
        %1345 = vmatprep.subr.mxu0 0.0
        %1346 = vmatpush1.msra.mxu0 0.0
        %1347 = vmatprep.subr.mxu0 0.0
        %1348 = vmatpush1.msra.mxu0 0.0
        %1349 = vmatprep.subr.mxu0 0.0
        %1350 = vmatpush1.msra.mxu0 0.0
        %1351 = vmatprep.subr.mxu0 0.0
        %1352 = vmatpush1.msra.mxu0 0.0
        %1353 = vmatprep.subr.mxu0 0.0
        %1354 = vmatpush1.msra.mxu0 0.0
        %1355 = vmatprep.subr.mxu0 0.0
        %1356 = vmatpush1.msra.mxu0 0.0
        %1357 = vmatprep.subr.mxu0 0.0
        %1358 = vmatpush1.msra.mxu0 0.0
        %1359 = vmatprep.subr.mxu0 0.0
        %1360 = vmatpush1.msra.mxu0 0.0
        %1361 = vmatprep.subr.mxu0 0.0
        %1362 = vmatpush1.msra.mxu0 0.0
        %1363 = vmatprep.subr.mxu0 0.0
        %1364 = vmatpush1.msra.mxu0 0.0
        %1365 = vmatprep.subr.mxu0 0.0
        %1366 = vmatpush1.msra.mxu0 0.0
        %1367 = vmatprep.subr.mxu0 0.0
        %1368 = vmatpush1.msra.mxu0 0.0
        %1369 = vmatprep.subr.mxu0 0.0
        %1370 = vmatpush1.msra.mxu0 0.0
        %1371 = vmatprep.subr.mxu0 0.0
        %1372 = vmatpush1.msra.mxu0 0.0
        %1373 = vmatprep.subr.mxu0 0.0
        %1374 = vmatpush1.msra.mxu0 0.0
        %1375 = vmatprep.subr.mxu0 0.0
        %1376 = vmatpush1.msra.mxu0 0.0
        %1377 = vmatprep.subr.mxu0 0.0
        %1378 = vmatpush1.msra.mxu0 0.0
        %1379 = vmatprep.subr.mxu0 0.0
        %1380 = vmatpush1.msra.mxu0 0.0
        %1381 = vmatprep.subr.mxu0 0.0
        %1382 = vmatpush1.msra.mxu0 0.0
        %1383 = vmatprep.subr.mxu0 0.0
        %1384 = vmatpush1.msra.mxu0 0.0
        %1385 = vmatprep.subr.mxu0 0.0
        %1386 = vmatpush1.msra.mxu0 0.0
        %1387 = vmatprep.subr.mxu0 0.0
        %1388 = vmatpush1.msra.mxu0 0.0
        %1389 = vmatprep.subr.mxu0 0.0
        %1390 = vmatpush1.msra.mxu0 0.0
        %1391 = vmatprep.subr.mxu0 0.0
        %1392 = vmatpush1.msra.mxu0 0.0
        %1393 = vmatprep.subr.mxu0 0.0
        %1394 = vmatpush1.msra.mxu0 0.0
        %1395 = vmatprep.subr.mxu0 0.0
        %1396 = vmatpush1.msra.mxu0 0.0
        %1397 = vmatprep.subr.mxu0 0.0
        %1398 = vmatpush1.msra.mxu0 0.0
        %1399 = vmatprep.subr.mxu0 0.0
        %1400 = vmatpush1.msra.mxu0 0.0
        %1401 = vmatprep.mubr.f32.mxu0 0.0
        %v1402 = vand.u32 %v1157, 4294901760
        %1403 = vmatmul.mubr.f32.gmra.mrb[0].mxu0 %v1402
        %v1404 = vpop.f32.mrb[0].mxu0
        %v1405 = vadd.f32 %v1254, %v1404
        %v1406 = vpop.f32.mrb[0].mxu0
        %1407 = vmatprep.mubr.f32.mxu0 0.0
        %v1408 = vand.u32 %v1160, 4294901760
        %1409 = vmatmul.mubr.f32.gmra.mrb[0].mxu0 %v1408
        %v1410 = vpop.f32.mrb[0].mxu0
        %v1411 = vadd.f32 %v1264, %v1410
        %v1412 = vpop.f32.mrb[0].mxu0
        %1413 = vmatprep.mubr.f32.mxu0 0.0
        %v1414 = vand.u32 %v1163, 4294901760
        %1415 = vmatmul.mubr.f32.gmra.mrb[0].mxu0 %v1414
        %v1416 = vpop.f32.mrb[0].mxu0
        %v1417 = vadd.f32 %v1274, %v1416
        %v1418 = vpop.f32.mrb[0].mxu0
        %1419 = vmatprep.mubr.f32.mxu0 0.0
        %v1420 = vand.u32 %v1166, 4294901760
        %1421 = vmatmul.mubr.f32.gmra.mrb[0].mxu0 %v1420
        %v1422 = vpop.f32.mrb[0].mxu0
        %v1423 = vadd.f32 %v1284, %v1422
        %v1424 = vpop.f32.mrb[0].mxu0
        %1425 = vmatprep.mubr.f32.mxu0 0.0
        %v1426 = vand.u32 %v1169, 4294901760
        %1427 = vmatmul.mubr.f32.gmra.mrb[0].mxu0 %v1426
        %v1428 = vpop.f32.mrb[0].mxu0
        %v1429 = vadd.f32 %v1294, %v1428
        %v1430 = vpop.f32.mrb[0].mxu0
        %1431 = vmatprep.mubr.f32.mxu0 0.0
        %v1432 = vand.u32 %v1172, 4294901760
        %1433 = vmatmul.mubr.f32.gmra.mrb[0].mxu0 %v1432
        %v1434 = vpop.f32.mrb[0].mxu0
        %v1435 = vadd.f32 %v1304, %v1434
        %v1436 = vpop.f32.mrb[0].mxu0
        %1437 = vmatprep.mubr.f32.mxu0 0.0
        %v1438 = vand.u32 %v1175, 4294901760
        %1439 = vmatmul.mubr.f32.gmra.mrb[0].mxu0 %v1438
        %v1440 = vpop.f32.mrb[0].mxu0
        %v1441 = vadd.f32 %v1314, %v1440
        %v1442 = vpop.f32.mrb[0].mxu0
        %1443 = vmatprep.mubr.f32.mxu0 0.0
        %v1444 = vand.u32 %v1178, 4294901760
        %1445 = vmatmul.mubr.f32.gmra.mrb[0].mxu0 %v1444
        %v1446 = vpop.f32.mrb[0].mxu0
        %v1447 = vadd.f32 %v1324, %v1446
        %v1448 = vpop.f32.mrb[0].mxu0
        %1449 = vdwg.mxu0
        %1450 = vmatprep.subr.mxu0 0.0
        %v1451 = vand.u32 %v346, 4294901760
        %v1452 = vsub.f32 %v346, %v1451
        %1453 = vmatpush1.msra.mxu0 %v1452
        %1454 = vmatprep.subr.mxu0 0.0
        %v1455 = vand.u32 %v347, 4294901760
        %v1456 = vsub.f32 %v347, %v1455
        %1457 = vmatpush1.msra.mxu0 %v1456
        %1458 = vmatprep.subr.mxu0 0.0
        %1459 = vmatpush1.msra.mxu0 0.0
        %1460 = vmatprep.subr.mxu0 0.0
        %1461 = vmatpush1.msra.mxu0 0.0
        %1462 = vmatprep.subr.mxu0 0.0
        %1463 = vmatpush1.msra.mxu0 0.0
        %1464 = vmatprep.subr.mxu0 0.0
        %1465 = vmatpush1.msra.mxu0 0.0
        %1466 = vmatprep.subr.mxu0 0.0
        %1467 = vmatpush1.msra.mxu0 0.0
        %1468 = vmatprep.subr.mxu0 0.0
        %1469 = vmatpush1.msra.mxu0 0.0
        %1470 = vmatprep.subr.mxu0 0.0
        %1471 = vmatpush1.msra.mxu0 0.0
        %1472 = vmatprep.subr.mxu0 0.0
        %1473 = vmatpush1.msra.mxu0 0.0
        %1474 = vmatprep.subr.mxu0 0.0
        %1475 = vmatpush1.msra.mxu0 0.0
        %1476 = vmatprep.subr.mxu0 0.0
        %1477 = vmatpush1.msra.mxu0 0.0
        %1478 = vmatprep.subr.mxu0 0.0
        %1479 = vmatpush1.msra.mxu0 0.0
        %1480 = vmatprep.subr.mxu0 0.0
        %1481 = vmatpush1.msra.mxu0 0.0
        %1482 = vmatprep.subr.mxu0 0.0
        %1483 = vmatpush1.msra.mxu0 0.0
        %1484 = vmatprep.subr.mxu0 0.0
        %1485 = vmatpush1.msra.mxu0 0.0
        %1486 = vmatprep.subr.mxu0 0.0
        %1487 = vmatpush1.msra.mxu0 0.0
        %1488 = vmatprep.subr.mxu0 0.0
        %1489 = vmatpush1.msra.mxu0 0.0
        %1490 = vmatprep.subr.mxu0 0.0
        %1491 = vmatpush1.msra.mxu0 0.0
        %1492 = vmatprep.subr.mxu0 0.0
        %1493 = vmatpush1.msra.mxu0 0.0
        %1494 = vmatprep.subr.mxu0 0.0
        %1495 = vmatpush1.msra.mxu0 0.0
        %1496 = vmatprep.subr.mxu0 0.0
        %1497 = vmatpush1.msra.mxu0 0.0
        %1498 = vmatprep.subr.mxu0 0.0
        %1499 = vmatpush1.msra.mxu0 0.0
        %1500 = vmatprep.subr.mxu0 0.0
        %1501 = vmatpush1.msra.mxu0 0.0
        %1502 = vmatprep.subr.mxu0 0.0
        %1503 = vmatpush1.msra.mxu0 0.0
        %1504 = vmatprep.subr.mxu0 0.0
        %1505 = vmatpush1.msra.mxu0 0.0
        %1506 = vmatprep.subr.mxu0 0.0
        %1507 = vmatpush1.msra.mxu0 0.0
        %1508 = vmatprep.subr.mxu0 0.0
        %1509 = vmatpush1.msra.mxu0 0.0
        %1510 = vmatprep.subr.mxu0 0.0
        %1511 = vmatpush1.msra.mxu0 0.0
        %1512 = vmatprep.subr.mxu0 0.0
        %1513 = vmatpush1.msra.mxu0 0.0
        %1514 = vmatprep.subr.mxu0 0.0
        %1515 = vmatpush1.msra.mxu0 0.0
        %1516 = vmatprep.subr.mxu0 0.0
        %1517 = vmatpush1.msra.mxu0 0.0
        %1518 = vmatprep.mubr.f32.mxu0 0.0
        %v1519 = vand.u32 %v1157, 4294901760
        %v1520 = vsub.f32 %v1157, %v1519
        %1521 = vmatmul.mubr.f32.gmra.mrb[0].mxu0 %v1520
        %v1522 = vpop.f32.mrb[0].mxu0
        %v1523 = vadd.f32 %v1405, %v1522
        %v1524 = vpop.f32.mrb[0].mxu0
        %1525 = vmatprep.mubr.f32.mxu0 0.0
        %v1526 = vand.u32 %v1160, 4294901760
        %v1527 = vsub.f32 %v1160, %v1526
        %1528 = vmatmul.mubr.f32.gmra.mrb[0].mxu0 %v1527
        %v1529 = vpop.f32.mrb[0].mxu0
        %v1530 = vadd.f32 %v1411, %v1529
        %v1531 = vpop.f32.mrb[0].mxu0
        %1532 = vmatprep.mubr.f32.mxu0 0.0
        %v1533 = vand.u32 %v1163, 4294901760
        %v1534 = vsub.f32 %v1163, %v1533
        %1535 = vmatmul.mubr.f32.gmra.mrb[0].mxu0 %v1534
        %v1536 = vpop.f32.mrb[0].mxu0
        %v1537 = vadd.f32 %v1417, %v1536
        %v1538 = vpop.f32.mrb[0].mxu0
        %1539 = vmatprep.mubr.f32.mxu0 0.0
        %v1540 = vand.u32 %v1166, 4294901760
        %v1541 = vsub.f32 %v1166, %v1540
        %1542 = vmatmul.mubr.f32.gmra.mrb[0].mxu0 %v1541
        %v1543 = vpop.f32.mrb[0].mxu0
        %v1544 = vadd.f32 %v1423, %v1543
        %v1545 = vpop.f32.mrb[0].mxu0
        %1546 = vmatprep.mubr.f32.mxu0 0.0
        %v1547 = vand.u32 %v1169, 4294901760
        %v1548 = vsub.f32 %v1169, %v1547
        %1549 = vmatmul.mubr.f32.gmra.mrb[0].mxu0 %v1548
        %v1550 = vpop.f32.mrb[0].mxu0
        %v1551 = vadd.f32 %v1429, %v1550
        %v1552 = vpop.f32.mrb[0].mxu0
        %1553 = vmatprep.mubr.f32.mxu0 0.0
        %v1554 = vand.u32 %v1172, 4294901760
        %v1555 = vsub.f32 %v1172, %v1554
        %1556 = vmatmul.mubr.f32.gmra.mrb[0].mxu0 %v1555
        %v1557 = vpop.f32.mrb[0].mxu0
        %v1558 = vadd.f32 %v1435, %v1557
        %v1559 = vpop.f32.mrb[0].mxu0
        %1560 = vmatprep.mubr.f32.mxu0 0.0
        %v1561 = vand.u32 %v1175, 4294901760
        %v1562 = vsub.f32 %v1175, %v1561
        %1563 = vmatmul.mubr.f32.gmra.mrb[0].mxu0 %v1562
        %v1564 = vpop.f32.mrb[0].mxu0
        %v1565 = vadd.f32 %v1441, %v1564
        %v1566 = vpop.f32.mrb[0].mxu0
        %1567 = vmatprep.mubr.f32.mxu0 0.0
        %v1568 = vand.u32 %v1178, 4294901760
        %v1569 = vsub.f32 %v1178, %v1568
        %1570 = vmatmul.mubr.f32.gmra.mrb[0].mxu0 %v1569
        %v1571 = vpop.f32.mrb[0].mxu0
        %v1572 = vadd.f32 %v1447, %v1571
        %v1573 = vpop.f32.mrb[0].mxu0
        %1574 = vdwg.mxu0
        %1575 = vmatprep.subr.mxu0 0.0
        %v1576 = vand.u32 %v346, 4294901760
        %1577 = vmatpush1.msra.mxu0 %v1576
        %1578 = vmatprep.subr.mxu0 0.0
        %v1579 = vand.u32 %v347, 4294901760
        %1580 = vmatpush1.msra.mxu0 %v1579
        %1581 = vmatprep.subr.mxu0 0.0
        %1582 = vmatpush1.msra.mxu0 0.0
        %1583 = vmatprep.subr.mxu0 0.0
        %1584 = vmatpush1.msra.mxu0 0.0
        %1585 = vmatprep.subr.mxu0 0.0
        %1586 = vmatpush1.msra.mxu0 0.0
        %1587 = vmatprep.subr.mxu0 0.0
        %1588 = vmatpush1.msra.mxu0 0.0
        %1589 = vmatprep.subr.mxu0 0.0
        %1590 = vmatpush1.msra.mxu0 0.0
        %1591 = vmatprep.subr.mxu0 0.0
        %1592 = vmatpush1.msra.mxu0 0.0
        %1593 = vmatprep.subr.mxu0 0.0
        %1594 = vmatpush1.msra.mxu0 0.0
        %1595 = vmatprep.subr.mxu0 0.0
        %1596 = vmatpush1.msra.mxu0 0.0
        %1597 = vmatprep.subr.mxu0 0.0
        %1598 = vmatpush1.msra.mxu0 0.0
        %1599 = vmatprep.subr.mxu0 0.0
        %1600 = vmatpush1.msra.mxu0 0.0
        %1601 = vmatprep.subr.mxu0 0.0
        %1602 = vmatpush1.msra.mxu0 0.0
        %1603 = vmatprep.subr.mxu0 0.0
        %1604 = vmatpush1.msra.mxu0 0.0
        %1605 = vmatprep.subr.mxu0 0.0
        %1606 = vmatpush1.msra.mxu0 0.0
        %1607 = vmatprep.subr.mxu0 0.0
        %1608 = vmatpush1.msra.mxu0 0.0
        %1609 = vmatprep.subr.mxu0 0.0
        %1610 = vmatpush1.msra.mxu0 0.0
        %1611 = vmatprep.subr.mxu0 0.0
        %1612 = vmatpush1.msra.mxu0 0.0
        %1613 = vmatprep.subr.mxu0 0.0
        %1614 = vmatpush1.msra.mxu0 0.0
        %1615 = vmatprep.subr.mxu0 0.0
        %1616 = vmatpush1.msra.mxu0 0.0
        %1617 = vmatprep.subr.mxu0 0.0
        %1618 = vmatpush1.msra.mxu0 0.0
        %1619 = vmatprep.subr.mxu0 0.0
        %1620 = vmatpush1.msra.mxu0 0.0
        %1621 = vmatprep.subr.mxu0 0.0
        %1622 = vmatpush1.msra.mxu0 0.0
        %1623 = vmatprep.subr.mxu0 0.0
        %1624 = vmatpush1.msra.mxu0 0.0
        %1625 = vmatprep.subr.mxu0 0.0
        %1626 = vmatpush1.msra.mxu0 0.0
        %1627 = vmatprep.subr.mxu0 0.0
        %1628 = vmatpush1.msra.mxu0 0.0
        %1629 = vmatprep.subr.mxu0 0.0
        %1630 = vmatpush1.msra.mxu0 0.0
        %1631 = vmatprep.subr.mxu0 0.0
        %1632 = vmatpush1.msra.mxu0 0.0
        %1633 = vmatprep.subr.mxu0 0.0
        %1634 = vmatpush1.msra.mxu0 0.0
        %1635 = vmatprep.subr.mxu0 0.0
        %1636 = vmatpush1.msra.mxu0 0.0
        %1637 = vmatprep.subr.mxu0 0.0
        %1638 = vmatpush1.msra.mxu0 0.0
        %1639 = vmatprep.subr.mxu0 0.0
        %1640 = vmatpush1.msra.mxu0 0.0
        %1641 = vmatprep.mubr.f32.mxu0 0.0
        %v1642 = vand.u32 %v1157, 4294901760
        %v1643 = vsub.f32 %v1157, %v1642
        %v1644 = vand.u32 %v1643, 4294901760
        %1645 = vmatmul.mubr.f32.gmra.mrb[0].mxu0 %v1644
        %v1646 = vpop.f32.mrb[0].mxu0
        %v1647 = vadd.f32 %v1523, %v1646
        %v1648 = vpop.f32.mrb[0].mxu0
        %1649 = vmatprep.mubr.f32.mxu0 0.0
        %v1650 = vand.u32 %v1160, 4294901760
        %v1651 = vsub.f32 %v1160, %v1650
        %v1652 = vand.u32 %v1651, 4294901760
        %1653 = vmatmul.mubr.f32.gmra.mrb[0].mxu0 %v1652
        %v1654 = vpop.f32.mrb[0].mxu0
        %v1655 = vadd.f32 %v1530, %v1654
        %v1656 = vpop.f32.mrb[0].mxu0
        %1657 = vmatprep.mubr.f32.mxu0 0.0
        %v1658 = vand.u32 %v1163, 4294901760
        %v1659 = vsub.f32 %v1163, %v1658
        %v1660 = vand.u32 %v1659, 4294901760
        %1661 = vmatmul.mubr.f32.gmra.mrb[0].mxu0 %v1660
        %v1662 = vpop.f32.mrb[0].mxu0
        %v1663 = vadd.f32 %v1537, %v1662
        %v1664 = vpop.f32.mrb[0].mxu0
        %1665 = vmatprep.mubr.f32.mxu0 0.0
        %v1666 = vand.u32 %v1166, 4294901760
        %v1667 = vsub.f32 %v1166, %v1666
        %v1668 = vand.u32 %v1667, 4294901760
        %1669 = vmatmul.mubr.f32.gmra.mrb[0].mxu0 %v1668
        %v1670 = vpop.f32.mrb[0].mxu0
        %v1671 = vadd.f32 %v1544, %v1670
        %v1672 = vpop.f32.mrb[0].mxu0
        %1673 = vmatprep.mubr.f32.mxu0 0.0
        %v1674 = vand.u32 %v1169, 4294901760
        %v1675 = vsub.f32 %v1169, %v1674
        %v1676 = vand.u32 %v1675, 4294901760
        %1677 = vmatmul.mubr.f32.gmra.mrb[0].mxu0 %v1676
        %v1678 = vpop.f32.mrb[0].mxu0
        %v1679 = vadd.f32 %v1551, %v1678
        %v1680 = vpop.f32.mrb[0].mxu0
        %1681 = vmatprep.mubr.f32.mxu0 0.0
        %v1682 = vand.u32 %v1172, 4294901760
        %v1683 = vsub.f32 %v1172, %v1682
        %v1684 = vand.u32 %v1683, 4294901760
        %1685 = vmatmul.mubr.f32.gmra.mrb[0].mxu0 %v1684
        %v1686 = vpop.f32.mrb[0].mxu0
        %v1687 = vadd.f32 %v1558, %v1686
        %v1688 = vpop.f32.mrb[0].mxu0
        %1689 = vmatprep.mubr.f32.mxu0 0.0
        %v1690 = vand.u32 %v1175, 4294901760
        %v1691 = vsub.f32 %v1175, %v1690
        %v1692 = vand.u32 %v1691, 4294901760
        %1693 = vmatmul.mubr.f32.gmra.mrb[0].mxu0 %v1692
        %v1694 = vpop.f32.mrb[0].mxu0
        %v1695 = vadd.f32 %v1565, %v1694
        %v1696 = vpop.f32.mrb[0].mxu0
        %1697 = vmatprep.mubr.f32.mxu0 0.0
        %v1698 = vand.u32 %v1178, 4294901760
        %v1699 = vsub.f32 %v1178, %v1698
        %v1700 = vand.u32 %v1699, 4294901760
        %1701 = vmatmul.mubr.f32.gmra.mrb[0].mxu0 %v1700
        %v1702 = vpop.f32.mrb[0].mxu0
        %v1703 = vadd.f32 %v1572, %v1702
        %v1704 = vpop.f32.mrb[0].mxu0
        %1705 = vdwg.mxu0
        %1706 = vmatprep.subr.mxu0 0.0
        %v1707 = vand.u32 %v346, 4294901760
        %v1708 = vsub.f32 %v346, %v1707
        %v1709 = vand.u32 %v1708, 4294901760
        %1710 = vmatpush1.msra.mxu0 %v1709
        %1711 = vmatprep.subr.mxu0 0.0
        %v1712 = vand.u32 %v347, 4294901760
        %v1713 = vsub.f32 %v347, %v1712
        %v1714 = vand.u32 %v1713, 4294901760
        %1715 = vmatpush1.msra.mxu0 %v1714
        %1716 = vmatprep.subr.mxu0 0.0
        %1717 = vmatpush1.msra.mxu0 0.0
        %1718 = vmatprep.subr.mxu0 0.0
        %1719 = vmatpush1.msra.mxu0 0.0
        %1720 = vmatprep.subr.mxu0 0.0
        %1721 = vmatpush1.msra.mxu0 0.0
        %1722 = vmatprep.subr.mxu0 0.0
        %1723 = vmatpush1.msra.mxu0 0.0
        %1724 = vmatprep.subr.mxu0 0.0
        %1725 = vmatpush1.msra.mxu0 0.0
        %1726 = vmatprep.subr.mxu0 0.0
        %1727 = vmatpush1.msra.mxu0 0.0
        %1728 = vmatprep.subr.mxu0 0.0
        %1729 = vmatpush1.msra.mxu0 0.0
        %1730 = vmatprep.subr.mxu0 0.0
        %1731 = vmatpush1.msra.mxu0 0.0
        %1732 = vmatprep.subr.mxu0 0.0
        %1733 = vmatpush1.msra.mxu0 0.0
        %1734 = vmatprep.subr.mxu0 0.0
        %1735 = vmatpush1.msra.mxu0 0.0
        %1736 = vmatprep.subr.mxu0 0.0
        %1737 = vmatpush1.msra.mxu0 0.0
        %1738 = vmatprep.subr.mxu0 0.0
        %1739 = vmatpush1.msra.mxu0 0.0
        %1740 = vmatprep.subr.mxu0 0.0
        %1741 = vmatpush1.msra.mxu0 0.0
        %1742 = vmatprep.subr.mxu0 0.0
        %1743 = vmatpush1.msra.mxu0 0.0
        %1744 = vmatprep.subr.mxu0 0.0
        %1745 = vmatpush1.msra.mxu0 0.0
        %1746 = vmatprep.subr.mxu0 0.0
        %1747 = vmatpush1.msra.mxu0 0.0
        %1748 = vmatprep.subr.mxu0 0.0
        %1749 = vmatpush1.msra.mxu0 0.0
        %1750 = vmatprep.subr.mxu0 0.0
        %1751 = vmatpush1.msra.mxu0 0.0
        %1752 = vmatprep.subr.mxu0 0.0
        %1753 = vmatpush1.msra.mxu0 0.0
        %1754 = vmatprep.subr.mxu0 0.0
        %1755 = vmatpush1.msra.mxu0 0.0
        %1756 = vmatprep.subr.mxu0 0.0
        %1757 = vmatpush1.msra.mxu0 0.0
        %1758 = vmatprep.subr.mxu0 0.0
        %1759 = vmatpush1.msra.mxu0 0.0
        %1760 = vmatprep.subr.mxu0 0.0
        %1761 = vmatpush1.msra.mxu0 0.0
        %1762 = vmatprep.subr.mxu0 0.0
        %1763 = vmatpush1.msra.mxu0 0.0
        %1764 = vmatprep.subr.mxu0 0.0
        %1765 = vmatpush1.msra.mxu0 0.0
        %1766 = vmatprep.subr.mxu0 0.0
        %1767 = vmatpush1.msra.mxu0 0.0
        %1768 = vmatprep.subr.mxu0 0.0
        %1769 = vmatpush1.msra.mxu0 0.0
        %1770 = vmatprep.subr.mxu0 0.0
        %1771 = vmatpush1.msra.mxu0 0.0
        %1772 = vmatprep.subr.mxu0 0.0
        %1773 = vmatpush1.msra.mxu0 0.0
        %1774 = vmatprep.subr.mxu0 0.0
        %1775 = vmatpush1.msra.mxu0 0.0
        %1776 = vmatprep.mubr.f32.mxu0 0.0
        %v1777 = vand.u32 %v1157, 4294901760
        %1778 = vmatmul.mubr.f32.gmra.mrb[0].mxu0 %v1777
        %v1779 = vpop.f32.mrb[0].mxu0
        %v1780 = vadd.f32 %v1647, %v1779
        %v1781 = vpop.f32.mrb[0].mxu0
        %1782 = vmatprep.mubr.f32.mxu0 0.0
        %v1783 = vand.u32 %v1160, 4294901760
        %1784 = vmatmul.mubr.f32.gmra.mrb[0].mxu0 %v1783
        %v1785 = vpop.f32.mrb[0].mxu0
        %v1786 = vadd.f32 %v1655, %v1785
        %v1787 = vpop.f32.mrb[0].mxu0
        %1788 = vmatprep.mubr.f32.mxu0 0.0
        %v1789 = vand.u32 %v1163, 4294901760
        %1790 = vmatmul.mubr.f32.gmra.mrb[0].mxu0 %v1789
        %v1791 = vpop.f32.mrb[0].mxu0
        %v1792 = vadd.f32 %v1663, %v1791
        %v1793 = vpop.f32.mrb[0].mxu0
        %1794 = vmatprep.mubr.f32.mxu0 0.0
        %v1795 = vand.u32 %v1166, 4294901760
        %1796 = vmatmul.mubr.f32.gmra.mrb[0].mxu0 %v1795
        %v1797 = vpop.f32.mrb[0].mxu0
        %v1798 = vadd.f32 %v1671, %v1797
        %v1799 = vpop.f32.mrb[0].mxu0
        %1800 = vmatprep.mubr.f32.mxu0 0.0
        %v1801 = vand.u32 %v1169, 4294901760
        %1802 = vmatmul.mubr.f32.gmra.mrb[0].mxu0 %v1801
        %v1803 = vpop.f32.mrb[0].mxu0
        %v1804 = vadd.f32 %v1679, %v1803
        %v1805 = vpop.f32.mrb[0].mxu0
        %1806 = vmatprep.mubr.f32.mxu0 0.0
        %v1807 = vand.u32 %v1172, 4294901760
        %1808 = vmatmul.mubr.f32.gmra.mrb[0].mxu0 %v1807
        %v1809 = vpop.f32.mrb[0].mxu0
        %v1810 = vadd.f32 %v1687, %v1809
        %v1811 = vpop.f32.mrb[0].mxu0
        %1812 = vmatprep.mubr.f32.mxu0 0.0
        %v1813 = vand.u32 %v1175, 4294901760
        %1814 = vmatmul.mubr.f32.gmra.mrb[0].mxu0 %v1813
        %v1815 = vpop.f32.mrb[0].mxu0
        %v1816 = vadd.f32 %v1695, %v1815
        %v1817 = vpop.f32.mrb[0].mxu0
        %1818 = vmatprep.mubr.f32.mxu0 0.0
        %v1819 = vand.u32 %v1178, 4294901760
        %1820 = vmatmul.mubr.f32.gmra.mrb[0].mxu0 %v1819
        %v1821 = vpop.f32.mrb[0].mxu0
        %v1822 = vadd.f32 %v1703, %v1821
        %v1823 = vpop.f32.mrb[0].mxu0
        %1824 = vdwg.mxu0
        %1825 = vmatprep.subr.mxu0 0.0
        %v1826 = vand.u32 %v346, 4294901760
        %1827 = vmatpush1.msra.mxu0 %v1826
        %1828 = vmatprep.subr.mxu0 0.0
        %v1829 = vand.u32 %v347, 4294901760
        %1830 = vmatpush1.msra.mxu0 %v1829
        %1831 = vmatprep.subr.mxu0 0.0
        %1832 = vmatpush1.msra.mxu0 0.0
        %1833 = vmatprep.subr.mxu0 0.0
        %1834 = vmatpush1.msra.mxu0 0.0
        %1835 = vmatprep.subr.mxu0 0.0
        %1836 = vmatpush1.msra.mxu0 0.0
        %1837 = vmatprep.subr.mxu0 0.0
        %1838 = vmatpush1.msra.mxu0 0.0
        %1839 = vmatprep.subr.mxu0 0.0
        %1840 = vmatpush1.msra.mxu0 0.0
        %1841 = vmatprep.subr.mxu0 0.0
        %1842 = vmatpush1.msra.mxu0 0.0
        %1843 = vmatprep.subr.mxu0 0.0
        %1844 = vmatpush1.msra.mxu0 0.0
        %1845 = vmatprep.subr.mxu0 0.0
        %1846 = vmatpush1.msra.mxu0 0.0
        %1847 = vmatprep.subr.mxu0 0.0
        %1848 = vmatpush1.msra.mxu0 0.0
        %1849 = vmatprep.subr.mxu0 0.0
        %1850 = vmatpush1.msra.mxu0 0.0
        %1851 = vmatprep.subr.mxu0 0.0
        %1852 = vmatpush1.msra.mxu0 0.0
        %1853 = vmatprep.subr.mxu0 0.0
        %1854 = vmatpush1.msra.mxu0 0.0
        %1855 = vmatprep.subr.mxu0 0.0
        %1856 = vmatpush1.msra.mxu0 0.0
        %1857 = vmatprep.subr.mxu0 0.0
        %1858 = vmatpush1.msra.mxu0 0.0
        %1859 = vmatprep.subr.mxu0 0.0
        %1860 = vmatpush1.msra.mxu0 0.0
        %1861 = vmatprep.subr.mxu0 0.0
        %1862 = vmatpush1.msra.mxu0 0.0
        %1863 = vmatprep.subr.mxu0 0.0
        %1864 = vmatpush1.msra.mxu0 0.0
        %1865 = vmatprep.subr.mxu0 0.0
        %1866 = vmatpush1.msra.mxu0 0.0
        %1867 = vmatprep.subr.mxu0 0.0
        %1868 = vmatpush1.msra.mxu0 0.0
        %1869 = vmatprep.subr.mxu0 0.0
        %1870 = vmatpush1.msra.mxu0 0.0
        %1871 = vmatprep.subr.mxu0 0.0
        %1872 = vmatpush1.msra.mxu0 0.0
        %1873 = vmatprep.subr.mxu0 0.0
        %1874 = vmatpush1.msra.mxu0 0.0
        %1875 = vmatprep.subr.mxu0 0.0
        %1876 = vmatpush1.msra.mxu0 0.0
        %1877 = vmatprep.subr.mxu0 0.0
        %1878 = vmatpush1.msra.mxu0 0.0
        %1879 = vmatprep.subr.mxu0 0.0
        %1880 = vmatpush1.msra.mxu0 0.0
        %1881 = vmatprep.subr.mxu0 0.0
        %1882 = vmatpush1.msra.mxu0 0.0
        %1883 = vmatprep.subr.mxu0 0.0
        %1884 = vmatpush1.msra.mxu0 0.0
        %1885 = vmatprep.subr.mxu0 0.0
        %1886 = vmatpush1.msra.mxu0 0.0
        %1887 = vmatprep.subr.mxu0 0.0
        %1888 = vmatpush1.msra.mxu0 0.0
        %1889 = vmatprep.subr.mxu0 0.0
        %1890 = vmatpush1.msra.mxu0 0.0
        %1891 = vmatprep.mubr.f32.mxu0 0.0
        %v1892 = vand.u32 %v1157, 4294901760
        %1893 = vmatmul.mubr.f32.gmra.mrb[0].mxu0 %v1892
        %v1894 = vpop.f32.mrb[0].mxu0
        %v1895 = vadd.f32 %v1780, %v1894
        %v1896 = vpop.f32.mrb[0].mxu0
        %1897 = vmatprep.mubr.f32.mxu0 0.0
        %v1898 = vand.u32 %v1160, 4294901760
        %1899 = vmatmul.mubr.f32.gmra.mrb[0].mxu0 %v1898
        %v1900 = vpop.f32.mrb[0].mxu0
        %v1901 = vadd.f32 %v1786, %v1900
        %v1902 = vpop.f32.mrb[0].mxu0
        %1903 = vmatprep.mubr.f32.mxu0 0.0
        %v1904 = vand.u32 %v1163, 4294901760
        %1905 = vmatmul.mubr.f32.gmra.mrb[0].mxu0 %v1904
        %v1906 = vpop.f32.mrb[0].mxu0
        %v1907 = vadd.f32 %v1792, %v1906
        %v1908 = vpop.f32.mrb[0].mxu0
        %1909 = vmatprep.mubr.f32.mxu0 0.0
        %v1910 = vand.u32 %v1166, 4294901760
        %1911 = vmatmul.mubr.f32.gmra.mrb[0].mxu0 %v1910
        %v1912 = vpop.f32.mrb[0].mxu0
        %v1913 = vadd.f32 %v1798, %v1912
        %v1914 = vpop.f32.mrb[0].mxu0
        %1915 = vmatprep.mubr.f32.mxu0 0.0
        %v1916 = vand.u32 %v1169, 4294901760
        %1917 = vmatmul.mubr.f32.gmra.mrb[0].mxu0 %v1916
        %v1918 = vpop.f32.mrb[0].mxu0
        %v1919 = vadd.f32 %v1804, %v1918
        %v1920 = vpop.f32.mrb[0].mxu0
        %1921 = vmatprep.mubr.f32.mxu0 0.0
        %v1922 = vand.u32 %v1172, 4294901760
        %1923 = vmatmul.mubr.f32.gmra.mrb[0].mxu0 %v1922
        %v1924 = vpop.f32.mrb[0].mxu0
        %v1925 = vadd.f32 %v1810, %v1924
        %v1926 = vpop.f32.mrb[0].mxu0
        %1927 = vmatprep.mubr.f32.mxu0 0.0
        %v1928 = vand.u32 %v1175, 4294901760
        %1929 = vmatmul.mubr.f32.gmra.mrb[0].mxu0 %v1928
        %v1930 = vpop.f32.mrb[0].mxu0
        %v1931 = vadd.f32 %v1816, %v1930
        %v1932 = vpop.f32.mrb[0].mxu0
        %1933 = vmatprep.mubr.f32.mxu0 0.0
        %v1934 = vand.u32 %v1178, 4294901760
        %1935 = vmatmul.mubr.f32.gmra.mrb[0].mxu0 %v1934
        %v1936 = vpop.f32.mrb[0].mxu0
        %v1937 = vadd.f32 %v1822, %v1936
        %v1938 = vpop.f32.mrb[0].mxu0
        %1939 = vdwg.mxu0
        %s1940 = scalar_lea.vmem %s324, 128 [#allocation2]
        %v1941 = vld [vmem:[%s1940] sm:$0xff]
        %v1942 = vld [vmem:[%s1940 + $0x8] sm:$0xff]
        %v1943 = vld [vmem:[%s1940 + $0x10] sm:$0xff]
        %v1944 = vld [vmem:[%s1940 + $0x18] sm:$0xff]
        %v1945 = vld [vmem:[%s1940 + $0x20] sm:$0xff]
        %v1946 = vld [vmem:[%s1940 + $0x28] sm:$0xff]
        %v1947 = vld [vmem:[%s1940 + $0x30] sm:$0xff]
        %v1948 = vld [vmem:[%s1940 + $0x38] sm:$0xff]
        %s1949 = scalar_lea.vmem %s324, 192 [#allocation2]
        %v1950 = vld [vmem:[%s1949] sm:$0xff]
        %v1951 = vld [vmem:[%s1949 + $0x8] sm:$0xff]
        %v1952 = vld [vmem:[%s1949 + $0x10] sm:$0xff]
        %v1953 = vld [vmem:[%s1949 + $0x18] sm:$0xff]
        %v1954 = vld [vmem:[%s1949 + $0x20] sm:$0xff]
        %v1955 = vld [vmem:[%s1949 + $0x28] sm:$0xff]
        %v1956 = vld [vmem:[%s1949 + $0x30] sm:$0xff]
        %v1957 = vld [vmem:[%s1949 + $0x38] sm:$0xff]
        %v1959 = vsel %vm371, %v1950, 0
        %v1962 = vsel %vm371, %v1951, 0
        %v1965 = vsel %vm371, %v1952, 0
        %v1968 = vsel %vm371, %v1953, 0
        %v1971 = vsel %vm371, %v1954, 0
        %v1974 = vsel %vm371, %v1955, 0
        %v1977 = vsel %vm371, %v1956, 0
        %v1980 = vsel %vm371, %v1957, 0
        %1982 = vmatprep.subr.mxu0 0.0
        %v1983 = vand.u32 %v348, 4294901760
        %1984 = vmatpush1.msra.mxu0 %v1983
        %1985 = vmatprep.subr.mxu0 0.0
        %v1986 = vand.u32 %v349, 4294901760
        %1987 = vmatpush1.msra.mxu0 %v1986
        %1988 = vmatprep.subr.mxu0 0.0
        %1989 = vmatpush1.msra.mxu0 0.0
        %1990 = vmatprep.subr.mxu0 0.0
        %1991 = vmatpush1.msra.mxu0 0.0
        %1992 = vmatprep.subr.mxu0 0.0
        %1993 = vmatpush1.msra.mxu0 0.0
        %1994 = vmatprep.subr.mxu0 0.0
        %1995 = vmatpush1.msra.mxu0 0.0
        %1996 = vmatprep.subr.mxu0 0.0
        %1997 = vmatpush1.msra.mxu0 0.0
        %1998 = vmatprep.subr.mxu0 0.0
        %1999 = vmatpush1.msra.mxu0 0.0
        %2000 = vmatprep.subr.mxu0 0.0
        %2001 = vmatpush1.msra.mxu0 0.0
        %2002 = vmatprep.subr.mxu0 0.0
        %2003 = vmatpush1.msra.mxu0 0.0
        %2004 = vmatprep.subr.mxu0 0.0
        %2005 = vmatpush1.msra.mxu0 0.0
        %2006 = vmatprep.subr.mxu0 0.0
        %2007 = vmatpush1.msra.mxu0 0.0
        %2008 = vmatprep.subr.mxu0 0.0
        %2009 = vmatpush1.msra.mxu0 0.0
        %2010 = vmatprep.subr.mxu0 0.0
        %2011 = vmatpush1.msra.mxu0 0.0
        %2012 = vmatprep.subr.mxu0 0.0
        %2013 = vmatpush1.msra.mxu0 0.0
        %2014 = vmatprep.subr.mxu0 0.0
        %2015 = vmatpush1.msra.mxu0 0.0
        %2016 = vmatprep.subr.mxu0 0.0
        %2017 = vmatpush1.msra.mxu0 0.0
        %2018 = vmatprep.subr.mxu0 0.0
        %2019 = vmatpush1.msra.mxu0 0.0
        %2020 = vmatprep.subr.mxu0 0.0
        %2021 = vmatpush1.msra.mxu0 0.0
        %2022 = vmatprep.subr.mxu0 0.0
        %2023 = vmatpush1.msra.mxu0 0.0
        %2024 = vmatprep.subr.mxu0 0.0
        %2025 = vmatpush1.msra.mxu0 0.0
        %2026 = vmatprep.subr.mxu0 0.0
        %2027 = vmatpush1.msra.mxu0 0.0
        %2028 = vmatprep.subr.mxu0 0.0
        %2029 = vmatpush1.msra.mxu0 0.0
        %2030 = vmatprep.subr.mxu0 0.0
        %2031 = vmatpush1.msra.mxu0 0.0
        %2032 = vmatprep.subr.mxu0 0.0
        %2033 = vmatpush1.msra.mxu0 0.0
        %2034 = vmatprep.subr.mxu0 0.0
        %2035 = vmatpush1.msra.mxu0 0.0
        %2036 = vmatprep.subr.mxu0 0.0
        %2037 = vmatpush1.msra.mxu0 0.0
        %2038 = vmatprep.subr.mxu0 0.0
        %2039 = vmatpush1.msra.mxu0 0.0
        %2040 = vmatprep.subr.mxu0 0.0
        %2041 = vmatpush1.msra.mxu0 0.0
        %2042 = vmatprep.subr.mxu0 0.0
        %2043 = vmatpush1.msra.mxu0 0.0
        %2044 = vmatprep.subr.mxu0 0.0
        %2045 = vmatpush1.msra.mxu0 0.0
        %2046 = vmatprep.subr.mxu0 0.0
        %2047 = vmatpush1.msra.mxu0 0.0
        %2048 = vmatprep.mubr.f32.mxu0 0.0
        %v2049 = vand.u32 %v1959, 4294901760
        %v2050 = vsub.f32 %v1959, %v2049
        %v2051 = vand.u32 %v2050, 4294901760
        %v2052 = vsub.f32 %v2050, %v2051
        %v2053 = vand.u32 %v2052, 4294901760
        %2054 = vmatmul.mubr.f32.gmra.mrb[0].mxu0 %v2053
        %v2055 = vpop.f32.mrb[0].mxu0
        %v2056 = vadd.f32 0.0, %v2055
        %v2057 = vpop.f32.mrb[0].mxu0
        %2058 = vmatprep.mubr.f32.mxu0 0.0
        %v2059 = vand.u32 %v1962, 4294901760
        %v2060 = vsub.f32 %v1962, %v2059
        %v2061 = vand.u32 %v2060, 4294901760
        %v2062 = vsub.f32 %v2060, %v2061
        %v2063 = vand.u32 %v2062, 4294901760
        %2064 = vmatmul.mubr.f32.gmra.mrb[0].mxu0 %v2063
        %v2065 = vpop.f32.mrb[0].mxu0
        %v2066 = vadd.f32 0.0, %v2065
        %v2067 = vpop.f32.mrb[0].mxu0
        %2068 = vmatprep.mubr.f32.mxu0 0.0
        %v2069 = vand.u32 %v1965, 4294901760
        %v2070 = vsub.f32 %v1965, %v2069
        %v2071 = vand.u32 %v2070, 4294901760
        %v2072 = vsub.f32 %v2070, %v2071
        %v2073 = vand.u32 %v2072, 4294901760
        %2074 = vmatmul.mubr.f32.gmra.mrb[0].mxu0 %v2073
        %v2075 = vpop.f32.mrb[0].mxu0
        %v2076 = vadd.f32 0.0, %v2075
        %v2077 = vpop.f32.mrb[0].mxu0
        %2078 = vmatprep.mubr.f32.mxu0 0.0
        %v2079 = vand.u32 %v1968, 4294901760
        %v2080 = vsub.f32 %v1968, %v2079
        %v2081 = vand.u32 %v2080, 4294901760
        %v2082 = vsub.f32 %v2080, %v2081
        %v2083 = vand.u32 %v2082, 4294901760
        %2084 = vmatmul.mubr.f32.gmra.mrb[0].mxu0 %v2083
        %v2085 = vpop.f32.mrb[0].mxu0
        %v2086 = vadd.f32 0.0, %v2085
        %v2087 = vpop.f32.mrb[0].mxu0
        %2088 = vmatprep.mubr.f32.mxu0 0.0
        %v2089 = vand.u32 %v1971, 4294901760
        %v2090 = vsub.f32 %v1971, %v2089
        %v2091 = vand.u32 %v2090, 4294901760
        %v2092 = vsub.f32 %v2090, %v2091
        %v2093 = vand.u32 %v2092, 4294901760
        %2094 = vmatmul.mubr.f32.gmra.mrb[0].mxu0 %v2093
        %v2095 = vpop.f32.mrb[0].mxu0
        %v2096 = vadd.f32 0.0, %v2095
        %v2097 = vpop.f32.mrb[0].mxu0
        %2098 = vmatprep.mubr.f32.mxu0 0.0
        %v2099 = vand.u32 %v1974, 4294901760
        %v2100 = vsub.f32 %v1974, %v2099
        %v2101 = vand.u32 %v2100, 4294901760
        %v2102 = vsub.f32 %v2100, %v2101
        %v2103 = vand.u32 %v2102, 4294901760
        %2104 = vmatmul.mubr.f32.gmra.mrb[0].mxu0 %v2103
        %v2105 = vpop.f32.mrb[0].mxu0
        %v2106 = vadd.f32 0.0, %v2105
        %v2107 = vpop.f32.mrb[0].mxu0
        %2108 = vmatprep.mubr.f32.mxu0 0.0
        %v2109 = vand.u32 %v1977, 4294901760
        %v2110 = vsub.f32 %v1977, %v2109
        %v2111 = vand.u32 %v2110, 4294901760
        %v2112 = vsub.f32 %v2110, %v2111
        %v2113 = vand.u32 %v2112, 4294901760
        %2114 = vmatmul.mubr.f32.gmra.mrb[0].mxu0 %v2113
        %v2115 = vpop.f32.mrb[0].mxu0
        %v2116 = vadd.f32 0.0, %v2115
        %v2117 = vpop.f32.mrb[0].mxu0
        %2118 = vmatprep.mubr.f32.mxu0 0.0
        %v2119 = vand.u32 %v1980, 4294901760
        %v2120 = vsub.f32 %v1980, %v2119
        %v2121 = vand.u32 %v2120, 4294901760
        %v2122 = vsub.f32 %v2120, %v2121
        %v2123 = vand.u32 %v2122, 4294901760
        %2124 = vmatmul.mubr.f32.gmra.mrb[0].mxu0 %v2123
        %v2125 = vpop.f32.mrb[0].mxu0
        %v2126 = vadd.f32 0.0, %v2125
        %v2127 = vpop.f32.mrb[0].mxu0
        %2128 = vdwg.mxu0
        %2129 = vmatprep.subr.mxu0 0.0
        %v2130 = vand.u32 %v348, 4294901760
        %v2131 = vsub.f32 %v348, %v2130
        %v2132 = vand.u32 %v2131, 4294901760
        %v2133 = vsub.f32 %v2131, %v2132
        %v2134 = vand.u32 %v2133, 4294901760
        %2135 = vmatpush1.msra.mxu0 %v2134
        %2136 = vmatprep.subr.mxu0 0.0
        %v2137 = vand.u32 %v349, 4294901760
        %v2138 = vsub.f32 %v349, %v2137
        %v2139 = vand.u32 %v2138, 4294901760
        %v2140 = vsub.f32 %v2138, %v2139
        %v2141 = vand.u32 %v2140, 4294901760
        %2142 = vmatpush1.msra.mxu0 %v2141
        %2143 = vmatprep.subr.mxu0 0.0
        %2144 = vmatpush1.msra.mxu0 0.0
        %2145 = vmatprep.subr.mxu0 0.0
        %2146 = vmatpush1.msra.mxu0 0.0
        %2147 = vmatprep.subr.mxu0 0.0
        %2148 = vmatpush1.msra.mxu0 0.0
        %2149 = vmatprep.subr.mxu0 0.0
        %2150 = vmatpush1.msra.mxu0 0.0
        %2151 = vmatprep.subr.mxu0 0.0
        %2152 = vmatpush1.msra.mxu0 0.0
        %2153 = vmatprep.subr.mxu0 0.0
        %2154 = vmatpush1.msra.mxu0 0.0
        %2155 = vmatprep.subr.mxu0 0.0
        %2156 = vmatpush1.msra.mxu0 0.0
        %2157 = vmatprep.subr.mxu0 0.0
        %2158 = vmatpush1.msra.mxu0 0.0
        %2159 = vmatprep.subr.mxu0 0.0
        %2160 = vmatpush1.msra.mxu0 0.0
        %2161 = vmatprep.subr.mxu0 0.0
        %2162 = vmatpush1.msra.mxu0 0.0
        %2163 = vmatprep.subr.mxu0 0.0
        %2164 = vmatpush1.msra.mxu0 0.0
        %2165 = vmatprep.subr.mxu0 0.0
        %2166 = vmatpush1.msra.mxu0 0.0
        %2167 = vmatprep.subr.mxu0 0.0
        %2168 = vmatpush1.msra.mxu0 0.0
        %2169 = vmatprep.subr.mxu0 0.0
        %2170 = vmatpush1.msra.mxu0 0.0
        %2171 = vmatprep.subr.mxu0 0.0
        %2172 = vmatpush1.msra.mxu0 0.0
        %2173 = vmatprep.subr.mxu0 0.0
        %2174 = vmatpush1.msra.mxu0 0.0
        %2175 = vmatprep.subr.mxu0 0.0
        %2176 = vmatpush1.msra.mxu0 0.0
        %2177 = vmatprep.subr.mxu0 0.0
        %2178 = vmatpush1.msra.mxu0 0.0
        %2179 = vmatprep.subr.mxu0 0.0
        %2180 = vmatpush1.msra.mxu0 0.0
        %2181 = vmatprep.subr.mxu0 0.0
        %2182 = vmatpush1.msra.mxu0 0.0
        %2183 = vmatprep.subr.mxu0 0.0
        %2184 = vmatpush1.msra.mxu0 0.0
        %2185 = vmatprep.subr.mxu0 0.0
        %2186 = vmatpush1.msra.mxu0 0.0
        %2187 = vmatprep.subr.mxu0 0.0
        %2188 = vmatpush1.msra.mxu0 0.0
        %2189 = vmatprep.subr.mxu0 0.0
        %2190 = vmatpush1.msra.mxu0 0.0
        %2191 = vmatprep.subr.mxu0 0.0
        %2192 = vmatpush1.msra.mxu0 0.0
        %2193 = vmatprep.subr.mxu0 0.0
        %2194 = vmatpush1.msra.mxu0 0.0
        %2195 = vmatprep.subr.mxu0 0.0
        %2196 = vmatpush1.msra.mxu0 0.0
        %2197 = vmatprep.subr.mxu0 0.0
        %2198 = vmatpush1.msra.mxu0 0.0
        %2199 = vmatprep.subr.mxu0 0.0
        %2200 = vmatpush1.msra.mxu0 0.0
        %2201 = vmatprep.subr.mxu0 0.0
        %2202 = vmatpush1.msra.mxu0 0.0
        %2203 = vmatprep.mubr.f32.mxu0 0.0
        %v2204 = vand.u32 %v1959, 4294901760
        %2205 = vmatmul.mubr.f32.gmra.mrb[0].mxu0 %v2204
        %v2206 = vpop.f32.mrb[0].mxu0
        %v2207 = vadd.f32 %v2056, %v2206
        %v2208 = vpop.f32.mrb[0].mxu0
        %2209 = vmatprep.mubr.f32.mxu0 0.0
        %v2210 = vand.u32 %v1962, 4294901760
        %2211 = vmatmul.mubr.f32.gmra.mrb[0].mxu0 %v2210
        %v2212 = vpop.f32.mrb[0].mxu0
        %v2213 = vadd.f32 %v2066, %v2212
        %v2214 = vpop.f32.mrb[0].mxu0
        %2215 = vmatprep.mubr.f32.mxu0 0.0
        %v2216 = vand.u32 %v1965, 4294901760
        %2217 = vmatmul.mubr.f32.gmra.mrb[0].mxu0 %v2216
        %v2218 = vpop.f32.mrb[0].mxu0
        %v2219 = vadd.f32 %v2076, %v2218
        %v2220 = vpop.f32.mrb[0].mxu0
        %2221 = vmatprep.mubr.f32.mxu0 0.0
        %v2222 = vand.u32 %v1968, 4294901760
        %2223 = vmatmul.mubr.f32.gmra.mrb[0].mxu0 %v2222
        %v2224 = vpop.f32.mrb[0].mxu0
        %v2225 = vadd.f32 %v2086, %v2224
        %v2226 = vpop.f32.mrb[0].mxu0
        %2227 = vmatprep.mubr.f32.mxu0 0.0
        %v2228 = vand.u32 %v1971, 4294901760
        %2229 = vmatmul.mubr.f32.gmra.mrb[0].mxu0 %v2228
        %v2230 = vpop.f32.mrb[0].mxu0
        %v2231 = vadd.f32 %v2096, %v2230
        %v2232 = vpop.f32.mrb[0].mxu0
        %2233 = vmatprep.mubr.f32.mxu0 0.0
        %v2234 = vand.u32 %v1974, 4294901760
        %2235 = vmatmul.mubr.f32.gmra.mrb[0].mxu0 %v2234
        %v2236 = vpop.f32.mrb[0].mxu0
        %v2237 = vadd.f32 %v2106, %v2236
        %v2238 = vpop.f32.mrb[0].mxu0
        %2239 = vmatprep.mubr.f32.mxu0 0.0
        %v2240 = vand.u32 %v1977, 4294901760
        %2241 = vmatmul.mubr.f32.gmra.mrb[0].mxu0 %v2240
        %v2242 = vpop.f32.mrb[0].mxu0
        %v2243 = vadd.f32 %v2116, %v2242
        %v2244 = vpop.f32.mrb[0].mxu0
        %2245 = vmatprep.mubr.f32.mxu0 0.0
        %v2246 = vand.u32 %v1980, 4294901760
        %2247 = vmatmul.mubr.f32.gmra.mrb[0].mxu0 %v2246
        %v2248 = vpop.f32.mrb[0].mxu0
        %v2249 = vadd.f32 %v2126, %v2248
        %v2250 = vpop.f32.mrb[0].mxu0
        %2251 = vdwg.mxu0
        %2252 = vmatprep.subr.mxu0 0.0
        %v2253 = vand.u32 %v348, 4294901760
        %v2254 = vsub.f32 %v348, %v2253
        %2255 = vmatpush1.msra.mxu0 %v2254
        %2256 = vmatprep.subr.mxu0 0.0
        %v2257 = vand.u32 %v349, 4294901760
        %v2258 = vsub.f32 %v349, %v2257
        %2259 = vmatpush1.msra.mxu0 %v2258
        %2260 = vmatprep.subr.mxu0 0.0
        %2261 = vmatpush1.msra.mxu0 0.0
        %2262 = vmatprep.subr.mxu0 0.0
        %2263 = vmatpush1.msra.mxu0 0.0
        %2264 = vmatprep.subr.mxu0 0.0
        %2265 = vmatpush1.msra.mxu0 0.0
        %2266 = vmatprep.subr.mxu0 0.0
        %2267 = vmatpush1.msra.mxu0 0.0
        %2268 = vmatprep.subr.mxu0 0.0
        %2269 = vmatpush1.msra.mxu0 0.0
        %2270 = vmatprep.subr.mxu0 0.0
        %2271 = vmatpush1.msra.mxu0 0.0
        %2272 = vmatprep.subr.mxu0 0.0
        %2273 = vmatpush1.msra.mxu0 0.0
        %2274 = vmatprep.subr.mxu0 0.0
        %2275 = vmatpush1.msra.mxu0 0.0
        %2276 = vmatprep.subr.mxu0 0.0
        %2277 = vmatpush1.msra.mxu0 0.0
        %2278 = vmatprep.subr.mxu0 0.0
        %2279 = vmatpush1.msra.mxu0 0.0
        %2280 = vmatprep.subr.mxu0 0.0
        %2281 = vmatpush1.msra.mxu0 0.0
        %2282 = vmatprep.subr.mxu0 0.0
        %2283 = vmatpush1.msra.mxu0 0.0
        %2284 = vmatprep.subr.mxu0 0.0
        %2285 = vmatpush1.msra.mxu0 0.0
        %2286 = vmatprep.subr.mxu0 0.0
        %2287 = vmatpush1.msra.mxu0 0.0
        %2288 = vmatprep.subr.mxu0 0.0
        %2289 = vmatpush1.msra.mxu0 0.0
        %2290 = vmatprep.subr.mxu0 0.0
        %2291 = vmatpush1.msra.mxu0 0.0
        %2292 = vmatprep.subr.mxu0 0.0
        %2293 = vmatpush1.msra.mxu0 0.0
        %2294 = vmatprep.subr.mxu0 0.0
        %2295 = vmatpush1.msra.mxu0 0.0
        %2296 = vmatprep.subr.mxu0 0.0
        %2297 = vmatpush1.msra.mxu0 0.0
        %2298 = vmatprep.subr.mxu0 0.0
        %2299 = vmatpush1.msra.mxu0 0.0
        %2300 = vmatprep.subr.mxu0 0.0
        %2301 = vmatpush1.msra.mxu0 0.0
        %2302 = vmatprep.subr.mxu0 0.0
        %2303 = vmatpush1.msra.mxu0 0.0
        %2304 = vmatprep.subr.mxu0 0.0
        %2305 = vmatpush1.msra.mxu0 0.0
        %2306 = vmatprep.subr.mxu0 0.0
        %2307 = vmatpush1.msra.mxu0 0.0
        %2308 = vmatprep.subr.mxu0 0.0
        %2309 = vmatpush1.msra.mxu0 0.0
        %2310 = vmatprep.subr.mxu0 0.0
        %2311 = vmatpush1.msra.mxu0 0.0
        %2312 = vmatprep.subr.mxu0 0.0
        %2313 = vmatpush1.msra.mxu0 0.0
        %2314 = vmatprep.subr.mxu0 0.0
        %2315 = vmatpush1.msra.mxu0 0.0
        %2316 = vmatprep.subr.mxu0 0.0
        %2317 = vmatpush1.msra.mxu0 0.0
        %2318 = vmatprep.subr.mxu0 0.0
        %2319 = vmatpush1.msra.mxu0 0.0
        %2320 = vmatprep.mubr.f32.mxu0 0.0
        %v2321 = vand.u32 %v1959, 4294901760
        %v2322 = vsub.f32 %v1959, %v2321
        %2323 = vmatmul.mubr.f32.gmra.mrb[0].mxu0 %v2322
        %v2324 = vpop.f32.mrb[0].mxu0
        %v2325 = vadd.f32 %v2207, %v2324
        %v2326 = vpop.f32.mrb[0].mxu0
        %2327 = vmatprep.mubr.f32.mxu0 0.0
        %v2328 = vand.u32 %v1962, 4294901760
        %v2329 = vsub.f32 %v1962, %v2328
        %2330 = vmatmul.mubr.f32.gmra.mrb[0].mxu0 %v2329
        %v2331 = vpop.f32.mrb[0].mxu0
        %v2332 = vadd.f32 %v2213, %v2331
        %v2333 = vpop.f32.mrb[0].mxu0
        %2334 = vmatprep.mubr.f32.mxu0 0.0
        %v2335 = vand.u32 %v1965, 4294901760
        %v2336 = vsub.f32 %v1965, %v2335
        %2337 = vmatmul.mubr.f32.gmra.mrb[0].mxu0 %v2336
        %v2338 = vpop.f32.mrb[0].mxu0
        %v2339 = vadd.f32 %v2219, %v2338
        %v2340 = vpop.f32.mrb[0].mxu0
        %2341 = vmatprep.mubr.f32.mxu0 0.0
        %v2342 = vand.u32 %v1968, 4294901760
        %v2343 = vsub.f32 %v1968, %v2342
        %2344 = vmatmul.mubr.f32.gmra.mrb[0].mxu0 %v2343
        %v2345 = vpop.f32.mrb[0].mxu0
        %v2346 = vadd.f32 %v2225, %v2345
        %v2347 = vpop.f32.mrb[0].mxu0
        %2348 = vmatprep.mubr.f32.mxu0 0.0
        %v2349 = vand.u32 %v1971, 4294901760
        %v2350 = vsub.f32 %v1971, %v2349
        %2351 = vmatmul.mubr.f32.gmra.mrb[0].mxu0 %v2350
        %v2352 = vpop.f32.mrb[0].mxu0
        %v2353 = vadd.f32 %v2231, %v2352
        %v2354 = vpop.f32.mrb[0].mxu0
        %2355 = vmatprep.mubr.f32.mxu0 0.0
        %v2356 = vand.u32 %v1974, 4294901760
        %v2357 = vsub.f32 %v1974, %v2356
        %2358 = vmatmul.mubr.f32.gmra.mrb[0].mxu0 %v2357
        %v2359 = vpop.f32.mrb[0].mxu0
        %v2360 = vadd.f32 %v2237, %v2359
        %v2361 = vpop.f32.mrb[0].mxu0
        %2362 = vmatprep.mubr.f32.mxu0 0.0
        %v2363 = vand.u32 %v1977, 4294901760
        %v2364 = vsub.f32 %v1977, %v2363
        %2365 = vmatmul.mubr.f32.gmra.mrb[0].mxu0 %v2364
        %v2366 = vpop.f32.mrb[0].mxu0
        %v2367 = vadd.f32 %v2243, %v2366
        %v2368 = vpop.f32.mrb[0].mxu0
        %2369 = vmatprep.mubr.f32.mxu0 0.0
        %v2370 = vand.u32 %v1980, 4294901760
        %v2371 = vsub.f32 %v1980, %v2370
        %2372 = vmatmul.mubr.f32.gmra.mrb[0].mxu0 %v2371
        %v2373 = vpop.f32.mrb[0].mxu0
        %v2374 = vadd.f32 %v2249, %v2373
        %v2375 = vpop.f32.mrb[0].mxu0
        %2376 = vdwg.mxu0
        %2377 = vmatprep.subr.mxu0 0.0
        %v2378 = vand.u32 %v348, 4294901760
        %2379 = vmatpush1.msra.mxu0 %v2378
        %2380 = vmatprep.subr.mxu0 0.0
        %v2381 = vand.u32 %v349, 4294901760
        %2382 = vmatpush1.msra.mxu0 %v2381
        %2383 = vmatprep.subr.mxu0 0.0
        %2384 = vmatpush1.msra.mxu0 0.0
        %2385 = vmatprep.subr.mxu0 0.0
        %2386 = vmatpush1.msra.mxu0 0.0
        %2387 = vmatprep.subr.mxu0 0.0
        %2388 = vmatpush1.msra.mxu0 0.0
        %2389 = vmatprep.subr.mxu0 0.0
        %2390 = vmatpush1.msra.mxu0 0.0
        %2391 = vmatprep.subr.mxu0 0.0
        %2392 = vmatpush1.msra.mxu0 0.0
        %2393 = vmatprep.subr.mxu0 0.0
        %2394 = vmatpush1.msra.mxu0 0.0
        %2395 = vmatprep.subr.mxu0 0.0
        %2396 = vmatpush1.msra.mxu0 0.0
        %2397 = vmatprep.subr.mxu0 0.0
        %2398 = vmatpush1.msra.mxu0 0.0
        %2399 = vmatprep.subr.mxu0 0.0
        %2400 = vmatpush1.msra.mxu0 0.0
        %2401 = vmatprep.subr.mxu0 0.0
        %2402 = vmatpush1.msra.mxu0 0.0
        %2403 = vmatprep.subr.mxu0 0.0
        %2404 = vmatpush1.msra.mxu0 0.0
        %2405 = vmatprep.subr.mxu0 0.0
        %2406 = vmatpush1.msra.mxu0 0.0
        %2407 = vmatprep.subr.mxu0 0.0
        %2408 = vmatpush1.msra.mxu0 0.0
        %2409 = vmatprep.subr.mxu0 0.0
        %2410 = vmatpush1.msra.mxu0 0.0
        %2411 = vmatprep.subr.mxu0 0.0
        %2412 = vmatpush1.msra.mxu0 0.0
        %2413 = vmatprep.subr.mxu0 0.0
        %2414 = vmatpush1.msra.mxu0 0.0
        %2415 = vmatprep.subr.mxu0 0.0
        %2416 = vmatpush1.msra.mxu0 0.0
        %2417 = vmatprep.subr.mxu0 0.0
        %2418 = vmatpush1.msra.mxu0 0.0
        %2419 = vmatprep.subr.mxu0 0.0
        %2420 = vmatpush1.msra.mxu0 0.0
        %2421 = vmatprep.subr.mxu0 0.0
        %2422 = vmatpush1.msra.mxu0 0.0
        %2423 = vmatprep.subr.mxu0 0.0
        %2424 = vmatpush1.msra.mxu0 0.0
        %2425 = vmatprep.subr.mxu0 0.0
        %2426 = vmatpush1.msra.mxu0 0.0
        %2427 = vmatprep.subr.mxu0 0.0
        %2428 = vmatpush1.msra.mxu0 0.0
        %2429 = vmatprep.subr.mxu0 0.0
        %2430 = vmatpush1.msra.mxu0 0.0
        %2431 = vmatprep.subr.mxu0 0.0
        %2432 = vmatpush1.msra.mxu0 0.0
        %2433 = vmatprep.subr.mxu0 0.0
        %2434 = vmatpush1.msra.mxu0 0.0
        %2435 = vmatprep.subr.mxu0 0.0
        %2436 = vmatpush1.msra.mxu0 0.0
        %2437 = vmatprep.subr.mxu0 0.0
        %2438 = vmatpush1.msra.mxu0 0.0
        %2439 = vmatprep.subr.mxu0 0.0
        %2440 = vmatpush1.msra.mxu0 0.0
        %2441 = vmatprep.subr.mxu0 0.0
        %2442 = vmatpush1.msra.mxu0 0.0
        %2443 = vmatprep.mubr.f32.mxu0 0.0
        %v2444 = vand.u32 %v1959, 4294901760
        %v2445 = vsub.f32 %v1959, %v2444
        %v2446 = vand.u32 %v2445, 4294901760
        %2447 = vmatmul.mubr.f32.gmra.mrb[0].mxu0 %v2446
        %v2448 = vpop.f32.mrb[0].mxu0
        %v2449 = vadd.f32 %v2325, %v2448
        %v2450 = vpop.f32.mrb[0].mxu0
        %2451 = vmatprep.mubr.f32.mxu0 0.0
        %v2452 = vand.u32 %v1962, 4294901760
        %v2453 = vsub.f32 %v1962, %v2452
        %v2454 = vand.u32 %v2453, 4294901760
        %2455 = vmatmul.mubr.f32.gmra.mrb[0].mxu0 %v2454
        %v2456 = vpop.f32.mrb[0].mxu0
        %v2457 = vadd.f32 %v2332, %v2456
        %v2458 = vpop.f32.mrb[0].mxu0
        %2459 = vmatprep.mubr.f32.mxu0 0.0
        %v2460 = vand.u32 %v1965, 4294901760
        %v2461 = vsub.f32 %v1965, %v2460
        %v2462 = vand.u32 %v2461, 4294901760
        %2463 = vmatmul.mubr.f32.gmra.mrb[0].mxu0 %v2462
        %v2464 = vpop.f32.mrb[0].mxu0
        %v2465 = vadd.f32 %v2339, %v2464
        %v2466 = vpop.f32.mrb[0].mxu0
        %2467 = vmatprep.mubr.f32.mxu0 0.0
        %v2468 = vand.u32 %v1968, 4294901760
        %v2469 = vsub.f32 %v1968, %v2468
        %v2470 = vand.u32 %v2469, 4294901760
        %2471 = vmatmul.mubr.f32.gmra.mrb[0].mxu0 %v2470
        %v2472 = vpop.f32.mrb[0].mxu0
        %v2473 = vadd.f32 %v2346, %v2472
        %v2474 = vpop.f32.mrb[0].mxu0
        %2475 = vmatprep.mubr.f32.mxu0 0.0
        %v2476 = vand.u32 %v1971, 4294901760
        %v2477 = vsub.f32 %v1971, %v2476
        %v2478 = vand.u32 %v2477, 4294901760
        %2479 = vmatmul.mubr.f32.gmra.mrb[0].mxu0 %v2478
        %v2480 = vpop.f32.mrb[0].mxu0
        %v2481 = vadd.f32 %v2353, %v2480
        %v2482 = vpop.f32.mrb[0].mxu0
        %2483 = vmatprep.mubr.f32.mxu0 0.0
        %v2484 = vand.u32 %v1974, 4294901760
        %v2485 = vsub.f32 %v1974, %v2484
        %v2486 = vand.u32 %v2485, 4294901760
        %2487 = vmatmul.mubr.f32.gmra.mrb[0].mxu0 %v2486
        %v2488 = vpop.f32.mrb[0].mxu0
        %v2489 = vadd.f32 %v2360, %v2488
        %v2490 = vpop.f32.mrb[0].mxu0
        %2491 = vmatprep.mubr.f32.mxu0 0.0
        %v2492 = vand.u32 %v1977, 4294901760
        %v2493 = vsub.f32 %v1977, %v2492
        %v2494 = vand.u32 %v2493, 4294901760
        %2495 = vmatmul.mubr.f32.gmra.mrb[0].mxu0 %v2494
        %v2496 = vpop.f32.mrb[0].mxu0
        %v2497 = vadd.f32 %v2367, %v2496
        %v2498 = vpop.f32.mrb[0].mxu0
        %2499 = vmatprep.mubr.f32.mxu0 0.0
        %v2500 = vand.u32 %v1980, 4294901760
        %v2501 = vsub.f32 %v1980, %v2500
        %v2502 = vand.u32 %v2501, 4294901760
        %2503 = vmatmul.mubr.f32.gmra.mrb[0].mxu0 %v2502
        %v2504 = vpop.f32.mrb[0].mxu0
        %v2505 = vadd.f32 %v2374, %v2504
        %v2506 = vpop.f32.mrb[0].mxu0
        %2507 = vdwg.mxu0
        %2508 = vmatprep.subr.mxu0 0.0
        %v2509 = vand.u32 %v348, 4294901760
        %v2510 = vsub.f32 %v348, %v2509
        %v2511 = vand.u32 %v2510, 4294901760
        %2512 = vmatpush1.msra.mxu0 %v2511
        %2513 = vmatprep.subr.mxu0 0.0
        %v2514 = vand.u32 %v349, 4294901760
        %v2515 = vsub.f32 %v349, %v2514
        %v2516 = vand.u32 %v2515, 4294901760
        %2517 = vmatpush1.msra.mxu0 %v2516
        %2518 = vmatprep.subr.mxu0 0.0
        %2519 = vmatpush1.msra.mxu0 0.0
        %2520 = vmatprep.subr.mxu0 0.0
        %2521 = vmatpush1.msra.mxu0 0.0
        %2522 = vmatprep.subr.mxu0 0.0
        %2523 = vmatpush1.msra.mxu0 0.0
        %2524 = vmatprep.subr.mxu0 0.0
        %2525 = vmatpush1.msra.mxu0 0.0
        %2526 = vmatprep.subr.mxu0 0.0
        %2527 = vmatpush1.msra.mxu0 0.0
        %2528 = vmatprep.subr.mxu0 0.0
        %2529 = vmatpush1.msra.mxu0 0.0
        %2530 = vmatprep.subr.mxu0 0.0
        %2531 = vmatpush1.msra.mxu0 0.0
        %2532 = vmatprep.subr.mxu0 0.0
        %2533 = vmatpush1.msra.mxu0 0.0
        %2534 = vmatprep.subr.mxu0 0.0
        %2535 = vmatpush1.msra.mxu0 0.0
        %2536 = vmatprep.subr.mxu0 0.0
        %2537 = vmatpush1.msra.mxu0 0.0
        %2538 = vmatprep.subr.mxu0 0.0
        %2539 = vmatpush1.msra.mxu0 0.0
        %2540 = vmatprep.subr.mxu0 0.0
        %2541 = vmatpush1.msra.mxu0 0.0
        %2542 = vmatprep.subr.mxu0 0.0
        %2543 = vmatpush1.msra.mxu0 0.0
        %2544 = vmatprep.subr.mxu0 0.0
        %2545 = vmatpush1.msra.mxu0 0.0
        %2546 = vmatprep.subr.mxu0 0.0
        %2547 = vmatpush1.msra.mxu0 0.0
        %2548 = vmatprep.subr.mxu0 0.0
        %2549 = vmatpush1.msra.mxu0 0.0
        %2550 = vmatprep.subr.mxu0 0.0
        %2551 = vmatpush1.msra.mxu0 0.0
        %2552 = vmatprep.subr.mxu0 0.0
        %2553 = vmatpush1.msra.mxu0 0.0
        %2554 = vmatprep.subr.mxu0 0.0
        %2555 = vmatpush1.msra.mxu0 0.0
        %2556 = vmatprep.subr.mxu0 0.0
        %2557 = vmatpush1.msra.mxu0 0.0
        %2558 = vmatprep.subr.mxu0 0.0
        %2559 = vmatpush1.msra.mxu0 0.0
        %2560 = vmatprep.subr.mxu0 0.0
        %2561 = vmatpush1.msra.mxu0 0.0
        %2562 = vmatprep.subr.mxu0 0.0
        %2563 = vmatpush1.msra.mxu0 0.0
        %2564 = vmatprep.subr.mxu0 0.0
        %2565 = vmatpush1.msra.mxu0 0.0
        %2566 = vmatprep.subr.mxu0 0.0
        %2567 = vmatpush1.msra.mxu0 0.0
        %2568 = vmatprep.subr.mxu0 0.0
        %2569 = vmatpush1.msra.mxu0 0.0
        %2570 = vmatprep.subr.mxu0 0.0
        %2571 = vmatpush1.msra.mxu0 0.0
        %2572 = vmatprep.subr.mxu0 0.0
        %2573 = vmatpush1.msra.mxu0 0.0
        %2574 = vmatprep.subr.mxu0 0.0
        %2575 = vmatpush1.msra.mxu0 0.0
        %2576 = vmatprep.subr.mxu0 0.0
        %2577 = vmatpush1.msra.mxu0 0.0
        %2578 = vmatprep.mubr.f32.mxu0 0.0
        %v2579 = vand.u32 %v1959, 4294901760
        %2580 = vmatmul.mubr.f32.gmra.mrb[0].mxu0 %v2579
        %v2581 = vpop.f32.mrb[0].mxu0
        %v2582 = vadd.f32 %v2449, %v2581
        %v2583 = vpop.f32.mrb[0].mxu0
        %2584 = vmatprep.mubr.f32.mxu0 0.0
        %v2585 = vand.u32 %v1962, 4294901760
        %2586 = vmatmul.mubr.f32.gmra.mrb[0].mxu0 %v2585
        %v2587 = vpop.f32.mrb[0].mxu0
        %v2588 = vadd.f32 %v2457, %v2587
        %v2589 = vpop.f32.mrb[0].mxu0
        %2590 = vmatprep.mubr.f32.mxu0 0.0
        %v2591 = vand.u32 %v1965, 4294901760
        %2592 = vmatmul.mubr.f32.gmra.mrb[0].mxu0 %v2591
        %v2593 = vpop.f32.mrb[0].mxu0
        %v2594 = vadd.f32 %v2465, %v2593
        %v2595 = vpop.f32.mrb[0].mxu0
        %2596 = vmatprep.mubr.f32.mxu0 0.0
        %v2597 = vand.u32 %v1968, 4294901760
        %2598 = vmatmul.mubr.f32.gmra.mrb[0].mxu0 %v2597
        %v2599 = vpop.f32.mrb[0].mxu0
        %v2600 = vadd.f32 %v2473, %v2599
        %v2601 = vpop.f32.mrb[0].mxu0
        %2602 = vmatprep.mubr.f32.mxu0 0.0
        %v2603 = vand.u32 %v1971, 4294901760
        %2604 = vmatmul.mubr.f32.gmra.mrb[0].mxu0 %v2603
        %v2605 = vpop.f32.mrb[0].mxu0
        %v2606 = vadd.f32 %v2481, %v2605
        %v2607 = vpop.f32.mrb[0].mxu0
        %2608 = vmatprep.mubr.f32.mxu0 0.0
        %v2609 = vand.u32 %v1974, 4294901760
        %2610 = vmatmul.mubr.f32.gmra.mrb[0].mxu0 %v2609
        %v2611 = vpop.f32.mrb[0].mxu0
        %v2612 = vadd.f32 %v2489, %v2611
        %v2613 = vpop.f32.mrb[0].mxu0
        %2614 = vmatprep.mubr.f32.mxu0 0.0
        %v2615 = vand.u32 %v1977, 4294901760
        %2616 = vmatmul.mubr.f32.gmra.mrb[0].mxu0 %v2615
        %v2617 = vpop.f32.mrb[0].mxu0
        %v2618 = vadd.f32 %v2497, %v2617
        %v2619 = vpop.f32.mrb[0].mxu0
        %2620 = vmatprep.mubr.f32.mxu0 0.0
        %v2621 = vand.u32 %v1980, 4294901760
        %2622 = vmatmul.mubr.f32.gmra.mrb[0].mxu0 %v2621
        %v2623 = vpop.f32.mrb[0].mxu0
        %v2624 = vadd.f32 %v2505, %v2623
        %v2625 = vpop.f32.mrb[0].mxu0
        %2626 = vdwg.mxu0
        %2627 = vmatprep.subr.mxu0 0.0
        %v2628 = vand.u32 %v348, 4294901760
        %2629 = vmatpush1.msra.mxu0 %v2628
        %2630 = vmatprep.subr.mxu0 0.0
        %v2631 = vand.u32 %v349, 4294901760
        %2632 = vmatpush1.msra.mxu0 %v2631
        %2633 = vmatprep.subr.mxu0 0.0
        %2634 = vmatpush1.msra.mxu0 0.0
        %2635 = vmatprep.subr.mxu0 0.0
        %2636 = vmatpush1.msra.mxu0 0.0
        %2637 = vmatprep.subr.mxu0 0.0
        %2638 = vmatpush1.msra.mxu0 0.0
        %2639 = vmatprep.subr.mxu0 0.0
        %2640 = vmatpush1.msra.mxu0 0.0
        %2641 = vmatprep.subr.mxu0 0.0
        %2642 = vmatpush1.msra.mxu0 0.0
        %2643 = vmatprep.subr.mxu0 0.0
        %2644 = vmatpush1.msra.mxu0 0.0
        %2645 = vmatprep.subr.mxu0 0.0
        %2646 = vmatpush1.msra.mxu0 0.0
        %2647 = vmatprep.subr.mxu0 0.0
        %2648 = vmatpush1.msra.mxu0 0.0
        %2649 = vmatprep.subr.mxu0 0.0
        %2650 = vmatpush1.msra.mxu0 0.0
        %2651 = vmatprep.subr.mxu0 0.0
        %2652 = vmatpush1.msra.mxu0 0.0
        %2653 = vmatprep.subr.mxu0 0.0
        %2654 = vmatpush1.msra.mxu0 0.0
        %2655 = vmatprep.subr.mxu0 0.0
        %2656 = vmatpush1.msra.mxu0 0.0
        %2657 = vmatprep.subr.mxu0 0.0
        %2658 = vmatpush1.msra.mxu0 0.0
        %2659 = vmatprep.subr.mxu0 0.0
        %2660 = vmatpush1.msra.mxu0 0.0
        %2661 = vmatprep.subr.mxu0 0.0
        %2662 = vmatpush1.msra.mxu0 0.0
        %2663 = vmatprep.subr.mxu0 0.0
        %2664 = vmatpush1.msra.mxu0 0.0
        %2665 = vmatprep.subr.mxu0 0.0
        %2666 = vmatpush1.msra.mxu0 0.0
        %2667 = vmatprep.subr.mxu0 0.0
        %2668 = vmatpush1.msra.mxu0 0.0
        %2669 = vmatprep.subr.mxu0 0.0
        %2670 = vmatpush1.msra.mxu0 0.0
        %2671 = vmatprep.subr.mxu0 0.0
        %2672 = vmatpush1.msra.mxu0 0.0
        %2673 = vmatprep.subr.mxu0 0.0
        %2674 = vmatpush1.msra.mxu0 0.0
        %2675 = vmatprep.subr.mxu0 0.0
        %2676 = vmatpush1.msra.mxu0 0.0
        %2677 = vmatprep.subr.mxu0 0.0
        %2678 = vmatpush1.msra.mxu0 0.0
        %2679 = vmatprep.subr.mxu0 0.0
        %2680 = vmatpush1.msra.mxu0 0.0
        %2681 = vmatprep.subr.mxu0 0.0
        %2682 = vmatpush1.msra.mxu0 0.0
        %2683 = vmatprep.subr.mxu0 0.0
        %2684 = vmatpush1.msra.mxu0 0.0
        %2685 = vmatprep.subr.mxu0 0.0
        %2686 = vmatpush1.msra.mxu0 0.0
        %2687 = vmatprep.subr.mxu0 0.0
        %2688 = vmatpush1.msra.mxu0 0.0
        %2689 = vmatprep.subr.mxu0 0.0
        %2690 = vmatpush1.msra.mxu0 0.0
        %2691 = vmatprep.subr.mxu0 0.0
        %2692 = vmatpush1.msra.mxu0 0.0
        %2693 = vmatprep.mubr.f32.mxu0 0.0
        %v2694 = vand.u32 %v1959, 4294901760
        %2695 = vmatmul.mubr.f32.gmra.mrb[0].mxu0 %v2694
        %v2696 = vpop.f32.mrb[0].mxu0
        %v2697 = vadd.f32 %v2582, %v2696
        %v2698 = vpop.f32.mrb[0].mxu0
        %2699 = vmatprep.mubr.f32.mxu0 0.0
        %v2700 = vand.u32 %v1962, 4294901760
        %2701 = vmatmul.mubr.f32.gmra.mrb[0].mxu0 %v2700
        %v2702 = vpop.f32.mrb[0].mxu0
        %v2703 = vadd.f32 %v2588, %v2702
        %v2704 = vpop.f32.mrb[0].mxu0
        %2705 = vmatprep.mubr.f32.mxu0 0.0
        %v2706 = vand.u32 %v1965, 4294901760
        %2707 = vmatmul.mubr.f32.gmra.mrb[0].mxu0 %v2706
        %v2708 = vpop.f32.mrb[0].mxu0
        %v2709 = vadd.f32 %v2594, %v2708
        %v2710 = vpop.f32.mrb[0].mxu0
        %2711 = vmatprep.mubr.f32.mxu0 0.0
        %v2712 = vand.u32 %v1968, 4294901760
        %2713 = vmatmul.mubr.f32.gmra.mrb[0].mxu0 %v2712
        %v2714 = vpop.f32.mrb[0].mxu0
        %v2715 = vadd.f32 %v2600, %v2714
        %v2716 = vpop.f32.mrb[0].mxu0
        %2717 = vmatprep.mubr.f32.mxu0 0.0
        %v2718 = vand.u32 %v1971, 4294901760
        %2719 = vmatmul.mubr.f32.gmra.mrb[0].mxu0 %v2718
        %v2720 = vpop.f32.mrb[0].mxu0
        %v2721 = vadd.f32 %v2606, %v2720
        %v2722 = vpop.f32.mrb[0].mxu0
        %2723 = vmatprep.mubr.f32.mxu0 0.0
        %v2724 = vand.u32 %v1974, 4294901760
        %2725 = vmatmul.mubr.f32.gmra.mrb[0].mxu0 %v2724
        %v2726 = vpop.f32.mrb[0].mxu0
        %v2727 = vadd.f32 %v2612, %v2726
        %v2728 = vpop.f32.mrb[0].mxu0
        %2729 = vmatprep.mubr.f32.mxu0 0.0
        %v2730 = vand.u32 %v1977, 4294901760
        %2731 = vmatmul.mubr.f32.gmra.mrb[0].mxu0 %v2730
        %v2732 = vpop.f32.mrb[0].mxu0
        %v2733 = vadd.f32 %v2618, %v2732
        %v2734 = vpop.f32.mrb[0].mxu0
        %2735 = vmatprep.mubr.f32.mxu0 0.0
        %v2736 = vand.u32 %v1980, 4294901760
        %2737 = vmatmul.mubr.f32.gmra.mrb[0].mxu0 %v2736
        %v2738 = vpop.f32.mrb[0].mxu0
        %v2739 = vadd.f32 %v2624, %v2738
        %v2740 = vpop.f32.mrb[0].mxu0
        %2741 = vdwg.mxu0
        %v2743 = vsel %vm371, %v1941, 0
        %v2746 = vsel %vm371, %v1942, 0
        %v2749 = vsel %vm371, %v1943, 0
        %v2752 = vsel %vm371, %v1944, 0
        %v2755 = vsel %vm371, %v1945, 0
        %v2758 = vsel %vm371, %v1946, 0
        %v2761 = vsel %vm371, %v1947, 0
        %v2764 = vsel %vm371, %v1948, 0
        %2766 = vmatprep.subr.mxu0 0.0
        %v2767 = vand.u32 %v346, 4294901760
        %2768 = vmatpush1.msra.mxu0 %v2767
        %2769 = vmatprep.subr.mxu0 0.0
        %v2770 = vand.u32 %v347, 4294901760
        %2771 = vmatpush1.msra.mxu0 %v2770
        %2772 = vmatprep.subr.mxu0 0.0
        %2773 = vmatpush1.msra.mxu0 0.0
        %2774 = vmatprep.subr.mxu0 0.0
        %2775 = vmatpush1.msra.mxu0 0.0
        %2776 = vmatprep.subr.mxu0 0.0
        %2777 = vmatpush1.msra.mxu0 0.0
        %2778 = vmatprep.subr.mxu0 0.0
        %2779 = vmatpush1.msra.mxu0 0.0
        %2780 = vmatprep.subr.mxu0 0.0
        %2781 = vmatpush1.msra.mxu0 0.0
        %2782 = vmatprep.subr.mxu0 0.0
        %2783 = vmatpush1.msra.mxu0 0.0
        %2784 = vmatprep.subr.mxu0 0.0
        %2785 = vmatpush1.msra.mxu0 0.0
        %2786 = vmatprep.subr.mxu0 0.0
        %2787 = vmatpush1.msra.mxu0 0.0
        %2788 = vmatprep.subr.mxu0 0.0
        %2789 = vmatpush1.msra.mxu0 0.0
        %2790 = vmatprep.subr.mxu0 0.0
        %2791 = vmatpush1.msra.mxu0 0.0
        %2792 = vmatprep.subr.mxu0 0.0
        %2793 = vmatpush1.msra.mxu0 0.0
        %2794 = vmatprep.subr.mxu0 0.0
        %2795 = vmatpush1.msra.mxu0 0.0
        %2796 = vmatprep.subr.mxu0 0.0
        %2797 = vmatpush1.msra.mxu0 0.0
        %2798 = vmatprep.subr.mxu0 0.0
        %2799 = vmatpush1.msra.mxu0 0.0
        %2800 = vmatprep.subr.mxu0 0.0
        %2801 = vmatpush1.msra.mxu0 0.0
        %2802 = vmatprep.subr.mxu0 0.0
        %2803 = vmatpush1.msra.mxu0 0.0
        %2804 = vmatprep.subr.mxu0 0.0
        %2805 = vmatpush1.msra.mxu0 0.0
        %2806 = vmatprep.subr.mxu0 0.0
        %2807 = vmatpush1.msra.mxu0 0.0
        %2808 = vmatprep.subr.mxu0 0.0
        %2809 = vmatpush1.msra.mxu0 0.0
        %2810 = vmatprep.subr.mxu0 0.0
        %2811 = vmatpush1.msra.mxu0 0.0
        %2812 = vmatprep.subr.mxu0 0.0
        %2813 = vmatpush1.msra.mxu0 0.0
        %2814 = vmatprep.subr.mxu0 0.0
        %2815 = vmatpush1.msra.mxu0 0.0
        %2816 = vmatprep.subr.mxu0 0.0
        %2817 = vmatpush1.msra.mxu0 0.0
        %2818 = vmatprep.subr.mxu0 0.0
        %2819 = vmatpush1.msra.mxu0 0.0
        %2820 = vmatprep.subr.mxu0 0.0
        %2821 = vmatpush1.msra.mxu0 0.0
        %2822 = vmatprep.subr.mxu0 0.0
        %2823 = vmatpush1.msra.mxu0 0.0
        %2824 = vmatprep.subr.mxu0 0.0
        %2825 = vmatpush1.msra.mxu0 0.0
        %2826 = vmatprep.subr.mxu0 0.0
        %2827 = vmatpush1.msra.mxu0 0.0
        %2828 = vmatprep.subr.mxu0 0.0
        %2829 = vmatpush1.msra.mxu0 0.0
        %2830 = vmatprep.subr.mxu0 0.0
        %2831 = vmatpush1.msra.mxu0 0.0
        %2832 = vmatprep.mubr.f32.mxu0 0.0
        %v2833 = vand.u32 %v2743, 4294901760
        %v2834 = vsub.f32 %v2743, %v2833
        %v2835 = vand.u32 %v2834, 4294901760
        %v2836 = vsub.f32 %v2834, %v2835
        %v2837 = vand.u32 %v2836, 4294901760
        %2838 = vmatmul.mubr.f32.gmra.mrb[0].mxu0 %v2837
        %v2839 = vpop.f32.mrb[0].mxu0
        %v2840 = vadd.f32 %v2697, %v2839
        %v2841 = vpop.f32.mrb[0].mxu0
        %2842 = vmatprep.mubr.f32.mxu0 0.0
        %v2843 = vand.u32 %v2746, 4294901760
        %v2844 = vsub.f32 %v2746, %v2843
        %v2845 = vand.u32 %v2844, 4294901760
        %v2846 = vsub.f32 %v2844, %v2845
        %v2847 = vand.u32 %v2846, 4294901760
        %2848 = vmatmul.mubr.f32.gmra.mrb[0].mxu0 %v2847
        %v2849 = vpop.f32.mrb[0].mxu0
        %v2850 = vadd.f32 %v2703, %v2849
        %v2851 = vpop.f32.mrb[0].mxu0
        %2852 = vmatprep.mubr.f32.mxu0 0.0
        %v2853 = vand.u32 %v2749, 4294901760
        %v2854 = vsub.f32 %v2749, %v2853
        %v2855 = vand.u32 %v2854, 4294901760
        %v2856 = vsub.f32 %v2854, %v2855
        %v2857 = vand.u32 %v2856, 4294901760
        %2858 = vmatmul.mubr.f32.gmra.mrb[0].mxu0 %v2857
        %v2859 = vpop.f32.mrb[0].mxu0
        %v2860 = vadd.f32 %v2709, %v2859
        %v2861 = vpop.f32.mrb[0].mxu0
        %2862 = vmatprep.mubr.f32.mxu0 0.0
        %v2863 = vand.u32 %v2752, 4294901760
        %v2864 = vsub.f32 %v2752, %v2863
        %v2865 = vand.u32 %v2864, 4294901760
        %v2866 = vsub.f32 %v2864, %v2865
        %v2867 = vand.u32 %v2866, 4294901760
        %2868 = vmatmul.mubr.f32.gmra.mrb[0].mxu0 %v2867
        %v2869 = vpop.f32.mrb[0].mxu0
        %v2870 = vadd.f32 %v2715, %v2869
        %v2871 = vpop.f32.mrb[0].mxu0
        %2872 = vmatprep.mubr.f32.mxu0 0.0
        %v2873 = vand.u32 %v2755, 4294901760
        %v2874 = vsub.f32 %v2755, %v2873
        %v2875 = vand.u32 %v2874, 4294901760
        %v2876 = vsub.f32 %v2874, %v2875
        %v2877 = vand.u32 %v2876, 4294901760
        %2878 = vmatmul.mubr.f32.gmra.mrb[0].mxu0 %v2877
        %v2879 = vpop.f32.mrb[0].mxu0
        %v2880 = vadd.f32 %v2721, %v2879
        %v2881 = vpop.f32.mrb[0].mxu0
        %2882 = vmatprep.mubr.f32.mxu0 0.0
        %v2883 = vand.u32 %v2758, 4294901760
        %v2884 = vsub.f32 %v2758, %v2883
        %v2885 = vand.u32 %v2884, 4294901760
        %v2886 = vsub.f32 %v2884, %v2885
        %v2887 = vand.u32 %v2886, 4294901760
        %2888 = vmatmul.mubr.f32.gmra.mrb[0].mxu0 %v2887
        %v2889 = vpop.f32.mrb[0].mxu0
        %v2890 = vadd.f32 %v2727, %v2889
        %v2891 = vpop.f32.mrb[0].mxu0
        %2892 = vmatprep.mubr.f32.mxu0 0.0
        %v2893 = vand.u32 %v2761, 4294901760
        %v2894 = vsub.f32 %v2761, %v2893
        %v2895 = vand.u32 %v2894, 4294901760
        %v2896 = vsub.f32 %v2894, %v2895
        %v2897 = vand.u32 %v2896, 4294901760
        %2898 = vmatmul.mubr.f32.gmra.mrb[0].mxu0 %v2897
        %v2899 = vpop.f32.mrb[0].mxu0
        %v2900 = vadd.f32 %v2733, %v2899
        %v2901 = vpop.f32.mrb[0].mxu0
        %2902 = vmatprep.mubr.f32.mxu0 0.0
        %v2903 = vand.u32 %v2764, 4294901760
        %v2904 = vsub.f32 %v2764, %v2903
        %v2905 = vand.u32 %v2904, 4294901760
        %v2906 = vsub.f32 %v2904, %v2905
        %v2907 = vand.u32 %v2906, 4294901760
        %2908 = vmatmul.mubr.f32.gmra.mrb[0].mxu0 %v2907
        %v2909 = vpop.f32.mrb[0].mxu0
        %v2910 = vadd.f32 %v2739, %v2909
        %v2911 = vpop.f32.mrb[0].mxu0
        %2912 = vdwg.mxu0
        %2913 = vmatprep.subr.mxu0 0.0
        %v2914 = vand.u32 %v346, 4294901760
        %v2915 = vsub.f32 %v346, %v2914
        %v2916 = vand.u32 %v2915, 4294901760
        %v2917 = vsub.f32 %v2915, %v2916
        %v2918 = vand.u32 %v2917, 4294901760
        %2919 = vmatpush1.msra.mxu0 %v2918
        %2920 = vmatprep.subr.mxu0 0.0
        %v2921 = vand.u32 %v347, 4294901760
        %v2922 = vsub.f32 %v347, %v2921
        %v2923 = vand.u32 %v2922, 4294901760
        %v2924 = vsub.f32 %v2922, %v2923
        %v2925 = vand.u32 %v2924, 4294901760
        %2926 = vmatpush1.msra.mxu0 %v2925
        %2927 = vmatprep.subr.mxu0 0.0
        %2928 = vmatpush1.msra.mxu0 0.0
        %2929 = vmatprep.subr.mxu0 0.0
        %2930 = vmatpush1.msra.mxu0 0.0
        %2931 = vmatprep.subr.mxu0 0.0
        %2932 = vmatpush1.msra.mxu0 0.0
        %2933 = vmatprep.subr.mxu0 0.0
        %2934 = vmatpush1.msra.mxu0 0.0
        %2935 = vmatprep.subr.mxu0 0.0
        %2936 = vmatpush1.msra.mxu0 0.0
        %2937 = vmatprep.subr.mxu0 0.0
        %2938 = vmatpush1.msra.mxu0 0.0
        %2939 = vmatprep.subr.mxu0 0.0
        %2940 = vmatpush1.msra.mxu0 0.0
        %2941 = vmatprep.subr.mxu0 0.0
        %2942 = vmatpush1.msra.mxu0 0.0
        %2943 = vmatprep.subr.mxu0 0.0
        %2944 = vmatpush1.msra.mxu0 0.0
        %2945 = vmatprep.subr.mxu0 0.0
        %2946 = vmatpush1.msra.mxu0 0.0
        %2947 = vmatprep.subr.mxu0 0.0
        %2948 = vmatpush1.msra.mxu0 0.0
        %2949 = vmatprep.subr.mxu0 0.0
        %2950 = vmatpush1.msra.mxu0 0.0
        %2951 = vmatprep.subr.mxu0 0.0
        %2952 = vmatpush1.msra.mxu0 0.0
        %2953 = vmatprep.subr.mxu0 0.0
        %2954 = vmatpush1.msra.mxu0 0.0
        %2955 = vmatprep.subr.mxu0 0.0
        %2956 = vmatpush1.msra.mxu0 0.0
        %2957 = vmatprep.subr.mxu0 0.0
        %2958 = vmatpush1.msra.mxu0 0.0
        %2959 = vmatprep.subr.mxu0 0.0
        %2960 = vmatpush1.msra.mxu0 0.0
        %2961 = vmatprep.subr.mxu0 0.0
        %2962 = vmatpush1.msra.mxu0 0.0
        %2963 = vmatprep.subr.mxu0 0.0
        %2964 = vmatpush1.msra.mxu0 0.0
        %2965 = vmatprep.subr.mxu0 0.0
        %2966 = vmatpush1.msra.mxu0 0.0
        %2967 = vmatprep.subr.mxu0 0.0
        %2968 = vmatpush1.msra.mxu0 0.0
        %2969 = vmatprep.subr.mxu0 0.0
        %2970 = vmatpush1.msra.mxu0 0.0
        %2971 = vmatprep.subr.mxu0 0.0
        %2972 = vmatpush1.msra.mxu0 0.0
        %2973 = vmatprep.subr.mxu0 0.0
        %2974 = vmatpush1.msra.mxu0 0.0
        %2975 = vmatprep.subr.mxu0 0.0
        %2976 = vmatpush1.msra.mxu0 0.0
        %2977 = vmatprep.subr.mxu0 0.0
        %2978 = vmatpush1.msra.mxu0 0.0
        %2979 = vmatprep.subr.mxu0 0.0
        %2980 = vmatpush1.msra.mxu0 0.0
        %2981 = vmatprep.subr.mxu0 0.0
        %2982 = vmatpush1.msra.mxu0 0.0
        %2983 = vmatprep.subr.mxu0 0.0
        %2984 = vmatpush1.msra.mxu0 0.0
        %2985 = vmatprep.subr.mxu0 0.0
        %2986 = vmatpush1.msra.mxu0 0.0
        %2987 = vmatprep.mubr.f32.mxu0 0.0
        %v2988 = vand.u32 %v2743, 4294901760
        %2989 = vmatmul.mubr.f32.gmra.mrb[0].mxu0 %v2988
        %v2990 = vpop.f32.mrb[0].mxu0
        %v2991 = vadd.f32 %v2840, %v2990
        %v2992 = vpop.f32.mrb[0].mxu0
        %2993 = vmatprep.mubr.f32.mxu0 0.0
        %v2994 = vand.u32 %v2746, 4294901760
        %2995 = vmatmul.mubr.f32.gmra.mrb[0].mxu0 %v2994
        %v2996 = vpop.f32.mrb[0].mxu0
        %v2997 = vadd.f32 %v2850, %v2996
        %v2998 = vpop.f32.mrb[0].mxu0
        %2999 = vmatprep.mubr.f32.mxu0 0.0
        %v3000 = vand.u32 %v2749, 4294901760
        %3001 = vmatmul.mubr.f32.gmra.mrb[0].mxu0 %v3000
        %v3002 = vpop.f32.mrb[0].mxu0
        %v3003 = vadd.f32 %v2860, %v3002
        %v3004 = vpop.f32.mrb[0].mxu0
        %3005 = vmatprep.mubr.f32.mxu0 0.0
        %v3006 = vand.u32 %v2752, 4294901760
        %3007 = vmatmul.mubr.f32.gmra.mrb[0].mxu0 %v3006
        %v3008 = vpop.f32.mrb[0].mxu0
        %v3009 = vadd.f32 %v2870, %v3008
        %v3010 = vpop.f32.mrb[0].mxu0
        %3011 = vmatprep.mubr.f32.mxu0 0.0
        %v3012 = vand.u32 %v2755, 4294901760
        %3013 = vmatmul.mubr.f32.gmra.mrb[0].mxu0 %v3012
        %v3014 = vpop.f32.mrb[0].mxu0
        %v3015 = vadd.f32 %v2880, %v3014
        %v3016 = vpop.f32.mrb[0].mxu0
        %3017 = vmatprep.mubr.f32.mxu0 0.0
        %v3018 = vand.u32 %v2758, 4294901760
        %3019 = vmatmul.mubr.f32.gmra.mrb[0].mxu0 %v3018
        %v3020 = vpop.f32.mrb[0].mxu0
        %v3021 = vadd.f32 %v2890, %v3020
        %v3022 = vpop.f32.mrb[0].mxu0
        %3023 = vmatprep.mubr.f32.mxu0 0.0
        %v3024 = vand.u32 %v2761, 4294901760
        %3025 = vmatmul.mubr.f32.gmra.mrb[0].mxu0 %v3024
        %v3026 = vpop.f32.mrb[0].mxu0
        %v3027 = vadd.f32 %v2900, %v3026
        %v3028 = vpop.f32.mrb[0].mxu0
        %3029 = vmatprep.mubr.f32.mxu0 0.0
        %v3030 = vand.u32 %v2764, 4294901760
        %3031 = vmatmul.mubr.f32.gmra.mrb[0].mxu0 %v3030
        %v3032 = vpop.f32.mrb[0].mxu0
        %v3033 = vadd.f32 %v2910, %v3032
        %v3034 = vpop.f32.mrb[0].mxu0
        %3035 = vdwg.mxu0
        %3036 = vmatprep.subr.mxu0 0.0
        %v3037 = vand.u32 %v346, 4294901760
        %v3038 = vsub.f32 %v346, %v3037
        %3039 = vmatpush1.msra.mxu0 %v3038
        %3040 = vmatprep.subr.mxu0 0.0
        %v3041 = vand.u32 %v347, 4294901760
        %v3042 = vsub.f32 %v347, %v3041
        %3043 = vmatpush1.msra.mxu0 %v3042
        %3044 = vmatprep.subr.mxu0 0.0
        %3045 = vmatpush1.msra.mxu0 0.0
        %3046 = vmatprep.subr.mxu0 0.0
        %3047 = vmatpush1.msra.mxu0 0.0
        %3048 = vmatprep.subr.mxu0 0.0
        %3049 = vmatpush1.msra.mxu0 0.0
        %3050 = vmatprep.subr.mxu0 0.0
        %3051 = vmatpush1.msra.mxu0 0.0
        %3052 = vmatprep.subr.mxu0 0.0
        %3053 = vmatpush1.msra.mxu0 0.0
        %3054 = vmatprep.subr.mxu0 0.0
        %3055 = vmatpush1.msra.mxu0 0.0
        %3056 = vmatprep.subr.mxu0 0.0
        %3057 = vmatpush1.msra.mxu0 0.0
        %3058 = vmatprep.subr.mxu0 0.0
        %3059 = vmatpush1.msra.mxu0 0.0
        %3060 = vmatprep.subr.mxu0 0.0
        %3061 = vmatpush1.msra.mxu0 0.0
        %3062 = vmatprep.subr.mxu0 0.0
        %3063 = vmatpush1.msra.mxu0 0.0
        %3064 = vmatprep.subr.mxu0 0.0
        %3065 = vmatpush1.msra.mxu0 0.0
        %3066 = vmatprep.subr.mxu0 0.0
        %3067 = vmatpush1.msra.mxu0 0.0
        %3068 = vmatprep.subr.mxu0 0.0
        %3069 = vmatpush1.msra.mxu0 0.0
        %3070 = vmatprep.subr.mxu0 0.0
        %3071 = vmatpush1.msra.mxu0 0.0
        %3072 = vmatprep.subr.mxu0 0.0
        %3073 = vmatpush1.msra.mxu0 0.0
        %3074 = vmatprep.subr.mxu0 0.0
        %3075 = vmatpush1.msra.mxu0 0.0
        %3076 = vmatprep.subr.mxu0 0.0
        %3077 = vmatpush1.msra.mxu0 0.0
        %3078 = vmatprep.subr.mxu0 0.0
        %3079 = vmatpush1.msra.mxu0 0.0
        %3080 = vmatprep.subr.mxu0 0.0
        %3081 = vmatpush1.msra.mxu0 0.0
        %3082 = vmatprep.subr.mxu0 0.0
        %3083 = vmatpush1.msra.mxu0 0.0
        %3084 = vmatprep.subr.mxu0 0.0
        %3085 = vmatpush1.msra.mxu0 0.0
        %3086 = vmatprep.subr.mxu0 0.0
        %3087 = vmatpush1.msra.mxu0 0.0
        %3088 = vmatprep.subr.mxu0 0.0
        %3089 = vmatpush1.msra.mxu0 0.0
        %3090 = vmatprep.subr.mxu0 0.0
        %3091 = vmatpush1.msra.mxu0 0.0
        %3092 = vmatprep.subr.mxu0 0.0
        %3093 = vmatpush1.msra.mxu0 0.0
        %3094 = vmatprep.subr.mxu0 0.0
        %3095 = vmatpush1.msra.mxu0 0.0
        %3096 = vmatprep.subr.mxu0 0.0
        %3097 = vmatpush1.msra.mxu0 0.0
        %3098 = vmatprep.subr.mxu0 0.0
        %3099 = vmatpush1.msra.mxu0 0.0
        %3100 = vmatprep.subr.mxu0 0.0
        %3101 = vmatpush1.msra.mxu0 0.0
        %3102 = vmatprep.subr.mxu0 0.0
        %3103 = vmatpush1.msra.mxu0 0.0
        %3104 = vmatprep.mubr.f32.mxu0 0.0
        %v3105 = vand.u32 %v2743, 4294901760
        %v3106 = vsub.f32 %v2743, %v3105
        %3107 = vmatmul.mubr.f32.gmra.mrb[0].mxu0 %v3106
        %v3108 = vpop.f32.mrb[0].mxu0
        %v3109 = vadd.f32 %v2991, %v3108
        %v3110 = vpop.f32.mrb[0].mxu0
        %3111 = vmatprep.mubr.f32.mxu0 0.0
        %v3112 = vand.u32 %v2746, 4294901760
        %v3113 = vsub.f32 %v2746, %v3112
        %3114 = vmatmul.mubr.f32.gmra.mrb[0].mxu0 %v3113
        %v3115 = vpop.f32.mrb[0].mxu0
        %v3116 = vadd.f32 %v2997, %v3115
        %v3117 = vpop.f32.mrb[0].mxu0
        %3118 = vmatprep.mubr.f32.mxu0 0.0
        %v3119 = vand.u32 %v2749, 4294901760
        %v3120 = vsub.f32 %v2749, %v3119
        %3121 = vmatmul.mubr.f32.gmra.mrb[0].mxu0 %v3120
        %v3122 = vpop.f32.mrb[0].mxu0
        %v3123 = vadd.f32 %v3003, %v3122
        %v3124 = vpop.f32.mrb[0].mxu0
        %3125 = vmatprep.mubr.f32.mxu0 0.0
        %v3126 = vand.u32 %v2752, 4294901760
        %v3127 = vsub.f32 %v2752, %v3126
        %3128 = vmatmul.mubr.f32.gmra.mrb[0].mxu0 %v3127
        %v3129 = vpop.f32.mrb[0].mxu0
        %v3130 = vadd.f32 %v3009, %v3129
        %v3131 = vpop.f32.mrb[0].mxu0
        %3132 = vmatprep.mubr.f32.mxu0 0.0
        %v3133 = vand.u32 %v2755, 4294901760
        %v3134 = vsub.f32 %v2755, %v3133
        %3135 = vmatmul.mubr.f32.gmra.mrb[0].mxu0 %v3134
        %v3136 = vpop.f32.mrb[0].mxu0
        %v3137 = vadd.f32 %v3015, %v3136
        %v3138 = vpop.f32.mrb[0].mxu0
        %3139 = vmatprep.mubr.f32.mxu0 0.0
        %v3140 = vand.u32 %v2758, 4294901760
        %v3141 = vsub.f32 %v2758, %v3140
        %3142 = vmatmul.mubr.f32.gmra.mrb[0].mxu0 %v3141
        %v3143 = vpop.f32.mrb[0].mxu0
        %v3144 = vadd.f32 %v3021, %v3143
        %v3145 = vpop.f32.mrb[0].mxu0
        %3146 = vmatprep.mubr.f32.mxu0 0.0
        %v3147 = vand.u32 %v2761, 4294901760
        %v3148 = vsub.f32 %v2761, %v3147
        %3149 = vmatmul.mubr.f32.gmra.mrb[0].mxu0 %v3148
        %v3150 = vpop.f32.mrb[0].mxu0
        %v3151 = vadd.f32 %v3027, %v3150
        %v3152 = vpop.f32.mrb[0].mxu0
        %3153 = vmatprep.mubr.f32.mxu0 0.0
        %v3154 = vand.u32 %v2764, 4294901760
        %v3155 = vsub.f32 %v2764, %v3154
        %3156 = vmatmul.mubr.f32.gmra.mrb[0].mxu0 %v3155
        %v3157 = vpop.f32.mrb[0].mxu0
        %v3158 = vadd.f32 %v3033, %v3157
        %v3159 = vpop.f32.mrb[0].mxu0
        %3160 = vdwg.mxu0
        %3161 = vmatprep.subr.mxu0 0.0
        %v3162 = vand.u32 %v346, 4294901760
        %3163 = vmatpush1.msra.mxu0 %v3162
        %3164 = vmatprep.subr.mxu0 0.0
        %v3165 = vand.u32 %v347, 4294901760
        %3166 = vmatpush1.msra.mxu0 %v3165
        %3167 = vmatprep.subr.mxu0 0.0
        %3168 = vmatpush1.msra.mxu0 0.0
        %3169 = vmatprep.subr.mxu0 0.0
        %3170 = vmatpush1.msra.mxu0 0.0
        %3171 = vmatprep.subr.mxu0 0.0
        %3172 = vmatpush1.msra.mxu0 0.0
        %3173 = vmatprep.subr.mxu0 0.0
        %3174 = vmatpush1.msra.mxu0 0.0
        %3175 = vmatprep.subr.mxu0 0.0
        %3176 = vmatpush1.msra.mxu0 0.0
        %3177 = vmatprep.subr.mxu0 0.0
        %3178 = vmatpush1.msra.mxu0 0.0
        %3179 = vmatprep.subr.mxu0 0.0
        %3180 = vmatpush1.msra.mxu0 0.0
        %3181 = vmatprep.subr.mxu0 0.0
        %3182 = vmatpush1.msra.mxu0 0.0
        %3183 = vmatprep.subr.mxu0 0.0
        %3184 = vmatpush1.msra.mxu0 0.0
        %3185 = vmatprep.subr.mxu0 0.0
        %3186 = vmatpush1.msra.mxu0 0.0
        %3187 = vmatprep.subr.mxu0 0.0
        %3188 = vmatpush1.msra.mxu0 0.0
        %3189 = vmatprep.subr.mxu0 0.0
        %3190 = vmatpush1.msra.mxu0 0.0
        %3191 = vmatprep.subr.mxu0 0.0
        %3192 = vmatpush1.msra.mxu0 0.0
        %3193 = vmatprep.subr.mxu0 0.0
        %3194 = vmatpush1.msra.mxu0 0.0
        %3195 = vmatprep.subr.mxu0 0.0
        %3196 = vmatpush1.msra.mxu0 0.0
        %3197 = vmatprep.subr.mxu0 0.0
        %3198 = vmatpush1.msra.mxu0 0.0
        %3199 = vmatprep.subr.mxu0 0.0
        %3200 = vmatpush1.msra.mxu0 0.0
        %3201 = vmatprep.subr.mxu0 0.0
        %3202 = vmatpush1.msra.mxu0 0.0
        %3203 = vmatprep.subr.mxu0 0.0
        %3204 = vmatpush1.msra.mxu0 0.0
        %3205 = vmatprep.subr.mxu0 0.0
        %3206 = vmatpush1.msra.mxu0 0.0
        %3207 = vmatprep.subr.mxu0 0.0
        %3208 = vmatpush1.msra.mxu0 0.0
        %3209 = vmatprep.subr.mxu0 0.0
        %3210 = vmatpush1.msra.mxu0 0.0
        %3211 = vmatprep.subr.mxu0 0.0
        %3212 = vmatpush1.msra.mxu0 0.0
        %3213 = vmatprep.subr.mxu0 0.0
        %3214 = vmatpush1.msra.mxu0 0.0
        %3215 = vmatprep.subr.mxu0 0.0
        %3216 = vmatpush1.msra.mxu0 0.0
        %3217 = vmatprep.subr.mxu0 0.0
        %3218 = vmatpush1.msra.mxu0 0.0
        %3219 = vmatprep.subr.mxu0 0.0
        %3220 = vmatpush1.msra.mxu0 0.0
        %3221 = vmatprep.subr.mxu0 0.0
        %3222 = vmatpush1.msra.mxu0 0.0
        %3223 = vmatprep.subr.mxu0 0.0
        %3224 = vmatpush1.msra.mxu0 0.0
        %3225 = vmatprep.subr.mxu0 0.0
        %3226 = vmatpush1.msra.mxu0 0.0
        %3227 = vmatprep.mubr.f32.mxu0 0.0
        %v3228 = vand.u32 %v2743, 4294901760
        %v3229 = vsub.f32 %v2743, %v3228
        %v3230 = vand.u32 %v3229, 4294901760
        %3231 = vmatmul.mubr.f32.gmra.mrb[0].mxu0 %v3230
        %v3232 = vpop.f32.mrb[0].mxu0
        %v3233 = vadd.f32 %v3109, %v3232
        %v3234 = vpop.f32.mrb[0].mxu0
        %3235 = vmatprep.mubr.f32.mxu0 0.0
        %v3236 = vand.u32 %v2746, 4294901760
        %v3237 = vsub.f32 %v2746, %v3236
        %v3238 = vand.u32 %v3237, 4294901760
        %3239 = vmatmul.mubr.f32.gmra.mrb[0].mxu0 %v3238
        %v3240 = vpop.f32.mrb[0].mxu0
        %v3241 = vadd.f32 %v3116, %v3240
        %v3242 = vpop.f32.mrb[0].mxu0
        %3243 = vmatprep.mubr.f32.mxu0 0.0
        %v3244 = vand.u32 %v2749, 4294901760
        %v3245 = vsub.f32 %v2749, %v3244
        %v3246 = vand.u32 %v3245, 4294901760
        %3247 = vmatmul.mubr.f32.gmra.mrb[0].mxu0 %v3246
        %v3248 = vpop.f32.mrb[0].mxu0
        %v3249 = vadd.f32 %v3123, %v3248
        %v3250 = vpop.f32.mrb[0].mxu0
        %3251 = vmatprep.mubr.f32.mxu0 0.0
        %v3252 = vand.u32 %v2752, 4294901760
        %v3253 = vsub.f32 %v2752, %v3252
        %v3254 = vand.u32 %v3253, 4294901760
        %3255 = vmatmul.mubr.f32.gmra.mrb[0].mxu0 %v3254
        %v3256 = vpop.f32.mrb[0].mxu0
        %v3257 = vadd.f32 %v3130, %v3256
        %v3258 = vpop.f32.mrb[0].mxu0
        %3259 = vmatprep.mubr.f32.mxu0 0.0
        %v3260 = vand.u32 %v2755, 4294901760
        %v3261 = vsub.f32 %v2755, %v3260
        %v3262 = vand.u32 %v3261, 4294901760
        %3263 = vmatmul.mubr.f32.gmra.mrb[0].mxu0 %v3262
        %v3264 = vpop.f32.mrb[0].mxu0
        %v3265 = vadd.f32 %v3137, %v3264
        %v3266 = vpop.f32.mrb[0].mxu0
        %3267 = vmatprep.mubr.f32.mxu0 0.0
        %v3268 = vand.u32 %v2758, 4294901760
        %v3269 = vsub.f32 %v2758, %v3268
        %v3270 = vand.u32 %v3269, 4294901760
        %3271 = vmatmul.mubr.f32.gmra.mrb[0].mxu0 %v3270
        %v3272 = vpop.f32.mrb[0].mxu0
        %v3273 = vadd.f32 %v3144, %v3272
        %v3274 = vpop.f32.mrb[0].mxu0
        %3275 = vmatprep.mubr.f32.mxu0 0.0
        %v3276 = vand.u32 %v2761, 4294901760
        %v3277 = vsub.f32 %v2761, %v3276
        %v3278 = vand.u32 %v3277, 4294901760
        %3279 = vmatmul.mubr.f32.gmra.mrb[0].mxu0 %v3278
        %v3280 = vpop.f32.mrb[0].mxu0
        %v3281 = vadd.f32 %v3151, %v3280
        %v3282 = vpop.f32.mrb[0].mxu0
        %3283 = vmatprep.mubr.f32.mxu0 0.0
        %v3284 = vand.u32 %v2764, 4294901760
        %v3285 = vsub.f32 %v2764, %v3284
        %v3286 = vand.u32 %v3285, 4294901760
        %3287 = vmatmul.mubr.f32.gmra.mrb[0].mxu0 %v3286
        %v3288 = vpop.f32.mrb[0].mxu0
        %v3289 = vadd.f32 %v3158, %v3288
        %v3290 = vpop.f32.mrb[0].mxu0
        %3291 = vdwg.mxu0
        %3292 = vmatprep.subr.mxu0 0.0
        %v3293 = vand.u32 %v346, 4294901760
        %v3294 = vsub.f32 %v346, %v3293
        %v3295 = vand.u32 %v3294, 4294901760
        %3296 = vmatpush1.msra.mxu0 %v3295
        %3297 = vmatprep.subr.mxu0 0.0
        %v3298 = vand.u32 %v347, 4294901760
        %v3299 = vsub.f32 %v347, %v3298
        %v3300 = vand.u32 %v3299, 4294901760
        %3301 = vmatpush1.msra.mxu0 %v3300
        %3302 = vmatprep.subr.mxu0 0.0
        %3303 = vmatpush1.msra.mxu0 0.0
        %3304 = vmatprep.subr.mxu0 0.0
        %3305 = vmatpush1.msra.mxu0 0.0
        %3306 = vmatprep.subr.mxu0 0.0
        %3307 = vmatpush1.msra.mxu0 0.0
        %3308 = vmatprep.subr.mxu0 0.0
        %3309 = vmatpush1.msra.mxu0 0.0
        %3310 = vmatprep.subr.mxu0 0.0
        %3311 = vmatpush1.msra.mxu0 0.0
        %3312 = vmatprep.subr.mxu0 0.0
        %3313 = vmatpush1.msra.mxu0 0.0
        %3314 = vmatprep.subr.mxu0 0.0
        %3315 = vmatpush1.msra.mxu0 0.0
        %3316 = vmatprep.subr.mxu0 0.0
        %3317 = vmatpush1.msra.mxu0 0.0
        %3318 = vmatprep.subr.mxu0 0.0
        %3319 = vmatpush1.msra.mxu0 0.0
        %3320 = vmatprep.subr.mxu0 0.0
        %3321 = vmatpush1.msra.mxu0 0.0
        %3322 = vmatprep.subr.mxu0 0.0
        %3323 = vmatpush1.msra.mxu0 0.0
        %3324 = vmatprep.subr.mxu0 0.0
        %3325 = vmatpush1.msra.mxu0 0.0
        %3326 = vmatprep.subr.mxu0 0.0
        %3327 = vmatpush1.msra.mxu0 0.0
        %3328 = vmatprep.subr.mxu0 0.0
        %3329 = vmatpush1.msra.mxu0 0.0
        %3330 = vmatprep.subr.mxu0 0.0
        %3331 = vmatpush1.msra.mxu0 0.0
        %3332 = vmatprep.subr.mxu0 0.0
        %3333 = vmatpush1.msra.mxu0 0.0
        %3334 = vmatprep.subr.mxu0 0.0
        %3335 = vmatpush1.msra.mxu0 0.0
        %3336 = vmatprep.subr.mxu0 0.0
        %3337 = vmatpush1.msra.mxu0 0.0
        %3338 = vmatprep.subr.mxu0 0.0
        %3339 = vmatpush1.msra.mxu0 0.0
        %3340 = vmatprep.subr.mxu0 0.0
        %3341 = vmatpush1.msra.mxu0 0.0
        %3342 = vmatprep.subr.mxu0 0.0
        %3343 = vmatpush1.msra.mxu0 0.0
        %3344 = vmatprep.subr.mxu0 0.0
        %3345 = vmatpush1.msra.mxu0 0.0
        %3346 = vmatprep.subr.mxu0 0.0
        %3347 = vmatpush1.msra.mxu0 0.0
        %3348 = vmatprep.subr.mxu0 0.0
        %3349 = vmatpush1.msra.mxu0 0.0
        %3350 = vmatprep.subr.mxu0 0.0
        %3351 = vmatpush1.msra.mxu0 0.0
        %3352 = vmatprep.subr.mxu0 0.0
        %3353 = vmatpush1.msra.mxu0 0.0
        %3354 = vmatprep.subr.mxu0 0.0
        %3355 = vmatpush1.msra.mxu0 0.0
        %3356 = vmatprep.subr.mxu0 0.0
        %3357 = vmatpush1.msra.mxu0 0.0
        %3358 = vmatprep.subr.mxu0 0.0
        %3359 = vmatpush1.msra.mxu0 0.0
        %3360 = vmatprep.subr.mxu0 0.0
        %3361 = vmatpush1.msra.mxu0 0.0
        %3362 = vmatprep.mubr.f32.mxu0 0.0
        %v3363 = vand.u32 %v2743, 4294901760
        %3364 = vmatmul.mubr.f32.gmra.mrb[0].mxu0 %v3363
        %v3365 = vpop.f32.mrb[0].mxu0
        %v3366 = vadd.f32 %v3233, %v3365
        %v3367 = vpop.f32.mrb[0].mxu0
        %3368 = vmatprep.mubr.f32.mxu0 0.0
        %v3369 = vand.u32 %v2746, 4294901760
        %3370 = vmatmul.mubr.f32.gmra.mrb[0].mxu0 %v3369
        %v3371 = vpop.f32.mrb[0].mxu0
        %v3372 = vadd.f32 %v3241, %v3371
        %v3373 = vpop.f32.mrb[0].mxu0
        %3374 = vmatprep.mubr.f32.mxu0 0.0
        %v3375 = vand.u32 %v2749, 4294901760
        %3376 = vmatmul.mubr.f32.gmra.mrb[0].mxu0 %v3375
        %v3377 = vpop.f32.mrb[0].mxu0
        %v3378 = vadd.f32 %v3249, %v3377
        %v3379 = vpop.f32.mrb[0].mxu0
        %3380 = vmatprep.mubr.f32.mxu0 0.0
        %v3381 = vand.u32 %v2752, 4294901760
        %3382 = vmatmul.mubr.f32.gmra.mrb[0].mxu0 %v3381
        %v3383 = vpop.f32.mrb[0].mxu0
        %v3384 = vadd.f32 %v3257, %v3383
        %v3385 = vpop.f32.mrb[0].mxu0
        %3386 = vmatprep.mubr.f32.mxu0 0.0
        %v3387 = vand.u32 %v2755, 4294901760
        %3388 = vmatmul.mubr.f32.gmra.mrb[0].mxu0 %v3387
        %v3389 = vpop.f32.mrb[0].mxu0
        %v3390 = vadd.f32 %v3265, %v3389
        %v3391 = vpop.f32.mrb[0].mxu0
        %3392 = vmatprep.mubr.f32.mxu0 0.0
        %v3393 = vand.u32 %v2758, 4294901760
        %3394 = vmatmul.mubr.f32.gmra.mrb[0].mxu0 %v3393
        %v3395 = vpop.f32.mrb[0].mxu0
        %v3396 = vadd.f32 %v3273, %v3395
        %v3397 = vpop.f32.mrb[0].mxu0
        %3398 = vmatprep.mubr.f32.mxu0 0.0
        %v3399 = vand.u32 %v2761, 4294901760
        %3400 = vmatmul.mubr.f32.gmra.mrb[0].mxu0 %v3399
        %v3401 = vpop.f32.mrb[0].mxu0
        %v3402 = vadd.f32 %v3281, %v3401
        %v3403 = vpop.f32.mrb[0].mxu0
        %3404 = vmatprep.mubr.f32.mxu0 0.0
        %v3405 = vand.u32 %v2764, 4294901760
        %3406 = vmatmul.mubr.f32.gmra.mrb[0].mxu0 %v3405
        %v3407 = vpop.f32.mrb[0].mxu0
        %v3408 = vadd.f32 %v3289, %v3407
        %v3409 = vpop.f32.mrb[0].mxu0
        %3410 = vdwg.mxu0
        %3411 = vmatprep.subr.mxu0 0.0
        %v3412 = vand.u32 %v346, 4294901760
        %3413 = vmatpush1.msra.mxu0 %v3412
        %3414 = vmatprep.subr.mxu0 0.0
        %v3415 = vand.u32 %v347, 4294901760
        %3416 = vmatpush1.msra.mxu0 %v3415
        %3417 = vmatprep.subr.mxu0 0.0
        %3418 = vmatpush1.msra.mxu0 0.0
        %3419 = vmatprep.subr.mxu0 0.0
        %3420 = vmatpush1.msra.mxu0 0.0
        %3421 = vmatprep.subr.mxu0 0.0
        %3422 = vmatpush1.msra.mxu0 0.0
        %3423 = vmatprep.subr.mxu0 0.0
        %3424 = vmatpush1.msra.mxu0 0.0
        %3425 = vmatprep.subr.mxu0 0.0
        %3426 = vmatpush1.msra.mxu0 0.0
        %3427 = vmatprep.subr.mxu0 0.0
        %3428 = vmatpush1.msra.mxu0 0.0
        %3429 = vmatprep.subr.mxu0 0.0
        %3430 = vmatpush1.msra.mxu0 0.0
        %3431 = vmatprep.subr.mxu0 0.0
        %3432 = vmatpush1.msra.mxu0 0.0
        %3433 = vmatprep.subr.mxu0 0.0
        %3434 = vmatpush1.msra.mxu0 0.0
        %3435 = vmatprep.subr.mxu0 0.0
        %3436 = vmatpush1.msra.mxu0 0.0
        %3437 = vmatprep.subr.mxu0 0.0
        %3438 = vmatpush1.msra.mxu0 0.0
        %3439 = vmatprep.subr.mxu0 0.0
        %3440 = vmatpush1.msra.mxu0 0.0
        %3441 = vmatprep.subr.mxu0 0.0
        %3442 = vmatpush1.msra.mxu0 0.0
        %3443 = vmatprep.subr.mxu0 0.0
        %3444 = vmatpush1.msra.mxu0 0.0
        %3445 = vmatprep.subr.mxu0 0.0
        %3446 = vmatpush1.msra.mxu0 0.0
        %3447 = vmatprep.subr.mxu0 0.0
        %3448 = vmatpush1.msra.mxu0 0.0
        %3449 = vmatprep.subr.mxu0 0.0
        %3450 = vmatpush1.msra.mxu0 0.0
        %3451 = vmatprep.subr.mxu0 0.0
        %3452 = vmatpush1.msra.mxu0 0.0
        %3453 = vmatprep.subr.mxu0 0.0
        %3454 = vmatpush1.msra.mxu0 0.0
        %3455 = vmatprep.subr.mxu0 0.0
        %3456 = vmatpush1.msra.mxu0 0.0
        %3457 = vmatprep.subr.mxu0 0.0
        %3458 = vmatpush1.msra.mxu0 0.0
        %3459 = vmatprep.subr.mxu0 0.0
        %3460 = vmatpush1.msra.mxu0 0.0
        %3461 = vmatprep.subr.mxu0 0.0
        %3462 = vmatpush1.msra.mxu0 0.0
        %3463 = vmatprep.subr.mxu0 0.0
        %3464 = vmatpush1.msra.mxu0 0.0
        %3465 = vmatprep.subr.mxu0 0.0
        %3466 = vmatpush1.msra.mxu0 0.0
        %3467 = vmatprep.subr.mxu0 0.0
        %3468 = vmatpush1.msra.mxu0 0.0
        %3469 = vmatprep.subr.mxu0 0.0
        %3470 = vmatpush1.msra.mxu0 0.0
        %3471 = vmatprep.subr.mxu0 0.0
        %3472 = vmatpush1.msra.mxu0 0.0
        %3473 = vmatprep.subr.mxu0 0.0
        %3474 = vmatpush1.msra.mxu0 0.0
        %3475 = vmatprep.subr.mxu0 0.0
        %3476 = vmatpush1.msra.mxu0 0.0
        %3477 = vmatprep.mubr.f32.mxu0 0.0
        %v3478 = vand.u32 %v2743, 4294901760
        %3479 = vmatmul.mubr.f32.gmra.mrb[0].mxu0 %v3478
        %v3480 = vpop.f32.mrb[0].mxu0
        %v3481 = vadd.f32 %v3366, %v3480
        %v3482 = vpop.f32.mrb[0].mxu0
        %3483 = vmatprep.mubr.f32.mxu0 0.0
        %v3484 = vand.u32 %v2746, 4294901760
        %3485 = vmatmul.mubr.f32.gmra.mrb[0].mxu0 %v3484
        %v3486 = vpop.f32.mrb[0].mxu0
        %v3487 = vadd.f32 %v3372, %v3486
        %v3488 = vpop.f32.mrb[0].mxu0
        %3489 = vmatprep.mubr.f32.mxu0 0.0
        %v3490 = vand.u32 %v2749, 4294901760
        %3491 = vmatmul.mubr.f32.gmra.mrb[0].mxu0 %v3490
        %v3492 = vpop.f32.mrb[0].mxu0
        %v3493 = vadd.f32 %v3378, %v3492
        %v3494 = vpop.f32.mrb[0].mxu0
        %3495 = vmatprep.mubr.f32.mxu0 0.0
        %v3496 = vand.u32 %v2752, 4294901760
        %3497 = vmatmul.mubr.f32.gmra.mrb[0].mxu0 %v3496
        %v3498 = vpop.f32.mrb[0].mxu0
        %v3499 = vadd.f32 %v3384, %v3498
        %v3500 = vpop.f32.mrb[0].mxu0
        %3501 = vmatprep.mubr.f32.mxu0 0.0
        %v3502 = vand.u32 %v2755, 4294901760
        %3503 = vmatmul.mubr.f32.gmra.mrb[0].mxu0 %v3502
        %v3504 = vpop.f32.mrb[0].mxu0
        %v3505 = vadd.f32 %v3390, %v3504
        %v3506 = vpop.f32.mrb[0].mxu0
        %3507 = vmatprep.mubr.f32.mxu0 0.0
        %v3508 = vand.u32 %v2758, 4294901760
        %3509 = vmatmul.mubr.f32.gmra.mrb[0].mxu0 %v3508
        %v3510 = vpop.f32.mrb[0].mxu0
        %v3511 = vadd.f32 %v3396, %v3510
        %v3512 = vpop.f32.mrb[0].mxu0
        %3513 = vmatprep.mubr.f32.mxu0 0.0
        %v3514 = vand.u32 %v2761, 4294901760
        %3515 = vmatmul.mubr.f32.gmra.mrb[0].mxu0 %v3514
        %v3516 = vpop.f32.mrb[0].mxu0
        %v3517 = vadd.f32 %v3402, %v3516
        %v3518 = vpop.f32.mrb[0].mxu0
        %3519 = vmatprep.mubr.f32.mxu0 0.0
        %v3520 = vand.u32 %v2764, 4294901760
        %3521 = vmatmul.mubr.f32.gmra.mrb[0].mxu0 %v3520
        %v3522 = vpop.f32.mrb[0].mxu0
        %v3523 = vadd.f32 %v3408, %v3522
        %v3524 = vpop.f32.mrb[0].mxu0
        %3525 = vdwg.mxu0
        %vm3526 = vcmask 64512
        %v3528 = vsel %vm3526, %v352, 0
        %v3531 = vsel %vm3526, %v353, 0
        %3533 = vmatprep.subr.mxu0 0.0
        %v3534 = vand.u32 %v3481, 4294901760
        %3535 = vmatpush1.msra.mxu0 %v3534
        %3536 = vmatprep.subr.mxu0 0.0
        %3537 = vmatpush1.msra.mxu0 0.0
        %3538 = vmatprep.subr.mxu0 0.0
        %3539 = vmatpush1.msra.mxu0 0.0
        %3540 = vmatprep.subr.mxu0 0.0
        %3541 = vmatpush1.msra.mxu0 0.0
        %3542 = vmatprep.subr.mxu0 0.0
        %3543 = vmatpush1.msra.mxu0 0.0
        %3544 = vmatprep.subr.mxu0 0.0
        %3545 = vmatpush1.msra.mxu0 0.0
        %3546 = vmatprep.subr.mxu0 0.0
        %3547 = vmatpush1.msra.mxu0 0.0
        %3548 = vmatprep.subr.mxu0 0.0
        %3549 = vmatpush1.msra.mxu0 0.0
        %3550 = vmatprep.subr.mxu0 0.0
        %3551 = vmatpush1.msra.mxu0 0.0
        %3552 = vmatprep.subr.mxu0 0.0
        %3553 = vmatpush1.msra.mxu0 0.0
        %3554 = vmatprep.subr.mxu0 0.0
        %3555 = vmatpush1.msra.mxu0 0.0
        %3556 = vmatprep.subr.mxu0 0.0
        %3557 = vmatpush1.msra.mxu0 0.0
        %3558 = vmatprep.subr.mxu0 0.0
        %3559 = vmatpush1.msra.mxu0 0.0
        %3560 = vmatprep.subr.mxu0 0.0
        %3561 = vmatpush1.msra.mxu0 0.0
        %3562 = vmatprep.subr.mxu0 0.0
        %3563 = vmatpush1.msra.mxu0 0.0
        %3564 = vmatprep.subr.mxu0 0.0
        %3565 = vmatpush1.msra.mxu0 0.0
        %3566 = vmatprep.subr.mxu0 0.0
        %3567 = vmatpush1.msra.mxu0 0.0
        %3568 = vmatprep.subr.mxu0 0.0
        %3569 = vmatpush1.msra.mxu0 0.0
        %3570 = vmatprep.subr.mxu0 0.0
        %3571 = vmatpush1.msra.mxu0 0.0
        %3572 = vmatprep.subr.mxu0 0.0
        %3573 = vmatpush1.msra.mxu0 0.0
        %3574 = vmatprep.subr.mxu0 0.0
        %3575 = vmatpush1.msra.mxu0 0.0
        %3576 = vmatprep.subr.mxu0 0.0
        %3577 = vmatpush1.msra.mxu0 0.0
        %3578 = vmatprep.subr.mxu0 0.0
        %3579 = vmatpush1.msra.mxu0 0.0
        %3580 = vmatprep.subr.mxu0 0.0
        %3581 = vmatpush1.msra.mxu0 0.0
        %3582 = vmatprep.subr.mxu0 0.0
        %3583 = vmatpush1.msra.mxu0 0.0
        %3584 = vmatprep.subr.mxu0 0.0
        %3585 = vmatpush1.msra.mxu0 0.0
        %3586 = vmatprep.subr.mxu0 0.0
        %3587 = vmatpush1.msra.mxu0 0.0
        %3588 = vmatprep.subr.mxu0 0.0
        %3589 = vmatpush1.msra.mxu0 0.0
        %3590 = vmatprep.subr.mxu0 0.0
        %3591 = vmatpush1.msra.mxu0 0.0
        %3592 = vmatprep.subr.mxu0 0.0
        %3593 = vmatpush1.msra.mxu0 0.0
        %3594 = vmatprep.subr.mxu0 0.0
        %3595 = vmatpush1.msra.mxu0 0.0
        %3596 = vmatprep.subr.mxu0 0.0
        %3597 = vmatpush1.msra.mxu0 0.0
        %3598 = vmatprep.mubr.f32.mxu0 0.0
        %v3599 = vand.u32 %v3528, 4294901760
        %v3600 = vsub.f32 %v3528, %v3599
        %v3601 = vand.u32 %v3600, 4294901760
        %v3602 = vsub.f32 %v3600, %v3601
        %v3603 = vand.u32 %v3602, 4294901760
        %3604 = vmatmul.mubr.f32.gmra.mrb[0].mxu0 %v3603
        %v3605 = vpop.f32.mrb[0].mxu0
        %v3606 = vadd.f32 0.0, %v3605
        %v3607 = vpop.f32.mrb[0].mxu0
        %3608 = vmatprep.mubr.f32.mxu0 0.0
        %v3609 = vand.u32 %v3531, 4294901760
        %v3610 = vsub.f32 %v3531, %v3609
        %v3611 = vand.u32 %v3610, 4294901760
        %v3612 = vsub.f32 %v3610, %v3611
        %v3613 = vand.u32 %v3612, 4294901760
        %3614 = vmatmul.mubr.f32.gmra.mrb[0].mxu0 %v3613
        %v3615 = vpop.f32.mrb[0].mxu0
        %v3616 = vadd.f32 0.0, %v3615
        %v3617 = vpop.f32.mrb[0].mxu0
        %3618 = vdwg.mxu0
        %3619 = vmatprep.subr.mxu0 0.0
        %v3620 = vand.u32 %v3481, 4294901760
        %v3621 = vsub.f32 %v3481, %v3620
        %v3622 = vand.u32 %v3621, 4294901760
        %v3623 = vsub.f32 %v3621, %v3622
        %v3624 = vand.u32 %v3623, 4294901760
        %3625 = vmatpush1.msra.mxu0 %v3624
        %3626 = vmatprep.subr.mxu0 0.0
        %3627 = vmatpush1.msra.mxu0 0.0
        %3628 = vmatprep.subr.mxu0 0.0
        %3629 = vmatpush1.msra.mxu0 0.0
        %3630 = vmatprep.subr.mxu0 0.0
        %3631 = vmatpush1.msra.mxu0 0.0
        %3632 = vmatprep.subr.mxu0 0.0
        %3633 = vmatpush1.msra.mxu0 0.0
        %3634 = vmatprep.subr.mxu0 0.0
        %3635 = vmatpush1.msra.mxu0 0.0
        %3636 = vmatprep.subr.mxu0 0.0
        %3637 = vmatpush1.msra.mxu0 0.0
        %3638 = vmatprep.subr.mxu0 0.0
        %3639 = vmatpush1.msra.mxu0 0.0
        %3640 = vmatprep.subr.mxu0 0.0
        %3641 = vmatpush1.msra.mxu0 0.0
        %3642 = vmatprep.subr.mxu0 0.0
        %3643 = vmatpush1.msra.mxu0 0.0
        %3644 = vmatprep.subr.mxu0 0.0
        %3645 = vmatpush1.msra.mxu0 0.0
        %3646 = vmatprep.subr.mxu0 0.0
        %3647 = vmatpush1.msra.mxu0 0.0
        %3648 = vmatprep.subr.mxu0 0.0
        %3649 = vmatpush1.msra.mxu0 0.0
        %3650 = vmatprep.subr.mxu0 0.0
        %3651 = vmatpush1.msra.mxu0 0.0
        %3652 = vmatprep.subr.mxu0 0.0
        %3653 = vmatpush1.msra.mxu0 0.0
        %3654 = vmatprep.subr.mxu0 0.0
        %3655 = vmatpush1.msra.mxu0 0.0
        %3656 = vmatprep.subr.mxu0 0.0
        %3657 = vmatpush1.msra.mxu0 0.0
        %3658 = vmatprep.subr.mxu0 0.0
        %3659 = vmatpush1.msra.mxu0 0.0
        %3660 = vmatprep.subr.mxu0 0.0
        %3661 = vmatpush1.msra.mxu0 0.0
        %3662 = vmatprep.subr.mxu0 0.0
        %3663 = vmatpush1.msra.mxu0 0.0
        %3664 = vmatprep.subr.mxu0 0.0
        %3665 = vmatpush1.msra.mxu0 0.0
        %3666 = vmatprep.subr.mxu0 0.0
        %3667 = vmatpush1.msra.mxu0 0.0
        %3668 = vmatprep.subr.mxu0 0.0
        %3669 = vmatpush1.msra.mxu0 0.0
        %3670 = vmatprep.subr.mxu0 0.0
        %3671 = vmatpush1.msra.mxu0 0.0
        %3672 = vmatprep.subr.mxu0 0.0
        %3673 = vmatpush1.msra.mxu0 0.0
        %3674 = vmatprep.subr.mxu0 0.0
        %3675 = vmatpush1.msra.mxu0 0.0
        %3676 = vmatprep.subr.mxu0 0.0
        %3677 = vmatpush1.msra.mxu0 0.0
        %3678 = vmatprep.subr.mxu0 0.0
        %3679 = vmatpush1.msra.mxu0 0.0
        %3680 = vmatprep.subr.mxu0 0.0
        %3681 = vmatpush1.msra.mxu0 0.0
        %3682 = vmatprep.subr.mxu0 0.0
        %3683 = vmatpush1.msra.mxu0 0.0
        %3684 = vmatprep.subr.mxu0 0.0
        %3685 = vmatpush1.msra.mxu0 0.0
        %3686 = vmatprep.subr.mxu0 0.0
        %3687 = vmatpush1.msra.mxu0 0.0
        %3688 = vmatprep.mubr.f32.mxu0 0.0
        %v3689 = vand.u32 %v3528, 4294901760
        %3690 = vmatmul.mubr.f32.gmra.mrb[0].mxu0 %v3689
        %v3691 = vpop.f32.mrb[0].mxu0
        %v3692 = vadd.f32 %v3606, %v3691
        %v3693 = vpop.f32.mrb[0].mxu0
        %3694 = vmatprep.mubr.f32.mxu0 0.0
        %v3695 = vand.u32 %v3531, 4294901760
        %3696 = vmatmul.mubr.f32.gmra.mrb[0].mxu0 %v3695
        %v3697 = vpop.f32.mrb[0].mxu0
        %v3698 = vadd.f32 %v3616, %v3697
        %v3699 = vpop.f32.mrb[0].mxu0
        %3700 = vdwg.mxu0
        %3701 = vmatprep.subr.mxu0 0.0
        %v3702 = vand.u32 %v3481, 4294901760
        %v3703 = vsub.f32 %v3481, %v3702
        %3704 = vmatpush1.msra.mxu0 %v3703
        %3705 = vmatprep.subr.mxu0 0.0
        %3706 = vmatpush1.msra.mxu0 0.0
        %3707 = vmatprep.subr.mxu0 0.0
        %3708 = vmatpush1.msra.mxu0 0.0
        %3709 = vmatprep.subr.mxu0 0.0
        %3710 = vmatpush1.msra.mxu0 0.0
        %3711 = vmatprep.subr.mxu0 0.0
        %3712 = vmatpush1.msra.mxu0 0.0
        %3713 = vmatprep.subr.mxu0 0.0
        %3714 = vmatpush1.msra.mxu0 0.0
        %3715 = vmatprep.subr.mxu0 0.0
        %3716 = vmatpush1.msra.mxu0 0.0
        %3717 = vmatprep.subr.mxu0 0.0
        %3718 = vmatpush1.msra.mxu0 0.0
        %3719 = vmatprep.subr.mxu0 0.0
        %3720 = vmatpush1.msra.mxu0 0.0
        %3721 = vmatprep.subr.mxu0 0.0
        %3722 = vmatpush1.msra.mxu0 0.0
        %3723 = vmatprep.subr.mxu0 0.0
        %3724 = vmatpush1.msra.mxu0 0.0
        %3725 = vmatprep.subr.mxu0 0.0
        %3726 = vmatpush1.msra.mxu0 0.0
        %3727 = vmatprep.subr.mxu0 0.0
        %3728 = vmatpush1.msra.mxu0 0.0
        %3729 = vmatprep.subr.mxu0 0.0
        %3730 = vmatpush1.msra.mxu0 0.0
        %3731 = vmatprep.subr.mxu0 0.0
        %3732 = vmatpush1.msra.mxu0 0.0
        %3733 = vmatprep.subr.mxu0 0.0
        %3734 = vmatpush1.msra.mxu0 0.0
        %3735 = vmatprep.subr.mxu0 0.0
        %3736 = vmatpush1.msra.mxu0 0.0
        %3737 = vmatprep.subr.mxu0 0.0
        %3738 = vmatpush1.msra.mxu0 0.0
        %3739 = vmatprep.subr.mxu0 0.0
        %3740 = vmatpush1.msra.mxu0 0.0
        %3741 = vmatprep.subr.mxu0 0.0
        %3742 = vmatpush1.msra.mxu0 0.0
        %3743 = vmatprep.subr.mxu0 0.0
        %3744 = vmatpush1.msra.mxu0 0.0
        %3745 = vmatprep.subr.mxu0 0.0
        %3746 = vmatpush1.msra.mxu0 0.0
        %3747 = vmatprep.subr.mxu0 0.0
        %3748 = vmatpush1.msra.mxu0 0.0
        %3749 = vmatprep.subr.mxu0 0.0
        %3750 = vmatpush1.msra.mxu0 0.0
        %3751 = vmatprep.subr.mxu0 0.0
        %3752 = vmatpush1.msra.mxu0 0.0
        %3753 = vmatprep.subr.mxu0 0.0
        %3754 = vmatpush1.msra.mxu0 0.0
        %3755 = vmatprep.subr.mxu0 0.0
        %3756 = vmatpush1.msra.mxu0 0.0
        %3757 = vmatprep.subr.mxu0 0.0
        %3758 = vmatpush1.msra.mxu0 0.0
        %3759 = vmatprep.subr.mxu0 0.0
        %3760 = vmatpush1.msra.mxu0 0.0
        %3761 = vmatprep.subr.mxu0 0.0
        %3762 = vmatpush1.msra.mxu0 0.0
        %3763 = vmatprep.subr.mxu0 0.0
        %3764 = vmatpush1.msra.mxu0 0.0
        %3765 = vmatprep.subr.mxu0 0.0
        %3766 = vmatpush1.msra.mxu0 0.0
        %3767 = vmatprep.mubr.f32.mxu0 0.0
        %v3768 = vand.u32 %v3528, 4294901760
        %v3769 = vsub.f32 %v3528, %v3768
        %3770 = vmatmul.mubr.f32.gmra.mrb[0].mxu0 %v3769
        %v3771 = vpop.f32.mrb[0].mxu0
        %v3772 = vadd.f32 %v3692, %v3771
        %v3773 = vpop.f32.mrb[0].mxu0
        %3774 = vmatprep.mubr.f32.mxu0 0.0
        %v3775 = vand.u32 %v3531, 4294901760
        %v3776 = vsub.f32 %v3531, %v3775
        %3777 = vmatmul.mubr.f32.gmra.mrb[0].mxu0 %v3776
        %v3778 = vpop.f32.mrb[0].mxu0
        %v3779 = vadd.f32 %v3698, %v3778
        %v3780 = vpop.f32.mrb[0].mxu0
        %3781 = vdwg.mxu0
        %3782 = vmatprep.subr.mxu0 0.0
        %v3783 = vand.u32 %v3481, 4294901760
        %3784 = vmatpush1.msra.mxu0 %v3783
        %3785 = vmatprep.subr.mxu0 0.0
        %3786 = vmatpush1.msra.mxu0 0.0
        %3787 = vmatprep.subr.mxu0 0.0
        %3788 = vmatpush1.msra.mxu0 0.0
        %3789 = vmatprep.subr.mxu0 0.0
        %3790 = vmatpush1.msra.mxu0 0.0
        %3791 = vmatprep.subr.mxu0 0.0
        %3792 = vmatpush1.msra.mxu0 0.0
        %3793 = vmatprep.subr.mxu0 0.0
        %3794 = vmatpush1.msra.mxu0 0.0
        %3795 = vmatprep.subr.mxu0 0.0
        %3796 = vmatpush1.msra.mxu0 0.0
        %3797 = vmatprep.subr.mxu0 0.0
        %3798 = vmatpush1.msra.mxu0 0.0
        %3799 = vmatprep.subr.mxu0 0.0
        %3800 = vmatpush1.msra.mxu0 0.0
        %3801 = vmatprep.subr.mxu0 0.0
        %3802 = vmatpush1.msra.mxu0 0.0
        %3803 = vmatprep.subr.mxu0 0.0
        %3804 = vmatpush1.msra.mxu0 0.0
        %3805 = vmatprep.subr.mxu0 0.0
        %3806 = vmatpush1.msra.mxu0 0.0
        %3807 = vmatprep.subr.mxu0 0.0
        %3808 = vmatpush1.msra.mxu0 0.0
        %3809 = vmatprep.subr.mxu0 0.0
        %3810 = vmatpush1.msra.mxu0 0.0
        %3811 = vmatprep.subr.mxu0 0.0
        %3812 = vmatpush1.msra.mxu0 0.0
        %3813 = vmatprep.subr.mxu0 0.0
        %3814 = vmatpush1.msra.mxu0 0.0
        %3815 = vmatprep.subr.mxu0 0.0
        %3816 = vmatpush1.msra.mxu0 0.0
        %3817 = vmatprep.subr.mxu0 0.0
        %3818 = vmatpush1.msra.mxu0 0.0
        %3819 = vmatprep.subr.mxu0 0.0
        %3820 = vmatpush1.msra.mxu0 0.0
        %3821 = vmatprep.subr.mxu0 0.0
        %3822 = vmatpush1.msra.mxu0 0.0
        %3823 = vmatprep.subr.mxu0 0.0
        %3824 = vmatpush1.msra.mxu0 0.0
        %3825 = vmatprep.subr.mxu0 0.0
        %3826 = vmatpush1.msra.mxu0 0.0
        %3827 = vmatprep.subr.mxu0 0.0
        %3828 = vmatpush1.msra.mxu0 0.0
        %3829 = vmatprep.subr.mxu0 0.0
        %3830 = vmatpush1.msra.mxu0 0.0
        %3831 = vmatprep.subr.mxu0 0.0
        %3832 = vmatpush1.msra.mxu0 0.0
        %3833 = vmatprep.subr.mxu0 0.0
        %3834 = vmatpush1.msra.mxu0 0.0
        %3835 = vmatprep.subr.mxu0 0.0
        %3836 = vmatpush1.msra.mxu0 0.0
        %3837 = vmatprep.subr.mxu0 0.0
        %3838 = vmatpush1.msra.mxu0 0.0
        %3839 = vmatprep.subr.mxu0 0.0
        %3840 = vmatpush1.msra.mxu0 0.0
        %3841 = vmatprep.subr.mxu0 0.0
        %3842 = vmatpush1.msra.mxu0 0.0
        %3843 = vmatprep.subr.mxu0 0.0
        %3844 = vmatpush1.msra.mxu0 0.0
        %3845 = vmatprep.subr.mxu0 0.0
        %3846 = vmatpush1.msra.mxu0 0.0
        %3847 = vmatprep.mubr.f32.mxu0 0.0
        %v3848 = vand.u32 %v3528, 4294901760
        %v3849 = vsub.f32 %v3528, %v3848
        %v3850 = vand.u32 %v3849, 4294901760
        %3851 = vmatmul.mubr.f32.gmra.mrb[0].mxu0 %v3850
        %v3852 = vpop.f32.mrb[0].mxu0
        %v3853 = vadd.f32 %v3772, %v3852
        %v3854 = vpop.f32.mrb[0].mxu0
        %3855 = vmatprep.mubr.f32.mxu0 0.0
        %v3856 = vand.u32 %v3531, 4294901760
        %v3857 = vsub.f32 %v3531, %v3856
        %v3858 = vand.u32 %v3857, 4294901760
        %3859 = vmatmul.mubr.f32.gmra.mrb[0].mxu0 %v3858
        %v3860 = vpop.f32.mrb[0].mxu0
        %v3861 = vadd.f32 %v3779, %v3860
        %v3862 = vpop.f32.mrb[0].mxu0
        %3863 = vdwg.mxu0
        %3864 = vmatprep.subr.mxu0 0.0
        %v3865 = vand.u32 %v3481, 4294901760
        %v3866 = vsub.f32 %v3481, %v3865
        %v3867 = vand.u32 %v3866, 4294901760
        %3868 = vmatpush1.msra.mxu0 %v3867
        %3869 = vmatprep.subr.mxu0 0.0
        %3870 = vmatpush1.msra.mxu0 0.0
        %3871 = vmatprep.subr.mxu0 0.0
        %3872 = vmatpush1.msra.mxu0 0.0
        %3873 = vmatprep.subr.mxu0 0.0
        %3874 = vmatpush1.msra.mxu0 0.0
        %3875 = vmatprep.subr.mxu0 0.0
        %3876 = vmatpush1.msra.mxu0 0.0
        %3877 = vmatprep.subr.mxu0 0.0
        %3878 = vmatpush1.msra.mxu0 0.0
        %3879 = vmatprep.subr.mxu0 0.0
        %3880 = vmatpush1.msra.mxu0 0.0
        %3881 = vmatprep.subr.mxu0 0.0
        %3882 = vmatpush1.msra.mxu0 0.0
        %3883 = vmatprep.subr.mxu0 0.0
        %3884 = vmatpush1.msra.mxu0 0.0
        %3885 = vmatprep.subr.mxu0 0.0
        %3886 = vmatpush1.msra.mxu0 0.0
        %3887 = vmatprep.subr.mxu0 0.0
        %3888 = vmatpush1.msra.mxu0 0.0
        %3889 = vmatprep.subr.mxu0 0.0
        %3890 = vmatpush1.msra.mxu0 0.0
        %3891 = vmatprep.subr.mxu0 0.0
        %3892 = vmatpush1.msra.mxu0 0.0
        %3893 = vmatprep.subr.mxu0 0.0
        %3894 = vmatpush1.msra.mxu0 0.0
        %3895 = vmatprep.subr.mxu0 0.0
        %3896 = vmatpush1.msra.mxu0 0.0
        %3897 = vmatprep.subr.mxu0 0.0
        %3898 = vmatpush1.msra.mxu0 0.0
        %3899 = vmatprep.subr.mxu0 0.0
        %3900 = vmatpush1.msra.mxu0 0.0
        %3901 = vmatprep.subr.mxu0 0.0
        %3902 = vmatpush1.msra.mxu0 0.0
        %3903 = vmatprep.subr.mxu0 0.0
        %3904 = vmatpush1.msra.mxu0 0.0
        %3905 = vmatprep.subr.mxu0 0.0
        %3906 = vmatpush1.msra.mxu0 0.0
        %3907 = vmatprep.subr.mxu0 0.0
        %3908 = vmatpush1.msra.mxu0 0.0
        %3909 = vmatprep.subr.mxu0 0.0
        %3910 = vmatpush1.msra.mxu0 0.0
        %3911 = vmatprep.subr.mxu0 0.0
        %3912 = vmatpush1.msra.mxu0 0.0
        %3913 = vmatprep.subr.mxu0 0.0
        %3914 = vmatpush1.msra.mxu0 0.0
        %3915 = vmatprep.subr.mxu0 0.0
        %3916 = vmatpush1.msra.mxu0 0.0
        %3917 = vmatprep.subr.mxu0 0.0
        %3918 = vmatpush1.msra.mxu0 0.0
        %3919 = vmatprep.subr.mxu0 0.0
        %3920 = vmatpush1.msra.mxu0 0.0
        %3921 = vmatprep.subr.mxu0 0.0
        %3922 = vmatpush1.msra.mxu0 0.0
        %3923 = vmatprep.subr.mxu0 0.0
        %3924 = vmatpush1.msra.mxu0 0.0
        %3925 = vmatprep.subr.mxu0 0.0
        %3926 = vmatpush1.msra.mxu0 0.0
        %3927 = vmatprep.subr.mxu0 0.0
        %3928 = vmatpush1.msra.mxu0 0.0
        %3929 = vmatprep.subr.mxu0 0.0
        %3930 = vmatpush1.msra.mxu0 0.0
        %3931 = vmatprep.mubr.f32.mxu0 0.0
        %v3932 = vand.u32 %v3528, 4294901760
        %3933 = vmatmul.mubr.f32.gmra.mrb[0].mxu0 %v3932
        %v3934 = vpop.f32.mrb[0].mxu0
        %v3935 = vadd.f32 %v3853, %v3934
        %v3936 = vpop.f32.mrb[0].mxu0
        %3937 = vmatprep.mubr.f32.mxu0 0.0
        %v3938 = vand.u32 %v3531, 4294901760
        %3939 = vmatmul.mubr.f32.gmra.mrb[0].mxu0 %v3938
        %v3940 = vpop.f32.mrb[0].mxu0
        %v3941 = vadd.f32 %v3861, %v3940
        %v3942 = vpop.f32.mrb[0].mxu0
        %3943 = vdwg.mxu0
        %3944 = vmatprep.subr.mxu0 0.0
        %v3945 = vand.u32 %v3481, 4294901760
        %3946 = vmatpush1.msra.mxu0 %v3945
        %3947 = vmatprep.subr.mxu0 0.0
        %3948 = vmatpush1.msra.mxu0 0.0
        %3949 = vmatprep.subr.mxu0 0.0
        %3950 = vmatpush1.msra.mxu0 0.0
        %3951 = vmatprep.subr.mxu0 0.0
        %3952 = vmatpush1.msra.mxu0 0.0
        %3953 = vmatprep.subr.mxu0 0.0
        %3954 = vmatpush1.msra.mxu0 0.0
        %3955 = vmatprep.subr.mxu0 0.0
        %3956 = vmatpush1.msra.mxu0 0.0
        %3957 = vmatprep.subr.mxu0 0.0
        %3958 = vmatpush1.msra.mxu0 0.0
        %3959 = vmatprep.subr.mxu0 0.0
        %3960 = vmatpush1.msra.mxu0 0.0
        %3961 = vmatprep.subr.mxu0 0.0
        %3962 = vmatpush1.msra.mxu0 0.0
        %3963 = vmatprep.subr.mxu0 0.0
        %3964 = vmatpush1.msra.mxu0 0.0
        %3965 = vmatprep.subr.mxu0 0.0
        %3966 = vmatpush1.msra.mxu0 0.0
        %3967 = vmatprep.subr.mxu0 0.0
        %3968 = vmatpush1.msra.mxu0 0.0
        %3969 = vmatprep.subr.mxu0 0.0
        %3970 = vmatpush1.msra.mxu0 0.0
        %3971 = vmatprep.subr.mxu0 0.0
        %3972 = vmatpush1.msra.mxu0 0.0
        %3973 = vmatprep.subr.mxu0 0.0
        %3974 = vmatpush1.msra.mxu0 0.0
        %3975 = vmatprep.subr.mxu0 0.0
        %3976 = vmatpush1.msra.mxu0 0.0
        %3977 = vmatprep.subr.mxu0 0.0
        %3978 = vmatpush1.msra.mxu0 0.0
        %3979 = vmatprep.subr.mxu0 0.0
        %3980 = vmatpush1.msra.mxu0 0.0
        %3981 = vmatprep.subr.mxu0 0.0
        %3982 = vmatpush1.msra.mxu0 0.0
        %3983 = vmatprep.subr.mxu0 0.0
        %3984 = vmatpush1.msra.mxu0 0.0
        %3985 = vmatprep.subr.mxu0 0.0
        %3986 = vmatpush1.msra.mxu0 0.0
        %3987 = vmatprep.subr.mxu0 0.0
        %3988 = vmatpush1.msra.mxu0 0.0
        %3989 = vmatprep.subr.mxu0 0.0
        %3990 = vmatpush1.msra.mxu0 0.0
        %3991 = vmatprep.subr.mxu0 0.0
        %3992 = vmatpush1.msra.mxu0 0.0
        %3993 = vmatprep.subr.mxu0 0.0
        %3994 = vmatpush1.msra.mxu0 0.0
        %3995 = vmatprep.subr.mxu0 0.0
        %3996 = vmatpush1.msra.mxu0 0.0
        %3997 = vmatprep.subr.mxu0 0.0
        %3998 = vmatpush1.msra.mxu0 0.0
        %3999 = vmatprep.subr.mxu0 0.0
        %4000 = vmatpush1.msra.mxu0 0.0
        %4001 = vmatprep.subr.mxu0 0.0
        %4002 = vmatpush1.msra.mxu0 0.0
        %4003 = vmatprep.subr.mxu0 0.0
        %4004 = vmatpush1.msra.mxu0 0.0
        %4005 = vmatprep.subr.mxu0 0.0
        %4006 = vmatpush1.msra.mxu0 0.0
        %4007 = vmatprep.subr.mxu0 0.0
        %4008 = vmatpush1.msra.mxu0 0.0
        %4009 = vmatprep.mubr.f32.mxu0 0.0
        %v4010 = vand.u32 %v3528, 4294901760
        %4011 = vmatmul.mubr.f32.gmra.mrb[0].mxu0 %v4010
        %v4012 = vpop.f32.mrb[0].mxu0
        %v4013 = vadd.f32 %v3935, %v4012
        %v4014 = vpop.f32.mrb[0].mxu0
        %4015 = vmatprep.mubr.f32.mxu0 0.0
        %v4016 = vand.u32 %v3531, 4294901760
        %4017 = vmatmul.mubr.f32.gmra.mrb[0].mxu0 %v4016
        %v4018 = vpop.f32.mrb[0].mxu0
        %v4019 = vadd.f32 %v3941, %v4018
        %v4020 = vpop.f32.mrb[0].mxu0
        %4021 = vdwg.mxu0
        %4022 = vmatprep.subr.mxu0 0.0
        %v4023 = vand.u32 %v3487, 4294901760
        %4024 = vmatpush1.msra.mxu0 %v4023
        %4025 = vmatprep.subr.mxu0 0.0
        %4026 = vmatpush1.msra.mxu0 0.0
        %4027 = vmatprep.subr.mxu0 0.0
        %4028 = vmatpush1.msra.mxu0 0.0
        %4029 = vmatprep.subr.mxu0 0.0
        %4030 = vmatpush1.msra.mxu0 0.0
        %4031 = vmatprep.subr.mxu0 0.0
        %4032 = vmatpush1.msra.mxu0 0.0
        %4033 = vmatprep.subr.mxu0 0.0
        %4034 = vmatpush1.msra.mxu0 0.0
        %4035 = vmatprep.subr.mxu0 0.0
        %4036 = vmatpush1.msra.mxu0 0.0
        %4037 = vmatprep.subr.mxu0 0.0
        %4038 = vmatpush1.msra.mxu0 0.0
        %4039 = vmatprep.subr.mxu0 0.0
        %4040 = vmatpush1.msra.mxu0 0.0
        %4041 = vmatprep.subr.mxu0 0.0
        %4042 = vmatpush1.msra.mxu0 0.0
        %4043 = vmatprep.subr.mxu0 0.0
        %4044 = vmatpush1.msra.mxu0 0.0
        %4045 = vmatprep.subr.mxu0 0.0
        %4046 = vmatpush1.msra.mxu0 0.0
        %4047 = vmatprep.subr.mxu0 0.0
        %4048 = vmatpush1.msra.mxu0 0.0
        %4049 = vmatprep.subr.mxu0 0.0
        %4050 = vmatpush1.msra.mxu0 0.0
        %4051 = vmatprep.subr.mxu0 0.0
        %4052 = vmatpush1.msra.mxu0 0.0
        %4053 = vmatprep.subr.mxu0 0.0
        %4054 = vmatpush1.msra.mxu0 0.0
        %4055 = vmatprep.subr.mxu0 0.0
        %4056 = vmatpush1.msra.mxu0 0.0
        %4057 = vmatprep.subr.mxu0 0.0
        %4058 = vmatpush1.msra.mxu0 0.0
        %4059 = vmatprep.subr.mxu0 0.0
        %4060 = vmatpush1.msra.mxu0 0.0
        %4061 = vmatprep.subr.mxu0 0.0
        %4062 = vmatpush1.msra.mxu0 0.0
        %4063 = vmatprep.subr.mxu0 0.0
        %4064 = vmatpush1.msra.mxu0 0.0
        %4065 = vmatprep.subr.mxu0 0.0
        %4066 = vmatpush1.msra.mxu0 0.0
        %4067 = vmatprep.subr.mxu0 0.0
        %4068 = vmatpush1.msra.mxu0 0.0
        %4069 = vmatprep.subr.mxu0 0.0
        %4070 = vmatpush1.msra.mxu0 0.0
        %4071 = vmatprep.subr.mxu0 0.0
        %4072 = vmatpush1.msra.mxu0 0.0
        %4073 = vmatprep.subr.mxu0 0.0
        %4074 = vmatpush1.msra.mxu0 0.0
        %4075 = vmatprep.subr.mxu0 0.0
        %4076 = vmatpush1.msra.mxu0 0.0
        %4077 = vmatprep.subr.mxu0 0.0
        %4078 = vmatpush1.msra.mxu0 0.0
        %4079 = vmatprep.subr.mxu0 0.0
        %4080 = vmatpush1.msra.mxu0 0.0
        %4081 = vmatprep.subr.mxu0 0.0
        %4082 = vmatpush1.msra.mxu0 0.0
        %4083 = vmatprep.subr.mxu0 0.0
        %4084 = vmatpush1.msra.mxu0 0.0
        %4085 = vmatprep.subr.mxu0 0.0
        %4086 = vmatpush1.msra.mxu0 0.0
        %4087 = vmatprep.mubr.f32.mxu0 0.0
        %v4088 = vand.u32 %v3528, 4294901760
        %v4089 = vsub.f32 %v3528, %v4088
        %v4090 = vand.u32 %v4089, 4294901760
        %v4091 = vsub.f32 %v4089, %v4090
        %v4092 = vand.u32 %v4091, 4294901760
        %4093 = vmatmul.mubr.f32.gmra.mrb[0].mxu0 %v4092
        %v4094 = vpop.f32.mrb[0].mxu0
        %v4095 = vadd.f32 0.0, %v4094
        %v4096 = vpop.f32.mrb[0].mxu0
        %4097 = vmatprep.mubr.f32.mxu0 0.0
        %v4098 = vand.u32 %v3531, 4294901760
        %v4099 = vsub.f32 %v3531, %v4098
        %v4100 = vand.u32 %v4099, 4294901760
        %v4101 = vsub.f32 %v4099, %v4100
        %v4102 = vand.u32 %v4101, 4294901760
        %4103 = vmatmul.mubr.f32.gmra.mrb[0].mxu0 %v4102
        %v4104 = vpop.f32.mrb[0].mxu0
        %v4105 = vadd.f32 0.0, %v4104
        %v4106 = vpop.f32.mrb[0].mxu0
        %4107 = vdwg.mxu0
        %4108 = vmatprep.subr.mxu0 0.0
        %v4109 = vand.u32 %v3487, 4294901760
        %v4110 = vsub.f32 %v3487, %v4109
        %v4111 = vand.u32 %v4110, 4294901760
        %v4112 = vsub.f32 %v4110, %v4111
        %v4113 = vand.u32 %v4112, 4294901760
        %4114 = vmatpush1.msra.mxu0 %v4113
        %4115 = vmatprep.subr.mxu0 0.0
        %4116 = vmatpush1.msra.mxu0 0.0
        %4117 = vmatprep.subr.mxu0 0.0
        %4118 = vmatpush1.msra.mxu0 0.0
        %4119 = vmatprep.subr.mxu0 0.0
        %4120 = vmatpush1.msra.mxu0 0.0
        %4121 = vmatprep.subr.mxu0 0.0
        %4122 = vmatpush1.msra.mxu0 0.0
        %4123 = vmatprep.subr.mxu0 0.0
        %4124 = vmatpush1.msra.mxu0 0.0
        %4125 = vmatprep.subr.mxu0 0.0
        %4126 = vmatpush1.msra.mxu0 0.0
        %4127 = vmatprep.subr.mxu0 0.0
        %4128 = vmatpush1.msra.mxu0 0.0
        %4129 = vmatprep.subr.mxu0 0.0
        %4130 = vmatpush1.msra.mxu0 0.0
        %4131 = vmatprep.subr.mxu0 0.0
        %4132 = vmatpush1.msra.mxu0 0.0
        %4133 = vmatprep.subr.mxu0 0.0
        %4134 = vmatpush1.msra.mxu0 0.0
        %4135 = vmatprep.subr.mxu0 0.0
        %4136 = vmatpush1.msra.mxu0 0.0
        %4137 = vmatprep.subr.mxu0 0.0
        %4138 = vmatpush1.msra.mxu0 0.0
        %4139 = vmatprep.subr.mxu0 0.0
        %4140 = vmatpush1.msra.mxu0 0.0
        %4141 = vmatprep.subr.mxu0 0.0
        %4142 = vmatpush1.msra.mxu0 0.0
        %4143 = vmatprep.subr.mxu0 0.0
        %4144 = vmatpush1.msra.mxu0 0.0
        %4145 = vmatprep.subr.mxu0 0.0
        %4146 = vmatpush1.msra.mxu0 0.0
        %4147 = vmatprep.subr.mxu0 0.0
        %4148 = vmatpush1.msra.mxu0 0.0
        %4149 = vmatprep.subr.mxu0 0.0
        %4150 = vmatpush1.msra.mxu0 0.0
        %4151 = vmatprep.subr.mxu0 0.0
        %4152 = vmatpush1.msra.mxu0 0.0
        %4153 = vmatprep.subr.mxu0 0.0
        %4154 = vmatpush1.msra.mxu0 0.0
        %4155 = vmatprep.subr.mxu0 0.0
        %4156 = vmatpush1.msra.mxu0 0.0
        %4157 = vmatprep.subr.mxu0 0.0
        %4158 = vmatpush1.msra.mxu0 0.0
        %4159 = vmatprep.subr.mxu0 0.0
        %4160 = vmatpush1.msra.mxu0 0.0
        %4161 = vmatprep.subr.mxu0 0.0
        %4162 = vmatpush1.msra.mxu0 0.0
        %4163 = vmatprep.subr.mxu0 0.0
        %4164 = vmatpush1.msra.mxu0 0.0
        %4165 = vmatprep.subr.mxu0 0.0
        %4166 = vmatpush1.msra.mxu0 0.0
        %4167 = vmatprep.subr.mxu0 0.0
        %4168 = vmatpush1.msra.mxu0 0.0
        %4169 = vmatprep.subr.mxu0 0.0
        %4170 = vmatpush1.msra.mxu0 0.0
        %4171 = vmatprep.subr.mxu0 0.0
        %4172 = vmatpush1.msra.mxu0 0.0
        %4173 = vmatprep.subr.mxu0 0.0
        %4174 = vmatpush1.msra.mxu0 0.0
        %4175 = vmatprep.subr.mxu0 0.0
        %4176 = vmatpush1.msra.mxu0 0.0
        %4177 = vmatprep.mubr.f32.mxu0 0.0
        %v4178 = vand.u32 %v3528, 4294901760
        %4179 = vmatmul.mubr.f32.gmra.mrb[0].mxu0 %v4178
        %v4180 = vpop.f32.mrb[0].mxu0
        %v4181 = vadd.f32 %v4095, %v4180
        %v4182 = vpop.f32.mrb[0].mxu0
        %4183 = vmatprep.mubr.f32.mxu0 0.0
        %v4184 = vand.u32 %v3531, 4294901760
        %4185 = vmatmul.mubr.f32.gmra.mrb[0].mxu0 %v4184
        %v4186 = vpop.f32.mrb[0].mxu0
        %v4187 = vadd.f32 %v4105, %v4186
        %v4188 = vpop.f32.mrb[0].mxu0
        %4189 = vdwg.mxu0
        %4190 = vmatprep.subr.mxu0 0.0
        %v4191 = vand.u32 %v3487, 4294901760
        %v4192 = vsub.f32 %v3487, %v4191
        %4193 = vmatpush1.msra.mxu0 %v4192
        %4194 = vmatprep.subr.mxu0 0.0
        %4195 = vmatpush1.msra.mxu0 0.0
        %4196 = vmatprep.subr.mxu0 0.0
        %4197 = vmatpush1.msra.mxu0 0.0
        %4198 = vmatprep.subr.mxu0 0.0
        %4199 = vmatpush1.msra.mxu0 0.0
        %4200 = vmatprep.subr.mxu0 0.0
        %4201 = vmatpush1.msra.mxu0 0.0
        %4202 = vmatprep.subr.mxu0 0.0
        %4203 = vmatpush1.msra.mxu0 0.0
        %4204 = vmatprep.subr.mxu0 0.0
        %4205 = vmatpush1.msra.mxu0 0.0
        %4206 = vmatprep.subr.mxu0 0.0
        %4207 = vmatpush1.msra.mxu0 0.0
        %4208 = vmatprep.subr.mxu0 0.0
        %4209 = vmatpush1.msra.mxu0 0.0
        %4210 = vmatprep.subr.mxu0 0.0
        %4211 = vmatpush1.msra.mxu0 0.0
        %4212 = vmatprep.subr.mxu0 0.0
        %4213 = vmatpush1.msra.mxu0 0.0
        %4214 = vmatprep.subr.mxu0 0.0
        %4215 = vmatpush1.msra.mxu0 0.0
        %4216 = vmatprep.subr.mxu0 0.0
        %4217 = vmatpush1.msra.mxu0 0.0
        %4218 = vmatprep.subr.mxu0 0.0
        %4219 = vmatpush1.msra.mxu0 0.0
        %4220 = vmatprep.subr.mxu0 0.0
        %4221 = vmatpush1.msra.mxu0 0.0
        %4222 = vmatprep.subr.mxu0 0.0
        %4223 = vmatpush1.msra.mxu0 0.0
        %4224 = vmatprep.subr.mxu0 0.0
        %4225 = vmatpush1.msra.mxu0 0.0
        %4226 = vmatprep.subr.mxu0 0.0
        %4227 = vmatpush1.msra.mxu0 0.0
        %4228 = vmatprep.subr.mxu0 0.0
        %4229 = vmatpush1.msra.mxu0 0.0
        %4230 = vmatprep.subr.mxu0 0.0
        %4231 = vmatpush1.msra.mxu0 0.0
        %4232 = vmatprep.subr.mxu0 0.0
        %4233 = vmatpush1.msra.mxu0 0.0
        %4234 = vmatprep.subr.mxu0 0.0
        %4235 = vmatpush1.msra.mxu0 0.0
        %4236 = vmatprep.subr.mxu0 0.0
        %4237 = vmatpush1.msra.mxu0 0.0
        %4238 = vmatprep.subr.mxu0 0.0
        %4239 = vmatpush1.msra.mxu0 0.0
        %4240 = vmatprep.subr.mxu0 0.0
        %4241 = vmatpush1.msra.mxu0 0.0
        %4242 = vmatprep.subr.mxu0 0.0
        %4243 = vmatpush1.msra.mxu0 0.0
        %4244 = vmatprep.subr.mxu0 0.0
        %4245 = vmatpush1.msra.mxu0 0.0
        %4246 = vmatprep.subr.mxu0 0.0
        %4247 = vmatpush1.msra.mxu0 0.0
        %4248 = vmatprep.subr.mxu0 0.0
        %4249 = vmatpush1.msra.mxu0 0.0
        %4250 = vmatprep.subr.mxu0 0.0
        %4251 = vmatpush1.msra.mxu0 0.0
        %4252 = vmatprep.subr.mxu0 0.0
        %4253 = vmatpush1.msra.mxu0 0.0
        %4254 = vmatprep.subr.mxu0 0.0
        %4255 = vmatpush1.msra.mxu0 0.0
        %4256 = vmatprep.mubr.f32.mxu0 0.0
        %v4257 = vand.u32 %v3528, 4294901760
        %v4258 = vsub.f32 %v3528, %v4257
        %4259 = vmatmul.mubr.f32.gmra.mrb[0].mxu0 %v4258
        %v4260 = vpop.f32.mrb[0].mxu0
        %v4261 = vadd.f32 %v4181, %v4260
        %v4262 = vpop.f32.mrb[0].mxu0
        %4263 = vmatprep.mubr.f32.mxu0 0.0
        %v4264 = vand.u32 %v3531, 4294901760
        %v4265 = vsub.f32 %v3531, %v4264
        %4266 = vmatmul.mubr.f32.gmra.mrb[0].mxu0 %v4265
        %v4267 = vpop.f32.mrb[0].mxu0
        %v4268 = vadd.f32 %v4187, %v4267
        %v4269 = vpop.f32.mrb[0].mxu0
        %4270 = vdwg.mxu0
        %4271 = vmatprep.subr.mxu0 0.0
        %v4272 = vand.u32 %v3487, 4294901760
        %4273 = vmatpush1.msra.mxu0 %v4272
        %4274 = vmatprep.subr.mxu0 0.0
        %4275 = vmatpush1.msra.mxu0 0.0
        %4276 = vmatprep.subr.mxu0 0.0
        %4277 = vmatpush1.msra.mxu0 0.0
        %4278 = vmatprep.subr.mxu0 0.0
        %4279 = vmatpush1.msra.mxu0 0.0
        %4280 = vmatprep.subr.mxu0 0.0
        %4281 = vmatpush1.msra.mxu0 0.0
        %4282 = vmatprep.subr.mxu0 0.0
        %4283 = vmatpush1.msra.mxu0 0.0
        %4284 = vmatprep.subr.mxu0 0.0
        %4285 = vmatpush1.msra.mxu0 0.0
        %4286 = vmatprep.subr.mxu0 0.0
        %4287 = vmatpush1.msra.mxu0 0.0
        %4288 = vmatprep.subr.mxu0 0.0
        %4289 = vmatpush1.msra.mxu0 0.0
        %4290 = vmatprep.subr.mxu0 0.0
        %4291 = vmatpush1.msra.mxu0 0.0
        %4292 = vmatprep.subr.mxu0 0.0
        %4293 = vmatpush1.msra.mxu0 0.0
        %4294 = vmatprep.subr.mxu0 0.0
        %4295 = vmatpush1.msra.mxu0 0.0
        %4296 = vmatprep.subr.mxu0 0.0
        %4297 = vmatpush1.msra.mxu0 0.0
        %4298 = vmatprep.subr.mxu0 0.0
        %4299 = vmatpush1.msra.mxu0 0.0
        %4300 = vmatprep.subr.mxu0 0.0
        %4301 = vmatpush1.msra.mxu0 0.0
        %4302 = vmatprep.subr.mxu0 0.0
        %4303 = vmatpush1.msra.mxu0 0.0
        %4304 = vmatprep.subr.mxu0 0.0
        %4305 = vmatpush1.msra.mxu0 0.0
        %4306 = vmatprep.subr.mxu0 0.0
        %4307 = vmatpush1.msra.mxu0 0.0
        %4308 = vmatprep.subr.mxu0 0.0
        %4309 = vmatpush1.msra.mxu0 0.0
        %4310 = vmatprep.subr.mxu0 0.0
        %4311 = vmatpush1.msra.mxu0 0.0
        %4312 = vmatprep.subr.mxu0 0.0
        %4313 = vmatpush1.msra.mxu0 0.0
        %4314 = vmatprep.subr.mxu0 0.0
        %4315 = vmatpush1.msra.mxu0 0.0
        %4316 = vmatprep.subr.mxu0 0.0
        %4317 = vmatpush1.msra.mxu0 0.0
        %4318 = vmatprep.subr.mxu0 0.0
        %4319 = vmatpush1.msra.mxu0 0.0
        %4320 = vmatprep.subr.mxu0 0.0
        %4321 = vmatpush1.msra.mxu0 0.0
        %4322 = vmatprep.subr.mxu0 0.0
        %4323 = vmatpush1.msra.mxu0 0.0
        %4324 = vmatprep.subr.mxu0 0.0
        %4325 = vmatpush1.msra.mxu0 0.0
        %4326 = vmatprep.subr.mxu0 0.0
        %4327 = vmatpush1.msra.mxu0 0.0
        %4328 = vmatprep.subr.mxu0 0.0
        %4329 = vmatpush1.msra.mxu0 0.0
        %4330 = vmatprep.subr.mxu0 0.0
        %4331 = vmatpush1.msra.mxu0 0.0
        %4332 = vmatprep.subr.mxu0 0.0
        %4333 = vmatpush1.msra.mxu0 0.0
        %4334 = vmatprep.subr.mxu0 0.0
        %4335 = vmatpush1.msra.mxu0 0.0
        %4336 = vmatprep.mubr.f32.mxu0 0.0
        %v4337 = vand.u32 %v3528, 4294901760
        %v4338 = vsub.f32 %v3528, %v4337
        %v4339 = vand.u32 %v4338, 4294901760
        %4340 = vmatmul.mubr.f32.gmra.mrb[0].mxu0 %v4339
        %v4341 = vpop.f32.mrb[0].mxu0
        %v4342 = vadd.f32 %v4261, %v4341
        %v4343 = vpop.f32.mrb[0].mxu0
        %4344 = vmatprep.mubr.f32.mxu0 0.0
        %v4345 = vand.u32 %v3531, 4294901760
        %v4346 = vsub.f32 %v3531, %v4345
        %v4347 = vand.u32 %v4346, 4294901760
        %4348 = vmatmul.mubr.f32.gmra.mrb[0].mxu0 %v4347
        %v4349 = vpop.f32.mrb[0].mxu0
        %v4350 = vadd.f32 %v4268, %v4349
        %v4351 = vpop.f32.mrb[0].mxu0
        %4352 = vdwg.mxu0
        %4353 = vmatprep.subr.mxu0 0.0
        %v4354 = vand.u32 %v3487, 4294901760
        %v4355 = vsub.f32 %v3487, %v4354
        %v4356 = vand.u32 %v4355, 4294901760
        %4357 = vmatpush1.msra.mxu0 %v4356
        %4358 = vmatprep.subr.mxu0 0.0
        %4359 = vmatpush1.msra.mxu0 0.0
        %4360 = vmatprep.subr.mxu0 0.0
        %4361 = vmatpush1.msra.mxu0 0.0
        %4362 = vmatprep.subr.mxu0 0.0
        %4363 = vmatpush1.msra.mxu0 0.0
        %4364 = vmatprep.subr.mxu0 0.0
        %4365 = vmatpush1.msra.mxu0 0.0
        %4366 = vmatprep.subr.mxu0 0.0
        %4367 = vmatpush1.msra.mxu0 0.0
        %4368 = vmatprep.subr.mxu0 0.0
        %4369 = vmatpush1.msra.mxu0 0.0
        %4370 = vmatprep.subr.mxu0 0.0
        %4371 = vmatpush1.msra.mxu0 0.0
        %4372 = vmatprep.subr.mxu0 0.0
        %4373 = vmatpush1.msra.mxu0 0.0
        %4374 = vmatprep.subr.mxu0 0.0
        %4375 = vmatpush1.msra.mxu0 0.0
        %4376 = vmatprep.subr.mxu0 0.0
        %4377 = vmatpush1.msra.mxu0 0.0
        %4378 = vmatprep.subr.mxu0 0.0
        %4379 = vmatpush1.msra.mxu0 0.0
        %4380 = vmatprep.subr.mxu0 0.0
        %4381 = vmatpush1.msra.mxu0 0.0
        %4382 = vmatprep.subr.mxu0 0.0
        %4383 = vmatpush1.msra.mxu0 0.0
        %4384 = vmatprep.subr.mxu0 0.0
        %4385 = vmatpush1.msra.mxu0 0.0
        %4386 = vmatprep.subr.mxu0 0.0
        %4387 = vmatpush1.msra.mxu0 0.0
        %4388 = vmatprep.subr.mxu0 0.0
        %4389 = vmatpush1.msra.mxu0 0.0
        %4390 = vmatprep.subr.mxu0 0.0
        %4391 = vmatpush1.msra.mxu0 0.0
        %4392 = vmatprep.subr.mxu0 0.0
        %4393 = vmatpush1.msra.mxu0 0.0
        %4394 = vmatprep.subr.mxu0 0.0
        %4395 = vmatpush1.msra.mxu0 0.0
        %4396 = vmatprep.subr.mxu0 0.0
        %4397 = vmatpush1.msra.mxu0 0.0
        %4398 = vmatprep.subr.mxu0 0.0
        %4399 = vmatpush1.msra.mxu0 0.0
        %4400 = vmatprep.subr.mxu0 0.0
        %4401 = vmatpush1.msra.mxu0 0.0
        %4402 = vmatprep.subr.mxu0 0.0
        %4403 = vmatpush1.msra.mxu0 0.0
        %4404 = vmatprep.subr.mxu0 0.0
        %4405 = vmatpush1.msra.mxu0 0.0
        %4406 = vmatprep.subr.mxu0 0.0
        %4407 = vmatpush1.msra.mxu0 0.0
        %4408 = vmatprep.subr.mxu0 0.0
        %4409 = vmatpush1.msra.mxu0 0.0
        %4410 = vmatprep.subr.mxu0 0.0
        %4411 = vmatpush1.msra.mxu0 0.0
        %4412 = vmatprep.subr.mxu0 0.0
        %4413 = vmatpush1.msra.mxu0 0.0
        %4414 = vmatprep.subr.mxu0 0.0
        %4415 = vmatpush1.msra.mxu0 0.0
        %4416 = vmatprep.subr.mxu0 0.0
        %4417 = vmatpush1.msra.mxu0 0.0
        %4418 = vmatprep.subr.mxu0 0.0
        %4419 = vmatpush1.msra.mxu0 0.0
        %4420 = vmatprep.mubr.f32.mxu0 0.0
        %v4421 = vand.u32 %v3528, 4294901760
        %4422 = vmatmul.mubr.f32.gmra.mrb[0].mxu0 %v4421
        %v4423 = vpop.f32.mrb[0].mxu0
        %v4424 = vadd.f32 %v4342, %v4423
        %v4425 = vpop.f32.mrb[0].mxu0
        %4426 = vmatprep.mubr.f32.mxu0 0.0
        %v4427 = vand.u32 %v3531, 4294901760
        %4428 = vmatmul.mubr.f32.gmra.mrb[0].mxu0 %v4427
        %v4429 = vpop.f32.mrb[0].mxu0
        %v4430 = vadd.f32 %v4350, %v4429
        %v4431 = vpop.f32.mrb[0].mxu0
        %4432 = vdwg.mxu0
        %4433 = vmatprep.subr.mxu0 0.0
        %v4434 = vand.u32 %v3487, 4294901760
        %4435 = vmatpush1.msra.mxu0 %v4434
        %4436 = vmatprep.subr.mxu0 0.0
        %4437 = vmatpush1.msra.mxu0 0.0
        %4438 = vmatprep.subr.mxu0 0.0
        %4439 = vmatpush1.msra.mxu0 0.0
        %4440 = vmatprep.subr.mxu0 0.0
        %4441 = vmatpush1.msra.mxu0 0.0
        %4442 = vmatprep.subr.mxu0 0.0
        %4443 = vmatpush1.msra.mxu0 0.0
        %4444 = vmatprep.subr.mxu0 0.0
        %4445 = vmatpush1.msra.mxu0 0.0
        %4446 = vmatprep.subr.mxu0 0.0
        %4447 = vmatpush1.msra.mxu0 0.0
        %4448 = vmatprep.subr.mxu0 0.0
        %4449 = vmatpush1.msra.mxu0 0.0
        %4450 = vmatprep.subr.mxu0 0.0
        %4451 = vmatpush1.msra.mxu0 0.0
        %4452 = vmatprep.subr.mxu0 0.0
        %4453 = vmatpush1.msra.mxu0 0.0
        %4454 = vmatprep.subr.mxu0 0.0
        %4455 = vmatpush1.msra.mxu0 0.0
        %4456 = vmatprep.subr.mxu0 0.0
        %4457 = vmatpush1.msra.mxu0 0.0
        %4458 = vmatprep.subr.mxu0 0.0
        %4459 = vmatpush1.msra.mxu0 0.0
        %4460 = vmatprep.subr.mxu0 0.0
        %4461 = vmatpush1.msra.mxu0 0.0
        %4462 = vmatprep.subr.mxu0 0.0
        %4463 = vmatpush1.msra.mxu0 0.0
        %4464 = vmatprep.subr.mxu0 0.0
        %4465 = vmatpush1.msra.mxu0 0.0
        %4466 = vmatprep.subr.mxu0 0.0
        %4467 = vmatpush1.msra.mxu0 0.0
        %4468 = vmatprep.subr.mxu0 0.0
        %4469 = vmatpush1.msra.mxu0 0.0
        %4470 = vmatprep.subr.mxu0 0.0
        %4471 = vmatpush1.msra.mxu0 0.0
        %4472 = vmatprep.subr.mxu0 0.0
        %4473 = vmatpush1.msra.mxu0 0.0
        %4474 = vmatprep.subr.mxu0 0.0
        %4475 = vmatpush1.msra.mxu0 0.0
        %4476 = vmatprep.subr.mxu0 0.0
        %4477 = vmatpush1.msra.mxu0 0.0
        %4478 = vmatprep.subr.mxu0 0.0
        %4479 = vmatpush1.msra.mxu0 0.0
        %4480 = vmatprep.subr.mxu0 0.0
        %4481 = vmatpush1.msra.mxu0 0.0
        %4482 = vmatprep.subr.mxu0 0.0
        %4483 = vmatpush1.msra.mxu0 0.0
        %4484 = vmatprep.subr.mxu0 0.0
        %4485 = vmatpush1.msra.mxu0 0.0
        %4486 = vmatprep.subr.mxu0 0.0
        %4487 = vmatpush1.msra.mxu0 0.0
        %4488 = vmatprep.subr.mxu0 0.0
        %4489 = vmatpush1.msra.mxu0 0.0
        %4490 = vmatprep.subr.mxu0 0.0
        %4491 = vmatpush1.msra.mxu0 0.0
        %4492 = vmatprep.subr.mxu0 0.0
        %4493 = vmatpush1.msra.mxu0 0.0
        %4494 = vmatprep.subr.mxu0 0.0
        %4495 = vmatpush1.msra.mxu0 0.0
        %4496 = vmatprep.subr.mxu0 0.0
        %4497 = vmatpush1.msra.mxu0 0.0
        %4498 = vmatprep.mubr.f32.mxu0 0.0
        %v4499 = vand.u32 %v3528, 4294901760
        %4500 = vmatmul.mubr.f32.gmra.mrb[0].mxu0 %v4499
        %v4501 = vpop.f32.mrb[0].mxu0
        %v4502 = vadd.f32 %v4424, %v4501
        %v4503 = vpop.f32.mrb[0].mxu0
        %4504 = vmatprep.mubr.f32.mxu0 0.0
        %v4505 = vand.u32 %v3531, 4294901760
        %4506 = vmatmul.mubr.f32.gmra.mrb[0].mxu0 %v4505
        %v4507 = vpop.f32.mrb[0].mxu0
        %v4508 = vadd.f32 %v4430, %v4507
        %v4509 = vpop.f32.mrb[0].mxu0
        %4510 = vdwg.mxu0
        %4511 = vmatprep.subr.mxu0 0.0
        %v4512 = vand.u32 %v3493, 4294901760
        %4513 = vmatpush1.msra.mxu0 %v4512
        %4514 = vmatprep.subr.mxu0 0.0
        %4515 = vmatpush1.msra.mxu0 0.0
        %4516 = vmatprep.subr.mxu0 0.0
        %4517 = vmatpush1.msra.mxu0 0.0
        %4518 = vmatprep.subr.mxu0 0.0
        %4519 = vmatpush1.msra.mxu0 0.0
        %4520 = vmatprep.subr.mxu0 0.0
        %4521 = vmatpush1.msra.mxu0 0.0
        %4522 = vmatprep.subr.mxu0 0.0
        %4523 = vmatpush1.msra.mxu0 0.0
        %4524 = vmatprep.subr.mxu0 0.0
        %4525 = vmatpush1.msra.mxu0 0.0
        %4526 = vmatprep.subr.mxu0 0.0
        %4527 = vmatpush1.msra.mxu0 0.0
        %4528 = vmatprep.subr.mxu0 0.0
        %4529 = vmatpush1.msra.mxu0 0.0
        %4530 = vmatprep.subr.mxu0 0.0
        %4531 = vmatpush1.msra.mxu0 0.0
        %4532 = vmatprep.subr.mxu0 0.0
        %4533 = vmatpush1.msra.mxu0 0.0
        %4534 = vmatprep.subr.mxu0 0.0
        %4535 = vmatpush1.msra.mxu0 0.0
        %4536 = vmatprep.subr.mxu0 0.0
        %4537 = vmatpush1.msra.mxu0 0.0
        %4538 = vmatprep.subr.mxu0 0.0
        %4539 = vmatpush1.msra.mxu0 0.0
        %4540 = vmatprep.subr.mxu0 0.0
        %4541 = vmatpush1.msra.mxu0 0.0
        %4542 = vmatprep.subr.mxu0 0.0
        %4543 = vmatpush1.msra.mxu0 0.0
        %4544 = vmatprep.subr.mxu0 0.0
        %4545 = vmatpush1.msra.mxu0 0.0
        %4546 = vmatprep.subr.mxu0 0.0
        %4547 = vmatpush1.msra.mxu0 0.0
        %4548 = vmatprep.subr.mxu0 0.0
        %4549 = vmatpush1.msra.mxu0 0.0
        %4550 = vmatprep.subr.mxu0 0.0
        %4551 = vmatpush1.msra.mxu0 0.0
        %4552 = vmatprep.subr.mxu0 0.0
        %4553 = vmatpush1.msra.mxu0 0.0
        %4554 = vmatprep.subr.mxu0 0.0
        %4555 = vmatpush1.msra.mxu0 0.0
        %4556 = vmatprep.subr.mxu0 0.0
        %4557 = vmatpush1.msra.mxu0 0.0
        %4558 = vmatprep.subr.mxu0 0.0
        %4559 = vmatpush1.msra.mxu0 0.0
        %4560 = vmatprep.subr.mxu0 0.0
        %4561 = vmatpush1.msra.mxu0 0.0
        %4562 = vmatprep.subr.mxu0 0.0
        %4563 = vmatpush1.msra.mxu0 0.0
        %4564 = vmatprep.subr.mxu0 0.0
        %4565 = vmatpush1.msra.mxu0 0.0
        %4566 = vmatprep.subr.mxu0 0.0
        %4567 = vmatpush1.msra.mxu0 0.0
        %4568 = vmatprep.subr.mxu0 0.0
        %4569 = vmatpush1.msra.mxu0 0.0
        %4570 = vmatprep.subr.mxu0 0.0
        %4571 = vmatpush1.msra.mxu0 0.0
        %4572 = vmatprep.subr.mxu0 0.0
        %4573 = vmatpush1.msra.mxu0 0.0
        %4574 = vmatprep.subr.mxu0 0.0
        %4575 = vmatpush1.msra.mxu0 0.0
        %4576 = vmatprep.mubr.f32.mxu0 0.0
        %v4577 = vand.u32 %v3528, 4294901760
        %v4578 = vsub.f32 %v3528, %v4577
        %v4579 = vand.u32 %v4578, 4294901760
        %v4580 = vsub.f32 %v4578, %v4579
        %v4581 = vand.u32 %v4580, 4294901760
        %4582 = vmatmul.mubr.f32.gmra.mrb[0].mxu0 %v4581
        %v4583 = vpop.f32.mrb[0].mxu0
        %v4584 = vadd.f32 0.0, %v4583
        %v4585 = vpop.f32.mrb[0].mxu0
        %4586 = vmatprep.mubr.f32.mxu0 0.0
        %v4587 = vand.u32 %v3531, 4294901760
        %v4588 = vsub.f32 %v3531, %v4587
        %v4589 = vand.u32 %v4588, 4294901760
        %v4590 = vsub.f32 %v4588, %v4589
        %v4591 = vand.u32 %v4590, 4294901760
        %4592 = vmatmul.mubr.f32.gmra.mrb[0].mxu0 %v4591
        %v4593 = vpop.f32.mrb[0].mxu0
        %v4594 = vadd.f32 0.0, %v4593
        %v4595 = vpop.f32.mrb[0].mxu0
        %4596 = vdwg.mxu0
        %4597 = vmatprep.subr.mxu0 0.0
        %v4598 = vand.u32 %v3493, 4294901760
        %v4599 = vsub.f32 %v3493, %v4598
        %v4600 = vand.u32 %v4599, 4294901760
        %v4601 = vsub.f32 %v4599, %v4600
        %v4602 = vand.u32 %v4601, 4294901760
        %4603 = vmatpush1.msra.mxu0 %v4602
        %4604 = vmatprep.subr.mxu0 0.0
        %4605 = vmatpush1.msra.mxu0 0.0
        %4606 = vmatprep.subr.mxu0 0.0
        %4607 = vmatpush1.msra.mxu0 0.0
        %4608 = vmatprep.subr.mxu0 0.0
        %4609 = vmatpush1.msra.mxu0 0.0
        %4610 = vmatprep.subr.mxu0 0.0
        %4611 = vmatpush1.msra.mxu0 0.0
        %4612 = vmatprep.subr.mxu0 0.0
        %4613 = vmatpush1.msra.mxu0 0.0
        %4614 = vmatprep.subr.mxu0 0.0
        %4615 = vmatpush1.msra.mxu0 0.0
        %4616 = vmatprep.subr.mxu0 0.0
        %4617 = vmatpush1.msra.mxu0 0.0
        %4618 = vmatprep.subr.mxu0 0.0
        %4619 = vmatpush1.msra.mxu0 0.0
        %4620 = vmatprep.subr.mxu0 0.0
        %4621 = vmatpush1.msra.mxu0 0.0
        %4622 = vmatprep.subr.mxu0 0.0
        %4623 = vmatpush1.msra.mxu0 0.0
        %4624 = vmatprep.subr.mxu0 0.0
        %4625 = vmatpush1.msra.mxu0 0.0
        %4626 = vmatprep.subr.mxu0 0.0
        %4627 = vmatpush1.msra.mxu0 0.0
        %4628 = vmatprep.subr.mxu0 0.0
        %4629 = vmatpush1.msra.mxu0 0.0
        %4630 = vmatprep.subr.mxu0 0.0
        %4631 = vmatpush1.msra.mxu0 0.0
        %4632 = vmatprep.subr.mxu0 0.0
        %4633 = vmatpush1.msra.mxu0 0.0
        %4634 = vmatprep.subr.mxu0 0.0
        %4635 = vmatpush1.msra.mxu0 0.0
        %4636 = vmatprep.subr.mxu0 0.0
        %4637 = vmatpush1.msra.mxu0 0.0
        %4638 = vmatprep.subr.mxu0 0.0
        %4639 = vmatpush1.msra.mxu0 0.0
        %4640 = vmatprep.subr.mxu0 0.0
        %4641 = vmatpush1.msra.mxu0 0.0
        %4642 = vmatprep.subr.mxu0 0.0
        %4643 = vmatpush1.msra.mxu0 0.0
        %4644 = vmatprep.subr.mxu0 0.0
        %4645 = vmatpush1.msra.mxu0 0.0
        %4646 = vmatprep.subr.mxu0 0.0
        %4647 = vmatpush1.msra.mxu0 0.0
        %4648 = vmatprep.subr.mxu0 0.0
        %4649 = vmatpush1.msra.mxu0 0.0
        %4650 = vmatprep.subr.mxu0 0.0
        %4651 = vmatpush1.msra.mxu0 0.0
        %4652 = vmatprep.subr.mxu0 0.0
        %4653 = vmatpush1.msra.mxu0 0.0
        %4654 = vmatprep.subr.mxu0 0.0
        %4655 = vmatpush1.msra.mxu0 0.0
        %4656 = vmatprep.subr.mxu0 0.0
        %4657 = vmatpush1.msra.mxu0 0.0
        %4658 = vmatprep.subr.mxu0 0.0
        %4659 = vmatpush1.msra.mxu0 0.0
        %4660 = vmatprep.subr.mxu0 0.0
        %4661 = vmatpush1.msra.mxu0 0.0
        %4662 = vmatprep.subr.mxu0 0.0
        %4663 = vmatpush1.msra.mxu0 0.0
        %4664 = vmatprep.subr.mxu0 0.0
        %4665 = vmatpush1.msra.mxu0 0.0
        %4666 = vmatprep.mubr.f32.mxu0 0.0
        %v4667 = vand.u32 %v3528, 4294901760
        %4668 = vmatmul.mubr.f32.gmra.mrb[0].mxu0 %v4667
        %v4669 = vpop.f32.mrb[0].mxu0
        %v4670 = vadd.f32 %v4584, %v4669
        %v4671 = vpop.f32.mrb[0].mxu0
        %4672 = vmatprep.mubr.f32.mxu0 0.0
        %v4673 = vand.u32 %v3531, 4294901760
        %4674 = vmatmul.mubr.f32.gmra.mrb[0].mxu0 %v4673
        %v4675 = vpop.f32.mrb[0].mxu0
        %v4676 = vadd.f32 %v4594, %v4675
        %v4677 = vpop.f32.mrb[0].mxu0
        %4678 = vdwg.mxu0
        %4679 = vmatprep.subr.mxu0 0.0
        %v4680 = vand.u32 %v3493, 4294901760
        %v4681 = vsub.f32 %v3493, %v4680
        %4682 = vmatpush1.msra.mxu0 %v4681
        %4683 = vmatprep.subr.mxu0 0.0
        %4684 = vmatpush1.msra.mxu0 0.0
        %4685 = vmatprep.subr.mxu0 0.0
        %4686 = vmatpush1.msra.mxu0 0.0
        %4687 = vmatprep.subr.mxu0 0.0
        %4688 = vmatpush1.msra.mxu0 0.0
        %4689 = vmatprep.subr.mxu0 0.0
        %4690 = vmatpush1.msra.mxu0 0.0
        %4691 = vmatprep.subr.mxu0 0.0
        %4692 = vmatpush1.msra.mxu0 0.0
        %4693 = vmatprep.subr.mxu0 0.0
        %4694 = vmatpush1.msra.mxu0 0.0
        %4695 = vmatprep.subr.mxu0 0.0
        %4696 = vmatpush1.msra.mxu0 0.0
        %4697 = vmatprep.subr.mxu0 0.0
        %4698 = vmatpush1.msra.mxu0 0.0
        %4699 = vmatprep.subr.mxu0 0.0
        %4700 = vmatpush1.msra.mxu0 0.0
        %4701 = vmatprep.subr.mxu0 0.0
        %4702 = vmatpush1.msra.mxu0 0.0
        %4703 = vmatprep.subr.mxu0 0.0
        %4704 = vmatpush1.msra.mxu0 0.0
        %4705 = vmatprep.subr.mxu0 0.0
        %4706 = vmatpush1.msra.mxu0 0.0
        %4707 = vmatprep.subr.mxu0 0.0
        %4708 = vmatpush1.msra.mxu0 0.0
        %4709 = vmatprep.subr.mxu0 0.0
        %4710 = vmatpush1.msra.mxu0 0.0
        %4711 = vmatprep.subr.mxu0 0.0
        %4712 = vmatpush1.msra.mxu0 0.0
        %4713 = vmatprep.subr.mxu0 0.0
        %4714 = vmatpush1.msra.mxu0 0.0
        %4715 = vmatprep.subr.mxu0 0.0
        %4716 = vmatpush1.msra.mxu0 0.0
        %4717 = vmatprep.subr.mxu0 0.0
        %4718 = vmatpush1.msra.mxu0 0.0
        %4719 = vmatprep.subr.mxu0 0.0
        %4720 = vmatpush1.msra.mxu0 0.0
        %4721 = vmatprep.subr.mxu0 0.0
        %4722 = vmatpush1.msra.mxu0 0.0
        %4723 = vmatprep.subr.mxu0 0.0
        %4724 = vmatpush1.msra.mxu0 0.0
        %4725 = vmatprep.subr.mxu0 0.0
        %4726 = vmatpush1.msra.mxu0 0.0
        %4727 = vmatprep.subr.mxu0 0.0
        %4728 = vmatpush1.msra.mxu0 0.0
        %4729 = vmatprep.subr.mxu0 0.0
        %4730 = vmatpush1.msra.mxu0 0.0
        %4731 = vmatprep.subr.mxu0 0.0
        %4732 = vmatpush1.msra.mxu0 0.0
        %4733 = vmatprep.subr.mxu0 0.0
        %4734 = vmatpush1.msra.mxu0 0.0
        %4735 = vmatprep.subr.mxu0 0.0
        %4736 = vmatpush1.msra.mxu0 0.0
        %4737 = vmatprep.subr.mxu0 0.0
        %4738 = vmatpush1.msra.mxu0 0.0
        %4739 = vmatprep.subr.mxu0 0.0
        %4740 = vmatpush1.msra.mxu0 0.0
        %4741 = vmatprep.subr.mxu0 0.0
        %4742 = vmatpush1.msra.mxu0 0.0
        %4743 = vmatprep.subr.mxu0 0.0
        %4744 = vmatpush1.msra.mxu0 0.0
        %4745 = vmatprep.mubr.f32.mxu0 0.0
        %v4746 = vand.u32 %v3528, 4294901760
        %v4747 = vsub.f32 %v3528, %v4746
        %4748 = vmatmul.mubr.f32.gmra.mrb[0].mxu0 %v4747
        %v4749 = vpop.f32.mrb[0].mxu0
        %v4750 = vadd.f32 %v4670, %v4749
        %v4751 = vpop.f32.mrb[0].mxu0
        %4752 = vmatprep.mubr.f32.mxu0 0.0
        %v4753 = vand.u32 %v3531, 4294901760
        %v4754 = vsub.f32 %v3531, %v4753
        %4755 = vmatmul.mubr.f32.gmra.mrb[0].mxu0 %v4754
        %v4756 = vpop.f32.mrb[0].mxu0
        %v4757 = vadd.f32 %v4676, %v4756
        %v4758 = vpop.f32.mrb[0].mxu0
        %4759 = vdwg.mxu0
        %4760 = vmatprep.subr.mxu0 0.0
        %v4761 = vand.u32 %v3493, 4294901760
        %4762 = vmatpush1.msra.mxu0 %v4761
        %4763 = vmatprep.subr.mxu0 0.0
        %4764 = vmatpush1.msra.mxu0 0.0
        %4765 = vmatprep.subr.mxu0 0.0
        %4766 = vmatpush1.msra.mxu0 0.0
        %4767 = vmatprep.subr.mxu0 0.0
        %4768 = vmatpush1.msra.mxu0 0.0
        %4769 = vmatprep.subr.mxu0 0.0
        %4770 = vmatpush1.msra.mxu0 0.0
        %4771 = vmatprep.subr.mxu0 0.0
        %4772 = vmatpush1.msra.mxu0 0.0
        %4773 = vmatprep.subr.mxu0 0.0
        %4774 = vmatpush1.msra.mxu0 0.0
        %4775 = vmatprep.subr.mxu0 0.0
        %4776 = vmatpush1.msra.mxu0 0.0
        %4777 = vmatprep.subr.mxu0 0.0
        %4778 = vmatpush1.msra.mxu0 0.0
        %4779 = vmatprep.subr.mxu0 0.0
        %4780 = vmatpush1.msra.mxu0 0.0
        %4781 = vmatprep.subr.mxu0 0.0
        %4782 = vmatpush1.msra.mxu0 0.0
        %4783 = vmatprep.subr.mxu0 0.0
        %4784 = vmatpush1.msra.mxu0 0.0
        %4785 = vmatprep.subr.mxu0 0.0
        %4786 = vmatpush1.msra.mxu0 0.0
        %4787 = vmatprep.subr.mxu0 0.0
        %4788 = vmatpush1.msra.mxu0 0.0
        %4789 = vmatprep.subr.mxu0 0.0
        %4790 = vmatpush1.msra.mxu0 0.0
        %4791 = vmatprep.subr.mxu0 0.0
        %4792 = vmatpush1.msra.mxu0 0.0
        %4793 = vmatprep.subr.mxu0 0.0
        %4794 = vmatpush1.msra.mxu0 0.0
        %4795 = vmatprep.subr.mxu0 0.0
        %4796 = vmatpush1.msra.mxu0 0.0
        %4797 = vmatprep.subr.mxu0 0.0
        %4798 = vmatpush1.msra.mxu0 0.0
        %4799 = vmatprep.subr.mxu0 0.0
        %4800 = vmatpush1.msra.mxu0 0.0
        %4801 = vmatprep.subr.mxu0 0.0
        %4802 = vmatpush1.msra.mxu0 0.0
        %4803 = vmatprep.subr.mxu0 0.0
        %4804 = vmatpush1.msra.mxu0 0.0
        %4805 = vmatprep.subr.mxu0 0.0
        %4806 = vmatpush1.msra.mxu0 0.0
        %4807 = vmatprep.subr.mxu0 0.0
        %4808 = vmatpush1.msra.mxu0 0.0
        %4809 = vmatprep.subr.mxu0 0.0
        %4810 = vmatpush1.msra.mxu0 0.0
        %4811 = vmatprep.subr.mxu0 0.0
        %4812 = vmatpush1.msra.mxu0 0.0
        %4813 = vmatprep.subr.mxu0 0.0
        %4814 = vmatpush1.msra.mxu0 0.0
        %4815 = vmatprep.subr.mxu0 0.0
        %4816 = vmatpush1.msra.mxu0 0.0
        %4817 = vmatprep.subr.mxu0 0.0
        %4818 = vmatpush1.msra.mxu0 0.0
        %4819 = vmatprep.subr.mxu0 0.0
        %4820 = vmatpush1.msra.mxu0 0.0
        %4821 = vmatprep.subr.mxu0 0.0
        %4822 = vmatpush1.msra.mxu0 0.0
        %4823 = vmatprep.subr.mxu0 0.0
        %4824 = vmatpush1.msra.mxu0 0.0
        %4825 = vmatprep.mubr.f32.mxu0 0.0
        %v4826 = vand.u32 %v3528, 4294901760
        %v4827 = vsub.f32 %v3528, %v4826
        %v4828 = vand.u32 %v4827, 4294901760
        %4829 = vmatmul.mubr.f32.gmra.mrb[0].mxu0 %v4828
        %v4830 = vpop.f32.mrb[0].mxu0
        %v4831 = vadd.f32 %v4750, %v4830
        %v4832 = vpop.f32.mrb[0].mxu0
        %4833 = vmatprep.mubr.f32.mxu0 0.0
        %v4834 = vand.u32 %v3531, 4294901760
        %v4835 = vsub.f32 %v3531, %v4834
        %v4836 = vand.u32 %v4835, 4294901760
        %4837 = vmatmul.mubr.f32.gmra.mrb[0].mxu0 %v4836
        %v4838 = vpop.f32.mrb[0].mxu0
        %v4839 = vadd.f32 %v4757, %v4838
        %v4840 = vpop.f32.mrb[0].mxu0
        %4841 = vdwg.mxu0
        %4842 = vmatprep.subr.mxu0 0.0
        %v4843 = vand.u32 %v3493, 4294901760
        %v4844 = vsub.f32 %v3493, %v4843
        %v4845 = vand.u32 %v4844, 4294901760
        %4846 = vmatpush1.msra.mxu0 %v4845
        %4847 = vmatprep.subr.mxu0 0.0
        %4848 = vmatpush1.msra.mxu0 0.0
        %4849 = vmatprep.subr.mxu0 0.0
        %4850 = vmatpush1.msra.mxu0 0.0
        %4851 = vmatprep.subr.mxu0 0.0
        %4852 = vmatpush1.msra.mxu0 0.0
        %4853 = vmatprep.subr.mxu0 0.0
        %4854 = vmatpush1.msra.mxu0 0.0
        %4855 = vmatprep.subr.mxu0 0.0
        %4856 = vmatpush1.msra.mxu0 0.0
        %4857 = vmatprep.subr.mxu0 0.0
        %4858 = vmatpush1.msra.mxu0 0.0
        %4859 = vmatprep.subr.mxu0 0.0
        %4860 = vmatpush1.msra.mxu0 0.0
        %4861 = vmatprep.subr.mxu0 0.0
        %4862 = vmatpush1.msra.mxu0 0.0
        %4863 = vmatprep.subr.mxu0 0.0
        %4864 = vmatpush1.msra.mxu0 0.0
        %4865 = vmatprep.subr.mxu0 0.0
        %4866 = vmatpush1.msra.mxu0 0.0
        %4867 = vmatprep.subr.mxu0 0.0
        %4868 = vmatpush1.msra.mxu0 0.0
        %4869 = vmatprep.subr.mxu0 0.0
        %4870 = vmatpush1.msra.mxu0 0.0
        %4871 = vmatprep.subr.mxu0 0.0
        %4872 = vmatpush1.msra.mxu0 0.0
        %4873 = vmatprep.subr.mxu0 0.0
        %4874 = vmatpush1.msra.mxu0 0.0
        %4875 = vmatprep.subr.mxu0 0.0
        %4876 = vmatpush1.msra.mxu0 0.0
        %4877 = vmatprep.subr.mxu0 0.0
        %4878 = vmatpush1.msra.mxu0 0.0
        %4879 = vmatprep.subr.mxu0 0.0
        %4880 = vmatpush1.msra.mxu0 0.0
        %4881 = vmatprep.subr.mxu0 0.0
        %4882 = vmatpush1.msra.mxu0 0.0
        %4883 = vmatprep.subr.mxu0 0.0
        %4884 = vmatpush1.msra.mxu0 0.0
        %4885 = vmatprep.subr.mxu0 0.0
        %4886 = vmatpush1.msra.mxu0 0.0
        %4887 = vmatprep.subr.mxu0 0.0
        %4888 = vmatpush1.msra.mxu0 0.0
        %4889 = vmatprep.subr.mxu0 0.0
        %4890 = vmatpush1.msra.mxu0 0.0
        %4891 = vmatprep.subr.mxu0 0.0
        %4892 = vmatpush1.msra.mxu0 0.0
        %4893 = vmatprep.subr.mxu0 0.0
        %4894 = vmatpush1.msra.mxu0 0.0
        %4895 = vmatprep.subr.mxu0 0.0
        %4896 = vmatpush1.msra.mxu0 0.0
        %4897 = vmatprep.subr.mxu0 0.0
        %4898 = vmatpush1.msra.mxu0 0.0
        %4899 = vmatprep.subr.mxu0 0.0
        %4900 = vmatpush1.msra.mxu0 0.0
        %4901 = vmatprep.subr.mxu0 0.0
        %4902 = vmatpush1.msra.mxu0 0.0
        %4903 = vmatprep.subr.mxu0 0.0
        %4904 = vmatpush1.msra.mxu0 0.0
        %4905 = vmatprep.subr.mxu0 0.0
        %4906 = vmatpush1.msra.mxu0 0.0
        %4907 = vmatprep.subr.mxu0 0.0
        %4908 = vmatpush1.msra.mxu0 0.0
        %4909 = vmatprep.mubr.f32.mxu0 0.0
        %v4910 = vand.u32 %v3528, 4294901760
        %4911 = vmatmul.mubr.f32.gmra.mrb[0].mxu0 %v4910
        %v4912 = vpop.f32.mrb[0].mxu0
        %v4913 = vadd.f32 %v4831, %v4912
        %v4914 = vpop.f32.mrb[0].mxu0
        %4915 = vmatprep.mubr.f32.mxu0 0.0
        %v4916 = vand.u32 %v3531, 4294901760
        %4917 = vmatmul.mubr.f32.gmra.mrb[0].mxu0 %v4916
        %v4918 = vpop.f32.mrb[0].mxu0
        %v4919 = vadd.f32 %v4839, %v4918
        %v4920 = vpop.f32.mrb[0].mxu0
        %4921 = vdwg.mxu0
        %4922 = vmatprep.subr.mxu0 0.0
        %v4923 = vand.u32 %v3493, 4294901760
        %4924 = vmatpush1.msra.mxu0 %v4923
        %4925 = vmatprep.subr.mxu0 0.0
        %4926 = vmatpush1.msra.mxu0 0.0
        %4927 = vmatprep.subr.mxu0 0.0
        %4928 = vmatpush1.msra.mxu0 0.0
        %4929 = vmatprep.subr.mxu0 0.0
        %4930 = vmatpush1.msra.mxu0 0.0
        %4931 = vmatprep.subr.mxu0 0.0
        %4932 = vmatpush1.msra.mxu0 0.0
        %4933 = vmatprep.subr.mxu0 0.0
        %4934 = vmatpush1.msra.mxu0 0.0
        %4935 = vmatprep.subr.mxu0 0.0
        %4936 = vmatpush1.msra.mxu0 0.0
        %4937 = vmatprep.subr.mxu0 0.0
        %4938 = vmatpush1.msra.mxu0 0.0
        %4939 = vmatprep.subr.mxu0 0.0
        %4940 = vmatpush1.msra.mxu0 0.0
        %4941 = vmatprep.subr.mxu0 0.0
        %4942 = vmatpush1.msra.mxu0 0.0
        %4943 = vmatprep.subr.mxu0 0.0
        %4944 = vmatpush1.msra.mxu0 0.0
        %4945 = vmatprep.subr.mxu0 0.0
        %4946 = vmatpush1.msra.mxu0 0.0
        %4947 = vmatprep.subr.mxu0 0.0
        %4948 = vmatpush1.msra.mxu0 0.0
        %4949 = vmatprep.subr.mxu0 0.0
        %4950 = vmatpush1.msra.mxu0 0.0
        %4951 = vmatprep.subr.mxu0 0.0
        %4952 = vmatpush1.msra.mxu0 0.0
        %4953 = vmatprep.subr.mxu0 0.0
        %4954 = vmatpush1.msra.mxu0 0.0
        %4955 = vmatprep.subr.mxu0 0.0
        %4956 = vmatpush1.msra.mxu0 0.0
        %4957 = vmatprep.subr.mxu0 0.0
        %4958 = vmatpush1.msra.mxu0 0.0
        %4959 = vmatprep.subr.mxu0 0.0
        %4960 = vmatpush1.msra.mxu0 0.0
        %4961 = vmatprep.subr.mxu0 0.0
        %4962 = vmatpush1.msra.mxu0 0.0
        %4963 = vmatprep.subr.mxu0 0.0
        %4964 = vmatpush1.msra.mxu0 0.0
        %4965 = vmatprep.subr.mxu0 0.0
        %4966 = vmatpush1.msra.mxu0 0.0
        %4967 = vmatprep.subr.mxu0 0.0
        %4968 = vmatpush1.msra.mxu0 0.0
        %4969 = vmatprep.subr.mxu0 0.0
        %4970 = vmatpush1.msra.mxu0 0.0
        %4971 = vmatprep.subr.mxu0 0.0
        %4972 = vmatpush1.msra.mxu0 0.0
        %4973 = vmatprep.subr.mxu0 0.0
        %4974 = vmatpush1.msra.mxu0 0.0
        %4975 = vmatprep.subr.mxu0 0.0
        %4976 = vmatpush1.msra.mxu0 0.0
        %4977 = vmatprep.subr.mxu0 0.0
        %4978 = vmatpush1.msra.mxu0 0.0
        %4979 = vmatprep.subr.mxu0 0.0
        %4980 = vmatpush1.msra.mxu0 0.0
        %4981 = vmatprep.subr.mxu0 0.0
        %4982 = vmatpush1.msra.mxu0 0.0
        %4983 = vmatprep.subr.mxu0 0.0
        %4984 = vmatpush1.msra.mxu0 0.0
        %4985 = vmatprep.subr.mxu0 0.0
        %4986 = vmatpush1.msra.mxu0 0.0
        %4987 = vmatprep.mubr.f32.mxu0 0.0
        %v4988 = vand.u32 %v3528, 4294901760
        %4989 = vmatmul.mubr.f32.gmra.mrb[0].mxu0 %v4988
        %v4990 = vpop.f32.mrb[0].mxu0
        %v4991 = vadd.f32 %v4913, %v4990
        %v4992 = vpop.f32.mrb[0].mxu0
        %4993 = vmatprep.mubr.f32.mxu0 0.0
        %v4994 = vand.u32 %v3531, 4294901760
        %4995 = vmatmul.mubr.f32.gmra.mrb[0].mxu0 %v4994
        %v4996 = vpop.f32.mrb[0].mxu0
        %v4997 = vadd.f32 %v4919, %v4996
        %v4998 = vpop.f32.mrb[0].mxu0
        %4999 = vdwg.mxu0
        %5000 = vmatprep.subr.mxu0 0.0
        %v5001 = vand.u32 %v3499, 4294901760
        %5002 = vmatpush1.msra.mxu0 %v5001
        %5003 = vmatprep.subr.mxu0 0.0
        %5004 = vmatpush1.msra.mxu0 0.0
        %5005 = vmatprep.subr.mxu0 0.0
        %5006 = vmatpush1.msra.mxu0 0.0
        %5007 = vmatprep.subr.mxu0 0.0
        %5008 = vmatpush1.msra.mxu0 0.0
        %5009 = vmatprep.subr.mxu0 0.0
        %5010 = vmatpush1.msra.mxu0 0.0
        %5011 = vmatprep.subr.mxu0 0.0
        %5012 = vmatpush1.msra.mxu0 0.0
        %5013 = vmatprep.subr.mxu0 0.0
        %5014 = vmatpush1.msra.mxu0 0.0
        %5015 = vmatprep.subr.mxu0 0.0
        %5016 = vmatpush1.msra.mxu0 0.0
        %5017 = vmatprep.subr.mxu0 0.0
        %5018 = vmatpush1.msra.mxu0 0.0
        %5019 = vmatprep.subr.mxu0 0.0
        %5020 = vmatpush1.msra.mxu0 0.0
        %5021 = vmatprep.subr.mxu0 0.0
        %5022 = vmatpush1.msra.mxu0 0.0
        %5023 = vmatprep.subr.mxu0 0.0
        %5024 = vmatpush1.msra.mxu0 0.0
        %5025 = vmatprep.subr.mxu0 0.0
        %5026 = vmatpush1.msra.mxu0 0.0
        %5027 = vmatprep.subr.mxu0 0.0
        %5028 = vmatpush1.msra.mxu0 0.0
        %5029 = vmatprep.subr.mxu0 0.0
        %5030 = vmatpush1.msra.mxu0 0.0
        %5031 = vmatprep.subr.mxu0 0.0
        %5032 = vmatpush1.msra.mxu0 0.0
        %5033 = vmatprep.subr.mxu0 0.0
        %5034 = vmatpush1.msra.mxu0 0.0
        %5035 = vmatprep.subr.mxu0 0.0
        %5036 = vmatpush1.msra.mxu0 0.0
        %5037 = vmatprep.subr.mxu0 0.0
        %5038 = vmatpush1.msra.mxu0 0.0
        %5039 = vmatprep.subr.mxu0 0.0
        %5040 = vmatpush1.msra.mxu0 0.0
        %5041 = vmatprep.subr.mxu0 0.0
        %5042 = vmatpush1.msra.mxu0 0.0
        %5043 = vmatprep.subr.mxu0 0.0
        %5044 = vmatpush1.msra.mxu0 0.0
        %5045 = vmatprep.subr.mxu0 0.0
        %5046 = vmatpush1.msra.mxu0 0.0
        %5047 = vmatprep.subr.mxu0 0.0
        %5048 = vmatpush1.msra.mxu0 0.0
        %5049 = vmatprep.subr.mxu0 0.0
        %5050 = vmatpush1.msra.mxu0 0.0
        %5051 = vmatprep.subr.mxu0 0.0
        %5052 = vmatpush1.msra.mxu0 0.0
        %5053 = vmatprep.subr.mxu0 0.0
        %5054 = vmatpush1.msra.mxu0 0.0
        %5055 = vmatprep.subr.mxu0 0.0
        %5056 = vmatpush1.msra.mxu0 0.0
        %5057 = vmatprep.subr.mxu0 0.0
        %5058 = vmatpush1.msra.mxu0 0.0
        %5059 = vmatprep.subr.mxu0 0.0
        %5060 = vmatpush1.msra.mxu0 0.0
        %5061 = vmatprep.subr.mxu0 0.0
        %5062 = vmatpush1.msra.mxu0 0.0
        %5063 = vmatprep.subr.mxu0 0.0
        %5064 = vmatpush1.msra.mxu0 0.0
        %5065 = vmatprep.mubr.f32.mxu0 0.0
        %v5066 = vand.u32 %v3528, 4294901760
        %v5067 = vsub.f32 %v3528, %v5066
        %v5068 = vand.u32 %v5067, 4294901760
        %v5069 = vsub.f32 %v5067, %v5068
        %v5070 = vand.u32 %v5069, 4294901760
        %5071 = vmatmul.mubr.f32.gmra.mrb[0].mxu0 %v5070
        %v5072 = vpop.f32.mrb[0].mxu0
        %v5073 = vadd.f32 0.0, %v5072
        %v5074 = vpop.f32.mrb[0].mxu0
        %5075 = vmatprep.mubr.f32.mxu0 0.0
        %v5076 = vand.u32 %v3531, 4294901760
        %v5077 = vsub.f32 %v3531, %v5076
        %v5078 = vand.u32 %v5077, 4294901760
        %v5079 = vsub.f32 %v5077, %v5078
        %v5080 = vand.u32 %v5079, 4294901760
        %5081 = vmatmul.mubr.f32.gmra.mrb[0].mxu0 %v5080
        %v5082 = vpop.f32.mrb[0].mxu0
        %v5083 = vadd.f32 0.0, %v5082
        %v5084 = vpop.f32.mrb[0].mxu0
        %5085 = vdwg.mxu0
        %5086 = vmatprep.subr.mxu0 0.0
        %v5087 = vand.u32 %v3499, 4294901760
        %v5088 = vsub.f32 %v3499, %v5087
        %v5089 = vand.u32 %v5088, 4294901760
        %v5090 = vsub.f32 %v5088, %v5089
        %v5091 = vand.u32 %v5090, 4294901760
        %5092 = vmatpush1.msra.mxu0 %v5091
        %5093 = vmatprep.subr.mxu0 0.0
        %5094 = vmatpush1.msra.mxu0 0.0
        %5095 = vmatprep.subr.mxu0 0.0
        %5096 = vmatpush1.msra.mxu0 0.0
        %5097 = vmatprep.subr.mxu0 0.0
        %5098 = vmatpush1.msra.mxu0 0.0
        %5099 = vmatprep.subr.mxu0 0.0
        %5100 = vmatpush1.msra.mxu0 0.0
        %5101 = vmatprep.subr.mxu0 0.0
        %5102 = vmatpush1.msra.mxu0 0.0
        %5103 = vmatprep.subr.mxu0 0.0
        %5104 = vmatpush1.msra.mxu0 0.0
        %5105 = vmatprep.subr.mxu0 0.0
        %5106 = vmatpush1.msra.mxu0 0.0
        %5107 = vmatprep.subr.mxu0 0.0
        %5108 = vmatpush1.msra.mxu0 0.0
        %5109 = vmatprep.subr.mxu0 0.0
        %5110 = vmatpush1.msra.mxu0 0.0
        %5111 = vmatprep.subr.mxu0 0.0
        %5112 = vmatpush1.msra.mxu0 0.0
        %5113 = vmatprep.subr.mxu0 0.0
        %5114 = vmatpush1.msra.mxu0 0.0
        %5115 = vmatprep.subr.mxu0 0.0
        %5116 = vmatpush1.msra.mxu0 0.0
        %5117 = vmatprep.subr.mxu0 0.0
        %5118 = vmatpush1.msra.mxu0 0.0
        %5119 = vmatprep.subr.mxu0 0.0
        %5120 = vmatpush1.msra.mxu0 0.0
        %5121 = vmatprep.subr.mxu0 0.0
        %5122 = vmatpush1.msra.mxu0 0.0
        %5123 = vmatprep.subr.mxu0 0.0
        %5124 = vmatpush1.msra.mxu0 0.0
        %5125 = vmatprep.subr.mxu0 0.0
        %5126 = vmatpush1.msra.mxu0 0.0
        %5127 = vmatprep.subr.mxu0 0.0
        %5128 = vmatpush1.msra.mxu0 0.0
        %5129 = vmatprep.subr.mxu0 0.0
        %5130 = vmatpush1.msra.mxu0 0.0
        %5131 = vmatprep.subr.mxu0 0.0
        %5132 = vmatpush1.msra.mxu0 0.0
        %5133 = vmatprep.subr.mxu0 0.0
        %5134 = vmatpush1.msra.mxu0 0.0
        %5135 = vmatprep.subr.mxu0 0.0
        %5136 = vmatpush1.msra.mxu0 0.0
        %5137 = vmatprep.subr.mxu0 0.0
        %5138 = vmatpush1.msra.mxu0 0.0
        %5139 = vmatprep.subr.mxu0 0.0
        %5140 = vmatpush1.msra.mxu0 0.0
        %5141 = vmatprep.subr.mxu0 0.0
        %5142 = vmatpush1.msra.mxu0 0.0
        %5143 = vmatprep.subr.mxu0 0.0
        %5144 = vmatpush1.msra.mxu0 0.0
        %5145 = vmatprep.subr.mxu0 0.0
        %5146 = vmatpush1.msra.mxu0 0.0
        %5147 = vmatprep.subr.mxu0 0.0
        %5148 = vmatpush1.msra.mxu0 0.0
        %5149 = vmatprep.subr.mxu0 0.0
        %5150 = vmatpush1.msra.mxu0 0.0
        %5151 = vmatprep.subr.mxu0 0.0
        %5152 = vmatpush1.msra.mxu0 0.0
        %5153 = vmatprep.subr.mxu0 0.0
        %5154 = vmatpush1.msra.mxu0 0.0
        %5155 = vmatprep.mubr.f32.mxu0 0.0
        %v5156 = vand.u32 %v3528, 4294901760
        %5157 = vmatmul.mubr.f32.gmra.mrb[0].mxu0 %v5156
        %v5158 = vpop.f32.mrb[0].mxu0
        %v5159 = vadd.f32 %v5073, %v5158
        %v5160 = vpop.f32.mrb[0].mxu0
        %5161 = vmatprep.mubr.f32.mxu0 0.0
        %v5162 = vand.u32 %v3531, 4294901760
        %5163 = vmatmul.mubr.f32.gmra.mrb[0].mxu0 %v5162
        %v5164 = vpop.f32.mrb[0].mxu0
        %v5165 = vadd.f32 %v5083, %v5164
        %v5166 = vpop.f32.mrb[0].mxu0
        %5167 = vdwg.mxu0
        %5168 = vmatprep.subr.mxu0 0.0
        %v5169 = vand.u32 %v3499, 4294901760
        %v5170 = vsub.f32 %v3499, %v5169
        %5171 = vmatpush1.msra.mxu0 %v5170
        %5172 = vmatprep.subr.mxu0 0.0
        %5173 = vmatpush1.msra.mxu0 0.0
        %5174 = vmatprep.subr.mxu0 0.0
        %5175 = vmatpush1.msra.mxu0 0.0
        %5176 = vmatprep.subr.mxu0 0.0
        %5177 = vmatpush1.msra.mxu0 0.0
        %5178 = vmatprep.subr.mxu0 0.0
        %5179 = vmatpush1.msra.mxu0 0.0
        %5180 = vmatprep.subr.mxu0 0.0
        %5181 = vmatpush1.msra.mxu0 0.0
        %5182 = vmatprep.subr.mxu0 0.0
        %5183 = vmatpush1.msra.mxu0 0.0
        %5184 = vmatprep.subr.mxu0 0.0
        %5185 = vmatpush1.msra.mxu0 0.0
        %5186 = vmatprep.subr.mxu0 0.0
        %5187 = vmatpush1.msra.mxu0 0.0
        %5188 = vmatprep.subr.mxu0 0.0
        %5189 = vmatpush1.msra.mxu0 0.0
        %5190 = vmatprep.subr.mxu0 0.0
        %5191 = vmatpush1.msra.mxu0 0.0
        %5192 = vmatprep.subr.mxu0 0.0
        %5193 = vmatpush1.msra.mxu0 0.0
        %5194 = vmatprep.subr.mxu0 0.0
        %5195 = vmatpush1.msra.mxu0 0.0
        %5196 = vmatprep.subr.mxu0 0.0
        %5197 = vmatpush1.msra.mxu0 0.0
        %5198 = vmatprep.subr.mxu0 0.0
        %5199 = vmatpush1.msra.mxu0 0.0
        %5200 = vmatprep.subr.mxu0 0.0
        %5201 = vmatpush1.msra.mxu0 0.0
        %5202 = vmatprep.subr.mxu0 0.0
        %5203 = vmatpush1.msra.mxu0 0.0
        %5204 = vmatprep.subr.mxu0 0.0
        %5205 = vmatpush1.msra.mxu0 0.0
        %5206 = vmatprep.subr.mxu0 0.0
        %5207 = vmatpush1.msra.mxu0 0.0
        %5208 = vmatprep.subr.mxu0 0.0
        %5209 = vmatpush1.msra.mxu0 0.0
        %5210 = vmatprep.subr.mxu0 0.0
        %5211 = vmatpush1.msra.mxu0 0.0
        %5212 = vmatprep.subr.mxu0 0.0
        %5213 = vmatpush1.msra.mxu0 0.0
        %5214 = vmatprep.subr.mxu0 0.0
        %5215 = vmatpush1.msra.mxu0 0.0
        %5216 = vmatprep.subr.mxu0 0.0
        %5217 = vmatpush1.msra.mxu0 0.0
        %5218 = vmatprep.subr.mxu0 0.0
        %5219 = vmatpush1.msra.mxu0 0.0
        %5220 = vmatprep.subr.mxu0 0.0
        %5221 = vmatpush1.msra.mxu0 0.0
        %5222 = vmatprep.subr.mxu0 0.0
        %5223 = vmatpush1.msra.mxu0 0.0
        %5224 = vmatprep.subr.mxu0 0.0
        %5225 = vmatpush1.msra.mxu0 0.0
        %5226 = vmatprep.subr.mxu0 0.0
        %5227 = vmatpush1.msra.mxu0 0.0
        %5228 = vmatprep.subr.mxu0 0.0
        %5229 = vmatpush1.msra.mxu0 0.0
        %5230 = vmatprep.subr.mxu0 0.0
        %5231 = vmatpush1.msra.mxu0 0.0
        %5232 = vmatprep.subr.mxu0 0.0
        %5233 = vmatpush1.msra.mxu0 0.0
        %5234 = vmatprep.mubr.f32.mxu0 0.0
        %v5235 = vand.u32 %v3528, 4294901760
        %v5236 = vsub.f32 %v3528, %v5235
        %5237 = vmatmul.mubr.f32.gmra.mrb[0].mxu0 %v5236
        %v5238 = vpop.f32.mrb[0].mxu0
        %v5239 = vadd.f32 %v5159, %v5238
        %v5240 = vpop.f32.mrb[0].mxu0
        %5241 = vmatprep.mubr.f32.mxu0 0.0
        %v5242 = vand.u32 %v3531, 4294901760
        %v5243 = vsub.f32 %v3531, %v5242
        %5244 = vmatmul.mubr.f32.gmra.mrb[0].mxu0 %v5243
        %v5245 = vpop.f32.mrb[0].mxu0
        %v5246 = vadd.f32 %v5165, %v5245
        %v5247 = vpop.f32.mrb[0].mxu0
        %5248 = vdwg.mxu0
        %5249 = vmatprep.subr.mxu0 0.0
        %v5250 = vand.u32 %v3499, 4294901760
        %5251 = vmatpush1.msra.mxu0 %v5250
        %5252 = vmatprep.subr.mxu0 0.0
        %5253 = vmatpush1.msra.mxu0 0.0
        %5254 = vmatprep.subr.mxu0 0.0
        %5255 = vmatpush1.msra.mxu0 0.0
        %5256 = vmatprep.subr.mxu0 0.0
        %5257 = vmatpush1.msra.mxu0 0.0
        %5258 = vmatprep.subr.mxu0 0.0
        %5259 = vmatpush1.msra.mxu0 0.0
        %5260 = vmatprep.subr.mxu0 0.0
        %5261 = vmatpush1.msra.mxu0 0.0
        %5262 = vmatprep.subr.mxu0 0.0
        %5263 = vmatpush1.msra.mxu0 0.0
        %5264 = vmatprep.subr.mxu0 0.0
        %5265 = vmatpush1.msra.mxu0 0.0
        %5266 = vmatprep.subr.mxu0 0.0
        %5267 = vmatpush1.msra.mxu0 0.0
        %5268 = vmatprep.subr.mxu0 0.0
        %5269 = vmatpush1.msra.mxu0 0.0
        %5270 = vmatprep.subr.mxu0 0.0
        %5271 = vmatpush1.msra.mxu0 0.0
        %5272 = vmatprep.subr.mxu0 0.0
        %5273 = vmatpush1.msra.mxu0 0.0
        %5274 = vmatprep.subr.mxu0 0.0
        %5275 = vmatpush1.msra.mxu0 0.0
        %5276 = vmatprep.subr.mxu0 0.0
        %5277 = vmatpush1.msra.mxu0 0.0
        %5278 = vmatprep.subr.mxu0 0.0
        %5279 = vmatpush1.msra.mxu0 0.0
        %5280 = vmatprep.subr.mxu0 0.0
        %5281 = vmatpush1.msra.mxu0 0.0
        %5282 = vmatprep.subr.mxu0 0.0
        %5283 = vmatpush1.msra.mxu0 0.0
        %5284 = vmatprep.subr.mxu0 0.0
        %5285 = vmatpush1.msra.mxu0 0.0
        %5286 = vmatprep.subr.mxu0 0.0
        %5287 = vmatpush1.msra.mxu0 0.0
        %5288 = vmatprep.subr.mxu0 0.0
        %5289 = vmatpush1.msra.mxu0 0.0
        %5290 = vmatprep.subr.mxu0 0.0
        %5291 = vmatpush1.msra.mxu0 0.0
        %5292 = vmatprep.subr.mxu0 0.0
        %5293 = vmatpush1.msra.mxu0 0.0
        %5294 = vmatprep.subr.mxu0 0.0
        %5295 = vmatpush1.msra.mxu0 0.0
        %5296 = vmatprep.subr.mxu0 0.0
        %5297 = vmatpush1.msra.mxu0 0.0
        %5298 = vmatprep.subr.mxu0 0.0
        %5299 = vmatpush1.msra.mxu0 0.0
        %5300 = vmatprep.subr.mxu0 0.0
        %5301 = vmatpush1.msra.mxu0 0.0
        %5302 = vmatprep.subr.mxu0 0.0
        %5303 = vmatpush1.msra.mxu0 0.0
        %5304 = vmatprep.subr.mxu0 0.0
        %5305 = vmatpush1.msra.mxu0 0.0
        %5306 = vmatprep.subr.mxu0 0.0
        %5307 = vmatpush1.msra.mxu0 0.0
        %5308 = vmatprep.subr.mxu0 0.0
        %5309 = vmatpush1.msra.mxu0 0.0
        %5310 = vmatprep.subr.mxu0 0.0
        %5311 = vmatpush1.msra.mxu0 0.0
        %5312 = vmatprep.subr.mxu0 0.0
        %5313 = vmatpush1.msra.mxu0 0.0
        %5314 = vmatprep.mubr.f32.mxu0 0.0
        %v5315 = vand.u32 %v3528, 4294901760
        %v5316 = vsub.f32 %v3528, %v5315
        %v5317 = vand.u32 %v5316, 4294901760
        %5318 = vmatmul.mubr.f32.gmra.mrb[0].mxu0 %v5317
        %v5319 = vpop.f32.mrb[0].mxu0
        %v5320 = vadd.f32 %v5239, %v5319
        %v5321 = vpop.f32.mrb[0].mxu0
        %5322 = vmatprep.mubr.f32.mxu0 0.0
        %v5323 = vand.u32 %v3531, 4294901760
        %v5324 = vsub.f32 %v3531, %v5323
        %v5325 = vand.u32 %v5324, 4294901760
        %5326 = vmatmul.mubr.f32.gmra.mrb[0].mxu0 %v5325
        %v5327 = vpop.f32.mrb[0].mxu0
        %v5328 = vadd.f32 %v5246, %v5327
        %v5329 = vpop.f32.mrb[0].mxu0
        %5330 = vdwg.mxu0
        %5331 = vmatprep.subr.mxu0 0.0
        %v5332 = vand.u32 %v3499, 4294901760
        %v5333 = vsub.f32 %v3499, %v5332
        %v5334 = vand.u32 %v5333, 4294901760
        %5335 = vmatpush1.msra.mxu0 %v5334
        %5336 = vmatprep.subr.mxu0 0.0
        %5337 = vmatpush1.msra.mxu0 0.0
        %5338 = vmatprep.subr.mxu0 0.0
        %5339 = vmatpush1.msra.mxu0 0.0
        %5340 = vmatprep.subr.mxu0 0.0
        %5341 = vmatpush1.msra.mxu0 0.0
        %5342 = vmatprep.subr.mxu0 0.0
        %5343 = vmatpush1.msra.mxu0 0.0
        %5344 = vmatprep.subr.mxu0 0.0
        %5345 = vmatpush1.msra.mxu0 0.0
        %5346 = vmatprep.subr.mxu0 0.0
        %5347 = vmatpush1.msra.mxu0 0.0
        %5348 = vmatprep.subr.mxu0 0.0
        %5349 = vmatpush1.msra.mxu0 0.0
        %5350 = vmatprep.subr.mxu0 0.0
        %5351 = vmatpush1.msra.mxu0 0.0
        %5352 = vmatprep.subr.mxu0 0.0
        %5353 = vmatpush1.msra.mxu0 0.0
        %5354 = vmatprep.subr.mxu0 0.0
        %5355 = vmatpush1.msra.mxu0 0.0
        %5356 = vmatprep.subr.mxu0 0.0
        %5357 = vmatpush1.msra.mxu0 0.0
        %5358 = vmatprep.subr.mxu0 0.0
        %5359 = vmatpush1.msra.mxu0 0.0
        %5360 = vmatprep.subr.mxu0 0.0
        %5361 = vmatpush1.msra.mxu0 0.0
        %5362 = vmatprep.subr.mxu0 0.0
        %5363 = vmatpush1.msra.mxu0 0.0
        %5364 = vmatprep.subr.mxu0 0.0
        %5365 = vmatpush1.msra.mxu0 0.0
        %5366 = vmatprep.subr.mxu0 0.0
        %5367 = vmatpush1.msra.mxu0 0.0
        %5368 = vmatprep.subr.mxu0 0.0
        %5369 = vmatpush1.msra.mxu0 0.0
        %5370 = vmatprep.subr.mxu0 0.0
        %5371 = vmatpush1.msra.mxu0 0.0
        %5372 = vmatprep.subr.mxu0 0.0
        %5373 = vmatpush1.msra.mxu0 0.0
        %5374 = vmatprep.subr.mxu0 0.0
        %5375 = vmatpush1.msra.mxu0 0.0
        %5376 = vmatprep.subr.mxu0 0.0
        %5377 = vmatpush1.msra.mxu0 0.0
        %5378 = vmatprep.subr.mxu0 0.0
        %5379 = vmatpush1.msra.mxu0 0.0
        %5380 = vmatprep.subr.mxu0 0.0
        %5381 = vmatpush1.msra.mxu0 0.0
        %5382 = vmatprep.subr.mxu0 0.0
        %5383 = vmatpush1.msra.mxu0 0.0
        %5384 = vmatprep.subr.mxu0 0.0
        %5385 = vmatpush1.msra.mxu0 0.0
        %5386 = vmatprep.subr.mxu0 0.0
        %5387 = vmatpush1.msra.mxu0 0.0
        %5388 = vmatprep.subr.mxu0 0.0
        %5389 = vmatpush1.msra.mxu0 0.0
        %5390 = vmatprep.subr.mxu0 0.0
        %5391 = vmatpush1.msra.mxu0 0.0
        %5392 = vmatprep.subr.mxu0 0.0
        %5393 = vmatpush1.msra.mxu0 0.0
        %5394 = vmatprep.subr.mxu0 0.0
        %5395 = vmatpush1.msra.mxu0 0.0
        %5396 = vmatprep.subr.mxu0 0.0
        %5397 = vmatpush1.msra.mxu0 0.0
        %5398 = vmatprep.mubr.f32.mxu0 0.0
        %v5399 = vand.u32 %v3528, 4294901760
        %5400 = vmatmul.mubr.f32.gmra.mrb[0].mxu0 %v5399
        %v5401 = vpop.f32.mrb[0].mxu0
        %v5402 = vadd.f32 %v5320, %v5401
        %v5403 = vpop.f32.mrb[0].mxu0
        %5404 = vmatprep.mubr.f32.mxu0 0.0
        %v5405 = vand.u32 %v3531, 4294901760
        %5406 = vmatmul.mubr.f32.gmra.mrb[0].mxu0 %v5405
        %v5407 = vpop.f32.mrb[0].mxu0
        %v5408 = vadd.f32 %v5328, %v5407
        %v5409 = vpop.f32.mrb[0].mxu0
        %5410 = vdwg.mxu0
        %5411 = vmatprep.subr.mxu0 0.0
        %v5412 = vand.u32 %v3499, 4294901760
        %5413 = vmatpush1.msra.mxu0 %v5412
        %5414 = vmatprep.subr.mxu0 0.0
        %5415 = vmatpush1.msra.mxu0 0.0
        %5416 = vmatprep.subr.mxu0 0.0
        %5417 = vmatpush1.msra.mxu0 0.0
        %5418 = vmatprep.subr.mxu0 0.0
        %5419 = vmatpush1.msra.mxu0 0.0
        %5420 = vmatprep.subr.mxu0 0.0
        %5421 = vmatpush1.msra.mxu0 0.0
        %5422 = vmatprep.subr.mxu0 0.0
        %5423 = vmatpush1.msra.mxu0 0.0
        %5424 = vmatprep.subr.mxu0 0.0
        %5425 = vmatpush1.msra.mxu0 0.0
        %5426 = vmatprep.subr.mxu0 0.0
        %5427 = vmatpush1.msra.mxu0 0.0
        %5428 = vmatprep.subr.mxu0 0.0
        %5429 = vmatpush1.msra.mxu0 0.0
        %5430 = vmatprep.subr.mxu0 0.0
        %5431 = vmatpush1.msra.mxu0 0.0
        %5432 = vmatprep.subr.mxu0 0.0
        %5433 = vmatpush1.msra.mxu0 0.0
        %5434 = vmatprep.subr.mxu0 0.0
        %5435 = vmatpush1.msra.mxu0 0.0
        %5436 = vmatprep.subr.mxu0 0.0
        %5437 = vmatpush1.msra.mxu0 0.0
        %5438 = vmatprep.subr.mxu0 0.0
        %5439 = vmatpush1.msra.mxu0 0.0
        %5440 = vmatprep.subr.mxu0 0.0
        %5441 = vmatpush1.msra.mxu0 0.0
        %5442 = vmatprep.subr.mxu0 0.0
        %5443 = vmatpush1.msra.mxu0 0.0
        %5444 = vmatprep.subr.mxu0 0.0
        %5445 = vmatpush1.msra.mxu0 0.0
        %5446 = vmatprep.subr.mxu0 0.0
        %5447 = vmatpush1.msra.mxu0 0.0
        %5448 = vmatprep.subr.mxu0 0.0
        %5449 = vmatpush1.msra.mxu0 0.0
        %5450 = vmatprep.subr.mxu0 0.0
        %5451 = vmatpush1.msra.mxu0 0.0
        %5452 = vmatprep.subr.mxu0 0.0
        %5453 = vmatpush1.msra.mxu0 0.0
        %5454 = vmatprep.subr.mxu0 0.0
        %5455 = vmatpush1.msra.mxu0 0.0
        %5456 = vmatprep.subr.mxu0 0.0
        %5457 = vmatpush1.msra.mxu0 0.0
        %5458 = vmatprep.subr.mxu0 0.0
        %5459 = vmatpush1.msra.mxu0 0.0
        %5460 = vmatprep.subr.mxu0 0.0
        %5461 = vmatpush1.msra.mxu0 0.0
        %5462 = vmatprep.subr.mxu0 0.0
        %5463 = vmatpush1.msra.mxu0 0.0
        %5464 = vmatprep.subr.mxu0 0.0
        %5465 = vmatpush1.msra.mxu0 0.0
        %5466 = vmatprep.subr.mxu0 0.0
        %5467 = vmatpush1.msra.mxu0 0.0
        %5468 = vmatprep.subr.mxu0 0.0
        %5469 = vmatpush1.msra.mxu0 0.0
        %5470 = vmatprep.subr.mxu0 0.0
        %5471 = vmatpush1.msra.mxu0 0.0
        %5472 = vmatprep.subr.mxu0 0.0
        %5473 = vmatpush1.msra.mxu0 0.0
        %5474 = vmatprep.subr.mxu0 0.0
        %5475 = vmatpush1.msra.mxu0 0.0
        %5476 = vmatprep.mubr.f32.mxu0 0.0
        %v5477 = vand.u32 %v3528, 4294901760
        %5478 = vmatmul.mubr.f32.gmra.mrb[0].mxu0 %v5477
        %v5479 = vpop.f32.mrb[0].mxu0
        %v5480 = vadd.f32 %v5402, %v5479
        %v5481 = vpop.f32.mrb[0].mxu0
        %5482 = vmatprep.mubr.f32.mxu0 0.0
        %v5483 = vand.u32 %v3531, 4294901760
        %5484 = vmatmul.mubr.f32.gmra.mrb[0].mxu0 %v5483
        %v5485 = vpop.f32.mrb[0].mxu0
        %v5486 = vadd.f32 %v5408, %v5485
        %v5487 = vpop.f32.mrb[0].mxu0
        %5488 = vdwg.mxu0
        %5489 = vmatprep.subr.mxu0 0.0
        %v5490 = vand.u32 %v3505, 4294901760
        %5491 = vmatpush1.msra.mxu0 %v5490
        %5492 = vmatprep.subr.mxu0 0.0
        %5493 = vmatpush1.msra.mxu0 0.0
        %5494 = vmatprep.subr.mxu0 0.0
        %5495 = vmatpush1.msra.mxu0 0.0
        %5496 = vmatprep.subr.mxu0 0.0
        %5497 = vmatpush1.msra.mxu0 0.0
        %5498 = vmatprep.subr.mxu0 0.0
        %5499 = vmatpush1.msra.mxu0 0.0
        %5500 = vmatprep.subr.mxu0 0.0
        %5501 = vmatpush1.msra.mxu0 0.0
        %5502 = vmatprep.subr.mxu0 0.0
        %5503 = vmatpush1.msra.mxu0 0.0
        %5504 = vmatprep.subr.mxu0 0.0
        %5505 = vmatpush1.msra.mxu0 0.0
        %5506 = vmatprep.subr.mxu0 0.0
        %5507 = vmatpush1.msra.mxu0 0.0
        %5508 = vmatprep.subr.mxu0 0.0
        %5509 = vmatpush1.msra.mxu0 0.0
        %5510 = vmatprep.subr.mxu0 0.0
        %5511 = vmatpush1.msra.mxu0 0.0
        %5512 = vmatprep.subr.mxu0 0.0
        %5513 = vmatpush1.msra.mxu0 0.0
        %5514 = vmatprep.subr.mxu0 0.0
        %5515 = vmatpush1.msra.mxu0 0.0
        %5516 = vmatprep.subr.mxu0 0.0
        %5517 = vmatpush1.msra.mxu0 0.0
        %5518 = vmatprep.subr.mxu0 0.0
        %5519 = vmatpush1.msra.mxu0 0.0
        %5520 = vmatprep.subr.mxu0 0.0
        %5521 = vmatpush1.msra.mxu0 0.0
        %5522 = vmatprep.subr.mxu0 0.0
        %5523 = vmatpush1.msra.mxu0 0.0
        %5524 = vmatprep.subr.mxu0 0.0
        %5525 = vmatpush1.msra.mxu0 0.0
        %5526 = vmatprep.subr.mxu0 0.0
        %5527 = vmatpush1.msra.mxu0 0.0
        %5528 = vmatprep.subr.mxu0 0.0
        %5529 = vmatpush1.msra.mxu0 0.0
        %5530 = vmatprep.subr.mxu0 0.0
        %5531 = vmatpush1.msra.mxu0 0.0
        %5532 = vmatprep.subr.mxu0 0.0
        %5533 = vmatpush1.msra.mxu0 0.0
        %5534 = vmatprep.subr.mxu0 0.0
        %5535 = vmatpush1.msra.mxu0 0.0
        %5536 = vmatprep.subr.mxu0 0.0
        %5537 = vmatpush1.msra.mxu0 0.0
        %5538 = vmatprep.subr.mxu0 0.0
        %5539 = vmatpush1.msra.mxu0 0.0
        %5540 = vmatprep.subr.mxu0 0.0
        %5541 = vmatpush1.msra.mxu0 0.0
        %5542 = vmatprep.subr.mxu0 0.0
        %5543 = vmatpush1.msra.mxu0 0.0
        %5544 = vmatprep.subr.mxu0 0.0
        %5545 = vmatpush1.msra.mxu0 0.0
        %5546 = vmatprep.subr.mxu0 0.0
        %5547 = vmatpush1.msra.mxu0 0.0
        %5548 = vmatprep.subr.mxu0 0.0
        %5549 = vmatpush1.msra.mxu0 0.0
        %5550 = vmatprep.subr.mxu0 0.0
        %5551 = vmatpush1.msra.mxu0 0.0
        %5552 = vmatprep.subr.mxu0 0.0
        %5553 = vmatpush1.msra.mxu0 0.0
        %5554 = vmatprep.mubr.f32.mxu0 0.0
        %v5555 = vand.u32 %v3528, 4294901760
        %v5556 = vsub.f32 %v3528, %v5555
        %v5557 = vand.u32 %v5556, 4294901760
        %v5558 = vsub.f32 %v5556, %v5557
        %v5559 = vand.u32 %v5558, 4294901760
        %5560 = vmatmul.mubr.f32.gmra.mrb[0].mxu0 %v5559
        %v5561 = vpop.f32.mrb[0].mxu0
        %v5562 = vadd.f32 0.0, %v5561
        %v5563 = vpop.f32.mrb[0].mxu0
        %5564 = vmatprep.mubr.f32.mxu0 0.0
        %v5565 = vand.u32 %v3531, 4294901760
        %v5566 = vsub.f32 %v3531, %v5565
        %v5567 = vand.u32 %v5566, 4294901760
        %v5568 = vsub.f32 %v5566, %v5567
        %v5569 = vand.u32 %v5568, 4294901760
        %5570 = vmatmul.mubr.f32.gmra.mrb[0].mxu0 %v5569
        %v5571 = vpop.f32.mrb[0].mxu0
        %v5572 = vadd.f32 0.0, %v5571
        %v5573 = vpop.f32.mrb[0].mxu0
        %5574 = vdwg.mxu0
        %5575 = vmatprep.subr.mxu0 0.0
        %v5576 = vand.u32 %v3505, 4294901760
        %v5577 = vsub.f32 %v3505, %v5576
        %v5578 = vand.u32 %v5577, 4294901760
        %v5579 = vsub.f32 %v5577, %v5578
        %v5580 = vand.u32 %v5579, 4294901760
        %5581 = vmatpush1.msra.mxu0 %v5580
        %5582 = vmatprep.subr.mxu0 0.0
        %5583 = vmatpush1.msra.mxu0 0.0
        %5584 = vmatprep.subr.mxu0 0.0
        %5585 = vmatpush1.msra.mxu0 0.0
        %5586 = vmatprep.subr.mxu0 0.0
        %5587 = vmatpush1.msra.mxu0 0.0
        %5588 = vmatprep.subr.mxu0 0.0
        %5589 = vmatpush1.msra.mxu0 0.0
        %5590 = vmatprep.subr.mxu0 0.0
        %5591 = vmatpush1.msra.mxu0 0.0
        %5592 = vmatprep.subr.mxu0 0.0
        %5593 = vmatpush1.msra.mxu0 0.0
        %5594 = vmatprep.subr.mxu0 0.0
        %5595 = vmatpush1.msra.mxu0 0.0
        %5596 = vmatprep.subr.mxu0 0.0
        %5597 = vmatpush1.msra.mxu0 0.0
        %5598 = vmatprep.subr.mxu0 0.0
        %5599 = vmatpush1.msra.mxu0 0.0
        %5600 = vmatprep.subr.mxu0 0.0
        %5601 = vmatpush1.msra.mxu0 0.0
        %5602 = vmatprep.subr.mxu0 0.0
        %5603 = vmatpush1.msra.mxu0 0.0
        %5604 = vmatprep.subr.mxu0 0.0
        %5605 = vmatpush1.msra.mxu0 0.0
        %5606 = vmatprep.subr.mxu0 0.0
        %5607 = vmatpush1.msra.mxu0 0.0
        %5608 = vmatprep.subr.mxu0 0.0
        %5609 = vmatpush1.msra.mxu0 0.0
        %5610 = vmatprep.subr.mxu0 0.0
        %5611 = vmatpush1.msra.mxu0 0.0
        %5612 = vmatprep.subr.mxu0 0.0
        %5613 = vmatpush1.msra.mxu0 0.0
        %5614 = vmatprep.subr.mxu0 0.0
        %5615 = vmatpush1.msra.mxu0 0.0
        %5616 = vmatprep.subr.mxu0 0.0
        %5617 = vmatpush1.msra.mxu0 0.0
        %5618 = vmatprep.subr.mxu0 0.0
        %5619 = vmatpush1.msra.mxu0 0.0
        %5620 = vmatprep.subr.mxu0 0.0
        %5621 = vmatpush1.msra.mxu0 0.0
        %5622 = vmatprep.subr.mxu0 0.0
        %5623 = vmatpush1.msra.mxu0 0.0
        %5624 = vmatprep.subr.mxu0 0.0
        %5625 = vmatpush1.msra.mxu0 0.0
        %5626 = vmatprep.subr.mxu0 0.0
        %5627 = vmatpush1.msra.mxu0 0.0
        %5628 = vmatprep.subr.mxu0 0.0
        %5629 = vmatpush1.msra.mxu0 0.0
        %5630 = vmatprep.subr.mxu0 0.0
        %5631 = vmatpush1.msra.mxu0 0.0
        %5632 = vmatprep.subr.mxu0 0.0
        %5633 = vmatpush1.msra.mxu0 0.0
        %5634 = vmatprep.subr.mxu0 0.0
        %5635 = vmatpush1.msra.mxu0 0.0
        %5636 = vmatprep.subr.mxu0 0.0
        %5637 = vmatpush1.msra.mxu0 0.0
        %5638 = vmatprep.subr.mxu0 0.0
        %5639 = vmatpush1.msra.mxu0 0.0
        %5640 = vmatprep.subr.mxu0 0.0
        %5641 = vmatpush1.msra.mxu0 0.0
        %5642 = vmatprep.subr.mxu0 0.0
        %5643 = vmatpush1.msra.mxu0 0.0
        %5644 = vmatprep.mubr.f32.mxu0 0.0
        %v5645 = vand.u32 %v3528, 4294901760
        %5646 = vmatmul.mubr.f32.gmra.mrb[0].mxu0 %v5645
        %v5647 = vpop.f32.mrb[0].mxu0
        %v5648 = vadd.f32 %v5562, %v5647
        %v5649 = vpop.f32.mrb[0].mxu0
        %5650 = vmatprep.mubr.f32.mxu0 0.0
        %v5651 = vand.u32 %v3531, 4294901760
        %5652 = vmatmul.mubr.f32.gmra.mrb[0].mxu0 %v5651
        %v5653 = vpop.f32.mrb[0].mxu0
        %v5654 = vadd.f32 %v5572, %v5653
        %v5655 = vpop.f32.mrb[0].mxu0
        %5656 = vdwg.mxu0
        %5657 = vmatprep.subr.mxu0 0.0
        %v5658 = vand.u32 %v3505, 4294901760
        %v5659 = vsub.f32 %v3505, %v5658
        %5660 = vmatpush1.msra.mxu0 %v5659
        %5661 = vmatprep.subr.mxu0 0.0
        %5662 = vmatpush1.msra.mxu0 0.0
        %5663 = vmatprep.subr.mxu0 0.0
        %5664 = vmatpush1.msra.mxu0 0.0
        %5665 = vmatprep.subr.mxu0 0.0
        %5666 = vmatpush1.msra.mxu0 0.0
        %5667 = vmatprep.subr.mxu0 0.0
        %5668 = vmatpush1.msra.mxu0 0.0
        %5669 = vmatprep.subr.mxu0 0.0
        %5670 = vmatpush1.msra.mxu0 0.0
        %5671 = vmatprep.subr.mxu0 0.0
        %5672 = vmatpush1.msra.mxu0 0.0
        %5673 = vmatprep.subr.mxu0 0.0
        %5674 = vmatpush1.msra.mxu0 0.0
        %5675 = vmatprep.subr.mxu0 0.0
        %5676 = vmatpush1.msra.mxu0 0.0
        %5677 = vmatprep.subr.mxu0 0.0
        %5678 = vmatpush1.msra.mxu0 0.0
        %5679 = vmatprep.subr.mxu0 0.0
        %5680 = vmatpush1.msra.mxu0 0.0
        %5681 = vmatprep.subr.mxu0 0.0
        %5682 = vmatpush1.msra.mxu0 0.0
        %5683 = vmatprep.subr.mxu0 0.0
        %5684 = vmatpush1.msra.mxu0 0.0
        %5685 = vmatprep.subr.mxu0 0.0
        %5686 = vmatpush1.msra.mxu0 0.0
        %5687 = vmatprep.subr.mxu0 0.0
        %5688 = vmatpush1.msra.mxu0 0.0
        %5689 = vmatprep.subr.mxu0 0.0
        %5690 = vmatpush1.msra.mxu0 0.0
        %5691 = vmatprep.subr.mxu0 0.0
        %5692 = vmatpush1.msra.mxu0 0.0
        %5693 = vmatprep.subr.mxu0 0.0
        %5694 = vmatpush1.msra.mxu0 0.0
        %5695 = vmatprep.subr.mxu0 0.0
        %5696 = vmatpush1.msra.mxu0 0.0
        %5697 = vmatprep.subr.mxu0 0.0
        %5698 = vmatpush1.msra.mxu0 0.0
        %5699 = vmatprep.subr.mxu0 0.0
        %5700 = vmatpush1.msra.mxu0 0.0
        %5701 = vmatprep.subr.mxu0 0.0
        %5702 = vmatpush1.msra.mxu0 0.0
        %5703 = vmatprep.subr.mxu0 0.0
        %5704 = vmatpush1.msra.mxu0 0.0
        %5705 = vmatprep.subr.mxu0 0.0
        %5706 = vmatpush1.msra.mxu0 0.0
        %5707 = vmatprep.subr.mxu0 0.0
        %5708 = vmatpush1.msra.mxu0 0.0
        %5709 = vmatprep.subr.mxu0 0.0
        %5710 = vmatpush1.msra.mxu0 0.0
        %5711 = vmatprep.subr.mxu0 0.0
        %5712 = vmatpush1.msra.mxu0 0.0
        %5713 = vmatprep.subr.mxu0 0.0
        %5714 = vmatpush1.msra.mxu0 0.0
        %5715 = vmatprep.subr.mxu0 0.0
        %5716 = vmatpush1.msra.mxu0 0.0
        %5717 = vmatprep.subr.mxu0 0.0
        %5718 = vmatpush1.msra.mxu0 0.0
        %5719 = vmatprep.subr.mxu0 0.0
        %5720 = vmatpush1.msra.mxu0 0.0
        %5721 = vmatprep.subr.mxu0 0.0
        %5722 = vmatpush1.msra.mxu0 0.0
        %5723 = vmatprep.mubr.f32.mxu0 0.0
        %v5724 = vand.u32 %v3528, 4294901760
        %v5725 = vsub.f32 %v3528, %v5724
        %5726 = vmatmul.mubr.f32.gmra.mrb[0].mxu0 %v5725
        %v5727 = vpop.f32.mrb[0].mxu0
        %v5728 = vadd.f32 %v5648, %v5727
        %v5729 = vpop.f32.mrb[0].mxu0
        %5730 = vmatprep.mubr.f32.mxu0 0.0
        %v5731 = vand.u32 %v3531, 4294901760
        %v5732 = vsub.f32 %v3531, %v5731
        %5733 = vmatmul.mubr.f32.gmra.mrb[0].mxu0 %v5732
        %v5734 = vpop.f32.mrb[0].mxu0
        %v5735 = vadd.f32 %v5654, %v5734
        %v5736 = vpop.f32.mrb[0].mxu0
        %5737 = vdwg.mxu0
        %5738 = vmatprep.subr.mxu0 0.0
        %v5739 = vand.u32 %v3505, 4294901760
        %5740 = vmatpush1.msra.mxu0 %v5739
        %5741 = vmatprep.subr.mxu0 0.0
        %5742 = vmatpush1.msra.mxu0 0.0
        %5743 = vmatprep.subr.mxu0 0.0
        %5744 = vmatpush1.msra.mxu0 0.0
        %5745 = vmatprep.subr.mxu0 0.0
        %5746 = vmatpush1.msra.mxu0 0.0
        %5747 = vmatprep.subr.mxu0 0.0
        %5748 = vmatpush1.msra.mxu0 0.0
        %5749 = vmatprep.subr.mxu0 0.0
        %5750 = vmatpush1.msra.mxu0 0.0
        %5751 = vmatprep.subr.mxu0 0.0
        %5752 = vmatpush1.msra.mxu0 0.0
        %5753 = vmatprep.subr.mxu0 0.0
        %5754 = vmatpush1.msra.mxu0 0.0
        %5755 = vmatprep.subr.mxu0 0.0
        %5756 = vmatpush1.msra.mxu0 0.0
        %5757 = vmatprep.subr.mxu0 0.0
        %5758 = vmatpush1.msra.mxu0 0.0
        %5759 = vmatprep.subr.mxu0 0.0
        %5760 = vmatpush1.msra.mxu0 0.0
        %5761 = vmatprep.subr.mxu0 0.0
        %5762 = vmatpush1.msra.mxu0 0.0
        %5763 = vmatprep.subr.mxu0 0.0
        %5764 = vmatpush1.msra.mxu0 0.0
        %5765 = vmatprep.subr.mxu0 0.0
        %5766 = vmatpush1.msra.mxu0 0.0
        %5767 = vmatprep.subr.mxu0 0.0
        %5768 = vmatpush1.msra.mxu0 0.0
        %5769 = vmatprep.subr.mxu0 0.0
        %5770 = vmatpush1.msra.mxu0 0.0
        %5771 = vmatprep.subr.mxu0 0.0
        %5772 = vmatpush1.msra.mxu0 0.0
        %5773 = vmatprep.subr.mxu0 0.0
        %5774 = vmatpush1.msra.mxu0 0.0
        %5775 = vmatprep.subr.mxu0 0.0
        %5776 = vmatpush1.msra.mxu0 0.0
        %5777 = vmatprep.subr.mxu0 0.0
        %5778 = vmatpush1.msra.mxu0 0.0
        %5779 = vmatprep.subr.mxu0 0.0
        %5780 = vmatpush1.msra.mxu0 0.0
        %5781 = vmatprep.subr.mxu0 0.0
        %5782 = vmatpush1.msra.mxu0 0.0
        %5783 = vmatprep.subr.mxu0 0.0
        %5784 = vmatpush1.msra.mxu0 0.0
        %5785 = vmatprep.subr.mxu0 0.0
        %5786 = vmatpush1.msra.mxu0 0.0
        %5787 = vmatprep.subr.mxu0 0.0
        %5788 = vmatpush1.msra.mxu0 0.0
        %5789 = vmatprep.subr.mxu0 0.0
        %5790 = vmatpush1.msra.mxu0 0.0
        %5791 = vmatprep.subr.mxu0 0.0
        %5792 = vmatpush1.msra.mxu0 0.0
        %5793 = vmatprep.subr.mxu0 0.0
        %5794 = vmatpush1.msra.mxu0 0.0
        %5795 = vmatprep.subr.mxu0 0.0
        %5796 = vmatpush1.msra.mxu0 0.0
        %5797 = vmatprep.subr.mxu0 0.0
        %5798 = vmatpush1.msra.mxu0 0.0
        %5799 = vmatprep.subr.mxu0 0.0
        %5800 = vmatpush1.msra.mxu0 0.0
        %5801 = vmatprep.subr.mxu0 0.0
        %5802 = vmatpush1.msra.mxu0 0.0
        %5803 = vmatprep.mubr.f32.mxu0 0.0
        %v5804 = vand.u32 %v3528, 4294901760
        %v5805 = vsub.f32 %v3528, %v5804
        %v5806 = vand.u32 %v5805, 4294901760
        %5807 = vmatmul.mubr.f32.gmra.mrb[0].mxu0 %v5806
        %v5808 = vpop.f32.mrb[0].mxu0
        %v5809 = vadd.f32 %v5728, %v5808
        %v5810 = vpop.f32.mrb[0].mxu0
        %5811 = vmatprep.mubr.f32.mxu0 0.0
        %v5812 = vand.u32 %v3531, 4294901760
        %v5813 = vsub.f32 %v3531, %v5812
        %v5814 = vand.u32 %v5813, 4294901760
        %5815 = vmatmul.mubr.f32.gmra.mrb[0].mxu0 %v5814
        %v5816 = vpop.f32.mrb[0].mxu0
        %v5817 = vadd.f32 %v5735, %v5816
        %v5818 = vpop.f32.mrb[0].mxu0
        %5819 = vdwg.mxu0
        %5820 = vmatprep.subr.mxu0 0.0
        %v5821 = vand.u32 %v3505, 4294901760
        %v5822 = vsub.f32 %v3505, %v5821
        %v5823 = vand.u32 %v5822, 4294901760
        %5824 = vmatpush1.msra.mxu0 %v5823
        %5825 = vmatprep.subr.mxu0 0.0
        %5826 = vmatpush1.msra.mxu0 0.0
        %5827 = vmatprep.subr.mxu0 0.0
        %5828 = vmatpush1.msra.mxu0 0.0
        %5829 = vmatprep.subr.mxu0 0.0
        %5830 = vmatpush1.msra.mxu0 0.0
        %5831 = vmatprep.subr.mxu0 0.0
        %5832 = vmatpush1.msra.mxu0 0.0
        %5833 = vmatprep.subr.mxu0 0.0
        %5834 = vmatpush1.msra.mxu0 0.0
        %5835 = vmatprep.subr.mxu0 0.0
        %5836 = vmatpush1.msra.mxu0 0.0
        %5837 = vmatprep.subr.mxu0 0.0
        %5838 = vmatpush1.msra.mxu0 0.0
        %5839 = vmatprep.subr.mxu0 0.0
        %5840 = vmatpush1.msra.mxu0 0.0
        %5841 = vmatprep.subr.mxu0 0.0
        %5842 = vmatpush1.msra.mxu0 0.0
        %5843 = vmatprep.subr.mxu0 0.0
        %5844 = vmatpush1.msra.mxu0 0.0
        %5845 = vmatprep.subr.mxu0 0.0
        %5846 = vmatpush1.msra.mxu0 0.0
        %5847 = vmatprep.subr.mxu0 0.0
        %5848 = vmatpush1.msra.mxu0 0.0
        %5849 = vmatprep.subr.mxu0 0.0
        %5850 = vmatpush1.msra.mxu0 0.0
        %5851 = vmatprep.subr.mxu0 0.0
        %5852 = vmatpush1.msra.mxu0 0.0
        %5853 = vmatprep.subr.mxu0 0.0
        %5854 = vmatpush1.msra.mxu0 0.0
        %5855 = vmatprep.subr.mxu0 0.0
        %5856 = vmatpush1.msra.mxu0 0.0
        %5857 = vmatprep.subr.mxu0 0.0
        %5858 = vmatpush1.msra.mxu0 0.0
        %5859 = vmatprep.subr.mxu0 0.0
        %5860 = vmatpush1.msra.mxu0 0.0
        %5861 = vmatprep.subr.mxu0 0.0
        %5862 = vmatpush1.msra.mxu0 0.0
        %5863 = vmatprep.subr.mxu0 0.0
        %5864 = vmatpush1.msra.mxu0 0.0
        %5865 = vmatprep.subr.mxu0 0.0
        %5866 = vmatpush1.msra.mxu0 0.0
        %5867 = vmatprep.subr.mxu0 0.0
        %5868 = vmatpush1.msra.mxu0 0.0
        %5869 = vmatprep.subr.mxu0 0.0
        %5870 = vmatpush1.msra.mxu0 0.0
        %5871 = vmatprep.subr.mxu0 0.0
        %5872 = vmatpush1.msra.mxu0 0.0
        %5873 = vmatprep.subr.mxu0 0.0
        %5874 = vmatpush1.msra.mxu0 0.0
        %5875 = vmatprep.subr.mxu0 0.0
        %5876 = vmatpush1.msra.mxu0 0.0
        %5877 = vmatprep.subr.mxu0 0.0
        %5878 = vmatpush1.msra.mxu0 0.0
        %5879 = vmatprep.subr.mxu0 0.0
        %5880 = vmatpush1.msra.mxu0 0.0
        %5881 = vmatprep.subr.mxu0 0.0
        %5882 = vmatpush1.msra.mxu0 0.0
        %5883 = vmatprep.subr.mxu0 0.0
        %5884 = vmatpush1.msra.mxu0 0.0
        %5885 = vmatprep.subr.mxu0 0.0
        %5886 = vmatpush1.msra.mxu0 0.0
        %5887 = vmatprep.mubr.f32.mxu0 0.0
        %v5888 = vand.u32 %v3528, 4294901760
        %5889 = vmatmul.mubr.f32.gmra.mrb[0].mxu0 %v5888
        %v5890 = vpop.f32.mrb[0].mxu0
        %v5891 = vadd.f32 %v5809, %v5890
        %v5892 = vpop.f32.mrb[0].mxu0
        %5893 = vmatprep.mubr.f32.mxu0 0.0
        %v5894 = vand.u32 %v3531, 4294901760
        %5895 = vmatmul.mubr.f32.gmra.mrb[0].mxu0 %v5894
        %v5896 = vpop.f32.mrb[0].mxu0
        %v5897 = vadd.f32 %v5817, %v5896
        %v5898 = vpop.f32.mrb[0].mxu0
        %5899 = vdwg.mxu0
        %5900 = vmatprep.subr.mxu0 0.0
        %v5901 = vand.u32 %v3505, 4294901760
        %5902 = vmatpush1.msra.mxu0 %v5901
        %5903 = vmatprep.subr.mxu0 0.0
        %5904 = vmatpush1.msra.mxu0 0.0
        %5905 = vmatprep.subr.mxu0 0.0
        %5906 = vmatpush1.msra.mxu0 0.0
        %5907 = vmatprep.subr.mxu0 0.0
        %5908 = vmatpush1.msra.mxu0 0.0
        %5909 = vmatprep.subr.mxu0 0.0
        %5910 = vmatpush1.msra.mxu0 0.0
        %5911 = vmatprep.subr.mxu0 0.0
        %5912 = vmatpush1.msra.mxu0 0.0
        %5913 = vmatprep.subr.mxu0 0.0
        %5914 = vmatpush1.msra.mxu0 0.0
        %5915 = vmatprep.subr.mxu0 0.0
        %5916 = vmatpush1.msra.mxu0 0.0
        %5917 = vmatprep.subr.mxu0 0.0
        %5918 = vmatpush1.msra.mxu0 0.0
        %5919 = vmatprep.subr.mxu0 0.0
        %5920 = vmatpush1.msra.mxu0 0.0
        %5921 = vmatprep.subr.mxu0 0.0
        %5922 = vmatpush1.msra.mxu0 0.0
        %5923 = vmatprep.subr.mxu0 0.0
        %5924 = vmatpush1.msra.mxu0 0.0
        %5925 = vmatprep.subr.mxu0 0.0
        %5926 = vmatpush1.msra.mxu0 0.0
        %5927 = vmatprep.subr.mxu0 0.0
        %5928 = vmatpush1.msra.mxu0 0.0
        %5929 = vmatprep.subr.mxu0 0.0
        %5930 = vmatpush1.msra.mxu0 0.0
        %5931 = vmatprep.subr.mxu0 0.0
        %5932 = vmatpush1.msra.mxu0 0.0
        %5933 = vmatprep.subr.mxu0 0.0
        %5934 = vmatpush1.msra.mxu0 0.0
        %5935 = vmatprep.subr.mxu0 0.0
        %5936 = vmatpush1.msra.mxu0 0.0
        %5937 = vmatprep.subr.mxu0 0.0
        %5938 = vmatpush1.msra.mxu0 0.0
        %5939 = vmatprep.subr.mxu0 0.0
        %5940 = vmatpush1.msra.mxu0 0.0
        %5941 = vmatprep.subr.mxu0 0.0
        %5942 = vmatpush1.msra.mxu0 0.0
        %5943 = vmatprep.subr.mxu0 0.0
        %5944 = vmatpush1.msra.mxu0 0.0
        %5945 = vmatprep.subr.mxu0 0.0
        %5946 = vmatpush1.msra.mxu0 0.0
        %5947 = vmatprep.subr.mxu0 0.0
        %5948 = vmatpush1.msra.mxu0 0.0
        %5949 = vmatprep.subr.mxu0 0.0
        %5950 = vmatpush1.msra.mxu0 0.0
        %5951 = vmatprep.subr.mxu0 0.0
        %5952 = vmatpush1.msra.mxu0 0.0
        %5953 = vmatprep.subr.mxu0 0.0
        %5954 = vmatpush1.msra.mxu0 0.0
        %5955 = vmatprep.subr.mxu0 0.0
        %5956 = vmatpush1.msra.mxu0 0.0
        %5957 = vmatprep.subr.mxu0 0.0
        %5958 = vmatpush1.msra.mxu0 0.0
        %5959 = vmatprep.subr.mxu0 0.0
        %5960 = vmatpush1.msra.mxu0 0.0
        %5961 = vmatprep.subr.mxu0 0.0
        %5962 = vmatpush1.msra.mxu0 0.0
        %5963 = vmatprep.subr.mxu0 0.0
        %5964 = vmatpush1.msra.mxu0 0.0
        %5965 = vmatprep.mubr.f32.mxu0 0.0
        %v5966 = vand.u32 %v3528, 4294901760
        %5967 = vmatmul.mubr.f32.gmra.mrb[0].mxu0 %v5966
        %v5968 = vpop.f32.mrb[0].mxu0
        %v5969 = vadd.f32 %v5891, %v5968
        %v5970 = vpop.f32.mrb[0].mxu0
        %5971 = vmatprep.mubr.f32.mxu0 0.0
        %v5972 = vand.u32 %v3531, 4294901760
        %5973 = vmatmul.mubr.f32.gmra.mrb[0].mxu0 %v5972
        %v5974 = vpop.f32.mrb[0].mxu0
        %v5975 = vadd.f32 %v5897, %v5974
        %v5976 = vpop.f32.mrb[0].mxu0
        %5977 = vdwg.mxu0
        %5978 = vmatprep.subr.mxu0 0.0
        %v5979 = vand.u32 %v3511, 4294901760
        %5980 = vmatpush1.msra.mxu0 %v5979
        %5981 = vmatprep.subr.mxu0 0.0
        %5982 = vmatpush1.msra.mxu0 0.0
        %5983 = vmatprep.subr.mxu0 0.0
        %5984 = vmatpush1.msra.mxu0 0.0
        %5985 = vmatprep.subr.mxu0 0.0
        %5986 = vmatpush1.msra.mxu0 0.0
        %5987 = vmatprep.subr.mxu0 0.0
        %5988 = vmatpush1.msra.mxu0 0.0
        %5989 = vmatprep.subr.mxu0 0.0
        %5990 = vmatpush1.msra.mxu0 0.0
        %5991 = vmatprep.subr.mxu0 0.0
        %5992 = vmatpush1.msra.mxu0 0.0
        %5993 = vmatprep.subr.mxu0 0.0
        %5994 = vmatpush1.msra.mxu0 0.0
        %5995 = vmatprep.subr.mxu0 0.0
        %5996 = vmatpush1.msra.mxu0 0.0
        %5997 = vmatprep.subr.mxu0 0.0
        %5998 = vmatpush1.msra.mxu0 0.0
        %5999 = vmatprep.subr.mxu0 0.0
        %6000 = vmatpush1.msra.mxu0 0.0
        %6001 = vmatprep.subr.mxu0 0.0
        %6002 = vmatpush1.msra.mxu0 0.0
        %6003 = vmatprep.subr.mxu0 0.0
        %6004 = vmatpush1.msra.mxu0 0.0
        %6005 = vmatprep.subr.mxu0 0.0
        %6006 = vmatpush1.msra.mxu0 0.0
        %6007 = vmatprep.subr.mxu0 0.0
        %6008 = vmatpush1.msra.mxu0 0.0
        %6009 = vmatprep.subr.mxu0 0.0
        %6010 = vmatpush1.msra.mxu0 0.0
        %6011 = vmatprep.subr.mxu0 0.0
        %6012 = vmatpush1.msra.mxu0 0.0
        %6013 = vmatprep.subr.mxu0 0.0
        %6014 = vmatpush1.msra.mxu0 0.0
        %6015 = vmatprep.subr.mxu0 0.0
        %6016 = vmatpush1.msra.mxu0 0.0
        %6017 = vmatprep.subr.mxu0 0.0
        %6018 = vmatpush1.msra.mxu0 0.0
        %6019 = vmatprep.subr.mxu0 0.0
        %6020 = vmatpush1.msra.mxu0 0.0
        %6021 = vmatprep.subr.mxu0 0.0
        %6022 = vmatpush1.msra.mxu0 0.0
        %6023 = vmatprep.subr.mxu0 0.0
        %6024 = vmatpush1.msra.mxu0 0.0
        %6025 = vmatprep.subr.mxu0 0.0
        %6026 = vmatpush1.msra.mxu0 0.0
        %6027 = vmatprep.subr.mxu0 0.0
        %6028 = vmatpush1.msra.mxu0 0.0
        %6029 = vmatprep.subr.mxu0 0.0
        %6030 = vmatpush1.msra.mxu0 0.0
        %6031 = vmatprep.subr.mxu0 0.0
        %6032 = vmatpush1.msra.mxu0 0.0
        %6033 = vmatprep.subr.mxu0 0.0
        %6034 = vmatpush1.msra.mxu0 0.0
        %6035 = vmatprep.subr.mxu0 0.0
        %6036 = vmatpush1.msra.mxu0 0.0
        %6037 = vmatprep.subr.mxu0 0.0
        %6038 = vmatpush1.msra.mxu0 0.0
        %6039 = vmatprep.subr.mxu0 0.0
        %6040 = vmatpush1.msra.mxu0 0.0
        %6041 = vmatprep.subr.mxu0 0.0
        %6042 = vmatpush1.msra.mxu0 0.0
        %6043 = vmatprep.mubr.f32.mxu0 0.0
        %v6044 = vand.u32 %v3528, 4294901760
        %v6045 = vsub.f32 %v3528, %v6044
        %v6046 = vand.u32 %v6045, 4294901760
        %v6047 = vsub.f32 %v6045, %v6046
        %v6048 = vand.u32 %v6047, 4294901760
        %6049 = vmatmul.mubr.f32.gmra.mrb[0].mxu0 %v6048
        %v6050 = vpop.f32.mrb[0].mxu0
        %v6051 = vadd.f32 0.0, %v6050
        %v6052 = vpop.f32.mrb[0].mxu0
        %6053 = vmatprep.mubr.f32.mxu0 0.0
        %v6054 = vand.u32 %v3531, 4294901760
        %v6055 = vsub.f32 %v3531, %v6054
        %v6056 = vand.u32 %v6055, 4294901760
        %v6057 = vsub.f32 %v6055, %v6056
        %v6058 = vand.u32 %v6057, 4294901760
        %6059 = vmatmul.mubr.f32.gmra.mrb[0].mxu0 %v6058
        %v6060 = vpop.f32.mrb[0].mxu0
        %v6061 = vadd.f32 0.0, %v6060
        %v6062 = vpop.f32.mrb[0].mxu0
        %6063 = vdwg.mxu0
        %6064 = vmatprep.subr.mxu0 0.0
        %v6065 = vand.u32 %v3511, 4294901760
        %v6066 = vsub.f32 %v3511, %v6065
        %v6067 = vand.u32 %v6066, 4294901760
        %v6068 = vsub.f32 %v6066, %v6067
        %v6069 = vand.u32 %v6068, 4294901760
        %6070 = vmatpush1.msra.mxu0 %v6069
        %6071 = vmatprep.subr.mxu0 0.0
        %6072 = vmatpush1.msra.mxu0 0.0
        %6073 = vmatprep.subr.mxu0 0.0
        %6074 = vmatpush1.msra.mxu0 0.0
        %6075 = vmatprep.subr.mxu0 0.0
        %6076 = vmatpush1.msra.mxu0 0.0
        %6077 = vmatprep.subr.mxu0 0.0
        %6078 = vmatpush1.msra.mxu0 0.0
        %6079 = vmatprep.subr.mxu0 0.0
        %6080 = vmatpush1.msra.mxu0 0.0
        %6081 = vmatprep.subr.mxu0 0.0
        %6082 = vmatpush1.msra.mxu0 0.0
        %6083 = vmatprep.subr.mxu0 0.0
        %6084 = vmatpush1.msra.mxu0 0.0
        %6085 = vmatprep.subr.mxu0 0.0
        %6086 = vmatpush1.msra.mxu0 0.0
        %6087 = vmatprep.subr.mxu0 0.0
        %6088 = vmatpush1.msra.mxu0 0.0
        %6089 = vmatprep.subr.mxu0 0.0
        %6090 = vmatpush1.msra.mxu0 0.0
        %6091 = vmatprep.subr.mxu0 0.0
        %6092 = vmatpush1.msra.mxu0 0.0
        %6093 = vmatprep.subr.mxu0 0.0
        %6094 = vmatpush1.msra.mxu0 0.0
        %6095 = vmatprep.subr.mxu0 0.0
        %6096 = vmatpush1.msra.mxu0 0.0
        %6097 = vmatprep.subr.mxu0 0.0
        %6098 = vmatpush1.msra.mxu0 0.0
        %6099 = vmatprep.subr.mxu0 0.0
        %6100 = vmatpush1.msra.mxu0 0.0
        %6101 = vmatprep.subr.mxu0 0.0
        %6102 = vmatpush1.msra.mxu0 0.0
        %6103 = vmatprep.subr.mxu0 0.0
        %6104 = vmatpush1.msra.mxu0 0.0
        %6105 = vmatprep.subr.mxu0 0.0
        %6106 = vmatpush1.msra.mxu0 0.0
        %6107 = vmatprep.subr.mxu0 0.0
        %6108 = vmatpush1.msra.mxu0 0.0
        %6109 = vmatprep.subr.mxu0 0.0
        %6110 = vmatpush1.msra.mxu0 0.0
        %6111 = vmatprep.subr.mxu0 0.0
        %6112 = vmatpush1.msra.mxu0 0.0
        %6113 = vmatprep.subr.mxu0 0.0
        %6114 = vmatpush1.msra.mxu0 0.0
        %6115 = vmatprep.subr.mxu0 0.0
        %6116 = vmatpush1.msra.mxu0 0.0
        %6117 = vmatprep.subr.mxu0 0.0
        %6118 = vmatpush1.msra.mxu0 0.0
        %6119 = vmatprep.subr.mxu0 0.0
        %6120 = vmatpush1.msra.mxu0 0.0
        %6121 = vmatprep.subr.mxu0 0.0
        %6122 = vmatpush1.msra.mxu0 0.0
        %6123 = vmatprep.subr.mxu0 0.0
        %6124 = vmatpush1.msra.mxu0 0.0
        %6125 = vmatprep.subr.mxu0 0.0
        %6126 = vmatpush1.msra.mxu0 0.0
        %6127 = vmatprep.subr.mxu0 0.0
        %6128 = vmatpush1.msra.mxu0 0.0
        %6129 = vmatprep.subr.mxu0 0.0
        %6130 = vmatpush1.msra.mxu0 0.0
        %6131 = vmatprep.subr.mxu0 0.0
        %6132 = vmatpush1.msra.mxu0 0.0
        %6133 = vmatprep.mubr.f32.mxu0 0.0
        %v6134 = vand.u32 %v3528, 4294901760
        %6135 = vmatmul.mubr.f32.gmra.mrb[0].mxu0 %v6134
        %v6136 = vpop.f32.mrb[0].mxu0
        %v6137 = vadd.f32 %v6051, %v6136
        %v6138 = vpop.f32.mrb[0].mxu0
        %6139 = vmatprep.mubr.f32.mxu0 0.0
        %v6140 = vand.u32 %v3531, 4294901760
        %6141 = vmatmul.mubr.f32.gmra.mrb[0].mxu0 %v6140
        %v6142 = vpop.f32.mrb[0].mxu0
        %v6143 = vadd.f32 %v6061, %v6142
        %v6144 = vpop.f32.mrb[0].mxu0
        %6145 = vdwg.mxu0
        %6146 = vmatprep.subr.mxu0 0.0
        %v6147 = vand.u32 %v3511, 4294901760
        %v6148 = vsub.f32 %v3511, %v6147
        %6149 = vmatpush1.msra.mxu0 %v6148
        %6150 = vmatprep.subr.mxu0 0.0
        %6151 = vmatpush1.msra.mxu0 0.0
        %6152 = vmatprep.subr.mxu0 0.0
        %6153 = vmatpush1.msra.mxu0 0.0
        %6154 = vmatprep.subr.mxu0 0.0
        %6155 = vmatpush1.msra.mxu0 0.0
        %6156 = vmatprep.subr.mxu0 0.0
        %6157 = vmatpush1.msra.mxu0 0.0
        %6158 = vmatprep.subr.mxu0 0.0
        %6159 = vmatpush1.msra.mxu0 0.0
        %6160 = vmatprep.subr.mxu0 0.0
        %6161 = vmatpush1.msra.mxu0 0.0
        %6162 = vmatprep.subr.mxu0 0.0
        %6163 = vmatpush1.msra.mxu0 0.0
        %6164 = vmatprep.subr.mxu0 0.0
        %6165 = vmatpush1.msra.mxu0 0.0
        %6166 = vmatprep.subr.mxu0 0.0
        %6167 = vmatpush1.msra.mxu0 0.0
        %6168 = vmatprep.subr.mxu0 0.0
        %6169 = vmatpush1.msra.mxu0 0.0
        %6170 = vmatprep.subr.mxu0 0.0
        %6171 = vmatpush1.msra.mxu0 0.0
        %6172 = vmatprep.subr.mxu0 0.0
        %6173 = vmatpush1.msra.mxu0 0.0
        %6174 = vmatprep.subr.mxu0 0.0
        %6175 = vmatpush1.msra.mxu0 0.0
        %6176 = vmatprep.subr.mxu0 0.0
        %6177 = vmatpush1.msra.mxu0 0.0
        %6178 = vmatprep.subr.mxu0 0.0
        %6179 = vmatpush1.msra.mxu0 0.0
        %6180 = vmatprep.subr.mxu0 0.0
        %6181 = vmatpush1.msra.mxu0 0.0
        %6182 = vmatprep.subr.mxu0 0.0
        %6183 = vmatpush1.msra.mxu0 0.0
        %6184 = vmatprep.subr.mxu0 0.0
        %6185 = vmatpush1.msra.mxu0 0.0
        %6186 = vmatprep.subr.mxu0 0.0
        %6187 = vmatpush1.msra.mxu0 0.0
        %6188 = vmatprep.subr.mxu0 0.0
        %6189 = vmatpush1.msra.mxu0 0.0
        %6190 = vmatprep.subr.mxu0 0.0
        %6191 = vmatpush1.msra.mxu0 0.0
        %6192 = vmatprep.subr.mxu0 0.0
        %6193 = vmatpush1.msra.mxu0 0.0
        %6194 = vmatprep.subr.mxu0 0.0
        %6195 = vmatpush1.msra.mxu0 0.0
        %6196 = vmatprep.subr.mxu0 0.0
        %6197 = vmatpush1.msra.mxu0 0.0
        %6198 = vmatprep.subr.mxu0 0.0
        %6199 = vmatpush1.msra.mxu0 0.0
        %6200 = vmatprep.subr.mxu0 0.0
        %6201 = vmatpush1.msra.mxu0 0.0
        %6202 = vmatprep.subr.mxu0 0.0
        %6203 = vmatpush1.msra.mxu0 0.0
        %6204 = vmatprep.subr.mxu0 0.0
        %6205 = vmatpush1.msra.mxu0 0.0
        %6206 = vmatprep.subr.mxu0 0.0
        %6207 = vmatpush1.msra.mxu0 0.0
        %6208 = vmatprep.subr.mxu0 0.0
        %6209 = vmatpush1.msra.mxu0 0.0
        %6210 = vmatprep.subr.mxu0 0.0
        %6211 = vmatpush1.msra.mxu0 0.0
        %6212 = vmatprep.mubr.f32.mxu0 0.0
        %v6213 = vand.u32 %v3528, 4294901760
        %v6214 = vsub.f32 %v3528, %v6213
        %6215 = vmatmul.mubr.f32.gmra.mrb[0].mxu0 %v6214
        %v6216 = vpop.f32.mrb[0].mxu0
        %v6217 = vadd.f32 %v6137, %v6216
        %v6218 = vpop.f32.mrb[0].mxu0
        %6219 = vmatprep.mubr.f32.mxu0 0.0
        %v6220 = vand.u32 %v3531, 4294901760
        %v6221 = vsub.f32 %v3531, %v6220
        %6222 = vmatmul.mubr.f32.gmra.mrb[0].mxu0 %v6221
        %v6223 = vpop.f32.mrb[0].mxu0
        %v6224 = vadd.f32 %v6143, %v6223
        %v6225 = vpop.f32.mrb[0].mxu0
        %6226 = vdwg.mxu0
        %6227 = vmatprep.subr.mxu0 0.0
        %v6228 = vand.u32 %v3511, 4294901760
        %6229 = vmatpush1.msra.mxu0 %v6228
        %6230 = vmatprep.subr.mxu0 0.0
        %6231 = vmatpush1.msra.mxu0 0.0
        %6232 = vmatprep.subr.mxu0 0.0
        %6233 = vmatpush1.msra.mxu0 0.0
        %6234 = vmatprep.subr.mxu0 0.0
        %6235 = vmatpush1.msra.mxu0 0.0
        %6236 = vmatprep.subr.mxu0 0.0
        %6237 = vmatpush1.msra.mxu0 0.0
        %6238 = vmatprep.subr.mxu0 0.0
        %6239 = vmatpush1.msra.mxu0 0.0
        %6240 = vmatprep.subr.mxu0 0.0
        %6241 = vmatpush1.msra.mxu0 0.0
        %6242 = vmatprep.subr.mxu0 0.0
        %6243 = vmatpush1.msra.mxu0 0.0
        %6244 = vmatprep.subr.mxu0 0.0
        %6245 = vmatpush1.msra.mxu0 0.0
        %6246 = vmatprep.subr.mxu0 0.0
        %6247 = vmatpush1.msra.mxu0 0.0
        %6248 = vmatprep.subr.mxu0 0.0
        %6249 = vmatpush1.msra.mxu0 0.0
        %6250 = vmatprep.subr.mxu0 0.0
        %6251 = vmatpush1.msra.mxu0 0.0
        %6252 = vmatprep.subr.mxu0 0.0
        %6253 = vmatpush1.msra.mxu0 0.0
        %6254 = vmatprep.subr.mxu0 0.0
        %6255 = vmatpush1.msra.mxu0 0.0
        %6256 = vmatprep.subr.mxu0 0.0
        %6257 = vmatpush1.msra.mxu0 0.0
        %6258 = vmatprep.subr.mxu0 0.0
        %6259 = vmatpush1.msra.mxu0 0.0
        %6260 = vmatprep.subr.mxu0 0.0
        %6261 = vmatpush1.msra.mxu0 0.0
        %6262 = vmatprep.subr.mxu0 0.0
        %6263 = vmatpush1.msra.mxu0 0.0
        %6264 = vmatprep.subr.mxu0 0.0
        %6265 = vmatpush1.msra.mxu0 0.0
        %6266 = vmatprep.subr.mxu0 0.0
        %6267 = vmatpush1.msra.mxu0 0.0
        %6268 = vmatprep.subr.mxu0 0.0
        %6269 = vmatpush1.msra.mxu0 0.0
        %6270 = vmatprep.subr.mxu0 0.0
        %6271 = vmatpush1.msra.mxu0 0.0
        %6272 = vmatprep.subr.mxu0 0.0
        %6273 = vmatpush1.msra.mxu0 0.0
        %6274 = vmatprep.subr.mxu0 0.0
        %6275 = vmatpush1.msra.mxu0 0.0
        %6276 = vmatprep.subr.mxu0 0.0
        %6277 = vmatpush1.msra.mxu0 0.0
        %6278 = vmatprep.subr.mxu0 0.0
        %6279 = vmatpush1.msra.mxu0 0.0
        %6280 = vmatprep.subr.mxu0 0.0
        %6281 = vmatpush1.msra.mxu0 0.0
        %6282 = vmatprep.subr.mxu0 0.0
        %6283 = vmatpush1.msra.mxu0 0.0
        %6284 = vmatprep.subr.mxu0 0.0
        %6285 = vmatpush1.msra.mxu0 0.0
        %6286 = vmatprep.subr.mxu0 0.0
        %6287 = vmatpush1.msra.mxu0 0.0
        %6288 = vmatprep.subr.mxu0 0.0
        %6289 = vmatpush1.msra.mxu0 0.0
        %6290 = vmatprep.subr.mxu0 0.0
        %6291 = vmatpush1.msra.mxu0 0.0
        %6292 = vmatprep.mubr.f32.mxu0 0.0
        %v6293 = vand.u32 %v3528, 4294901760
        %v6294 = vsub.f32 %v3528, %v6293
        %v6295 = vand.u32 %v6294, 4294901760
        %6296 = vmatmul.mubr.f32.gmra.mrb[0].mxu0 %v6295
        %v6297 = vpop.f32.mrb[0].mxu0
        %v6298 = vadd.f32 %v6217, %v6297
        %v6299 = vpop.f32.mrb[0].mxu0
        %6300 = vmatprep.mubr.f32.mxu0 0.0
        %v6301 = vand.u32 %v3531, 4294901760
        %v6302 = vsub.f32 %v3531, %v6301
        %v6303 = vand.u32 %v6302, 4294901760
        %6304 = vmatmul.mubr.f32.gmra.mrb[0].mxu0 %v6303
        %v6305 = vpop.f32.mrb[0].mxu0
        %v6306 = vadd.f32 %v6224, %v6305
        %v6307 = vpop.f32.mrb[0].mxu0
        %6308 = vdwg.mxu0
        %6309 = vmatprep.subr.mxu0 0.0
        %v6310 = vand.u32 %v3511, 4294901760
        %v6311 = vsub.f32 %v3511, %v6310
        %v6312 = vand.u32 %v6311, 4294901760
        %6313 = vmatpush1.msra.mxu0 %v6312
        %6314 = vmatprep.subr.mxu0 0.0
        %6315 = vmatpush1.msra.mxu0 0.0
        %6316 = vmatprep.subr.mxu0 0.0
        %6317 = vmatpush1.msra.mxu0 0.0
        %6318 = vmatprep.subr.mxu0 0.0
        %6319 = vmatpush1.msra.mxu0 0.0
        %6320 = vmatprep.subr.mxu0 0.0
        %6321 = vmatpush1.msra.mxu0 0.0
        %6322 = vmatprep.subr.mxu0 0.0
        %6323 = vmatpush1.msra.mxu0 0.0
        %6324 = vmatprep.subr.mxu0 0.0
        %6325 = vmatpush1.msra.mxu0 0.0
        %6326 = vmatprep.subr.mxu0 0.0
        %6327 = vmatpush1.msra.mxu0 0.0
        %6328 = vmatprep.subr.mxu0 0.0
        %6329 = vmatpush1.msra.mxu0 0.0
        %6330 = vmatprep.subr.mxu0 0.0
        %6331 = vmatpush1.msra.mxu0 0.0
        %6332 = vmatprep.subr.mxu0 0.0
        %6333 = vmatpush1.msra.mxu0 0.0
        %6334 = vmatprep.subr.mxu0 0.0
        %6335 = vmatpush1.msra.mxu0 0.0
        %6336 = vmatprep.subr.mxu0 0.0
        %6337 = vmatpush1.msra.mxu0 0.0
        %6338 = vmatprep.subr.mxu0 0.0
        %6339 = vmatpush1.msra.mxu0 0.0
        %6340 = vmatprep.subr.mxu0 0.0
        %6341 = vmatpush1.msra.mxu0 0.0
        %6342 = vmatprep.subr.mxu0 0.0
        %6343 = vmatpush1.msra.mxu0 0.0
        %6344 = vmatprep.subr.mxu0 0.0
        %6345 = vmatpush1.msra.mxu0 0.0
        %6346 = vmatprep.subr.mxu0 0.0
        %6347 = vmatpush1.msra.mxu0 0.0
        %6348 = vmatprep.subr.mxu0 0.0
        %6349 = vmatpush1.msra.mxu0 0.0
        %6350 = vmatprep.subr.mxu0 0.0
        %6351 = vmatpush1.msra.mxu0 0.0
        %6352 = vmatprep.subr.mxu0 0.0
        %6353 = vmatpush1.msra.mxu0 0.0
        %6354 = vmatprep.subr.mxu0 0.0
        %6355 = vmatpush1.msra.mxu0 0.0
        %6356 = vmatprep.subr.mxu0 0.0
        %6357 = vmatpush1.msra.mxu0 0.0
        %6358 = vmatprep.subr.mxu0 0.0
        %6359 = vmatpush1.msra.mxu0 0.0
        %6360 = vmatprep.subr.mxu0 0.0
        %6361 = vmatpush1.msra.mxu0 0.0
        %6362 = vmatprep.subr.mxu0 0.0
        %6363 = vmatpush1.msra.mxu0 0.0
        %6364 = vmatprep.subr.mxu0 0.0
        %6365 = vmatpush1.msra.mxu0 0.0
        %6366 = vmatprep.subr.mxu0 0.0
        %6367 = vmatpush1.msra.mxu0 0.0
        %6368 = vmatprep.subr.mxu0 0.0
        %6369 = vmatpush1.msra.mxu0 0.0
        %6370 = vmatprep.subr.mxu0 0.0
        %6371 = vmatpush1.msra.mxu0 0.0
        %6372 = vmatprep.subr.mxu0 0.0
        %6373 = vmatpush1.msra.mxu0 0.0
        %6374 = vmatprep.subr.mxu0 0.0
        %6375 = vmatpush1.msra.mxu0 0.0
        %6376 = vmatprep.mubr.f32.mxu0 0.0
        %v6377 = vand.u32 %v3528, 4294901760
        %6378 = vmatmul.mubr.f32.gmra.mrb[0].mxu0 %v6377
        %v6379 = vpop.f32.mrb[0].mxu0
        %v6380 = vadd.f32 %v6298, %v6379
        %v6381 = vpop.f32.mrb[0].mxu0
        %6382 = vmatprep.mubr.f32.mxu0 0.0
        %v6383 = vand.u32 %v3531, 4294901760
        %6384 = vmatmul.mubr.f32.gmra.mrb[0].mxu0 %v6383
        %v6385 = vpop.f32.mrb[0].mxu0
        %v6386 = vadd.f32 %v6306, %v6385
        %v6387 = vpop.f32.mrb[0].mxu0
        %6388 = vdwg.mxu0
        %6389 = vmatprep.subr.mxu0 0.0
        %v6390 = vand.u32 %v3511, 4294901760
        %6391 = vmatpush1.msra.mxu0 %v6390
        %6392 = vmatprep.subr.mxu0 0.0
        %6393 = vmatpush1.msra.mxu0 0.0
        %6394 = vmatprep.subr.mxu0 0.0
        %6395 = vmatpush1.msra.mxu0 0.0
        %6396 = vmatprep.subr.mxu0 0.0
        %6397 = vmatpush1.msra.mxu0 0.0
        %6398 = vmatprep.subr.mxu0 0.0
        %6399 = vmatpush1.msra.mxu0 0.0
        %6400 = vmatprep.subr.mxu0 0.0
        %6401 = vmatpush1.msra.mxu0 0.0
        %6402 = vmatprep.subr.mxu0 0.0
        %6403 = vmatpush1.msra.mxu0 0.0
        %6404 = vmatprep.subr.mxu0 0.0
        %6405 = vmatpush1.msra.mxu0 0.0
        %6406 = vmatprep.subr.mxu0 0.0
        %6407 = vmatpush1.msra.mxu0 0.0
        %6408 = vmatprep.subr.mxu0 0.0
        %6409 = vmatpush1.msra.mxu0 0.0
        %6410 = vmatprep.subr.mxu0 0.0
        %6411 = vmatpush1.msra.mxu0 0.0
        %6412 = vmatprep.subr.mxu0 0.0
        %6413 = vmatpush1.msra.mxu0 0.0
        %6414 = vmatprep.subr.mxu0 0.0
        %6415 = vmatpush1.msra.mxu0 0.0
        %6416 = vmatprep.subr.mxu0 0.0
        %6417 = vmatpush1.msra.mxu0 0.0
        %6418 = vmatprep.subr.mxu0 0.0
        %6419 = vmatpush1.msra.mxu0 0.0
        %6420 = vmatprep.subr.mxu0 0.0
        %6421 = vmatpush1.msra.mxu0 0.0
        %6422 = vmatprep.subr.mxu0 0.0
        %6423 = vmatpush1.msra.mxu0 0.0
        %6424 = vmatprep.subr.mxu0 0.0
        %6425 = vmatpush1.msra.mxu0 0.0
        %6426 = vmatprep.subr.mxu0 0.0
        %6427 = vmatpush1.msra.mxu0 0.0
        %6428 = vmatprep.subr.mxu0 0.0
        %6429 = vmatpush1.msra.mxu0 0.0
        %6430 = vmatprep.subr.mxu0 0.0
        %6431 = vmatpush1.msra.mxu0 0.0
        %6432 = vmatprep.subr.mxu0 0.0
        %6433 = vmatpush1.msra.mxu0 0.0
        %6434 = vmatprep.subr.mxu0 0.0
        %6435 = vmatpush1.msra.mxu0 0.0
        %6436 = vmatprep.subr.mxu0 0.0
        %6437 = vmatpush1.msra.mxu0 0.0
        %6438 = vmatprep.subr.mxu0 0.0
        %6439 = vmatpush1.msra.mxu0 0.0
        %6440 = vmatprep.subr.mxu0 0.0
        %6441 = vmatpush1.msra.mxu0 0.0
        %6442 = vmatprep.subr.mxu0 0.0
        %6443 = vmatpush1.msra.mxu0 0.0
        %6444 = vmatprep.subr.mxu0 0.0
        %6445 = vmatpush1.msra.mxu0 0.0
        %6446 = vmatprep.subr.mxu0 0.0
        %6447 = vmatpush1.msra.mxu0 0.0
        %6448 = vmatprep.subr.mxu0 0.0
        %6449 = vmatpush1.msra.mxu0 0.0
        %6450 = vmatprep.subr.mxu0 0.0
        %6451 = vmatpush1.msra.mxu0 0.0
        %6452 = vmatprep.subr.mxu0 0.0
        %6453 = vmatpush1.msra.mxu0 0.0
        %6454 = vmatprep.mubr.f32.mxu0 0.0
        %v6455 = vand.u32 %v3528, 4294901760
        %6456 = vmatmul.mubr.f32.gmra.mrb[0].mxu0 %v6455
        %v6457 = vpop.f32.mrb[0].mxu0
        %v6458 = vadd.f32 %v6380, %v6457
        %v6459 = vpop.f32.mrb[0].mxu0
        %6460 = vmatprep.mubr.f32.mxu0 0.0
        %v6461 = vand.u32 %v3531, 4294901760
        %6462 = vmatmul.mubr.f32.gmra.mrb[0].mxu0 %v6461
        %v6463 = vpop.f32.mrb[0].mxu0
        %v6464 = vadd.f32 %v6386, %v6463
        %v6465 = vpop.f32.mrb[0].mxu0
        %6466 = vdwg.mxu0
        %6467 = vmatprep.subr.mxu0 0.0
        %v6468 = vand.u32 %v3517, 4294901760
        %6469 = vmatpush1.msra.mxu0 %v6468
        %6470 = vmatprep.subr.mxu0 0.0
        %6471 = vmatpush1.msra.mxu0 0.0
        %6472 = vmatprep.subr.mxu0 0.0
        %6473 = vmatpush1.msra.mxu0 0.0
        %6474 = vmatprep.subr.mxu0 0.0
        %6475 = vmatpush1.msra.mxu0 0.0
        %6476 = vmatprep.subr.mxu0 0.0
        %6477 = vmatpush1.msra.mxu0 0.0
        %6478 = vmatprep.subr.mxu0 0.0
        %6479 = vmatpush1.msra.mxu0 0.0
        %6480 = vmatprep.subr.mxu0 0.0
        %6481 = vmatpush1.msra.mxu0 0.0
        %6482 = vmatprep.subr.mxu0 0.0
        %6483 = vmatpush1.msra.mxu0 0.0
        %6484 = vmatprep.subr.mxu0 0.0
        %6485 = vmatpush1.msra.mxu0 0.0
        %6486 = vmatprep.subr.mxu0 0.0
        %6487 = vmatpush1.msra.mxu0 0.0
        %6488 = vmatprep.subr.mxu0 0.0
        %6489 = vmatpush1.msra.mxu0 0.0
        %6490 = vmatprep.subr.mxu0 0.0
        %6491 = vmatpush1.msra.mxu0 0.0
        %6492 = vmatprep.subr.mxu0 0.0
        %6493 = vmatpush1.msra.mxu0 0.0
        %6494 = vmatprep.subr.mxu0 0.0
        %6495 = vmatpush1.msra.mxu0 0.0
        %6496 = vmatprep.subr.mxu0 0.0
        %6497 = vmatpush1.msra.mxu0 0.0
        %6498 = vmatprep.subr.mxu0 0.0
        %6499 = vmatpush1.msra.mxu0 0.0
        %6500 = vmatprep.subr.mxu0 0.0
        %6501 = vmatpush1.msra.mxu0 0.0
        %6502 = vmatprep.subr.mxu0 0.0
        %6503 = vmatpush1.msra.mxu0 0.0
        %6504 = vmatprep.subr.mxu0 0.0
        %6505 = vmatpush1.msra.mxu0 0.0
        %6506 = vmatprep.subr.mxu0 0.0
        %6507 = vmatpush1.msra.mxu0 0.0
        %6508 = vmatprep.subr.mxu0 0.0
        %6509 = vmatpush1.msra.mxu0 0.0
        %6510 = vmatprep.subr.mxu0 0.0
        %6511 = vmatpush1.msra.mxu0 0.0
        %6512 = vmatprep.subr.mxu0 0.0
        %6513 = vmatpush1.msra.mxu0 0.0
        %6514 = vmatprep.subr.mxu0 0.0
        %6515 = vmatpush1.msra.mxu0 0.0
        %6516 = vmatprep.subr.mxu0 0.0
        %6517 = vmatpush1.msra.mxu0 0.0
        %6518 = vmatprep.subr.mxu0 0.0
        %6519 = vmatpush1.msra.mxu0 0.0
        %6520 = vmatprep.subr.mxu0 0.0
        %6521 = vmatpush1.msra.mxu0 0.0
        %6522 = vmatprep.subr.mxu0 0.0
        %6523 = vmatpush1.msra.mxu0 0.0
        %6524 = vmatprep.subr.mxu0 0.0
        %6525 = vmatpush1.msra.mxu0 0.0
        %6526 = vmatprep.subr.mxu0 0.0
        %6527 = vmatpush1.msra.mxu0 0.0
        %6528 = vmatprep.subr.mxu0 0.0
        %6529 = vmatpush1.msra.mxu0 0.0
        %6530 = vmatprep.subr.mxu0 0.0
        %6531 = vmatpush1.msra.mxu0 0.0
        %6532 = vmatprep.mubr.f32.mxu0 0.0
        %v6533 = vand.u32 %v3528, 4294901760
        %v6534 = vsub.f32 %v3528, %v6533
        %v6535 = vand.u32 %v6534, 4294901760
        %v6536 = vsub.f32 %v6534, %v6535
        %v6537 = vand.u32 %v6536, 4294901760
        %6538 = vmatmul.mubr.f32.gmra.mrb[0].mxu0 %v6537
        %v6539 = vpop.f32.mrb[0].mxu0
        %v6540 = vadd.f32 0.0, %v6539
        %v6541 = vpop.f32.mrb[0].mxu0
        %6542 = vmatprep.mubr.f32.mxu0 0.0
        %v6543 = vand.u32 %v3531, 4294901760
        %v6544 = vsub.f32 %v3531, %v6543
        %v6545 = vand.u32 %v6544, 4294901760
        %v6546 = vsub.f32 %v6544, %v6545
        %v6547 = vand.u32 %v6546, 4294901760
        %6548 = vmatmul.mubr.f32.gmra.mrb[0].mxu0 %v6547
        %v6549 = vpop.f32.mrb[0].mxu0
        %v6550 = vadd.f32 0.0, %v6549
        %v6551 = vpop.f32.mrb[0].mxu0
        %6552 = vdwg.mxu0
        %6553 = vmatprep.subr.mxu0 0.0
        %v6554 = vand.u32 %v3517, 4294901760
        %v6555 = vsub.f32 %v3517, %v6554
        %v6556 = vand.u32 %v6555, 4294901760
        %v6557 = vsub.f32 %v6555, %v6556
        %v6558 = vand.u32 %v6557, 4294901760
        %6559 = vmatpush1.msra.mxu0 %v6558
        %6560 = vmatprep.subr.mxu0 0.0
        %6561 = vmatpush1.msra.mxu0 0.0
        %6562 = vmatprep.subr.mxu0 0.0
        %6563 = vmatpush1.msra.mxu0 0.0
        %6564 = vmatprep.subr.mxu0 0.0
        %6565 = vmatpush1.msra.mxu0 0.0
        %6566 = vmatprep.subr.mxu0 0.0
        %6567 = vmatpush1.msra.mxu0 0.0
        %6568 = vmatprep.subr.mxu0 0.0
        %6569 = vmatpush1.msra.mxu0 0.0
        %6570 = vmatprep.subr.mxu0 0.0
        %6571 = vmatpush1.msra.mxu0 0.0
        %6572 = vmatprep.subr.mxu0 0.0
        %6573 = vmatpush1.msra.mxu0 0.0
        %6574 = vmatprep.subr.mxu0 0.0
        %6575 = vmatpush1.msra.mxu0 0.0
        %6576 = vmatprep.subr.mxu0 0.0
        %6577 = vmatpush1.msra.mxu0 0.0
        %6578 = vmatprep.subr.mxu0 0.0
        %6579 = vmatpush1.msra.mxu0 0.0
        %6580 = vmatprep.subr.mxu0 0.0
        %6581 = vmatpush1.msra.mxu0 0.0
        %6582 = vmatprep.subr.mxu0 0.0
        %6583 = vmatpush1.msra.mxu0 0.0
        %6584 = vmatprep.subr.mxu0 0.0
        %6585 = vmatpush1.msra.mxu0 0.0
        %6586 = vmatprep.subr.mxu0 0.0
        %6587 = vmatpush1.msra.mxu0 0.0
        %6588 = vmatprep.subr.mxu0 0.0
        %6589 = vmatpush1.msra.mxu0 0.0
        %6590 = vmatprep.subr.mxu0 0.0
        %6591 = vmatpush1.msra.mxu0 0.0
        %6592 = vmatprep.subr.mxu0 0.0
        %6593 = vmatpush1.msra.mxu0 0.0
        %6594 = vmatprep.subr.mxu0 0.0
        %6595 = vmatpush1.msra.mxu0 0.0
        %6596 = vmatprep.subr.mxu0 0.0
        %6597 = vmatpush1.msra.mxu0 0.0
        %6598 = vmatprep.subr.mxu0 0.0
        %6599 = vmatpush1.msra.mxu0 0.0
        %6600 = vmatprep.subr.mxu0 0.0
        %6601 = vmatpush1.msra.mxu0 0.0
        %6602 = vmatprep.subr.mxu0 0.0
        %6603 = vmatpush1.msra.mxu0 0.0
        %6604 = vmatprep.subr.mxu0 0.0
        %6605 = vmatpush1.msra.mxu0 0.0
        %6606 = vmatprep.subr.mxu0 0.0
        %6607 = vmatpush1.msra.mxu0 0.0
        %6608 = vmatprep.subr.mxu0 0.0
        %6609 = vmatpush1.msra.mxu0 0.0
        %6610 = vmatprep.subr.mxu0 0.0
        %6611 = vmatpush1.msra.mxu0 0.0
        %6612 = vmatprep.subr.mxu0 0.0
        %6613 = vmatpush1.msra.mxu0 0.0
        %6614 = vmatprep.subr.mxu0 0.0
        %6615 = vmatpush1.msra.mxu0 0.0
        %6616 = vmatprep.subr.mxu0 0.0
        %6617 = vmatpush1.msra.mxu0 0.0
        %6618 = vmatprep.subr.mxu0 0.0
        %6619 = vmatpush1.msra.mxu0 0.0
        %6620 = vmatprep.subr.mxu0 0.0
        %6621 = vmatpush1.msra.mxu0 0.0
        %6622 = vmatprep.mubr.f32.mxu0 0.0
        %v6623 = vand.u32 %v3528, 4294901760
        %6624 = vmatmul.mubr.f32.gmra.mrb[0].mxu0 %v6623
        %v6625 = vpop.f32.mrb[0].mxu0
        %v6626 = vadd.f32 %v6540, %v6625
        %v6627 = vpop.f32.mrb[0].mxu0
        %6628 = vmatprep.mubr.f32.mxu0 0.0
        %v6629 = vand.u32 %v3531, 4294901760
        %6630 = vmatmul.mubr.f32.gmra.mrb[0].mxu0 %v6629
        %v6631 = vpop.f32.mrb[0].mxu0
        %v6632 = vadd.f32 %v6550, %v6631
        %v6633 = vpop.f32.mrb[0].mxu0
        %6634 = vdwg.mxu0
        %6635 = vmatprep.subr.mxu0 0.0
        %v6636 = vand.u32 %v3517, 4294901760
        %v6637 = vsub.f32 %v3517, %v6636
        %6638 = vmatpush1.msra.mxu0 %v6637
        %6639 = vmatprep.subr.mxu0 0.0
        %6640 = vmatpush1.msra.mxu0 0.0
        %6641 = vmatprep.subr.mxu0 0.0
        %6642 = vmatpush1.msra.mxu0 0.0
        %6643 = vmatprep.subr.mxu0 0.0
        %6644 = vmatpush1.msra.mxu0 0.0
        %6645 = vmatprep.subr.mxu0 0.0
        %6646 = vmatpush1.msra.mxu0 0.0
        %6647 = vmatprep.subr.mxu0 0.0
        %6648 = vmatpush1.msra.mxu0 0.0
        %6649 = vmatprep.subr.mxu0 0.0
        %6650 = vmatpush1.msra.mxu0 0.0
        %6651 = vmatprep.subr.mxu0 0.0
        %6652 = vmatpush1.msra.mxu0 0.0
        %6653 = vmatprep.subr.mxu0 0.0
        %6654 = vmatpush1.msra.mxu0 0.0
        %6655 = vmatprep.subr.mxu0 0.0
        %6656 = vmatpush1.msra.mxu0 0.0
        %6657 = vmatprep.subr.mxu0 0.0
        %6658 = vmatpush1.msra.mxu0 0.0
        %6659 = vmatprep.subr.mxu0 0.0
        %6660 = vmatpush1.msra.mxu0 0.0
        %6661 = vmatprep.subr.mxu0 0.0
        %6662 = vmatpush1.msra.mxu0 0.0
        %6663 = vmatprep.subr.mxu0 0.0
        %6664 = vmatpush1.msra.mxu0 0.0
        %6665 = vmatprep.subr.mxu0 0.0
        %6666 = vmatpush1.msra.mxu0 0.0
        %6667 = vmatprep.subr.mxu0 0.0
        %6668 = vmatpush1.msra.mxu0 0.0
        %6669 = vmatprep.subr.mxu0 0.0
        %6670 = vmatpush1.msra.mxu0 0.0
        %6671 = vmatprep.subr.mxu0 0.0
        %6672 = vmatpush1.msra.mxu0 0.0
        %6673 = vmatprep.subr.mxu0 0.0
        %6674 = vmatpush1.msra.mxu0 0.0
        %6675 = vmatprep.subr.mxu0 0.0
        %6676 = vmatpush1.msra.mxu0 0.0
        %6677 = vmatprep.subr.mxu0 0.0
        %6678 = vmatpush1.msra.mxu0 0.0
        %6679 = vmatprep.subr.mxu0 0.0
        %6680 = vmatpush1.msra.mxu0 0.0
        %6681 = vmatprep.subr.mxu0 0.0
        %6682 = vmatpush1.msra.mxu0 0.0
        %6683 = vmatprep.subr.mxu0 0.0
        %6684 = vmatpush1.msra.mxu0 0.0
        %6685 = vmatprep.subr.mxu0 0.0
        %6686 = vmatpush1.msra.mxu0 0.0
        %6687 = vmatprep.subr.mxu0 0.0
        %6688 = vmatpush1.msra.mxu0 0.0
        %6689 = vmatprep.subr.mxu0 0.0
        %6690 = vmatpush1.msra.mxu0 0.0
        %6691 = vmatprep.subr.mxu0 0.0
        %6692 = vmatpush1.msra.mxu0 0.0
        %6693 = vmatprep.subr.mxu0 0.0
        %6694 = vmatpush1.msra.mxu0 0.0
        %6695 = vmatprep.subr.mxu0 0.0
        %6696 = vmatpush1.msra.mxu0 0.0
        %6697 = vmatprep.subr.mxu0 0.0
        %6698 = vmatpush1.msra.mxu0 0.0
        %6699 = vmatprep.subr.mxu0 0.0
        %6700 = vmatpush1.msra.mxu0 0.0
        %6701 = vmatprep.mubr.f32.mxu0 0.0
        %v6702 = vand.u32 %v3528, 4294901760
        %v6703 = vsub.f32 %v3528, %v6702
        %6704 = vmatmul.mubr.f32.gmra.mrb[0].mxu0 %v6703
        %v6705 = vpop.f32.mrb[0].mxu0
        %v6706 = vadd.f32 %v6626, %v6705
        %v6707 = vpop.f32.mrb[0].mxu0
        %6708 = vmatprep.mubr.f32.mxu0 0.0
        %v6709 = vand.u32 %v3531, 4294901760
        %v6710 = vsub.f32 %v3531, %v6709
        %6711 = vmatmul.mubr.f32.gmra.mrb[0].mxu0 %v6710
        %v6712 = vpop.f32.mrb[0].mxu0
        %v6713 = vadd.f32 %v6632, %v6712
        %v6714 = vpop.f32.mrb[0].mxu0
        %6715 = vdwg.mxu0
        %6716 = vmatprep.subr.mxu0 0.0
        %v6717 = vand.u32 %v3517, 4294901760
        %6718 = vmatpush1.msra.mxu0 %v6717
        %6719 = vmatprep.subr.mxu0 0.0
        %6720 = vmatpush1.msra.mxu0 0.0
        %6721 = vmatprep.subr.mxu0 0.0
        %6722 = vmatpush1.msra.mxu0 0.0
        %6723 = vmatprep.subr.mxu0 0.0
        %6724 = vmatpush1.msra.mxu0 0.0
        %6725 = vmatprep.subr.mxu0 0.0
        %6726 = vmatpush1.msra.mxu0 0.0
        %6727 = vmatprep.subr.mxu0 0.0
        %6728 = vmatpush1.msra.mxu0 0.0
        %6729 = vmatprep.subr.mxu0 0.0
        %6730 = vmatpush1.msra.mxu0 0.0
        %6731 = vmatprep.subr.mxu0 0.0
        %6732 = vmatpush1.msra.mxu0 0.0
        %6733 = vmatprep.subr.mxu0 0.0
        %6734 = vmatpush1.msra.mxu0 0.0
        %6735 = vmatprep.subr.mxu0 0.0
        %6736 = vmatpush1.msra.mxu0 0.0
        %6737 = vmatprep.subr.mxu0 0.0
        %6738 = vmatpush1.msra.mxu0 0.0
        %6739 = vmatprep.subr.mxu0 0.0
        %6740 = vmatpush1.msra.mxu0 0.0
        %6741 = vmatprep.subr.mxu0 0.0
        %6742 = vmatpush1.msra.mxu0 0.0
        %6743 = vmatprep.subr.mxu0 0.0
        %6744 = vmatpush1.msra.mxu0 0.0
        %6745 = vmatprep.subr.mxu0 0.0
        %6746 = vmatpush1.msra.mxu0 0.0
        %6747 = vmatprep.subr.mxu0 0.0
        %6748 = vmatpush1.msra.mxu0 0.0
        %6749 = vmatprep.subr.mxu0 0.0
        %6750 = vmatpush1.msra.mxu0 0.0
        %6751 = vmatprep.subr.mxu0 0.0
        %6752 = vmatpush1.msra.mxu0 0.0
        %6753 = vmatprep.subr.mxu0 0.0
        %6754 = vmatpush1.msra.mxu0 0.0
        %6755 = vmatprep.subr.mxu0 0.0
        %6756 = vmatpush1.msra.mxu0 0.0
        %6757 = vmatprep.subr.mxu0 0.0
        %6758 = vmatpush1.msra.mxu0 0.0
        %6759 = vmatprep.subr.mxu0 0.0
        %6760 = vmatpush1.msra.mxu0 0.0
        %6761 = vmatprep.subr.mxu0 0.0
        %6762 = vmatpush1.msra.mxu0 0.0
        %6763 = vmatprep.subr.mxu0 0.0
        %6764 = vmatpush1.msra.mxu0 0.0
        %6765 = vmatprep.subr.mxu0 0.0
        %6766 = vmatpush1.msra.mxu0 0.0
        %6767 = vmatprep.subr.mxu0 0.0
        %6768 = vmatpush1.msra.mxu0 0.0
        %6769 = vmatprep.subr.mxu0 0.0
        %6770 = vmatpush1.msra.mxu0 0.0
        %6771 = vmatprep.subr.mxu0 0.0
        %6772 = vmatpush1.msra.mxu0 0.0
        %6773 = vmatprep.subr.mxu0 0.0
        %6774 = vmatpush1.msra.mxu0 0.0
        %6775 = vmatprep.subr.mxu0 0.0
        %6776 = vmatpush1.msra.mxu0 0.0
        %6777 = vmatprep.subr.mxu0 0.0
        %6778 = vmatpush1.msra.mxu0 0.0
        %6779 = vmatprep.subr.mxu0 0.0
        %6780 = vmatpush1.msra.mxu0 0.0
        %6781 = vmatprep.mubr.f32.mxu0 0.0
        %v6782 = vand.u32 %v3528, 4294901760
        %v6783 = vsub.f32 %v3528, %v6782
        %v6784 = vand.u32 %v6783, 4294901760
        %6785 = vmatmul.mubr.f32.gmra.mrb[0].mxu0 %v6784
        %v6786 = vpop.f32.mrb[0].mxu0
        %v6787 = vadd.f32 %v6706, %v6786
        %v6788 = vpop.f32.mrb[0].mxu0
        %6789 = vmatprep.mubr.f32.mxu0 0.0
        %v6790 = vand.u32 %v3531, 4294901760
        %v6791 = vsub.f32 %v3531, %v6790
        %v6792 = vand.u32 %v6791, 4294901760
        %6793 = vmatmul.mubr.f32.gmra.mrb[0].mxu0 %v6792
        %v6794 = vpop.f32.mrb[0].mxu0
        %v6795 = vadd.f32 %v6713, %v6794
        %v6796 = vpop.f32.mrb[0].mxu0
        %6797 = vdwg.mxu0
        %6798 = vmatprep.subr.mxu0 0.0
        %v6799 = vand.u32 %v3517, 4294901760
        %v6800 = vsub.f32 %v3517, %v6799
        %v6801 = vand.u32 %v6800, 4294901760
        %6802 = vmatpush1.msra.mxu0 %v6801
        %6803 = vmatprep.subr.mxu0 0.0
        %6804 = vmatpush1.msra.mxu0 0.0
        %6805 = vmatprep.subr.mxu0 0.0
        %6806 = vmatpush1.msra.mxu0 0.0
        %6807 = vmatprep.subr.mxu0 0.0
        %6808 = vmatpush1.msra.mxu0 0.0
        %6809 = vmatprep.subr.mxu0 0.0
        %6810 = vmatpush1.msra.mxu0 0.0
        %6811 = vmatprep.subr.mxu0 0.0
        %6812 = vmatpush1.msra.mxu0 0.0
        %6813 = vmatprep.subr.mxu0 0.0
        %6814 = vmatpush1.msra.mxu0 0.0
        %6815 = vmatprep.subr.mxu0 0.0
        %6816 = vmatpush1.msra.mxu0 0.0
        %6817 = vmatprep.subr.mxu0 0.0
        %6818 = vmatpush1.msra.mxu0 0.0
        %6819 = vmatprep.subr.mxu0 0.0
        %6820 = vmatpush1.msra.mxu0 0.0
        %6821 = vmatprep.subr.mxu0 0.0
        %6822 = vmatpush1.msra.mxu0 0.0
        %6823 = vmatprep.subr.mxu0 0.0
        %6824 = vmatpush1.msra.mxu0 0.0
        %6825 = vmatprep.subr.mxu0 0.0
        %6826 = vmatpush1.msra.mxu0 0.0
        %6827 = vmatprep.subr.mxu0 0.0
        %6828 = vmatpush1.msra.mxu0 0.0
        %6829 = vmatprep.subr.mxu0 0.0
        %6830 = vmatpush1.msra.mxu0 0.0
        %6831 = vmatprep.subr.mxu0 0.0
        %6832 = vmatpush1.msra.mxu0 0.0
        %6833 = vmatprep.subr.mxu0 0.0
        %6834 = vmatpush1.msra.mxu0 0.0
        %6835 = vmatprep.subr.mxu0 0.0
        %6836 = vmatpush1.msra.mxu0 0.0
        %6837 = vmatprep.subr.mxu0 0.0
        %6838 = vmatpush1.msra.mxu0 0.0
        %6839 = vmatprep.subr.mxu0 0.0
        %6840 = vmatpush1.msra.mxu0 0.0
        %6841 = vmatprep.subr.mxu0 0.0
        %6842 = vmatpush1.msra.mxu0 0.0
        %6843 = vmatprep.subr.mxu0 0.0
        %6844 = vmatpush1.msra.mxu0 0.0
        %6845 = vmatprep.subr.mxu0 0.0
        %6846 = vmatpush1.msra.mxu0 0.0
        %6847 = vmatprep.subr.mxu0 0.0
        %6848 = vmatpush1.msra.mxu0 0.0
        %6849 = vmatprep.subr.mxu0 0.0
        %6850 = vmatpush1.msra.mxu0 0.0
        %6851 = vmatprep.subr.mxu0 0.0
        %6852 = vmatpush1.msra.mxu0 0.0
        %6853 = vmatprep.subr.mxu0 0.0
        %6854 = vmatpush1.msra.mxu0 0.0
        %6855 = vmatprep.subr.mxu0 0.0
        %6856 = vmatpush1.msra.mxu0 0.0
        %6857 = vmatprep.subr.mxu0 0.0
        %6858 = vmatpush1.msra.mxu0 0.0
        %6859 = vmatprep.subr.mxu0 0.0
        %6860 = vmatpush1.msra.mxu0 0.0
        %6861 = vmatprep.subr.mxu0 0.0
        %6862 = vmatpush1.msra.mxu0 0.0
        %6863 = vmatprep.subr.mxu0 0.0
        %6864 = vmatpush1.msra.mxu0 0.0
        %6865 = vmatprep.mubr.f32.mxu0 0.0
        %v6866 = vand.u32 %v3528, 4294901760
        %6867 = vmatmul.mubr.f32.gmra.mrb[0].mxu0 %v6866
        %v6868 = vpop.f32.mrb[0].mxu0
        %v6869 = vadd.f32 %v6787, %v6868
        %v6870 = vpop.f32.mrb[0].mxu0
        %6871 = vmatprep.mubr.f32.mxu0 0.0
        %v6872 = vand.u32 %v3531, 4294901760
        %6873 = vmatmul.mubr.f32.gmra.mrb[0].mxu0 %v6872
        %v6874 = vpop.f32.mrb[0].mxu0
        %v6875 = vadd.f32 %v6795, %v6874
        %v6876 = vpop.f32.mrb[0].mxu0
        %6877 = vdwg.mxu0
        %6878 = vmatprep.subr.mxu0 0.0
        %v6879 = vand.u32 %v3517, 4294901760
        %6880 = vmatpush1.msra.mxu0 %v6879
        %6881 = vmatprep.subr.mxu0 0.0
        %6882 = vmatpush1.msra.mxu0 0.0
        %6883 = vmatprep.subr.mxu0 0.0
        %6884 = vmatpush1.msra.mxu0 0.0
        %6885 = vmatprep.subr.mxu0 0.0
        %6886 = vmatpush1.msra.mxu0 0.0
        %6887 = vmatprep.subr.mxu0 0.0
        %6888 = vmatpush1.msra.mxu0 0.0
        %6889 = vmatprep.subr.mxu0 0.0
        %6890 = vmatpush1.msra.mxu0 0.0
        %6891 = vmatprep.subr.mxu0 0.0
        %6892 = vmatpush1.msra.mxu0 0.0
        %6893 = vmatprep.subr.mxu0 0.0
        %6894 = vmatpush1.msra.mxu0 0.0
        %6895 = vmatprep.subr.mxu0 0.0
        %6896 = vmatpush1.msra.mxu0 0.0
        %6897 = vmatprep.subr.mxu0 0.0
        %6898 = vmatpush1.msra.mxu0 0.0
        %6899 = vmatprep.subr.mxu0 0.0
        %6900 = vmatpush1.msra.mxu0 0.0
        %6901 = vmatprep.subr.mxu0 0.0
        %6902 = vmatpush1.msra.mxu0 0.0
        %6903 = vmatprep.subr.mxu0 0.0
        %6904 = vmatpush1.msra.mxu0 0.0
        %6905 = vmatprep.subr.mxu0 0.0
        %6906 = vmatpush1.msra.mxu0 0.0
        %6907 = vmatprep.subr.mxu0 0.0
        %6908 = vmatpush1.msra.mxu0 0.0
        %6909 = vmatprep.subr.mxu0 0.0
        %6910 = vmatpush1.msra.mxu0 0.0
        %6911 = vmatprep.subr.mxu0 0.0
        %6912 = vmatpush1.msra.mxu0 0.0
        %6913 = vmatprep.subr.mxu0 0.0
        %6914 = vmatpush1.msra.mxu0 0.0
        %6915 = vmatprep.subr.mxu0 0.0
        %6916 = vmatpush1.msra.mxu0 0.0
        %6917 = vmatprep.subr.mxu0 0.0
        %6918 = vmatpush1.msra.mxu0 0.0
        %6919 = vmatprep.subr.mxu0 0.0
        %6920 = vmatpush1.msra.mxu0 0.0
        %6921 = vmatprep.subr.mxu0 0.0
        %6922 = vmatpush1.msra.mxu0 0.0
        %6923 = vmatprep.subr.mxu0 0.0
        %6924 = vmatpush1.msra.mxu0 0.0
        %6925 = vmatprep.subr.mxu0 0.0
        %6926 = vmatpush1.msra.mxu0 0.0
        %6927 = vmatprep.subr.mxu0 0.0
        %6928 = vmatpush1.msra.mxu0 0.0
        %6929 = vmatprep.subr.mxu0 0.0
        %6930 = vmatpush1.msra.mxu0 0.0
        %6931 = vmatprep.subr.mxu0 0.0
        %6932 = vmatpush1.msra.mxu0 0.0
        %6933 = vmatprep.subr.mxu0 0.0
        %6934 = vmatpush1.msra.mxu0 0.0
        %6935 = vmatprep.subr.mxu0 0.0
        %6936 = vmatpush1.msra.mxu0 0.0
        %6937 = vmatprep.subr.mxu0 0.0
        %6938 = vmatpush1.msra.mxu0 0.0
        %6939 = vmatprep.subr.mxu0 0.0
        %6940 = vmatpush1.msra.mxu0 0.0
        %6941 = vmatprep.subr.mxu0 0.0
        %6942 = vmatpush1.msra.mxu0 0.0
        %6943 = vmatprep.mubr.f32.mxu0 0.0
        %v6944 = vand.u32 %v3528, 4294901760
        %6945 = vmatmul.mubr.f32.gmra.mrb[0].mxu0 %v6944
        %v6946 = vpop.f32.mrb[0].mxu0
        %v6947 = vadd.f32 %v6869, %v6946
        %v6948 = vpop.f32.mrb[0].mxu0
        %6949 = vmatprep.mubr.f32.mxu0 0.0
        %v6950 = vand.u32 %v3531, 4294901760
        %6951 = vmatmul.mubr.f32.gmra.mrb[0].mxu0 %v6950
        %v6952 = vpop.f32.mrb[0].mxu0
        %v6953 = vadd.f32 %v6875, %v6952
        %v6954 = vpop.f32.mrb[0].mxu0
        %6955 = vdwg.mxu0
        %6956 = vmatprep.subr.mxu0 0.0
        %v6957 = vand.u32 %v3523, 4294901760
        %6958 = vmatpush1.msra.mxu0 %v6957
        %6959 = vmatprep.subr.mxu0 0.0
        %6960 = vmatpush1.msra.mxu0 0.0
        %6961 = vmatprep.subr.mxu0 0.0
        %6962 = vmatpush1.msra.mxu0 0.0
        %6963 = vmatprep.subr.mxu0 0.0
        %6964 = vmatpush1.msra.mxu0 0.0
        %6965 = vmatprep.subr.mxu0 0.0
        %6966 = vmatpush1.msra.mxu0 0.0
        %6967 = vmatprep.subr.mxu0 0.0
        %6968 = vmatpush1.msra.mxu0 0.0
        %6969 = vmatprep.subr.mxu0 0.0
        %6970 = vmatpush1.msra.mxu0 0.0
        %6971 = vmatprep.subr.mxu0 0.0
        %6972 = vmatpush1.msra.mxu0 0.0
        %6973 = vmatprep.subr.mxu0 0.0
        %6974 = vmatpush1.msra.mxu0 0.0
        %6975 = vmatprep.subr.mxu0 0.0
        %6976 = vmatpush1.msra.mxu0 0.0
        %6977 = vmatprep.subr.mxu0 0.0
        %6978 = vmatpush1.msra.mxu0 0.0
        %6979 = vmatprep.subr.mxu0 0.0
        %6980 = vmatpush1.msra.mxu0 0.0
        %6981 = vmatprep.subr.mxu0 0.0
        %6982 = vmatpush1.msra.mxu0 0.0
        %6983 = vmatprep.subr.mxu0 0.0
        %6984 = vmatpush1.msra.mxu0 0.0
        %6985 = vmatprep.subr.mxu0 0.0
        %6986 = vmatpush1.msra.mxu0 0.0
        %6987 = vmatprep.subr.mxu0 0.0
        %6988 = vmatpush1.msra.mxu0 0.0
        %6989 = vmatprep.subr.mxu0 0.0
        %6990 = vmatpush1.msra.mxu0 0.0
        %6991 = vmatprep.subr.mxu0 0.0
        %6992 = vmatpush1.msra.mxu0 0.0
        %6993 = vmatprep.subr.mxu0 0.0
        %6994 = vmatpush1.msra.mxu0 0.0
        %6995 = vmatprep.subr.mxu0 0.0
        %6996 = vmatpush1.msra.mxu0 0.0
        %6997 = vmatprep.subr.mxu0 0.0
        %6998 = vmatpush1.msra.mxu0 0.0
        %6999 = vmatprep.subr.mxu0 0.0
        %7000 = vmatpush1.msra.mxu0 0.0
        %7001 = vmatprep.subr.mxu0 0.0
        %7002 = vmatpush1.msra.mxu0 0.0
        %7003 = vmatprep.subr.mxu0 0.0
        %7004 = vmatpush1.msra.mxu0 0.0
        %7005 = vmatprep.subr.mxu0 0.0
        %7006 = vmatpush1.msra.mxu0 0.0
        %7007 = vmatprep.subr.mxu0 0.0
        %7008 = vmatpush1.msra.mxu0 0.0
        %7009 = vmatprep.subr.mxu0 0.0
        %7010 = vmatpush1.msra.mxu0 0.0
        %7011 = vmatprep.subr.mxu0 0.0
        %7012 = vmatpush1.msra.mxu0 0.0
        %7013 = vmatprep.subr.mxu0 0.0
        %7014 = vmatpush1.msra.mxu0 0.0
        %7015 = vmatprep.subr.mxu0 0.0
        %7016 = vmatpush1.msra.mxu0 0.0
        %7017 = vmatprep.subr.mxu0 0.0
        %7018 = vmatpush1.msra.mxu0 0.0
        %7019 = vmatprep.subr.mxu0 0.0
        %7020 = vmatpush1.msra.mxu0 0.0
        %7021 = vmatprep.mubr.f32.mxu0 0.0
        %v7022 = vand.u32 %v3528, 4294901760
        %v7023 = vsub.f32 %v3528, %v7022
        %v7024 = vand.u32 %v7023, 4294901760
        %v7025 = vsub.f32 %v7023, %v7024
        %v7026 = vand.u32 %v7025, 4294901760
        %7027 = vmatmul.mubr.f32.gmra.mrb[0].mxu0 %v7026
        %v7028 = vpop.f32.mrb[0].mxu0
        %v7029 = vadd.f32 0.0, %v7028
        %v7030 = vpop.f32.mrb[0].mxu0
        %7031 = vmatprep.mubr.f32.mxu0 0.0
        %v7032 = vand.u32 %v3531, 4294901760
        %v7033 = vsub.f32 %v3531, %v7032
        %v7034 = vand.u32 %v7033, 4294901760
        %v7035 = vsub.f32 %v7033, %v7034
        %v7036 = vand.u32 %v7035, 4294901760
        %7037 = vmatmul.mubr.f32.gmra.mrb[0].mxu0 %v7036
        %v7038 = vpop.f32.mrb[0].mxu0
        %v7039 = vadd.f32 0.0, %v7038
        %v7040 = vpop.f32.mrb[0].mxu0
        %7041 = vdwg.mxu0
        %7042 = vmatprep.subr.mxu0 0.0
        %v7043 = vand.u32 %v3523, 4294901760
        %v7044 = vsub.f32 %v3523, %v7043
        %v7045 = vand.u32 %v7044, 4294901760
        %v7046 = vsub.f32 %v7044, %v7045
        %v7047 = vand.u32 %v7046, 4294901760
        %7048 = vmatpush1.msra.mxu0 %v7047
        %7049 = vmatprep.subr.mxu0 0.0
        %7050 = vmatpush1.msra.mxu0 0.0
        %7051 = vmatprep.subr.mxu0 0.0
        %7052 = vmatpush1.msra.mxu0 0.0
        %7053 = vmatprep.subr.mxu0 0.0
        %7054 = vmatpush1.msra.mxu0 0.0
        %7055 = vmatprep.subr.mxu0 0.0
        %7056 = vmatpush1.msra.mxu0 0.0
        %7057 = vmatprep.subr.mxu0 0.0
        %7058 = vmatpush1.msra.mxu0 0.0
        %7059 = vmatprep.subr.mxu0 0.0
        %7060 = vmatpush1.msra.mxu0 0.0
        %7061 = vmatprep.subr.mxu0 0.0
        %7062 = vmatpush1.msra.mxu0 0.0
        %7063 = vmatprep.subr.mxu0 0.0
        %7064 = vmatpush1.msra.mxu0 0.0
        %7065 = vmatprep.subr.mxu0 0.0
        %7066 = vmatpush1.msra.mxu0 0.0
        %7067 = vmatprep.subr.mxu0 0.0
        %7068 = vmatpush1.msra.mxu0 0.0
        %7069 = vmatprep.subr.mxu0 0.0
        %7070 = vmatpush1.msra.mxu0 0.0
        %7071 = vmatprep.subr.mxu0 0.0
        %7072 = vmatpush1.msra.mxu0 0.0
        %7073 = vmatprep.subr.mxu0 0.0
        %7074 = vmatpush1.msra.mxu0 0.0
        %7075 = vmatprep.subr.mxu0 0.0
        %7076 = vmatpush1.msra.mxu0 0.0
        %7077 = vmatprep.subr.mxu0 0.0
        %7078 = vmatpush1.msra.mxu0 0.0
        %7079 = vmatprep.subr.mxu0 0.0
        %7080 = vmatpush1.msra.mxu0 0.0
        %7081 = vmatprep.subr.mxu0 0.0
        %7082 = vmatpush1.msra.mxu0 0.0
        %7083 = vmatprep.subr.mxu0 0.0
        %7084 = vmatpush1.msra.mxu0 0.0
        %7085 = vmatprep.subr.mxu0 0.0
        %7086 = vmatpush1.msra.mxu0 0.0
        %7087 = vmatprep.subr.mxu0 0.0
        %7088 = vmatpush1.msra.mxu0 0.0
        %7089 = vmatprep.subr.mxu0 0.0
        %7090 = vmatpush1.msra.mxu0 0.0
        %7091 = vmatprep.subr.mxu0 0.0
        %7092 = vmatpush1.msra.mxu0 0.0
        %7093 = vmatprep.subr.mxu0 0.0
        %7094 = vmatpush1.msra.mxu0 0.0
        %7095 = vmatprep.subr.mxu0 0.0
        %7096 = vmatpush1.msra.mxu0 0.0
        %7097 = vmatprep.subr.mxu0 0.0
        %7098 = vmatpush1.msra.mxu0 0.0
        %7099 = vmatprep.subr.mxu0 0.0
        %7100 = vmatpush1.msra.mxu0 0.0
        %7101 = vmatprep.subr.mxu0 0.0
        %7102 = vmatpush1.msra.mxu0 0.0
        %7103 = vmatprep.subr.mxu0 0.0
        %7104 = vmatpush1.msra.mxu0 0.0
        %7105 = vmatprep.subr.mxu0 0.0
        %7106 = vmatpush1.msra.mxu0 0.0
        %7107 = vmatprep.subr.mxu0 0.0
        %7108 = vmatpush1.msra.mxu0 0.0
        %7109 = vmatprep.subr.mxu0 0.0
        %7110 = vmatpush1.msra.mxu0 0.0
        %7111 = vmatprep.mubr.f32.mxu0 0.0
        %v7112 = vand.u32 %v3528, 4294901760
        %7113 = vmatmul.mubr.f32.gmra.mrb[0].mxu0 %v7112
        %v7114 = vpop.f32.mrb[0].mxu0
        %v7115 = vadd.f32 %v7029, %v7114
        %v7116 = vpop.f32.mrb[0].mxu0
        %7117 = vmatprep.mubr.f32.mxu0 0.0
        %v7118 = vand.u32 %v3531, 4294901760
        %7119 = vmatmul.mubr.f32.gmra.mrb[0].mxu0 %v7118
        %v7120 = vpop.f32.mrb[0].mxu0
        %v7121 = vadd.f32 %v7039, %v7120
        %v7122 = vpop.f32.mrb[0].mxu0
        %7123 = vdwg.mxu0
        %7124 = vmatprep.subr.mxu0 0.0
        %v7125 = vand.u32 %v3523, 4294901760
        %v7126 = vsub.f32 %v3523, %v7125
        %7127 = vmatpush1.msra.mxu0 %v7126
        %7128 = vmatprep.subr.mxu0 0.0
        %7129 = vmatpush1.msra.mxu0 0.0
        %7130 = vmatprep.subr.mxu0 0.0
        %7131 = vmatpush1.msra.mxu0 0.0
        %7132 = vmatprep.subr.mxu0 0.0
        %7133 = vmatpush1.msra.mxu0 0.0
        %7134 = vmatprep.subr.mxu0 0.0
        %7135 = vmatpush1.msra.mxu0 0.0
        %7136 = vmatprep.subr.mxu0 0.0
        %7137 = vmatpush1.msra.mxu0 0.0
        %7138 = vmatprep.subr.mxu0 0.0
        %7139 = vmatpush1.msra.mxu0 0.0
        %7140 = vmatprep.subr.mxu0 0.0
        %7141 = vmatpush1.msra.mxu0 0.0
        %7142 = vmatprep.subr.mxu0 0.0
        %7143 = vmatpush1.msra.mxu0 0.0
        %7144 = vmatprep.subr.mxu0 0.0
        %7145 = vmatpush1.msra.mxu0 0.0
        %7146 = vmatprep.subr.mxu0 0.0
        %7147 = vmatpush1.msra.mxu0 0.0
        %7148 = vmatprep.subr.mxu0 0.0
        %7149 = vmatpush1.msra.mxu0 0.0
        %7150 = vmatprep.subr.mxu0 0.0
        %7151 = vmatpush1.msra.mxu0 0.0
        %7152 = vmatprep.subr.mxu0 0.0
        %7153 = vmatpush1.msra.mxu0 0.0
        %7154 = vmatprep.subr.mxu0 0.0
        %7155 = vmatpush1.msra.mxu0 0.0
        %7156 = vmatprep.subr.mxu0 0.0
        %7157 = vmatpush1.msra.mxu0 0.0
        %7158 = vmatprep.subr.mxu0 0.0
        %7159 = vmatpush1.msra.mxu0 0.0
        %7160 = vmatprep.subr.mxu0 0.0
        %7161 = vmatpush1.msra.mxu0 0.0
        %7162 = vmatprep.subr.mxu0 0.0
        %7163 = vmatpush1.msra.mxu0 0.0
        %7164 = vmatprep.subr.mxu0 0.0
        %7165 = vmatpush1.msra.mxu0 0.0
        %7166 = vmatprep.subr.mxu0 0.0
        %7167 = vmatpush1.msra.mxu0 0.0
        %7168 = vmatprep.subr.mxu0 0.0
        %7169 = vmatpush1.msra.mxu0 0.0
        %7170 = vmatprep.subr.mxu0 0.0
        %7171 = vmatpush1.msra.mxu0 0.0
        %7172 = vmatprep.subr.mxu0 0.0
        %7173 = vmatpush1.msra.mxu0 0.0
        %7174 = vmatprep.subr.mxu0 0.0
        %7175 = vmatpush1.msra.mxu0 0.0
        %7176 = vmatprep.subr.mxu0 0.0
        %7177 = vmatpush1.msra.mxu0 0.0
        %7178 = vmatprep.subr.mxu0 0.0
        %7179 = vmatpush1.msra.mxu0 0.0
        %7180 = vmatprep.subr.mxu0 0.0
        %7181 = vmatpush1.msra.mxu0 0.0
        %7182 = vmatprep.subr.mxu0 0.0
        %7183 = vmatpush1.msra.mxu0 0.0
        %7184 = vmatprep.subr.mxu0 0.0
        %7185 = vmatpush1.msra.mxu0 0.0
        %7186 = vmatprep.subr.mxu0 0.0
        %7187 = vmatpush1.msra.mxu0 0.0
        %7188 = vmatprep.subr.mxu0 0.0
        %7189 = vmatpush1.msra.mxu0 0.0
        %7190 = vmatprep.mubr.f32.mxu0 0.0
        %v7191 = vand.u32 %v3528, 4294901760
        %v7192 = vsub.f32 %v3528, %v7191
        %7193 = vmatmul.mubr.f32.gmra.mrb[0].mxu0 %v7192
        %v7194 = vpop.f32.mrb[0].mxu0
        %v7195 = vadd.f32 %v7115, %v7194
        %v7196 = vpop.f32.mrb[0].mxu0
        %7197 = vmatprep.mubr.f32.mxu0 0.0
        %v7198 = vand.u32 %v3531, 4294901760
        %v7199 = vsub.f32 %v3531, %v7198
        %7200 = vmatmul.mubr.f32.gmra.mrb[0].mxu0 %v7199
        %v7201 = vpop.f32.mrb[0].mxu0
        %v7202 = vadd.f32 %v7121, %v7201
        %v7203 = vpop.f32.mrb[0].mxu0
        %7204 = vdwg.mxu0
        %7205 = vmatprep.subr.mxu0 0.0
        %v7206 = vand.u32 %v3523, 4294901760
        %7207 = vmatpush1.msra.mxu0 %v7206
        %7208 = vmatprep.subr.mxu0 0.0
        %7209 = vmatpush1.msra.mxu0 0.0
        %7210 = vmatprep.subr.mxu0 0.0
        %7211 = vmatpush1.msra.mxu0 0.0
        %7212 = vmatprep.subr.mxu0 0.0
        %7213 = vmatpush1.msra.mxu0 0.0
        %7214 = vmatprep.subr.mxu0 0.0
        %7215 = vmatpush1.msra.mxu0 0.0
        %7216 = vmatprep.subr.mxu0 0.0
        %7217 = vmatpush1.msra.mxu0 0.0
        %7218 = vmatprep.subr.mxu0 0.0
        %7219 = vmatpush1.msra.mxu0 0.0
        %7220 = vmatprep.subr.mxu0 0.0
        %7221 = vmatpush1.msra.mxu0 0.0
        %7222 = vmatprep.subr.mxu0 0.0
        %7223 = vmatpush1.msra.mxu0 0.0
        %7224 = vmatprep.subr.mxu0 0.0
        %7225 = vmatpush1.msra.mxu0 0.0
        %7226 = vmatprep.subr.mxu0 0.0
        %7227 = vmatpush1.msra.mxu0 0.0
        %7228 = vmatprep.subr.mxu0 0.0
        %7229 = vmatpush1.msra.mxu0 0.0
        %7230 = vmatprep.subr.mxu0 0.0
        %7231 = vmatpush1.msra.mxu0 0.0
        %7232 = vmatprep.subr.mxu0 0.0
        %7233 = vmatpush1.msra.mxu0 0.0
        %7234 = vmatprep.subr.mxu0 0.0
        %7235 = vmatpush1.msra.mxu0 0.0
        %7236 = vmatprep.subr.mxu0 0.0
        %7237 = vmatpush1.msra.mxu0 0.0
        %7238 = vmatprep.subr.mxu0 0.0
        %7239 = vmatpush1.msra.mxu0 0.0
        %7240 = vmatprep.subr.mxu0 0.0
        %7241 = vmatpush1.msra.mxu0 0.0
        %7242 = vmatprep.subr.mxu0 0.0
        %7243 = vmatpush1.msra.mxu0 0.0
        %7244 = vmatprep.subr.mxu0 0.0
        %7245 = vmatpush1.msra.mxu0 0.0
        %7246 = vmatprep.subr.mxu0 0.0
        %7247 = vmatpush1.msra.mxu0 0.0
        %7248 = vmatprep.subr.mxu0 0.0
        %7249 = vmatpush1.msra.mxu0 0.0
        %7250 = vmatprep.subr.mxu0 0.0
        %7251 = vmatpush1.msra.mxu0 0.0
        %7252 = vmatprep.subr.mxu0 0.0
        %7253 = vmatpush1.msra.mxu0 0.0
        %7254 = vmatprep.subr.mxu0 0.0
        %7255 = vmatpush1.msra.mxu0 0.0
        %7256 = vmatprep.subr.mxu0 0.0
        %7257 = vmatpush1.msra.mxu0 0.0
        %7258 = vmatprep.subr.mxu0 0.0
        %7259 = vmatpush1.msra.mxu0 0.0
        %7260 = vmatprep.subr.mxu0 0.0
        %7261 = vmatpush1.msra.mxu0 0.0
        %7262 = vmatprep.subr.mxu0 0.0
        %7263 = vmatpush1.msra.mxu0 0.0
        %7264 = vmatprep.subr.mxu0 0.0
        %7265 = vmatpush1.msra.mxu0 0.0
        %7266 = vmatprep.subr.mxu0 0.0
        %7267 = vmatpush1.msra.mxu0 0.0
        %7268 = vmatprep.subr.mxu0 0.0
        %7269 = vmatpush1.msra.mxu0 0.0
        %7270 = vmatprep.mubr.f32.mxu0 0.0
        %v7271 = vand.u32 %v3528, 4294901760
        %v7272 = vsub.f32 %v3528, %v7271
        %v7273 = vand.u32 %v7272, 4294901760
        %7274 = vmatmul.mubr.f32.gmra.mrb[0].mxu0 %v7273
        %v7275 = vpop.f32.mrb[0].mxu0
        %v7276 = vadd.f32 %v7195, %v7275
        %v7277 = vpop.f32.mrb[0].mxu0
        %7278 = vmatprep.mubr.f32.mxu0 0.0
        %v7279 = vand.u32 %v3531, 4294901760
        %v7280 = vsub.f32 %v3531, %v7279
        %v7281 = vand.u32 %v7280, 4294901760
        %7282 = vmatmul.mubr.f32.gmra.mrb[0].mxu0 %v7281
        %v7283 = vpop.f32.mrb[0].mxu0
        %v7284 = vadd.f32 %v7202, %v7283
        %v7285 = vpop.f32.mrb[0].mxu0
        %7286 = vdwg.mxu0
        %7287 = vmatprep.subr.mxu0 0.0
        %v7288 = vand.u32 %v3523, 4294901760
        %v7289 = vsub.f32 %v3523, %v7288
        %v7290 = vand.u32 %v7289, 4294901760
        %7291 = vmatpush1.msra.mxu0 %v7290
        %7292 = vmatprep.subr.mxu0 0.0
        %7293 = vmatpush1.msra.mxu0 0.0
        %7294 = vmatprep.subr.mxu0 0.0
        %7295 = vmatpush1.msra.mxu0 0.0
        %7296 = vmatprep.subr.mxu0 0.0
        %7297 = vmatpush1.msra.mxu0 0.0
        %7298 = vmatprep.subr.mxu0 0.0
        %7299 = vmatpush1.msra.mxu0 0.0
        %7300 = vmatprep.subr.mxu0 0.0
        %7301 = vmatpush1.msra.mxu0 0.0
        %7302 = vmatprep.subr.mxu0 0.0
        %7303 = vmatpush1.msra.mxu0 0.0
        %7304 = vmatprep.subr.mxu0 0.0
        %7305 = vmatpush1.msra.mxu0 0.0
        %7306 = vmatprep.subr.mxu0 0.0
        %7307 = vmatpush1.msra.mxu0 0.0
        %7308 = vmatprep.subr.mxu0 0.0
        %7309 = vmatpush1.msra.mxu0 0.0
        %7310 = vmatprep.subr.mxu0 0.0
        %7311 = vmatpush1.msra.mxu0 0.0
        %7312 = vmatprep.subr.mxu0 0.0
        %7313 = vmatpush1.msra.mxu0 0.0
        %7314 = vmatprep.subr.mxu0 0.0
        %7315 = vmatpush1.msra.mxu0 0.0
        %7316 = vmatprep.subr.mxu0 0.0
        %7317 = vmatpush1.msra.mxu0 0.0
        %7318 = vmatprep.subr.mxu0 0.0
        %7319 = vmatpush1.msra.mxu0 0.0
        %7320 = vmatprep.subr.mxu0 0.0
        %7321 = vmatpush1.msra.mxu0 0.0
        %7322 = vmatprep.subr.mxu0 0.0
        %7323 = vmatpush1.msra.mxu0 0.0
        %7324 = vmatprep.subr.mxu0 0.0
        %7325 = vmatpush1.msra.mxu0 0.0
        %7326 = vmatprep.subr.mxu0 0.0
        %7327 = vmatpush1.msra.mxu0 0.0
        %7328 = vmatprep.subr.mxu0 0.0
        %7329 = vmatpush1.msra.mxu0 0.0
        %7330 = vmatprep.subr.mxu0 0.0
        %7331 = vmatpush1.msra.mxu0 0.0
        %7332 = vmatprep.subr.mxu0 0.0
        %7333 = vmatpush1.msra.mxu0 0.0
        %7334 = vmatprep.subr.mxu0 0.0
        %7335 = vmatpush1.msra.mxu0 0.0
        %7336 = vmatprep.subr.mxu0 0.0
        %7337 = vmatpush1.msra.mxu0 0.0
        %7338 = vmatprep.subr.mxu0 0.0
        %7339 = vmatpush1.msra.mxu0 0.0
        %7340 = vmatprep.subr.mxu0 0.0
        %7341 = vmatpush1.msra.mxu0 0.0
        %7342 = vmatprep.subr.mxu0 0.0
        %7343 = vmatpush1.msra.mxu0 0.0
        %7344 = vmatprep.subr.mxu0 0.0
        %7345 = vmatpush1.msra.mxu0 0.0
        %7346 = vmatprep.subr.mxu0 0.0
        %7347 = vmatpush1.msra.mxu0 0.0
        %7348 = vmatprep.subr.mxu0 0.0
        %7349 = vmatpush1.msra.mxu0 0.0
        %7350 = vmatprep.subr.mxu0 0.0
        %7351 = vmatpush1.msra.mxu0 0.0
        %7352 = vmatprep.subr.mxu0 0.0
        %7353 = vmatpush1.msra.mxu0 0.0
        %7354 = vmatprep.mubr.f32.mxu0 0.0
        %v7355 = vand.u32 %v3528, 4294901760
        %7356 = vmatmul.mubr.f32.gmra.mrb[0].mxu0 %v7355
        %v7357 = vpop.f32.mrb[0].mxu0
        %v7358 = vadd.f32 %v7276, %v7357
        %v7359 = vpop.f32.mrb[0].mxu0
        %7360 = vmatprep.mubr.f32.mxu0 0.0
        %v7361 = vand.u32 %v3531, 4294901760
        %7362 = vmatmul.mubr.f32.gmra.mrb[0].mxu0 %v7361
        %v7363 = vpop.f32.mrb[0].mxu0
        %v7364 = vadd.f32 %v7284, %v7363
        %v7365 = vpop.f32.mrb[0].mxu0
        %7366 = vdwg.mxu0
        %7367 = vmatprep.subr.mxu0 0.0
        %v7368 = vand.u32 %v3523, 4294901760
        %7369 = vmatpush1.msra.mxu0 %v7368
        %7370 = vmatprep.subr.mxu0 0.0
        %7371 = vmatpush1.msra.mxu0 0.0
        %7372 = vmatprep.subr.mxu0 0.0
        %7373 = vmatpush1.msra.mxu0 0.0
        %7374 = vmatprep.subr.mxu0 0.0
        %7375 = vmatpush1.msra.mxu0 0.0
        %7376 = vmatprep.subr.mxu0 0.0
        %7377 = vmatpush1.msra.mxu0 0.0
        %7378 = vmatprep.subr.mxu0 0.0
        %7379 = vmatpush1.msra.mxu0 0.0
        %7380 = vmatprep.subr.mxu0 0.0
        %7381 = vmatpush1.msra.mxu0 0.0
        %7382 = vmatprep.subr.mxu0 0.0
        %7383 = vmatpush1.msra.mxu0 0.0
        %7384 = vmatprep.subr.mxu0 0.0
        %7385 = vmatpush1.msra.mxu0 0.0
        %7386 = vmatprep.subr.mxu0 0.0
        %7387 = vmatpush1.msra.mxu0 0.0
        %7388 = vmatprep.subr.mxu0 0.0
        %7389 = vmatpush1.msra.mxu0 0.0
        %7390 = vmatprep.subr.mxu0 0.0
        %7391 = vmatpush1.msra.mxu0 0.0
        %7392 = vmatprep.subr.mxu0 0.0
        %7393 = vmatpush1.msra.mxu0 0.0
        %7394 = vmatprep.subr.mxu0 0.0
        %7395 = vmatpush1.msra.mxu0 0.0
        %7396 = vmatprep.subr.mxu0 0.0
        %7397 = vmatpush1.msra.mxu0 0.0
        %7398 = vmatprep.subr.mxu0 0.0
        %7399 = vmatpush1.msra.mxu0 0.0
        %7400 = vmatprep.subr.mxu0 0.0
        %7401 = vmatpush1.msra.mxu0 0.0
        %7402 = vmatprep.subr.mxu0 0.0
        %7403 = vmatpush1.msra.mxu0 0.0
        %7404 = vmatprep.subr.mxu0 0.0
        %7405 = vmatpush1.msra.mxu0 0.0
        %7406 = vmatprep.subr.mxu0 0.0
        %7407 = vmatpush1.msra.mxu0 0.0
        %7408 = vmatprep.subr.mxu0 0.0
        %7409 = vmatpush1.msra.mxu0 0.0
        %7410 = vmatprep.subr.mxu0 0.0
        %7411 = vmatpush1.msra.mxu0 0.0
        %7412 = vmatprep.subr.mxu0 0.0
        %7413 = vmatpush1.msra.mxu0 0.0
        %7414 = vmatprep.subr.mxu0 0.0
        %7415 = vmatpush1.msra.mxu0 0.0
        %7416 = vmatprep.subr.mxu0 0.0
        %7417 = vmatpush1.msra.mxu0 0.0
        %7418 = vmatprep.subr.mxu0 0.0
        %7419 = vmatpush1.msra.mxu0 0.0
        %7420 = vmatprep.subr.mxu0 0.0
        %7421 = vmatpush1.msra.mxu0 0.0
        %7422 = vmatprep.subr.mxu0 0.0
        %7423 = vmatpush1.msra.mxu0 0.0
        %7424 = vmatprep.subr.mxu0 0.0
        %7425 = vmatpush1.msra.mxu0 0.0
        %7426 = vmatprep.subr.mxu0 0.0
        %7427 = vmatpush1.msra.mxu0 0.0
        %7428 = vmatprep.subr.mxu0 0.0
        %7429 = vmatpush1.msra.mxu0 0.0
        %7430 = vmatprep.subr.mxu0 0.0
        %7431 = vmatpush1.msra.mxu0 0.0
        %7432 = vmatprep.mubr.f32.mxu0 0.0
        %v7433 = vand.u32 %v3528, 4294901760
        %7434 = vmatmul.mubr.f32.gmra.mrb[0].mxu0 %v7433
        %v7435 = vpop.f32.mrb[0].mxu0
        %v7436 = vadd.f32 %v7358, %v7435
        %v7437 = vpop.f32.mrb[0].mxu0
        %7438 = vmatprep.mubr.f32.mxu0 0.0
        %v7439 = vand.u32 %v3531, 4294901760
        %7440 = vmatmul.mubr.f32.gmra.mrb[0].mxu0 %v7439
        %v7441 = vpop.f32.mrb[0].mxu0
        %v7442 = vadd.f32 %v7364, %v7441
        %v7443 = vpop.f32.mrb[0].mxu0
        %7444 = vdwg.mxu0
        %v7446 = vsel %vm3526, %v350, 0
        %v7449 = vsel %vm3526, %v351, 0
        %7451 = vmatprep.subr.mxu0 0.0
        %v7452 = vand.u32 %v1895, 4294901760
        %7453 = vmatpush1.msra.mxu0 %v7452
        %7454 = vmatprep.subr.mxu0 0.0
        %7455 = vmatpush1.msra.mxu0 0.0
        %7456 = vmatprep.subr.mxu0 0.0
        %7457 = vmatpush1.msra.mxu0 0.0
        %7458 = vmatprep.subr.mxu0 0.0
        %7459 = vmatpush1.msra.mxu0 0.0
        %7460 = vmatprep.subr.mxu0 0.0
        %7461 = vmatpush1.msra.mxu0 0.0
        %7462 = vmatprep.subr.mxu0 0.0
        %7463 = vmatpush1.msra.mxu0 0.0
        %7464 = vmatprep.subr.mxu0 0.0
        %7465 = vmatpush1.msra.mxu0 0.0
        %7466 = vmatprep.subr.mxu0 0.0
        %7467 = vmatpush1.msra.mxu0 0.0
        %7468 = vmatprep.subr.mxu0 0.0
        %7469 = vmatpush1.msra.mxu0 0.0
        %7470 = vmatprep.subr.mxu0 0.0
        %7471 = vmatpush1.msra.mxu0 0.0
        %7472 = vmatprep.subr.mxu0 0.0
        %7473 = vmatpush1.msra.mxu0 0.0
        %7474 = vmatprep.subr.mxu0 0.0
        %7475 = vmatpush1.msra.mxu0 0.0
        %7476 = vmatprep.subr.mxu0 0.0
        %7477 = vmatpush1.msra.mxu0 0.0
        %7478 = vmatprep.subr.mxu0 0.0
        %7479 = vmatpush1.msra.mxu0 0.0
        %7480 = vmatprep.subr.mxu0 0.0
        %7481 = vmatpush1.msra.mxu0 0.0
        %7482 = vmatprep.subr.mxu0 0.0
        %7483 = vmatpush1.msra.mxu0 0.0
        %7484 = vmatprep.subr.mxu0 0.0
        %7485 = vmatpush1.msra.mxu0 0.0
        %7486 = vmatprep.subr.mxu0 0.0
        %7487 = vmatpush1.msra.mxu0 0.0
        %7488 = vmatprep.subr.mxu0 0.0
        %7489 = vmatpush1.msra.mxu0 0.0
        %7490 = vmatprep.subr.mxu0 0.0
        %7491 = vmatpush1.msra.mxu0 0.0
        %7492 = vmatprep.subr.mxu0 0.0
        %7493 = vmatpush1.msra.mxu0 0.0
        %7494 = vmatprep.subr.mxu0 0.0
        %7495 = vmatpush1.msra.mxu0 0.0
        %7496 = vmatprep.subr.mxu0 0.0
        %7497 = vmatpush1.msra.mxu0 0.0
        %7498 = vmatprep.subr.mxu0 0.0
        %7499 = vmatpush1.msra.mxu0 0.0
        %7500 = vmatprep.subr.mxu0 0.0
        %7501 = vmatpush1.msra.mxu0 0.0
        %7502 = vmatprep.subr.mxu0 0.0
        %7503 = vmatpush1.msra.mxu0 0.0
        %7504 = vmatprep.subr.mxu0 0.0
        %7505 = vmatpush1.msra.mxu0 0.0
        %7506 = vmatprep.subr.mxu0 0.0
        %7507 = vmatpush1.msra.mxu0 0.0
        %7508 = vmatprep.subr.mxu0 0.0
        %7509 = vmatpush1.msra.mxu0 0.0
        %7510 = vmatprep.subr.mxu0 0.0
        %7511 = vmatpush1.msra.mxu0 0.0
        %7512 = vmatprep.subr.mxu0 0.0
        %7513 = vmatpush1.msra.mxu0 0.0
        %7514 = vmatprep.subr.mxu0 0.0
        %7515 = vmatpush1.msra.mxu0 0.0
        %7516 = vmatprep.mubr.f32.mxu0 0.0
        %v7517 = vand.u32 %v7446, 4294901760
        %v7518 = vsub.f32 %v7446, %v7517
        %v7519 = vand.u32 %v7518, 4294901760
        %v7520 = vsub.f32 %v7518, %v7519
        %v7521 = vand.u32 %v7520, 4294901760
        %7522 = vmatmul.mubr.f32.gmra.mrb[0].mxu0 %v7521
        %v7523 = vpop.f32.mrb[0].mxu0
        %v7524 = vadd.f32 %v4013, %v7523
        %v7525 = vpop.f32.mrb[0].mxu0
        %7526 = vmatprep.mubr.f32.mxu0 0.0
        %v7527 = vand.u32 %v7449, 4294901760
        %v7528 = vsub.f32 %v7449, %v7527
        %v7529 = vand.u32 %v7528, 4294901760
        %v7530 = vsub.f32 %v7528, %v7529
        %v7531 = vand.u32 %v7530, 4294901760
        %7532 = vmatmul.mubr.f32.gmra.mrb[0].mxu0 %v7531
        %v7533 = vpop.f32.mrb[0].mxu0
        %v7534 = vadd.f32 %v4019, %v7533
        %v7535 = vpop.f32.mrb[0].mxu0
        %7536 = vdwg.mxu0
        %7537 = vmatprep.subr.mxu0 0.0
        %v7538 = vand.u32 %v1895, 4294901760
        %v7539 = vsub.f32 %v1895, %v7538
        %v7540 = vand.u32 %v7539, 4294901760
        %v7541 = vsub.f32 %v7539, %v7540
        %v7542 = vand.u32 %v7541, 4294901760
        %7543 = vmatpush1.msra.mxu0 %v7542
        %7544 = vmatprep.subr.mxu0 0.0
        %7545 = vmatpush1.msra.mxu0 0.0
        %7546 = vmatprep.subr.mxu0 0.0
        %7547 = vmatpush1.msra.mxu0 0.0
        %7548 = vmatprep.subr.mxu0 0.0
        %7549 = vmatpush1.msra.mxu0 0.0
        %7550 = vmatprep.subr.mxu0 0.0
        %7551 = vmatpush1.msra.mxu0 0.0
        %7552 = vmatprep.subr.mxu0 0.0
        %7553 = vmatpush1.msra.mxu0 0.0
        %7554 = vmatprep.subr.mxu0 0.0
        %7555 = vmatpush1.msra.mxu0 0.0
        %7556 = vmatprep.subr.mxu0 0.0
        %7557 = vmatpush1.msra.mxu0 0.0
        %7558 = vmatprep.subr.mxu0 0.0
        %7559 = vmatpush1.msra.mxu0 0.0
        %7560 = vmatprep.subr.mxu0 0.0
        %7561 = vmatpush1.msra.mxu0 0.0
        %7562 = vmatprep.subr.mxu0 0.0
        %7563 = vmatpush1.msra.mxu0 0.0
        %7564 = vmatprep.subr.mxu0 0.0
        %7565 = vmatpush1.msra.mxu0 0.0
        %7566 = vmatprep.subr.mxu0 0.0
        %7567 = vmatpush1.msra.mxu0 0.0
        %7568 = vmatprep.subr.mxu0 0.0
        %7569 = vmatpush1.msra.mxu0 0.0
        %7570 = vmatprep.subr.mxu0 0.0
        %7571 = vmatpush1.msra.mxu0 0.0
        %7572 = vmatprep.subr.mxu0 0.0
        %7573 = vmatpush1.msra.mxu0 0.0
        %7574 = vmatprep.subr.mxu0 0.0
        %7575 = vmatpush1.msra.mxu0 0.0
        %7576 = vmatprep.subr.mxu0 0.0
        %7577 = vmatpush1.msra.mxu0 0.0
        %7578 = vmatprep.subr.mxu0 0.0
        %7579 = vmatpush1.msra.mxu0 0.0
        %7580 = vmatprep.subr.mxu0 0.0
        %7581 = vmatpush1.msra.mxu0 0.0
        %7582 = vmatprep.subr.mxu0 0.0
        %7583 = vmatpush1.msra.mxu0 0.0
        %7584 = vmatprep.subr.mxu0 0.0
        %7585 = vmatpush1.msra.mxu0 0.0
        %7586 = vmatprep.subr.mxu0 0.0
        %7587 = vmatpush1.msra.mxu0 0.0
        %7588 = vmatprep.subr.mxu0 0.0
        %7589 = vmatpush1.msra.mxu0 0.0
        %7590 = vmatprep.subr.mxu0 0.0
        %7591 = vmatpush1.msra.mxu0 0.0
        %7592 = vmatprep.subr.mxu0 0.0
        %7593 = vmatpush1.msra.mxu0 0.0
        %7594 = vmatprep.subr.mxu0 0.0
        %7595 = vmatpush1.msra.mxu0 0.0
        %7596 = vmatprep.subr.mxu0 0.0
        %7597 = vmatpush1.msra.mxu0 0.0
        %7598 = vmatprep.subr.mxu0 0.0
        %7599 = vmatpush1.msra.mxu0 0.0
        %7600 = vmatprep.subr.mxu0 0.0
        %7601 = vmatpush1.msra.mxu0 0.0
        %7602 = vmatprep.subr.mxu0 0.0
        %7603 = vmatpush1.msra.mxu0 0.0
        %7604 = vmatprep.subr.mxu0 0.0
        %7605 = vmatpush1.msra.mxu0 0.0
        %7606 = vmatprep.mubr.f32.mxu0 0.0
        %v7607 = vand.u32 %v7446, 4294901760
        %7608 = vmatmul.mubr.f32.gmra.mrb[0].mxu0 %v7607
        %v7609 = vpop.f32.mrb[0].mxu0
        %v7610 = vadd.f32 %v7524, %v7609
        %v7611 = vpop.f32.mrb[0].mxu0
        %7612 = vmatprep.mubr.f32.mxu0 0.0
        %v7613 = vand.u32 %v7449, 4294901760
        %7614 = vmatmul.mubr.f32.gmra.mrb[0].mxu0 %v7613
        %v7615 = vpop.f32.mrb[0].mxu0
        %v7616 = vadd.f32 %v7534, %v7615
        %v7617 = vpop.f32.mrb[0].mxu0
        %7618 = vdwg.mxu0
        %7619 = vmatprep.subr.mxu0 0.0
        %v7620 = vand.u32 %v1895, 4294901760
        %v7621 = vsub.f32 %v1895, %v7620
        %7622 = vmatpush1.msra.mxu0 %v7621
        %7623 = vmatprep.subr.mxu0 0.0
        %7624 = vmatpush1.msra.mxu0 0.0
        %7625 = vmatprep.subr.mxu0 0.0
        %7626 = vmatpush1.msra.mxu0 0.0
        %7627 = vmatprep.subr.mxu0 0.0
        %7628 = vmatpush1.msra.mxu0 0.0
        %7629 = vmatprep.subr.mxu0 0.0
        %7630 = vmatpush1.msra.mxu0 0.0
        %7631 = vmatprep.subr.mxu0 0.0
        %7632 = vmatpush1.msra.mxu0 0.0
        %7633 = vmatprep.subr.mxu0 0.0
        %7634 = vmatpush1.msra.mxu0 0.0
        %7635 = vmatprep.subr.mxu0 0.0
        %7636 = vmatpush1.msra.mxu0 0.0
        %7637 = vmatprep.subr.mxu0 0.0
        %7638 = vmatpush1.msra.mxu0 0.0
        %7639 = vmatprep.subr.mxu0 0.0
        %7640 = vmatpush1.msra.mxu0 0.0
        %7641 = vmatprep.subr.mxu0 0.0
        %7642 = vmatpush1.msra.mxu0 0.0
        %7643 = vmatprep.subr.mxu0 0.0
        %7644 = vmatpush1.msra.mxu0 0.0
        %7645 = vmatprep.subr.mxu0 0.0
        %7646 = vmatpush1.msra.mxu0 0.0
        %7647 = vmatprep.subr.mxu0 0.0
        %7648 = vmatpush1.msra.mxu0 0.0
        %7649 = vmatprep.subr.mxu0 0.0
        %7650 = vmatpush1.msra.mxu0 0.0
        %7651 = vmatprep.subr.mxu0 0.0
        %7652 = vmatpush1.msra.mxu0 0.0
        %7653 = vmatprep.subr.mxu0 0.0
        %7654 = vmatpush1.msra.mxu0 0.0
        %7655 = vmatprep.subr.mxu0 0.0
        %7656 = vmatpush1.msra.mxu0 0.0
        %7657 = vmatprep.subr.mxu0 0.0
        %7658 = vmatpush1.msra.mxu0 0.0
        %7659 = vmatprep.subr.mxu0 0.0
        %7660 = vmatpush1.msra.mxu0 0.0
        %7661 = vmatprep.subr.mxu0 0.0
        %7662 = vmatpush1.msra.mxu0 0.0
        %7663 = vmatprep.subr.mxu0 0.0
        %7664 = vmatpush1.msra.mxu0 0.0
        %7665 = vmatprep.subr.mxu0 0.0
        %7666 = vmatpush1.msra.mxu0 0.0
        %7667 = vmatprep.subr.mxu0 0.0
        %7668 = vmatpush1.msra.mxu0 0.0
        %7669 = vmatprep.subr.mxu0 0.0
        %7670 = vmatpush1.msra.mxu0 0.0
        %7671 = vmatprep.subr.mxu0 0.0
        %7672 = vmatpush1.msra.mxu0 0.0
        %7673 = vmatprep.subr.mxu0 0.0
        %7674 = vmatpush1.msra.mxu0 0.0
        %7675 = vmatprep.subr.mxu0 0.0
        %7676 = vmatpush1.msra.mxu0 0.0
        %7677 = vmatprep.subr.mxu0 0.0
        %7678 = vmatpush1.msra.mxu0 0.0
        %7679 = vmatprep.subr.mxu0 0.0
        %7680 = vmatpush1.msra.mxu0 0.0
        %7681 = vmatprep.subr.mxu0 0.0
        %7682 = vmatpush1.msra.mxu0 0.0
        %7683 = vmatprep.subr.mxu0 0.0
        %7684 = vmatpush1.msra.mxu0 0.0
        %7685 = vmatprep.mubr.f32.mxu0 0.0
        %v7686 = vand.u32 %v7446, 4294901760
        %v7687 = vsub.f32 %v7446, %v7686
        %7688 = vmatmul.mubr.f32.gmra.mrb[0].mxu0 %v7687
        %v7689 = vpop.f32.mrb[0].mxu0
        %v7690 = vadd.f32 %v7610, %v7689
        %v7691 = vpop.f32.mrb[0].mxu0
        %7692 = vmatprep.mubr.f32.mxu0 0.0
        %v7693 = vand.u32 %v7449, 4294901760
        %v7694 = vsub.f32 %v7449, %v7693
        %7695 = vmatmul.mubr.f32.gmra.mrb[0].mxu0 %v7694
        %v7696 = vpop.f32.mrb[0].mxu0
        %v7697 = vadd.f32 %v7616, %v7696
        %v7698 = vpop.f32.mrb[0].mxu0
        %7699 = vdwg.mxu0
        %7700 = vmatprep.subr.mxu0 0.0
        %v7701 = vand.u32 %v1895, 4294901760
        %7702 = vmatpush1.msra.mxu0 %v7701
        %7703 = vmatprep.subr.mxu0 0.0
        %7704 = vmatpush1.msra.mxu0 0.0
        %7705 = vmatprep.subr.mxu0 0.0
        %7706 = vmatpush1.msra.mxu0 0.0
        %7707 = vmatprep.subr.mxu0 0.0
        %7708 = vmatpush1.msra.mxu0 0.0
        %7709 = vmatprep.subr.mxu0 0.0
        %7710 = vmatpush1.msra.mxu0 0.0
        %7711 = vmatprep.subr.mxu0 0.0
        %7712 = vmatpush1.msra.mxu0 0.0
        %7713 = vmatprep.subr.mxu0 0.0
        %7714 = vmatpush1.msra.mxu0 0.0
        %7715 = vmatprep.subr.mxu0 0.0
        %7716 = vmatpush1.msra.mxu0 0.0
        %7717 = vmatprep.subr.mxu0 0.0
        %7718 = vmatpush1.msra.mxu0 0.0
        %7719 = vmatprep.subr.mxu0 0.0
        %7720 = vmatpush1.msra.mxu0 0.0
        %7721 = vmatprep.subr.mxu0 0.0
        %7722 = vmatpush1.msra.mxu0 0.0
        %7723 = vmatprep.subr.mxu0 0.0
        %7724 = vmatpush1.msra.mxu0 0.0
        %7725 = vmatprep.subr.mxu0 0.0
        %7726 = vmatpush1.msra.mxu0 0.0
        %7727 = vmatprep.subr.mxu0 0.0
        %7728 = vmatpush1.msra.mxu0 0.0
        %7729 = vmatprep.subr.mxu0 0.0
        %7730 = vmatpush1.msra.mxu0 0.0
        %7731 = vmatprep.subr.mxu0 0.0
        %7732 = vmatpush1.msra.mxu0 0.0
        %7733 = vmatprep.subr.mxu0 0.0
        %7734 = vmatpush1.msra.mxu0 0.0
        %7735 = vmatprep.subr.mxu0 0.0
        %7736 = vmatpush1.msra.mxu0 0.0
        %7737 = vmatprep.subr.mxu0 0.0
        %7738 = vmatpush1.msra.mxu0 0.0
        %7739 = vmatprep.subr.mxu0 0.0
        %7740 = vmatpush1.msra.mxu0 0.0
        %7741 = vmatprep.subr.mxu0 0.0
        %7742 = vmatpush1.msra.mxu0 0.0
        %7743 = vmatprep.subr.mxu0 0.0
        %7744 = vmatpush1.msra.mxu0 0.0
        %7745 = vmatprep.subr.mxu0 0.0
        %7746 = vmatpush1.msra.mxu0 0.0
        %7747 = vmatprep.subr.mxu0 0.0
        %7748 = vmatpush1.msra.mxu0 0.0
        %7749 = vmatprep.subr.mxu0 0.0
        %7750 = vmatpush1.msra.mxu0 0.0
        %7751 = vmatprep.subr.mxu0 0.0
        %7752 = vmatpush1.msra.mxu0 0.0
        %7753 = vmatprep.subr.mxu0 0.0
        %7754 = vmatpush1.msra.mxu0 0.0
        %7755 = vmatprep.subr.mxu0 0.0
        %7756 = vmatpush1.msra.mxu0 0.0
        %7757 = vmatprep.subr.mxu0 0.0
        %7758 = vmatpush1.msra.mxu0 0.0
        %7759 = vmatprep.subr.mxu0 0.0
        %7760 = vmatpush1.msra.mxu0 0.0
        %7761 = vmatprep.subr.mxu0 0.0
        %7762 = vmatpush1.msra.mxu0 0.0
        %7763 = vmatprep.subr.mxu0 0.0
        %7764 = vmatpush1.msra.mxu0 0.0
        %7765 = vmatprep.mubr.f32.mxu0 0.0
        %v7766 = vand.u32 %v7446, 4294901760
        %v7767 = vsub.f32 %v7446, %v7766
        %v7768 = vand.u32 %v7767, 4294901760
        %7769 = vmatmul.mubr.f32.gmra.mrb[0].mxu0 %v7768
        %v7770 = vpop.f32.mrb[0].mxu0
        %v7771 = vadd.f32 %v7690, %v7770
        %v7772 = vpop.f32.mrb[0].mxu0
        %7773 = vmatprep.mubr.f32.mxu0 0.0
        %v7774 = vand.u32 %v7449, 4294901760
        %v7775 = vsub.f32 %v7449, %v7774
        %v7776 = vand.u32 %v7775, 4294901760
        %7777 = vmatmul.mubr.f32.gmra.mrb[0].mxu0 %v7776
        %v7778 = vpop.f32.mrb[0].mxu0
        %v7779 = vadd.f32 %v7697, %v7778
        %v7780 = vpop.f32.mrb[0].mxu0
        %7781 = vdwg.mxu0
        %7782 = vmatprep.subr.mxu0 0.0
        %v7783 = vand.u32 %v1895, 4294901760
        %v7784 = vsub.f32 %v1895, %v7783
        %v7785 = vand.u32 %v7784, 4294901760
        %7786 = vmatpush1.msra.mxu0 %v7785
        %7787 = vmatprep.subr.mxu0 0.0
        %7788 = vmatpush1.msra.mxu0 0.0
        %7789 = vmatprep.subr.mxu0 0.0
        %7790 = vmatpush1.msra.mxu0 0.0
        %7791 = vmatprep.subr.mxu0 0.0
        %7792 = vmatpush1.msra.mxu0 0.0
        %7793 = vmatprep.subr.mxu0 0.0
        %7794 = vmatpush1.msra.mxu0 0.0
        %7795 = vmatprep.subr.mxu0 0.0
        %7796 = vmatpush1.msra.mxu0 0.0
        %7797 = vmatprep.subr.mxu0 0.0
        %7798 = vmatpush1.msra.mxu0 0.0
        %7799 = vmatprep.subr.mxu0 0.0
        %7800 = vmatpush1.msra.mxu0 0.0
        %7801 = vmatprep.subr.mxu0 0.0
        %7802 = vmatpush1.msra.mxu0 0.0
        %7803 = vmatprep.subr.mxu0 0.0
        %7804 = vmatpush1.msra.mxu0 0.0
        %7805 = vmatprep.subr.mxu0 0.0
        %7806 = vmatpush1.msra.mxu0 0.0
        %7807 = vmatprep.subr.mxu0 0.0
        %7808 = vmatpush1.msra.mxu0 0.0
        %7809 = vmatprep.subr.mxu0 0.0
        %7810 = vmatpush1.msra.mxu0 0.0
        %7811 = vmatprep.subr.mxu0 0.0
        %7812 = vmatpush1.msra.mxu0 0.0
        %7813 = vmatprep.subr.mxu0 0.0
        %7814 = vmatpush1.msra.mxu0 0.0
        %7815 = vmatprep.subr.mxu0 0.0
        %7816 = vmatpush1.msra.mxu0 0.0
        %7817 = vmatprep.subr.mxu0 0.0
        %7818 = vmatpush1.msra.mxu0 0.0
        %7819 = vmatprep.subr.mxu0 0.0
        %7820 = vmatpush1.msra.mxu0 0.0
        %7821 = vmatprep.subr.mxu0 0.0
        %7822 = vmatpush1.msra.mxu0 0.0
        %7823 = vmatprep.subr.mxu0 0.0
        %7824 = vmatpush1.msra.mxu0 0.0
        %7825 = vmatprep.subr.mxu0 0.0
        %7826 = vmatpush1.msra.mxu0 0.0
        %7827 = vmatprep.subr.mxu0 0.0
        %7828 = vmatpush1.msra.mxu0 0.0
        %7829 = vmatprep.subr.mxu0 0.0
        %7830 = vmatpush1.msra.mxu0 0.0
        %7831 = vmatprep.subr.mxu0 0.0
        %7832 = vmatpush1.msra.mxu0 0.0
        %7833 = vmatprep.subr.mxu0 0.0
        %7834 = vmatpush1.msra.mxu0 0.0
        %7835 = vmatprep.subr.mxu0 0.0
        %7836 = vmatpush1.msra.mxu0 0.0
        %7837 = vmatprep.subr.mxu0 0.0
        %7838 = vmatpush1.msra.mxu0 0.0
        %7839 = vmatprep.subr.mxu0 0.0
        %7840 = vmatpush1.msra.mxu0 0.0
        %7841 = vmatprep.subr.mxu0 0.0
        %7842 = vmatpush1.msra.mxu0 0.0
        %7843 = vmatprep.subr.mxu0 0.0
        %7844 = vmatpush1.msra.mxu0 0.0
        %7845 = vmatprep.subr.mxu0 0.0
        %7846 = vmatpush1.msra.mxu0 0.0
        %7847 = vmatprep.subr.mxu0 0.0
        %7848 = vmatpush1.msra.mxu0 0.0
        %7849 = vmatprep.mubr.f32.mxu0 0.0
        %v7850 = vand.u32 %v7446, 4294901760
        %7851 = vmatmul.mubr.f32.gmra.mrb[0].mxu0 %v7850
        %v7852 = vpop.f32.mrb[0].mxu0
        %v7853 = vadd.f32 %v7771, %v7852
        %v7854 = vpop.f32.mrb[0].mxu0
        %7855 = vmatprep.mubr.f32.mxu0 0.0
        %v7856 = vand.u32 %v7449, 4294901760
        %7857 = vmatmul.mubr.f32.gmra.mrb[0].mxu0 %v7856
        %v7858 = vpop.f32.mrb[0].mxu0
        %v7859 = vadd.f32 %v7779, %v7858
        %v7860 = vpop.f32.mrb[0].mxu0
        %7861 = vdwg.mxu0
        %7862 = vmatprep.subr.mxu0 0.0
        %v7863 = vand.u32 %v1895, 4294901760
        %7864 = vmatpush1.msra.mxu0 %v7863
        %7865 = vmatprep.subr.mxu0 0.0
        %7866 = vmatpush1.msra.mxu0 0.0
        %7867 = vmatprep.subr.mxu0 0.0
        %7868 = vmatpush1.msra.mxu0 0.0
        %7869 = vmatprep.subr.mxu0 0.0
        %7870 = vmatpush1.msra.mxu0 0.0
        %7871 = vmatprep.subr.mxu0 0.0
        %7872 = vmatpush1.msra.mxu0 0.0
        %7873 = vmatprep.subr.mxu0 0.0
        %7874 = vmatpush1.msra.mxu0 0.0
        %7875 = vmatprep.subr.mxu0 0.0
        %7876 = vmatpush1.msra.mxu0 0.0
        %7877 = vmatprep.subr.mxu0 0.0
        %7878 = vmatpush1.msra.mxu0 0.0
        %7879 = vmatprep.subr.mxu0 0.0
        %7880 = vmatpush1.msra.mxu0 0.0
        %7881 = vmatprep.subr.mxu0 0.0
        %7882 = vmatpush1.msra.mxu0 0.0
        %7883 = vmatprep.subr.mxu0 0.0
        %7884 = vmatpush1.msra.mxu0 0.0
        %7885 = vmatprep.subr.mxu0 0.0
        %7886 = vmatpush1.msra.mxu0 0.0
        %7887 = vmatprep.subr.mxu0 0.0
        %7888 = vmatpush1.msra.mxu0 0.0
        %7889 = vmatprep.subr.mxu0 0.0
        %7890 = vmatpush1.msra.mxu0 0.0
        %7891 = vmatprep.subr.mxu0 0.0
        %7892 = vmatpush1.msra.mxu0 0.0
        %7893 = vmatprep.subr.mxu0 0.0
        %7894 = vmatpush1.msra.mxu0 0.0
        %7895 = vmatprep.subr.mxu0 0.0
        %7896 = vmatpush1.msra.mxu0 0.0
        %7897 = vmatprep.subr.mxu0 0.0
        %7898 = vmatpush1.msra.mxu0 0.0
        %7899 = vmatprep.subr.mxu0 0.0
        %7900 = vmatpush1.msra.mxu0 0.0
        %7901 = vmatprep.subr.mxu0 0.0
        %7902 = vmatpush1.msra.mxu0 0.0
        %7903 = vmatprep.subr.mxu0 0.0
        %7904 = vmatpush1.msra.mxu0 0.0
        %7905 = vmatprep.subr.mxu0 0.0
        %7906 = vmatpush1.msra.mxu0 0.0
        %7907 = vmatprep.subr.mxu0 0.0
        %7908 = vmatpush1.msra.mxu0 0.0
        %7909 = vmatprep.subr.mxu0 0.0
        %7910 = vmatpush1.msra.mxu0 0.0
        %7911 = vmatprep.subr.mxu0 0.0
        %7912 = vmatpush1.msra.mxu0 0.0
        %7913 = vmatprep.subr.mxu0 0.0
        %7914 = vmatpush1.msra.mxu0 0.0
        %7915 = vmatprep.subr.mxu0 0.0
        %7916 = vmatpush1.msra.mxu0 0.0
        %7917 = vmatprep.subr.mxu0 0.0
        %7918 = vmatpush1.msra.mxu0 0.0
        %7919 = vmatprep.subr.mxu0 0.0
        %7920 = vmatpush1.msra.mxu0 0.0
        %7921 = vmatprep.subr.mxu0 0.0
        %7922 = vmatpush1.msra.mxu0 0.0
        %7923 = vmatprep.subr.mxu0 0.0
        %7924 = vmatpush1.msra.mxu0 0.0
        %7925 = vmatprep.subr.mxu0 0.0
        %7926 = vmatpush1.msra.mxu0 0.0
        %7927 = vmatprep.mubr.f32.mxu0 0.0
        %v7928 = vand.u32 %v7446, 4294901760
        %7929 = vmatmul.mubr.f32.gmra.mrb[0].mxu0 %v7928
        %v7930 = vpop.f32.mrb[0].mxu0
        %v7931 = vadd.f32 %v7853, %v7930
        %v7932 = vpop.f32.mrb[0].mxu0
        %7933 = vmatprep.mubr.f32.mxu0 0.0
        %v7934 = vand.u32 %v7449, 4294901760
        %7935 = vmatmul.mubr.f32.gmra.mrb[0].mxu0 %v7934
        %v7936 = vpop.f32.mrb[0].mxu0
        %v7937 = vadd.f32 %v7859, %v7936
        %v7938 = vpop.f32.mrb[0].mxu0
        %7939 = vdwg.mxu0
        %7940 = vmatprep.subr.mxu0 0.0
        %v7941 = vand.u32 %v1901, 4294901760
        %7942 = vmatpush1.msra.mxu0 %v7941
        %7943 = vmatprep.subr.mxu0 0.0
        %7944 = vmatpush1.msra.mxu0 0.0
        %7945 = vmatprep.subr.mxu0 0.0
        %7946 = vmatpush1.msra.mxu0 0.0
        %7947 = vmatprep.subr.mxu0 0.0
        %7948 = vmatpush1.msra.mxu0 0.0
        %7949 = vmatprep.subr.mxu0 0.0
        %7950 = vmatpush1.msra.mxu0 0.0
        %7951 = vmatprep.subr.mxu0 0.0
        %7952 = vmatpush1.msra.mxu0 0.0
        %7953 = vmatprep.subr.mxu0 0.0
        %7954 = vmatpush1.msra.mxu0 0.0
        %7955 = vmatprep.subr.mxu0 0.0
        %7956 = vmatpush1.msra.mxu0 0.0
        %7957 = vmatprep.subr.mxu0 0.0
        %7958 = vmatpush1.msra.mxu0 0.0
        %7959 = vmatprep.subr.mxu0 0.0
        %7960 = vmatpush1.msra.mxu0 0.0
        %7961 = vmatprep.subr.mxu0 0.0
        %7962 = vmatpush1.msra.mxu0 0.0
        %7963 = vmatprep.subr.mxu0 0.0
        %7964 = vmatpush1.msra.mxu0 0.0
        %7965 = vmatprep.subr.mxu0 0.0
        %7966 = vmatpush1.msra.mxu0 0.0
        %7967 = vmatprep.subr.mxu0 0.0
        %7968 = vmatpush1.msra.mxu0 0.0
        %7969 = vmatprep.subr.mxu0 0.0
        %7970 = vmatpush1.msra.mxu0 0.0
        %7971 = vmatprep.subr.mxu0 0.0
        %7972 = vmatpush1.msra.mxu0 0.0
        %7973 = vmatprep.subr.mxu0 0.0
        %7974 = vmatpush1.msra.mxu0 0.0
        %7975 = vmatprep.subr.mxu0 0.0
        %7976 = vmatpush1.msra.mxu0 0.0
        %7977 = vmatprep.subr.mxu0 0.0
        %7978 = vmatpush1.msra.mxu0 0.0
        %7979 = vmatprep.subr.mxu0 0.0
        %7980 = vmatpush1.msra.mxu0 0.0
        %7981 = vmatprep.subr.mxu0 0.0
        %7982 = vmatpush1.msra.mxu0 0.0
        %7983 = vmatprep.subr.mxu0 0.0
        %7984 = vmatpush1.msra.mxu0 0.0
        %7985 = vmatprep.subr.mxu0 0.0
        %7986 = vmatpush1.msra.mxu0 0.0
        %7987 = vmatprep.subr.mxu0 0.0
        %7988 = vmatpush1.msra.mxu0 0.0
        %7989 = vmatprep.subr.mxu0 0.0
        %7990 = vmatpush1.msra.mxu0 0.0
        %7991 = vmatprep.subr.mxu0 0.0
        %7992 = vmatpush1.msra.mxu0 0.0
        %7993 = vmatprep.subr.mxu0 0.0
        %7994 = vmatpush1.msra.mxu0 0.0
        %7995 = vmatprep.subr.mxu0 0.0
        %7996 = vmatpush1.msra.mxu0 0.0
        %7997 = vmatprep.subr.mxu0 0.0
        %7998 = vmatpush1.msra.mxu0 0.0
        %7999 = vmatprep.subr.mxu0 0.0
        %8000 = vmatpush1.msra.mxu0 0.0
        %8001 = vmatprep.subr.mxu0 0.0
        %8002 = vmatpush1.msra.mxu0 0.0
        %8003 = vmatprep.subr.mxu0 0.0
        %8004 = vmatpush1.msra.mxu0 0.0
        %8005 = vmatprep.mubr.f32.mxu0 0.0
        %v8006 = vand.u32 %v7446, 4294901760
        %v8007 = vsub.f32 %v7446, %v8006
        %v8008 = vand.u32 %v8007, 4294901760
        %v8009 = vsub.f32 %v8007, %v8008
        %v8010 = vand.u32 %v8009, 4294901760
        %8011 = vmatmul.mubr.f32.gmra.mrb[0].mxu0 %v8010
        %v8012 = vpop.f32.mrb[0].mxu0
        %v8013 = vadd.f32 %v4502, %v8012
        %v8014 = vpop.f32.mrb[0].mxu0
        %8015 = vmatprep.mubr.f32.mxu0 0.0
        %v8016 = vand.u32 %v7449, 4294901760
        %v8017 = vsub.f32 %v7449, %v8016
        %v8018 = vand.u32 %v8017, 4294901760
        %v8019 = vsub.f32 %v8017, %v8018
        %v8020 = vand.u32 %v8019, 4294901760
        %8021 = vmatmul.mubr.f32.gmra.mrb[0].mxu0 %v8020
        %v8022 = vpop.f32.mrb[0].mxu0
        %v8023 = vadd.f32 %v4508, %v8022
        %v8024 = vpop.f32.mrb[0].mxu0
        %8025 = vdwg.mxu0
        %8026 = vmatprep.subr.mxu0 0.0
        %v8027 = vand.u32 %v1901, 4294901760
        %v8028 = vsub.f32 %v1901, %v8027
        %v8029 = vand.u32 %v8028, 4294901760
        %v8030 = vsub.f32 %v8028, %v8029
        %v8031 = vand.u32 %v8030, 4294901760
        %8032 = vmatpush1.msra.mxu0 %v8031
        %8033 = vmatprep.subr.mxu0 0.0
        %8034 = vmatpush1.msra.mxu0 0.0
        %8035 = vmatprep.subr.mxu0 0.0
        %8036 = vmatpush1.msra.mxu0 0.0
        %8037 = vmatprep.subr.mxu0 0.0
        %8038 = vmatpush1.msra.mxu0 0.0
        %8039 = vmatprep.subr.mxu0 0.0
        %8040 = vmatpush1.msra.mxu0 0.0
        %8041 = vmatprep.subr.mxu0 0.0
        %8042 = vmatpush1.msra.mxu0 0.0
        %8043 = vmatprep.subr.mxu0 0.0
        %8044 = vmatpush1.msra.mxu0 0.0
        %8045 = vmatprep.subr.mxu0 0.0
        %8046 = vmatpush1.msra.mxu0 0.0
        %8047 = vmatprep.subr.mxu0 0.0
        %8048 = vmatpush1.msra.mxu0 0.0
        %8049 = vmatprep.subr.mxu0 0.0
        %8050 = vmatpush1.msra.mxu0 0.0
        %8051 = vmatprep.subr.mxu0 0.0
        %8052 = vmatpush1.msra.mxu0 0.0
        %8053 = vmatprep.subr.mxu0 0.0
        %8054 = vmatpush1.msra.mxu0 0.0
        %8055 = vmatprep.subr.mxu0 0.0
        %8056 = vmatpush1.msra.mxu0 0.0
        %8057 = vmatprep.subr.mxu0 0.0
        %8058 = vmatpush1.msra.mxu0 0.0
        %8059 = vmatprep.subr.mxu0 0.0
        %8060 = vmatpush1.msra.mxu0 0.0
        %8061 = vmatprep.subr.mxu0 0.0
        %8062 = vmatpush1.msra.mxu0 0.0
        %8063 = vmatprep.subr.mxu0 0.0
        %8064 = vmatpush1.msra.mxu0 0.0
        %8065 = vmatprep.subr.mxu0 0.0
        %8066 = vmatpush1.msra.mxu0 0.0
        %8067 = vmatprep.subr.mxu0 0.0
        %8068 = vmatpush1.msra.mxu0 0.0
        %8069 = vmatprep.subr.mxu0 0.0
        %8070 = vmatpush1.msra.mxu0 0.0
        %8071 = vmatprep.subr.mxu0 0.0
        %8072 = vmatpush1.msra.mxu0 0.0
        %8073 = vmatprep.subr.mxu0 0.0
        %8074 = vmatpush1.msra.mxu0 0.0
        %8075 = vmatprep.subr.mxu0 0.0
        %8076 = vmatpush1.msra.mxu0 0.0
        %8077 = vmatprep.subr.mxu0 0.0
        %8078 = vmatpush1.msra.mxu0 0.0
        %8079 = vmatprep.subr.mxu0 0.0
        %8080 = vmatpush1.msra.mxu0 0.0
        %8081 = vmatprep.subr.mxu0 0.0
        %8082 = vmatpush1.msra.mxu0 0.0
        %8083 = vmatprep.subr.mxu0 0.0
        %8084 = vmatpush1.msra.mxu0 0.0
        %8085 = vmatprep.subr.mxu0 0.0
        %8086 = vmatpush1.msra.mxu0 0.0
        %8087 = vmatprep.subr.mxu0 0.0
        %8088 = vmatpush1.msra.mxu0 0.0
        %8089 = vmatprep.subr.mxu0 0.0
        %8090 = vmatpush1.msra.mxu0 0.0
        %8091 = vmatprep.subr.mxu0 0.0
        %8092 = vmatpush1.msra.mxu0 0.0
        %8093 = vmatprep.subr.mxu0 0.0
        %8094 = vmatpush1.msra.mxu0 0.0
        %8095 = vmatprep.mubr.f32.mxu0 0.0
        %v8096 = vand.u32 %v7446, 4294901760
        %8097 = vmatmul.mubr.f32.gmra.mrb[0].mxu0 %v8096
        %v8098 = vpop.f32.mrb[0].mxu0
        %v8099 = vadd.f32 %v8013, %v8098
        %v8100 = vpop.f32.mrb[0].mxu0
        %8101 = vmatprep.mubr.f32.mxu0 0.0
        %v8102 = vand.u32 %v7449, 4294901760
        %8103 = vmatmul.mubr.f32.gmra.mrb[0].mxu0 %v8102
        %v8104 = vpop.f32.mrb[0].mxu0
        %v8105 = vadd.f32 %v8023, %v8104
        %v8106 = vpop.f32.mrb[0].mxu0
        %8107 = vdwg.mxu0
        %8108 = vmatprep.subr.mxu0 0.0
        %v8109 = vand.u32 %v1901, 4294901760
        %v8110 = vsub.f32 %v1901, %v8109
        %8111 = vmatpush1.msra.mxu0 %v8110
        %8112 = vmatprep.subr.mxu0 0.0
        %8113 = vmatpush1.msra.mxu0 0.0
        %8114 = vmatprep.subr.mxu0 0.0
        %8115 = vmatpush1.msra.mxu0 0.0
        %8116 = vmatprep.subr.mxu0 0.0
        %8117 = vmatpush1.msra.mxu0 0.0
        %8118 = vmatprep.subr.mxu0 0.0
        %8119 = vmatpush1.msra.mxu0 0.0
        %8120 = vmatprep.subr.mxu0 0.0
        %8121 = vmatpush1.msra.mxu0 0.0
        %8122 = vmatprep.subr.mxu0 0.0
        %8123 = vmatpush1.msra.mxu0 0.0
        %8124 = vmatprep.subr.mxu0 0.0
        %8125 = vmatpush1.msra.mxu0 0.0
        %8126 = vmatprep.subr.mxu0 0.0
        %8127 = vmatpush1.msra.mxu0 0.0
        %8128 = vmatprep.subr.mxu0 0.0
        %8129 = vmatpush1.msra.mxu0 0.0
        %8130 = vmatprep.subr.mxu0 0.0
        %8131 = vmatpush1.msra.mxu0 0.0
        %8132 = vmatprep.subr.mxu0 0.0
        %8133 = vmatpush1.msra.mxu0 0.0
        %8134 = vmatprep.subr.mxu0 0.0
        %8135 = vmatpush1.msra.mxu0 0.0
        %8136 = vmatprep.subr.mxu0 0.0
        %8137 = vmatpush1.msra.mxu0 0.0
        %8138 = vmatprep.subr.mxu0 0.0
        %8139 = vmatpush1.msra.mxu0 0.0
        %8140 = vmatprep.subr.mxu0 0.0
        %8141 = vmatpush1.msra.mxu0 0.0
        %8142 = vmatprep.subr.mxu0 0.0
        %8143 = vmatpush1.msra.mxu0 0.0
        %8144 = vmatprep.subr.mxu0 0.0
        %8145 = vmatpush1.msra.mxu0 0.0
        %8146 = vmatprep.subr.mxu0 0.0
        %8147 = vmatpush1.msra.mxu0 0.0
        %8148 = vmatprep.subr.mxu0 0.0
        %8149 = vmatpush1.msra.mxu0 0.0
        %8150 = vmatprep.subr.mxu0 0.0
        %8151 = vmatpush1.msra.mxu0 0.0
        %8152 = vmatprep.subr.mxu0 0.0
        %8153 = vmatpush1.msra.mxu0 0.0
        %8154 = vmatprep.subr.mxu0 0.0
        %8155 = vmatpush1.msra.mxu0 0.0
        %8156 = vmatprep.subr.mxu0 0.0
        %8157 = vmatpush1.msra.mxu0 0.0
        %8158 = vmatprep.subr.mxu0 0.0
        %8159 = vmatpush1.msra.mxu0 0.0
        %8160 = vmatprep.subr.mxu0 0.0
        %8161 = vmatpush1.msra.mxu0 0.0
        %8162 = vmatprep.subr.mxu0 0.0
        %8163 = vmatpush1.msra.mxu0 0.0
        %8164 = vmatprep.subr.mxu0 0.0
        %8165 = vmatpush1.msra.mxu0 0.0
        %8166 = vmatprep.subr.mxu0 0.0
        %8167 = vmatpush1.msra.mxu0 0.0
        %8168 = vmatprep.subr.mxu0 0.0
        %8169 = vmatpush1.msra.mxu0 0.0
        %8170 = vmatprep.subr.mxu0 0.0
        %8171 = vmatpush1.msra.mxu0 0.0
        %8172 = vmatprep.subr.mxu0 0.0
        %8173 = vmatpush1.msra.mxu0 0.0
        %8174 = vmatprep.mubr.f32.mxu0 0.0
        %v8175 = vand.u32 %v7446, 4294901760
        %v8176 = vsub.f32 %v7446, %v8175
        %8177 = vmatmul.mubr.f32.gmra.mrb[0].mxu0 %v8176
        %v8178 = vpop.f32.mrb[0].mxu0
        %v8179 = vadd.f32 %v8099, %v8178
        %v8180 = vpop.f32.mrb[0].mxu0
        %8181 = vmatprep.mubr.f32.mxu0 0.0
        %v8182 = vand.u32 %v7449, 4294901760
        %v8183 = vsub.f32 %v7449, %v8182
        %8184 = vmatmul.mubr.f32.gmra.mrb[0].mxu0 %v8183
        %v8185 = vpop.f32.mrb[0].mxu0
        %v8186 = vadd.f32 %v8105, %v8185
        %v8187 = vpop.f32.mrb[0].mxu0
        %8188 = vdwg.mxu0
        %8189 = vmatprep.subr.mxu0 0.0
        %v8190 = vand.u32 %v1901, 4294901760
        %8191 = vmatpush1.msra.mxu0 %v8190
        %8192 = vmatprep.subr.mxu0 0.0
        %8193 = vmatpush1.msra.mxu0 0.0
        %8194 = vmatprep.subr.mxu0 0.0
        %8195 = vmatpush1.msra.mxu0 0.0
        %8196 = vmatprep.subr.mxu0 0.0
        %8197 = vmatpush1.msra.mxu0 0.0
        %8198 = vmatprep.subr.mxu0 0.0
        %8199 = vmatpush1.msra.mxu0 0.0
        %8200 = vmatprep.subr.mxu0 0.0
        %8201 = vmatpush1.msra.mxu0 0.0
        %8202 = vmatprep.subr.mxu0 0.0
        %8203 = vmatpush1.msra.mxu0 0.0
        %8204 = vmatprep.subr.mxu0 0.0
        %8205 = vmatpush1.msra.mxu0 0.0
        %8206 = vmatprep.subr.mxu0 0.0
        %8207 = vmatpush1.msra.mxu0 0.0
        %8208 = vmatprep.subr.mxu0 0.0
        %8209 = vmatpush1.msra.mxu0 0.0
        %8210 = vmatprep.subr.mxu0 0.0
        %8211 = vmatpush1.msra.mxu0 0.0
        %8212 = vmatprep.subr.mxu0 0.0
        %8213 = vmatpush1.msra.mxu0 0.0
        %8214 = vmatprep.subr.mxu0 0.0
        %8215 = vmatpush1.msra.mxu0 0.0
        %8216 = vmatprep.subr.mxu0 0.0
        %8217 = vmatpush1.msra.mxu0 0.0
        %8218 = vmatprep.subr.mxu0 0.0
        %8219 = vmatpush1.msra.mxu0 0.0
        %8220 = vmatprep.subr.mxu0 0.0
        %8221 = vmatpush1.msra.mxu0 0.0
        %8222 = vmatprep.subr.mxu0 0.0
        %8223 = vmatpush1.msra.mxu0 0.0
        %8224 = vmatprep.subr.mxu0 0.0
        %8225 = vmatpush1.msra.mxu0 0.0
        %8226 = vmatprep.subr.mxu0 0.0
        %8227 = vmatpush1.msra.mxu0 0.0
        %8228 = vmatprep.subr.mxu0 0.0
        %8229 = vmatpush1.msra.mxu0 0.0
        %8230 = vmatprep.subr.mxu0 0.0
        %8231 = vmatpush1.msra.mxu0 0.0
        %8232 = vmatprep.subr.mxu0 0.0
        %8233 = vmatpush1.msra.mxu0 0.0
        %8234 = vmatprep.subr.mxu0 0.0
        %8235 = vmatpush1.msra.mxu0 0.0
        %8236 = vmatprep.subr.mxu0 0.0
        %8237 = vmatpush1.msra.mxu0 0.0
        %8238 = vmatprep.subr.mxu0 0.0
        %8239 = vmatpush1.msra.mxu0 0.0
        %8240 = vmatprep.subr.mxu0 0.0
        %8241 = vmatpush1.msra.mxu0 0.0
        %8242 = vmatprep.subr.mxu0 0.0
        %8243 = vmatpush1.msra.mxu0 0.0
        %8244 = vmatprep.subr.mxu0 0.0
        %8245 = vmatpush1.msra.mxu0 0.0
        %8246 = vmatprep.subr.mxu0 0.0
        %8247 = vmatpush1.msra.mxu0 0.0
        %8248 = vmatprep.subr.mxu0 0.0
        %8249 = vmatpush1.msra.mxu0 0.0
        %8250 = vmatprep.subr.mxu0 0.0
        %8251 = vmatpush1.msra.mxu0 0.0
        %8252 = vmatprep.subr.mxu0 0.0
        %8253 = vmatpush1.msra.mxu0 0.0
        %8254 = vmatprep.mubr.f32.mxu0 0.0
        %v8255 = vand.u32 %v7446, 4294901760
        %v8256 = vsub.f32 %v7446, %v8255
        %v8257 = vand.u32 %v8256, 4294901760
        %8258 = vmatmul.mubr.f32.gmra.mrb[0].mxu0 %v8257
        %v8259 = vpop.f32.mrb[0].mxu0
        %v8260 = vadd.f32 %v8179, %v8259
        %v8261 = vpop.f32.mrb[0].mxu0
        %8262 = vmatprep.mubr.f32.mxu0 0.0
        %v8263 = vand.u32 %v7449, 4294901760
        %v8264 = vsub.f32 %v7449, %v8263
        %v8265 = vand.u32 %v8264, 4294901760
        %8266 = vmatmul.mubr.f32.gmra.mrb[0].mxu0 %v8265
        %v8267 = vpop.f32.mrb[0].mxu0
        %v8268 = vadd.f32 %v8186, %v8267
        %v8269 = vpop.f32.mrb[0].mxu0
        %8270 = vdwg.mxu0
        %8271 = vmatprep.subr.mxu0 0.0
        %v8272 = vand.u32 %v1901, 4294901760
        %v8273 = vsub.f32 %v1901, %v8272
        %v8274 = vand.u32 %v8273, 4294901760
        %8275 = vmatpush1.msra.mxu0 %v8274
        %8276 = vmatprep.subr.mxu0 0.0
        %8277 = vmatpush1.msra.mxu0 0.0
        %8278 = vmatprep.subr.mxu0 0.0
        %8279 = vmatpush1.msra.mxu0 0.0
        %8280 = vmatprep.subr.mxu0 0.0
        %8281 = vmatpush1.msra.mxu0 0.0
        %8282 = vmatprep.subr.mxu0 0.0
        %8283 = vmatpush1.msra.mxu0 0.0
        %8284 = vmatprep.subr.mxu0 0.0
        %8285 = vmatpush1.msra.mxu0 0.0
        %8286 = vmatprep.subr.mxu0 0.0
        %8287 = vmatpush1.msra.mxu0 0.0
        %8288 = vmatprep.subr.mxu0 0.0
        %8289 = vmatpush1.msra.mxu0 0.0
        %8290 = vmatprep.subr.mxu0 0.0
        %8291 = vmatpush1.msra.mxu0 0.0
        %8292 = vmatprep.subr.mxu0 0.0
        %8293 = vmatpush1.msra.mxu0 0.0
        %8294 = vmatprep.subr.mxu0 0.0
        %8295 = vmatpush1.msra.mxu0 0.0
        %8296 = vmatprep.subr.mxu0 0.0
        %8297 = vmatpush1.msra.mxu0 0.0
        %8298 = vmatprep.subr.mxu0 0.0
        %8299 = vmatpush1.msra.mxu0 0.0
        %8300 = vmatprep.subr.mxu0 0.0
        %8301 = vmatpush1.msra.mxu0 0.0
        %8302 = vmatprep.subr.mxu0 0.0
        %8303 = vmatpush1.msra.mxu0 0.0
        %8304 = vmatprep.subr.mxu0 0.0
        %8305 = vmatpush1.msra.mxu0 0.0
        %8306 = vmatprep.subr.mxu0 0.0
        %8307 = vmatpush1.msra.mxu0 0.0
        %8308 = vmatprep.subr.mxu0 0.0
        %8309 = vmatpush1.msra.mxu0 0.0
        %8310 = vmatprep.subr.mxu0 0.0
        %8311 = vmatpush1.msra.mxu0 0.0
        %8312 = vmatprep.subr.mxu0 0.0
        %8313 = vmatpush1.msra.mxu0 0.0
        %8314 = vmatprep.subr.mxu0 0.0
        %8315 = vmatpush1.msra.mxu0 0.0
        %8316 = vmatprep.subr.mxu0 0.0
        %8317 = vmatpush1.msra.mxu0 0.0
        %8318 = vmatprep.subr.mxu0 0.0
        %8319 = vmatpush1.msra.mxu0 0.0
        %8320 = vmatprep.subr.mxu0 0.0
        %8321 = vmatpush1.msra.mxu0 0.0
        %8322 = vmatprep.subr.mxu0 0.0
        %8323 = vmatpush1.msra.mxu0 0.0
        %8324 = vmatprep.subr.mxu0 0.0
        %8325 = vmatpush1.msra.mxu0 0.0
        %8326 = vmatprep.subr.mxu0 0.0
        %8327 = vmatpush1.msra.mxu0 0.0
        %8328 = vmatprep.subr.mxu0 0.0
        %8329 = vmatpush1.msra.mxu0 0.0
        %8330 = vmatprep.subr.mxu0 0.0
        %8331 = vmatpush1.msra.mxu0 0.0
        %8332 = vmatprep.subr.mxu0 0.0
        %8333 = vmatpush1.msra.mxu0 0.0
        %8334 = vmatprep.subr.mxu0 0.0
        %8335 = vmatpush1.msra.mxu0 0.0
        %8336 = vmatprep.subr.mxu0 0.0
        %8337 = vmatpush1.msra.mxu0 0.0
        %8338 = vmatprep.mubr.f32.mxu0 0.0
        %v8339 = vand.u32 %v7446, 4294901760
        %8340 = vmatmul.mubr.f32.gmra.mrb[0].mxu0 %v8339
        %v8341 = vpop.f32.mrb[0].mxu0
        %v8342 = vadd.f32 %v8260, %v8341
        %v8343 = vpop.f32.mrb[0].mxu0
        %8344 = vmatprep.mubr.f32.mxu0 0.0
        %v8345 = vand.u32 %v7449, 4294901760
        %8346 = vmatmul.mubr.f32.gmra.mrb[0].mxu0 %v8345
        %v8347 = vpop.f32.mrb[0].mxu0
        %v8348 = vadd.f32 %v8268, %v8347
        %v8349 = vpop.f32.mrb[0].mxu0
        %8350 = vdwg.mxu0
        %8351 = vmatprep.subr.mxu0 0.0
        %v8352 = vand.u32 %v1901, 4294901760
        %8353 = vmatpush1.msra.mxu0 %v8352
        %8354 = vmatprep.subr.mxu0 0.0
        %8355 = vmatpush1.msra.mxu0 0.0
        %8356 = vmatprep.subr.mxu0 0.0
        %8357 = vmatpush1.msra.mxu0 0.0
        %8358 = vmatprep.subr.mxu0 0.0
        %8359 = vmatpush1.msra.mxu0 0.0
        %8360 = vmatprep.subr.mxu0 0.0
        %8361 = vmatpush1.msra.mxu0 0.0
        %8362 = vmatprep.subr.mxu0 0.0
        %8363 = vmatpush1.msra.mxu0 0.0
        %8364 = vmatprep.subr.mxu0 0.0
        %8365 = vmatpush1.msra.mxu0 0.0
        %8366 = vmatprep.subr.mxu0 0.0
        %8367 = vmatpush1.msra.mxu0 0.0
        %8368 = vmatprep.subr.mxu0 0.0
        %8369 = vmatpush1.msra.mxu0 0.0
        %8370 = vmatprep.subr.mxu0 0.0
        %8371 = vmatpush1.msra.mxu0 0.0
        %8372 = vmatprep.subr.mxu0 0.0
        %8373 = vmatpush1.msra.mxu0 0.0
        %8374 = vmatprep.subr.mxu0 0.0
        %8375 = vmatpush1.msra.mxu0 0.0
        %8376 = vmatprep.subr.mxu0 0.0
        %8377 = vmatpush1.msra.mxu0 0.0
        %8378 = vmatprep.subr.mxu0 0.0
        %8379 = vmatpush1.msra.mxu0 0.0
        %8380 = vmatprep.subr.mxu0 0.0
        %8381 = vmatpush1.msra.mxu0 0.0
        %8382 = vmatprep.subr.mxu0 0.0
        %8383 = vmatpush1.msra.mxu0 0.0
        %8384 = vmatprep.subr.mxu0 0.0
        %8385 = vmatpush1.msra.mxu0 0.0
        %8386 = vmatprep.subr.mxu0 0.0
        %8387 = vmatpush1.msra.mxu0 0.0
        %8388 = vmatprep.subr.mxu0 0.0
        %8389 = vmatpush1.msra.mxu0 0.0
        %8390 = vmatprep.subr.mxu0 0.0
        %8391 = vmatpush1.msra.mxu0 0.0
        %8392 = vmatprep.subr.mxu0 0.0
        %8393 = vmatpush1.msra.mxu0 0.0
        %8394 = vmatprep.subr.mxu0 0.0
        %8395 = vmatpush1.msra.mxu0 0.0
        %8396 = vmatprep.subr.mxu0 0.0
        %8397 = vmatpush1.msra.mxu0 0.0
        %8398 = vmatprep.subr.mxu0 0.0
        %8399 = vmatpush1.msra.mxu0 0.0
        %8400 = vmatprep.subr.mxu0 0.0
        %8401 = vmatpush1.msra.mxu0 0.0
        %8402 = vmatprep.subr.mxu0 0.0
        %8403 = vmatpush1.msra.mxu0 0.0
        %8404 = vmatprep.subr.mxu0 0.0
        %8405 = vmatpush1.msra.mxu0 0.0
        %8406 = vmatprep.subr.mxu0 0.0
        %8407 = vmatpush1.msra.mxu0 0.0
        %8408 = vmatprep.subr.mxu0 0.0
        %8409 = vmatpush1.msra.mxu0 0.0
        %8410 = vmatprep.subr.mxu0 0.0
        %8411 = vmatpush1.msra.mxu0 0.0
        %8412 = vmatprep.subr.mxu0 0.0
        %8413 = vmatpush1.msra.mxu0 0.0
        %8414 = vmatprep.subr.mxu0 0.0
        %8415 = vmatpush1.msra.mxu0 0.0
        %8416 = vmatprep.mubr.f32.mxu0 0.0
        %v8417 = vand.u32 %v7446, 4294901760
        %8418 = vmatmul.mubr.f32.gmra.mrb[0].mxu0 %v8417
        %v8419 = vpop.f32.mrb[0].mxu0
        %v8420 = vadd.f32 %v8342, %v8419
        %v8421 = vpop.f32.mrb[0].mxu0
        %8422 = vmatprep.mubr.f32.mxu0 0.0
        %v8423 = vand.u32 %v7449, 4294901760
        %8424 = vmatmul.mubr.f32.gmra.mrb[0].mxu0 %v8423
        %v8425 = vpop.f32.mrb[0].mxu0
        %v8426 = vadd.f32 %v8348, %v8425
        %v8427 = vpop.f32.mrb[0].mxu0
        %8428 = vdwg.mxu0
        %8429 = vmatprep.subr.mxu0 0.0
        %v8430 = vand.u32 %v1907, 4294901760
        %8431 = vmatpush1.msra.mxu0 %v8430
        %8432 = vmatprep.subr.mxu0 0.0
        %8433 = vmatpush1.msra.mxu0 0.0
        %8434 = vmatprep.subr.mxu0 0.0
        %8435 = vmatpush1.msra.mxu0 0.0
        %8436 = vmatprep.subr.mxu0 0.0
        %8437 = vmatpush1.msra.mxu0 0.0
        %8438 = vmatprep.subr.mxu0 0.0
        %8439 = vmatpush1.msra.mxu0 0.0
        %8440 = vmatprep.subr.mxu0 0.0
        %8441 = vmatpush1.msra.mxu0 0.0
        %8442 = vmatprep.subr.mxu0 0.0
        %8443 = vmatpush1.msra.mxu0 0.0
        %8444 = vmatprep.subr.mxu0 0.0
        %8445 = vmatpush1.msra.mxu0 0.0
        %8446 = vmatprep.subr.mxu0 0.0
        %8447 = vmatpush1.msra.mxu0 0.0
        %8448 = vmatprep.subr.mxu0 0.0
        %8449 = vmatpush1.msra.mxu0 0.0
        %8450 = vmatprep.subr.mxu0 0.0
        %8451 = vmatpush1.msra.mxu0 0.0
        %8452 = vmatprep.subr.mxu0 0.0
        %8453 = vmatpush1.msra.mxu0 0.0
        %8454 = vmatprep.subr.mxu0 0.0
        %8455 = vmatpush1.msra.mxu0 0.0
        %8456 = vmatprep.subr.mxu0 0.0
        %8457 = vmatpush1.msra.mxu0 0.0
        %8458 = vmatprep.subr.mxu0 0.0
        %8459 = vmatpush1.msra.mxu0 0.0
        %8460 = vmatprep.subr.mxu0 0.0
        %8461 = vmatpush1.msra.mxu0 0.0
        %8462 = vmatprep.subr.mxu0 0.0
        %8463 = vmatpush1.msra.mxu0 0.0
        %8464 = vmatprep.subr.mxu0 0.0
        %8465 = vmatpush1.msra.mxu0 0.0
        %8466 = vmatprep.subr.mxu0 0.0
        %8467 = vmatpush1.msra.mxu0 0.0
        %8468 = vmatprep.subr.mxu0 0.0
        %8469 = vmatpush1.msra.mxu0 0.0
        %8470 = vmatprep.subr.mxu0 0.0
        %8471 = vmatpush1.msra.mxu0 0.0
        %8472 = vmatprep.subr.mxu0 0.0
        %8473 = vmatpush1.msra.mxu0 0.0
        %8474 = vmatprep.subr.mxu0 0.0
        %8475 = vmatpush1.msra.mxu0 0.0
        %8476 = vmatprep.subr.mxu0 0.0
        %8477 = vmatpush1.msra.mxu0 0.0
        %8478 = vmatprep.subr.mxu0 0.0
        %8479 = vmatpush1.msra.mxu0 0.0
        %8480 = vmatprep.subr.mxu0 0.0
        %8481 = vmatpush1.msra.mxu0 0.0
        %8482 = vmatprep.subr.mxu0 0.0
        %8483 = vmatpush1.msra.mxu0 0.0
        %8484 = vmatprep.subr.mxu0 0.0
        %8485 = vmatpush1.msra.mxu0 0.0
        %8486 = vmatprep.subr.mxu0 0.0
        %8487 = vmatpush1.msra.mxu0 0.0
        %8488 = vmatprep.subr.mxu0 0.0
        %8489 = vmatpush1.msra.mxu0 0.0
        %8490 = vmatprep.subr.mxu0 0.0
        %8491 = vmatpush1.msra.mxu0 0.0
        %8492 = vmatprep.subr.mxu0 0.0
        %8493 = vmatpush1.msra.mxu0 0.0
        %8494 = vmatprep.mubr.f32.mxu0 0.0
        %v8495 = vand.u32 %v7446, 4294901760
        %v8496 = vsub.f32 %v7446, %v8495
        %v8497 = vand.u32 %v8496, 4294901760
        %v8498 = vsub.f32 %v8496, %v8497
        %v8499 = vand.u32 %v8498, 4294901760
        %8500 = vmatmul.mubr.f32.gmra.mrb[0].mxu0 %v8499
        %v8501 = vpop.f32.mrb[0].mxu0
        %v8502 = vadd.f32 %v4991, %v8501
        %v8503 = vpop.f32.mrb[0].mxu0
        %8504 = vmatprep.mubr.f32.mxu0 0.0
        %v8505 = vand.u32 %v7449, 4294901760
        %v8506 = vsub.f32 %v7449, %v8505
        %v8507 = vand.u32 %v8506, 4294901760
        %v8508 = vsub.f32 %v8506, %v8507
        %v8509 = vand.u32 %v8508, 4294901760
        %8510 = vmatmul.mubr.f32.gmra.mrb[0].mxu0 %v8509
        %v8511 = vpop.f32.mrb[0].mxu0
        %v8512 = vadd.f32 %v4997, %v8511
        %v8513 = vpop.f32.mrb[0].mxu0
        %8514 = vdwg.mxu0
        %8515 = vmatprep.subr.mxu0 0.0
        %v8516 = vand.u32 %v1907, 4294901760
        %v8517 = vsub.f32 %v1907, %v8516
        %v8518 = vand.u32 %v8517, 4294901760
        %v8519 = vsub.f32 %v8517, %v8518
        %v8520 = vand.u32 %v8519, 4294901760
        %8521 = vmatpush1.msra.mxu0 %v8520
        %8522 = vmatprep.subr.mxu0 0.0
        %8523 = vmatpush1.msra.mxu0 0.0
        %8524 = vmatprep.subr.mxu0 0.0
        %8525 = vmatpush1.msra.mxu0 0.0
        %8526 = vmatprep.subr.mxu0 0.0
        %8527 = vmatpush1.msra.mxu0 0.0
        %8528 = vmatprep.subr.mxu0 0.0
        %8529 = vmatpush1.msra.mxu0 0.0
        %8530 = vmatprep.subr.mxu0 0.0
        %8531 = vmatpush1.msra.mxu0 0.0
        %8532 = vmatprep.subr.mxu0 0.0
        %8533 = vmatpush1.msra.mxu0 0.0
        %8534 = vmatprep.subr.mxu0 0.0
        %8535 = vmatpush1.msra.mxu0 0.0
        %8536 = vmatprep.subr.mxu0 0.0
        %8537 = vmatpush1.msra.mxu0 0.0
        %8538 = vmatprep.subr.mxu0 0.0
        %8539 = vmatpush1.msra.mxu0 0.0
        %8540 = vmatprep.subr.mxu0 0.0
        %8541 = vmatpush1.msra.mxu0 0.0
        %8542 = vmatprep.subr.mxu0 0.0
        %8543 = vmatpush1.msra.mxu0 0.0
        %8544 = vmatprep.subr.mxu0 0.0
        %8545 = vmatpush1.msra.mxu0 0.0
        %8546 = vmatprep.subr.mxu0 0.0
        %8547 = vmatpush1.msra.mxu0 0.0
        %8548 = vmatprep.subr.mxu0 0.0
        %8549 = vmatpush1.msra.mxu0 0.0
        %8550 = vmatprep.subr.mxu0 0.0
        %8551 = vmatpush1.msra.mxu0 0.0
        %8552 = vmatprep.subr.mxu0 0.0
        %8553 = vmatpush1.msra.mxu0 0.0
        %8554 = vmatprep.subr.mxu0 0.0
        %8555 = vmatpush1.msra.mxu0 0.0
        %8556 = vmatprep.subr.mxu0 0.0
        %8557 = vmatpush1.msra.mxu0 0.0
        %8558 = vmatprep.subr.mxu0 0.0
        %8559 = vmatpush1.msra.mxu0 0.0
        %8560 = vmatprep.subr.mxu0 0.0
        %8561 = vmatpush1.msra.mxu0 0.0
        %8562 = vmatprep.subr.mxu0 0.0
        %8563 = vmatpush1.msra.mxu0 0.0
        %8564 = vmatprep.subr.mxu0 0.0
        %8565 = vmatpush1.msra.mxu0 0.0
        %8566 = vmatprep.subr.mxu0 0.0
        %8567 = vmatpush1.msra.mxu0 0.0
        %8568 = vmatprep.subr.mxu0 0.0
        %8569 = vmatpush1.msra.mxu0 0.0
        %8570 = vmatprep.subr.mxu0 0.0
        %8571 = vmatpush1.msra.mxu0 0.0
        %8572 = vmatprep.subr.mxu0 0.0
        %8573 = vmatpush1.msra.mxu0 0.0
        %8574 = vmatprep.subr.mxu0 0.0
        %8575 = vmatpush1.msra.mxu0 0.0
        %8576 = vmatprep.subr.mxu0 0.0
        %8577 = vmatpush1.msra.mxu0 0.0
        %8578 = vmatprep.subr.mxu0 0.0
        %8579 = vmatpush1.msra.mxu0 0.0
        %8580 = vmatprep.subr.mxu0 0.0
        %8581 = vmatpush1.msra.mxu0 0.0
        %8582 = vmatprep.subr.mxu0 0.0
        %8583 = vmatpush1.msra.mxu0 0.0
        %8584 = vmatprep.mubr.f32.mxu0 0.0
        %v8585 = vand.u32 %v7446, 4294901760
        %8586 = vmatmul.mubr.f32.gmra.mrb[0].mxu0 %v8585
        %v8587 = vpop.f32.mrb[0].mxu0
        %v8588 = vadd.f32 %v8502, %v8587
        %v8589 = vpop.f32.mrb[0].mxu0
        %8590 = vmatprep.mubr.f32.mxu0 0.0
        %v8591 = vand.u32 %v7449, 4294901760
        %8592 = vmatmul.mubr.f32.gmra.mrb[0].mxu0 %v8591
        %v8593 = vpop.f32.mrb[0].mxu0
        %v8594 = vadd.f32 %v8512, %v8593
        %v8595 = vpop.f32.mrb[0].mxu0
        %8596 = vdwg.mxu0
        %8597 = vmatprep.subr.mxu0 0.0
        %v8598 = vand.u32 %v1907, 4294901760
        %v8599 = vsub.f32 %v1907, %v8598
        %8600 = vmatpush1.msra.mxu0 %v8599
        %8601 = vmatprep.subr.mxu0 0.0
        %8602 = vmatpush1.msra.mxu0 0.0
        %8603 = vmatprep.subr.mxu0 0.0
        %8604 = vmatpush1.msra.mxu0 0.0
        %8605 = vmatprep.subr.mxu0 0.0
        %8606 = vmatpush1.msra.mxu0 0.0
        %8607 = vmatprep.subr.mxu0 0.0
        %8608 = vmatpush1.msra.mxu0 0.0
        %8609 = vmatprep.subr.mxu0 0.0
        %8610 = vmatpush1.msra.mxu0 0.0
        %8611 = vmatprep.subr.mxu0 0.0
        %8612 = vmatpush1.msra.mxu0 0.0
        %8613 = vmatprep.subr.mxu0 0.0
        %8614 = vmatpush1.msra.mxu0 0.0
        %8615 = vmatprep.subr.mxu0 0.0
        %8616 = vmatpush1.msra.mxu0 0.0
        %8617 = vmatprep.subr.mxu0 0.0
        %8618 = vmatpush1.msra.mxu0 0.0
        %8619 = vmatprep.subr.mxu0 0.0
        %8620 = vmatpush1.msra.mxu0 0.0
        %8621 = vmatprep.subr.mxu0 0.0
        %8622 = vmatpush1.msra.mxu0 0.0
        %8623 = vmatprep.subr.mxu0 0.0
        %8624 = vmatpush1.msra.mxu0 0.0
        %8625 = vmatprep.subr.mxu0 0.0
        %8626 = vmatpush1.msra.mxu0 0.0
        %8627 = vmatprep.subr.mxu0 0.0
        %8628 = vmatpush1.msra.mxu0 0.0
        %8629 = vmatprep.subr.mxu0 0.0
        %8630 = vmatpush1.msra.mxu0 0.0
        %8631 = vmatprep.subr.mxu0 0.0
        %8632 = vmatpush1.msra.mxu0 0.0
        %8633 = vmatprep.subr.mxu0 0.0
        %8634 = vmatpush1.msra.mxu0 0.0
        %8635 = vmatprep.subr.mxu0 0.0
        %8636 = vmatpush1.msra.mxu0 0.0
        %8637 = vmatprep.subr.mxu0 0.0
        %8638 = vmatpush1.msra.mxu0 0.0
        %8639 = vmatprep.subr.mxu0 0.0
        %8640 = vmatpush1.msra.mxu0 0.0
        %8641 = vmatprep.subr.mxu0 0.0
        %8642 = vmatpush1.msra.mxu0 0.0
        %8643 = vmatprep.subr.mxu0 0.0
        %8644 = vmatpush1.msra.mxu0 0.0
        %8645 = vmatprep.subr.mxu0 0.0
        %8646 = vmatpush1.msra.mxu0 0.0
        %8647 = vmatprep.subr.mxu0 0.0
        %8648 = vmatpush1.msra.mxu0 0.0
        %8649 = vmatprep.subr.mxu0 0.0
        %8650 = vmatpush1.msra.mxu0 0.0
        %8651 = vmatprep.subr.mxu0 0.0
        %8652 = vmatpush1.msra.mxu0 0.0
        %8653 = vmatprep.subr.mxu0 0.0
        %8654 = vmatpush1.msra.mxu0 0.0
        %8655 = vmatprep.subr.mxu0 0.0
        %8656 = vmatpush1.msra.mxu0 0.0
        %8657 = vmatprep.subr.mxu0 0.0
        %8658 = vmatpush1.msra.mxu0 0.0
        %8659 = vmatprep.subr.mxu0 0.0
        %8660 = vmatpush1.msra.mxu0 0.0
        %8661 = vmatprep.subr.mxu0 0.0
        %8662 = vmatpush1.msra.mxu0 0.0
        %8663 = vmatprep.mubr.f32.mxu0 0.0
        %v8664 = vand.u32 %v7446, 4294901760
        %v8665 = vsub.f32 %v7446, %v8664
        %8666 = vmatmul.mubr.f32.gmra.mrb[0].mxu0 %v8665
        %v8667 = vpop.f32.mrb[0].mxu0
        %v8668 = vadd.f32 %v8588, %v8667
        %v8669 = vpop.f32.mrb[0].mxu0
        %8670 = vmatprep.mubr.f32.mxu0 0.0
        %v8671 = vand.u32 %v7449, 4294901760
        %v8672 = vsub.f32 %v7449, %v8671
        %8673 = vmatmul.mubr.f32.gmra.mrb[0].mxu0 %v8672
        %v8674 = vpop.f32.mrb[0].mxu0
        %v8675 = vadd.f32 %v8594, %v8674
        %v8676 = vpop.f32.mrb[0].mxu0
        %8677 = vdwg.mxu0
        %8678 = vmatprep.subr.mxu0 0.0
        %v8679 = vand.u32 %v1907, 4294901760
        %8680 = vmatpush1.msra.mxu0 %v8679
        %8681 = vmatprep.subr.mxu0 0.0
        %8682 = vmatpush1.msra.mxu0 0.0
        %8683 = vmatprep.subr.mxu0 0.0
        %8684 = vmatpush1.msra.mxu0 0.0
        %8685 = vmatprep.subr.mxu0 0.0
        %8686 = vmatpush1.msra.mxu0 0.0
        %8687 = vmatprep.subr.mxu0 0.0
        %8688 = vmatpush1.msra.mxu0 0.0
        %8689 = vmatprep.subr.mxu0 0.0
        %8690 = vmatpush1.msra.mxu0 0.0
        %8691 = vmatprep.subr.mxu0 0.0
        %8692 = vmatpush1.msra.mxu0 0.0
        %8693 = vmatprep.subr.mxu0 0.0
        %8694 = vmatpush1.msra.mxu0 0.0
        %8695 = vmatprep.subr.mxu0 0.0
        %8696 = vmatpush1.msra.mxu0 0.0
        %8697 = vmatprep.subr.mxu0 0.0
        %8698 = vmatpush1.msra.mxu0 0.0
        %8699 = vmatprep.subr.mxu0 0.0
        %8700 = vmatpush1.msra.mxu0 0.0
        %8701 = vmatprep.subr.mxu0 0.0
        %8702 = vmatpush1.msra.mxu0 0.0
        %8703 = vmatprep.subr.mxu0 0.0
        %8704 = vmatpush1.msra.mxu0 0.0
        %8705 = vmatprep.subr.mxu0 0.0
        %8706 = vmatpush1.msra.mxu0 0.0
        %8707 = vmatprep.subr.mxu0 0.0
        %8708 = vmatpush1.msra.mxu0 0.0
        %8709 = vmatprep.subr.mxu0 0.0
        %8710 = vmatpush1.msra.mxu0 0.0
        %8711 = vmatprep.subr.mxu0 0.0
        %8712 = vmatpush1.msra.mxu0 0.0
        %8713 = vmatprep.subr.mxu0 0.0
        %8714 = vmatpush1.msra.mxu0 0.0
        %8715 = vmatprep.subr.mxu0 0.0
        %8716 = vmatpush1.msra.mxu0 0.0
        %8717 = vmatprep.subr.mxu0 0.0
        %8718 = vmatpush1.msra.mxu0 0.0
        %8719 = vmatprep.subr.mxu0 0.0
        %8720 = vmatpush1.msra.mxu0 0.0
        %8721 = vmatprep.subr.mxu0 0.0
        %8722 = vmatpush1.msra.mxu0 0.0
        %8723 = vmatprep.subr.mxu0 0.0
        %8724 = vmatpush1.msra.mxu0 0.0
        %8725 = vmatprep.subr.mxu0 0.0
        %8726 = vmatpush1.msra.mxu0 0.0
        %8727 = vmatprep.subr.mxu0 0.0
        %8728 = vmatpush1.msra.mxu0 0.0
        %8729 = vmatprep.subr.mxu0 0.0
        %8730 = vmatpush1.msra.mxu0 0.0
        %8731 = vmatprep.subr.mxu0 0.0
        %8732 = vmatpush1.msra.mxu0 0.0
        %8733 = vmatprep.subr.mxu0 0.0
        %8734 = vmatpush1.msra.mxu0 0.0
        %8735 = vmatprep.subr.mxu0 0.0
        %8736 = vmatpush1.msra.mxu0 0.0
        %8737 = vmatprep.subr.mxu0 0.0
        %8738 = vmatpush1.msra.mxu0 0.0
        %8739 = vmatprep.subr.mxu0 0.0
        %8740 = vmatpush1.msra.mxu0 0.0
        %8741 = vmatprep.subr.mxu0 0.0
        %8742 = vmatpush1.msra.mxu0 0.0
        %8743 = vmatprep.mubr.f32.mxu0 0.0
        %v8744 = vand.u32 %v7446, 4294901760
        %v8745 = vsub.f32 %v7446, %v8744
        %v8746 = vand.u32 %v8745, 4294901760
        %8747 = vmatmul.mubr.f32.gmra.mrb[0].mxu0 %v8746
        %v8748 = vpop.f32.mrb[0].mxu0
        %v8749 = vadd.f32 %v8668, %v8748
        %v8750 = vpop.f32.mrb[0].mxu0
        %8751 = vmatprep.mubr.f32.mxu0 0.0
        %v8752 = vand.u32 %v7449, 4294901760
        %v8753 = vsub.f32 %v7449, %v8752
        %v8754 = vand.u32 %v8753, 4294901760
        %8755 = vmatmul.mubr.f32.gmra.mrb[0].mxu0 %v8754
        %v8756 = vpop.f32.mrb[0].mxu0
        %v8757 = vadd.f32 %v8675, %v8756
        %v8758 = vpop.f32.mrb[0].mxu0
        %8759 = vdwg.mxu0
        %8760 = vmatprep.subr.mxu0 0.0
        %v8761 = vand.u32 %v1907, 4294901760
        %v8762 = vsub.f32 %v1907, %v8761
        %v8763 = vand.u32 %v8762, 4294901760
        %8764 = vmatpush1.msra.mxu0 %v8763
        %8765 = vmatprep.subr.mxu0 0.0
        %8766 = vmatpush1.msra.mxu0 0.0
        %8767 = vmatprep.subr.mxu0 0.0
        %8768 = vmatpush1.msra.mxu0 0.0
        %8769 = vmatprep.subr.mxu0 0.0
        %8770 = vmatpush1.msra.mxu0 0.0
        %8771 = vmatprep.subr.mxu0 0.0
        %8772 = vmatpush1.msra.mxu0 0.0
        %8773 = vmatprep.subr.mxu0 0.0
        %8774 = vmatpush1.msra.mxu0 0.0
        %8775 = vmatprep.subr.mxu0 0.0
        %8776 = vmatpush1.msra.mxu0 0.0
        %8777 = vmatprep.subr.mxu0 0.0
        %8778 = vmatpush1.msra.mxu0 0.0
        %8779 = vmatprep.subr.mxu0 0.0
        %8780 = vmatpush1.msra.mxu0 0.0
        %8781 = vmatprep.subr.mxu0 0.0
        %8782 = vmatpush1.msra.mxu0 0.0
        %8783 = vmatprep.subr.mxu0 0.0
        %8784 = vmatpush1.msra.mxu0 0.0
        %8785 = vmatprep.subr.mxu0 0.0
        %8786 = vmatpush1.msra.mxu0 0.0
        %8787 = vmatprep.subr.mxu0 0.0
        %8788 = vmatpush1.msra.mxu0 0.0
        %8789 = vmatprep.subr.mxu0 0.0
        %8790 = vmatpush1.msra.mxu0 0.0
        %8791 = vmatprep.subr.mxu0 0.0
        %8792 = vmatpush1.msra.mxu0 0.0
        %8793 = vmatprep.subr.mxu0 0.0
        %8794 = vmatpush1.msra.mxu0 0.0
        %8795 = vmatprep.subr.mxu0 0.0
        %8796 = vmatpush1.msra.mxu0 0.0
        %8797 = vmatprep.subr.mxu0 0.0
        %8798 = vmatpush1.msra.mxu0 0.0
        %8799 = vmatprep.subr.mxu0 0.0
        %8800 = vmatpush1.msra.mxu0 0.0
        %8801 = vmatprep.subr.mxu0 0.0
        %8802 = vmatpush1.msra.mxu0 0.0
        %8803 = vmatprep.subr.mxu0 0.0
        %8804 = vmatpush1.msra.mxu0 0.0
        %8805 = vmatprep.subr.mxu0 0.0
        %8806 = vmatpush1.msra.mxu0 0.0
        %8807 = vmatprep.subr.mxu0 0.0
        %8808 = vmatpush1.msra.mxu0 0.0
        %8809 = vmatprep.subr.mxu0 0.0
        %8810 = vmatpush1.msra.mxu0 0.0
        %8811 = vmatprep.subr.mxu0 0.0
        %8812 = vmatpush1.msra.mxu0 0.0
        %8813 = vmatprep.subr.mxu0 0.0
        %8814 = vmatpush1.msra.mxu0 0.0
        %8815 = vmatprep.subr.mxu0 0.0
        %8816 = vmatpush1.msra.mxu0 0.0
        %8817 = vmatprep.subr.mxu0 0.0
        %8818 = vmatpush1.msra.mxu0 0.0
        %8819 = vmatprep.subr.mxu0 0.0
        %8820 = vmatpush1.msra.mxu0 0.0
        %8821 = vmatprep.subr.mxu0 0.0
        %8822 = vmatpush1.msra.mxu0 0.0
        %8823 = vmatprep.subr.mxu0 0.0
        %8824 = vmatpush1.msra.mxu0 0.0
        %8825 = vmatprep.subr.mxu0 0.0
        %8826 = vmatpush1.msra.mxu0 0.0
        %8827 = vmatprep.mubr.f32.mxu0 0.0
        %v8828 = vand.u32 %v7446, 4294901760
        %8829 = vmatmul.mubr.f32.gmra.mrb[0].mxu0 %v8828
        %v8830 = vpop.f32.mrb[0].mxu0
        %v8831 = vadd.f32 %v8749, %v8830
        %v8832 = vpop.f32.mrb[0].mxu0
        %8833 = vmatprep.mubr.f32.mxu0 0.0
        %v8834 = vand.u32 %v7449, 4294901760
        %8835 = vmatmul.mubr.f32.gmra.mrb[0].mxu0 %v8834
        %v8836 = vpop.f32.mrb[0].mxu0
        %v8837 = vadd.f32 %v8757, %v8836
        %v8838 = vpop.f32.mrb[0].mxu0
        %8839 = vdwg.mxu0
        %8840 = vmatprep.subr.mxu0 0.0
        %v8841 = vand.u32 %v1907, 4294901760
        %8842 = vmatpush1.msra.mxu0 %v8841
        %8843 = vmatprep.subr.mxu0 0.0
        %8844 = vmatpush1.msra.mxu0 0.0
        %8845 = vmatprep.subr.mxu0 0.0
        %8846 = vmatpush1.msra.mxu0 0.0
        %8847 = vmatprep.subr.mxu0 0.0
        %8848 = vmatpush1.msra.mxu0 0.0
        %8849 = vmatprep.subr.mxu0 0.0
        %8850 = vmatpush1.msra.mxu0 0.0
        %8851 = vmatprep.subr.mxu0 0.0
        %8852 = vmatpush1.msra.mxu0 0.0
        %8853 = vmatprep.subr.mxu0 0.0
        %8854 = vmatpush1.msra.mxu0 0.0
        %8855 = vmatprep.subr.mxu0 0.0
        %8856 = vmatpush1.msra.mxu0 0.0
        %8857 = vmatprep.subr.mxu0 0.0
        %8858 = vmatpush1.msra.mxu0 0.0
        %8859 = vmatprep.subr.mxu0 0.0
        %8860 = vmatpush1.msra.mxu0 0.0
        %8861 = vmatprep.subr.mxu0 0.0
        %8862 = vmatpush1.msra.mxu0 0.0
        %8863 = vmatprep.subr.mxu0 0.0
        %8864 = vmatpush1.msra.mxu0 0.0
        %8865 = vmatprep.subr.mxu0 0.0
        %8866 = vmatpush1.msra.mxu0 0.0
        %8867 = vmatprep.subr.mxu0 0.0
        %8868 = vmatpush1.msra.mxu0 0.0
        %8869 = vmatprep.subr.mxu0 0.0
        %8870 = vmatpush1.msra.mxu0 0.0
        %8871 = vmatprep.subr.mxu0 0.0
        %8872 = vmatpush1.msra.mxu0 0.0
        %8873 = vmatprep.subr.mxu0 0.0
        %8874 = vmatpush1.msra.mxu0 0.0
        %8875 = vmatprep.subr.mxu0 0.0
        %8876 = vmatpush1.msra.mxu0 0.0
        %8877 = vmatprep.subr.mxu0 0.0
        %8878 = vmatpush1.msra.mxu0 0.0
        %8879 = vmatprep.subr.mxu0 0.0
        %8880 = vmatpush1.msra.mxu0 0.0
        %8881 = vmatprep.subr.mxu0 0.0
        %8882 = vmatpush1.msra.mxu0 0.0
        %8883 = vmatprep.subr.mxu0 0.0
        %8884 = vmatpush1.msra.mxu0 0.0
        %8885 = vmatprep.subr.mxu0 0.0
        %8886 = vmatpush1.msra.mxu0 0.0
        %8887 = vmatprep.subr.mxu0 0.0
        %8888 = vmatpush1.msra.mxu0 0.0
        %8889 = vmatprep.subr.mxu0 0.0
        %8890 = vmatpush1.msra.mxu0 0.0
        %8891 = vmatprep.subr.mxu0 0.0
        %8892 = vmatpush1.msra.mxu0 0.0
        %8893 = vmatprep.subr.mxu0 0.0
        %8894 = vmatpush1.msra.mxu0 0.0
        %8895 = vmatprep.subr.mxu0 0.0
        %8896 = vmatpush1.msra.mxu0 0.0
        %8897 = vmatprep.subr.mxu0 0.0
        %8898 = vmatpush1.msra.mxu0 0.0
        %8899 = vmatprep.subr.mxu0 0.0
        %8900 = vmatpush1.msra.mxu0 0.0
        %8901 = vmatprep.subr.mxu0 0.0
        %8902 = vmatpush1.msra.mxu0 0.0
        %8903 = vmatprep.subr.mxu0 0.0
        %8904 = vmatpush1.msra.mxu0 0.0
        %8905 = vmatprep.mubr.f32.mxu0 0.0
        %v8906 = vand.u32 %v7446, 4294901760
        %8907 = vmatmul.mubr.f32.gmra.mrb[0].mxu0 %v8906
        %v8908 = vpop.f32.mrb[0].mxu0
        %v8909 = vadd.f32 %v8831, %v8908
        %v8910 = vpop.f32.mrb[0].mxu0
        %8911 = vmatprep.mubr.f32.mxu0 0.0
        %v8912 = vand.u32 %v7449, 4294901760
        %8913 = vmatmul.mubr.f32.gmra.mrb[0].mxu0 %v8912
        %v8914 = vpop.f32.mrb[0].mxu0
        %v8915 = vadd.f32 %v8837, %v8914
        %v8916 = vpop.f32.mrb[0].mxu0
        %8917 = vdwg.mxu0
        %8918 = vmatprep.subr.mxu0 0.0
        %v8919 = vand.u32 %v1913, 4294901760
        %8920 = vmatpush1.msra.mxu0 %v8919
        %8921 = vmatprep.subr.mxu0 0.0
        %8922 = vmatpush1.msra.mxu0 0.0
        %8923 = vmatprep.subr.mxu0 0.0
        %8924 = vmatpush1.msra.mxu0 0.0
        %8925 = vmatprep.subr.mxu0 0.0
        %8926 = vmatpush1.msra.mxu0 0.0
        %8927 = vmatprep.subr.mxu0 0.0
        %8928 = vmatpush1.msra.mxu0 0.0
        %8929 = vmatprep.subr.mxu0 0.0
        %8930 = vmatpush1.msra.mxu0 0.0
        %8931 = vmatprep.subr.mxu0 0.0
        %8932 = vmatpush1.msra.mxu0 0.0
        %8933 = vmatprep.subr.mxu0 0.0
        %8934 = vmatpush1.msra.mxu0 0.0
        %8935 = vmatprep.subr.mxu0 0.0
        %8936 = vmatpush1.msra.mxu0 0.0
        %8937 = vmatprep.subr.mxu0 0.0
        %8938 = vmatpush1.msra.mxu0 0.0
        %8939 = vmatprep.subr.mxu0 0.0
        %8940 = vmatpush1.msra.mxu0 0.0
        %8941 = vmatprep.subr.mxu0 0.0
        %8942 = vmatpush1.msra.mxu0 0.0
        %8943 = vmatprep.subr.mxu0 0.0
        %8944 = vmatpush1.msra.mxu0 0.0
        %8945 = vmatprep.subr.mxu0 0.0
        %8946 = vmatpush1.msra.mxu0 0.0
        %8947 = vmatprep.subr.mxu0 0.0
        %8948 = vmatpush1.msra.mxu0 0.0
        %8949 = vmatprep.subr.mxu0 0.0
        %8950 = vmatpush1.msra.mxu0 0.0
        %8951 = vmatprep.subr.mxu0 0.0
        %8952 = vmatpush1.msra.mxu0 0.0
        %8953 = vmatprep.subr.mxu0 0.0
        %8954 = vmatpush1.msra.mxu0 0.0
        %8955 = vmatprep.subr.mxu0 0.0
        %8956 = vmatpush1.msra.mxu0 0.0
        %8957 = vmatprep.subr.mxu0 0.0
        %8958 = vmatpush1.msra.mxu0 0.0
        %8959 = vmatprep.subr.mxu0 0.0
        %8960 = vmatpush1.msra.mxu0 0.0
        %8961 = vmatprep.subr.mxu0 0.0
        %8962 = vmatpush1.msra.mxu0 0.0
        %8963 = vmatprep.subr.mxu0 0.0
        %8964 = vmatpush1.msra.mxu0 0.0
        %8965 = vmatprep.subr.mxu0 0.0
        %8966 = vmatpush1.msra.mxu0 0.0
        %8967 = vmatprep.subr.mxu0 0.0
        %8968 = vmatpush1.msra.mxu0 0.0
        %8969 = vmatprep.subr.mxu0 0.0
        %8970 = vmatpush1.msra.mxu0 0.0
        %8971 = vmatprep.subr.mxu0 0.0
        %8972 = vmatpush1.msra.mxu0 0.0
        %8973 = vmatprep.subr.mxu0 0.0
        %8974 = vmatpush1.msra.mxu0 0.0
        %8975 = vmatprep.subr.mxu0 0.0
        %8976 = vmatpush1.msra.mxu0 0.0
        %8977 = vmatprep.subr.mxu0 0.0
        %8978 = vmatpush1.msra.mxu0 0.0
        %8979 = vmatprep.subr.mxu0 0.0
        %8980 = vmatpush1.msra.mxu0 0.0
        %8981 = vmatprep.subr.mxu0 0.0
        %8982 = vmatpush1.msra.mxu0 0.0
        %8983 = vmatprep.mubr.f32.mxu0 0.0
        %v8984 = vand.u32 %v7446, 4294901760
        %v8985 = vsub.f32 %v7446, %v8984
        %v8986 = vand.u32 %v8985, 4294901760
        %v8987 = vsub.f32 %v8985, %v8986
        %v8988 = vand.u32 %v8987, 4294901760
        %8989 = vmatmul.mubr.f32.gmra.mrb[0].mxu0 %v8988
        %v8990 = vpop.f32.mrb[0].mxu0
        %v8991 = vadd.f32 %v5480, %v8990
        %v8992 = vpop.f32.mrb[0].mxu0
        %8993 = vmatprep.mubr.f32.mxu0 0.0
        %v8994 = vand.u32 %v7449, 4294901760
        %v8995 = vsub.f32 %v7449, %v8994
        %v8996 = vand.u32 %v8995, 4294901760
        %v8997 = vsub.f32 %v8995, %v8996
        %v8998 = vand.u32 %v8997, 4294901760
        %8999 = vmatmul.mubr.f32.gmra.mrb[0].mxu0 %v8998
        %v9000 = vpop.f32.mrb[0].mxu0
        %v9001 = vadd.f32 %v5486, %v9000
        %v9002 = vpop.f32.mrb[0].mxu0
        %9003 = vdwg.mxu0
        %9004 = vmatprep.subr.mxu0 0.0
        %v9005 = vand.u32 %v1913, 4294901760
        %v9006 = vsub.f32 %v1913, %v9005
        %v9007 = vand.u32 %v9006, 4294901760
        %v9008 = vsub.f32 %v9006, %v9007
        %v9009 = vand.u32 %v9008, 4294901760
        %9010 = vmatpush1.msra.mxu0 %v9009
        %9011 = vmatprep.subr.mxu0 0.0
        %9012 = vmatpush1.msra.mxu0 0.0
        %9013 = vmatprep.subr.mxu0 0.0
        %9014 = vmatpush1.msra.mxu0 0.0
        %9015 = vmatprep.subr.mxu0 0.0
        %9016 = vmatpush1.msra.mxu0 0.0
        %9017 = vmatprep.subr.mxu0 0.0
        %9018 = vmatpush1.msra.mxu0 0.0
        %9019 = vmatprep.subr.mxu0 0.0
        %9020 = vmatpush1.msra.mxu0 0.0
        %9021 = vmatprep.subr.mxu0 0.0
        %9022 = vmatpush1.msra.mxu0 0.0
        %9023 = vmatprep.subr.mxu0 0.0
        %9024 = vmatpush1.msra.mxu0 0.0
        %9025 = vmatprep.subr.mxu0 0.0
        %9026 = vmatpush1.msra.mxu0 0.0
        %9027 = vmatprep.subr.mxu0 0.0
        %9028 = vmatpush1.msra.mxu0 0.0
        %9029 = vmatprep.subr.mxu0 0.0
        %9030 = vmatpush1.msra.mxu0 0.0
        %9031 = vmatprep.subr.mxu0 0.0
        %9032 = vmatpush1.msra.mxu0 0.0
        %9033 = vmatprep.subr.mxu0 0.0
        %9034 = vmatpush1.msra.mxu0 0.0
        %9035 = vmatprep.subr.mxu0 0.0
        %9036 = vmatpush1.msra.mxu0 0.0
        %9037 = vmatprep.subr.mxu0 0.0
        %9038 = vmatpush1.msra.mxu0 0.0
        %9039 = vmatprep.subr.mxu0 0.0
        %9040 = vmatpush1.msra.mxu0 0.0
        %9041 = vmatprep.subr.mxu0 0.0
        %9042 = vmatpush1.msra.mxu0 0.0
        %9043 = vmatprep.subr.mxu0 0.0
        %9044 = vmatpush1.msra.mxu0 0.0
        %9045 = vmatprep.subr.mxu0 0.0
        %9046 = vmatpush1.msra.mxu0 0.0
        %9047 = vmatprep.subr.mxu0 0.0
        %9048 = vmatpush1.msra.mxu0 0.0
        %9049 = vmatprep.subr.mxu0 0.0
        %9050 = vmatpush1.msra.mxu0 0.0
        %9051 = vmatprep.subr.mxu0 0.0
        %9052 = vmatpush1.msra.mxu0 0.0
        %9053 = vmatprep.subr.mxu0 0.0
        %9054 = vmatpush1.msra.mxu0 0.0
        %9055 = vmatprep.subr.mxu0 0.0
        %9056 = vmatpush1.msra.mxu0 0.0
        %9057 = vmatprep.subr.mxu0 0.0
        %9058 = vmatpush1.msra.mxu0 0.0
        %9059 = vmatprep.subr.mxu0 0.0
        %9060 = vmatpush1.msra.mxu0 0.0
        %9061 = vmatprep.subr.mxu0 0.0
        %9062 = vmatpush1.msra.mxu0 0.0
        %9063 = vmatprep.subr.mxu0 0.0
        %9064 = vmatpush1.msra.mxu0 0.0
        %9065 = vmatprep.subr.mxu0 0.0
        %9066 = vmatpush1.msra.mxu0 0.0
        %9067 = vmatprep.subr.mxu0 0.0
        %9068 = vmatpush1.msra.mxu0 0.0
        %9069 = vmatprep.subr.mxu0 0.0
        %9070 = vmatpush1.msra.mxu0 0.0
        %9071 = vmatprep.subr.mxu0 0.0
        %9072 = vmatpush1.msra.mxu0 0.0
        %9073 = vmatprep.mubr.f32.mxu0 0.0
        %v9074 = vand.u32 %v7446, 4294901760
        %9075 = vmatmul.mubr.f32.gmra.mrb[0].mxu0 %v9074
        %v9076 = vpop.f32.mrb[0].mxu0
        %v9077 = vadd.f32 %v8991, %v9076
        %v9078 = vpop.f32.mrb[0].mxu0
        %9079 = vmatprep.mubr.f32.mxu0 0.0
        %v9080 = vand.u32 %v7449, 4294901760
        %9081 = vmatmul.mubr.f32.gmra.mrb[0].mxu0 %v9080
        %v9082 = vpop.f32.mrb[0].mxu0
        %v9083 = vadd.f32 %v9001, %v9082
        %v9084 = vpop.f32.mrb[0].mxu0
        %9085 = vdwg.mxu0
        %9086 = vmatprep.subr.mxu0 0.0
        %v9087 = vand.u32 %v1913, 4294901760
        %v9088 = vsub.f32 %v1913, %v9087
        %9089 = vmatpush1.msra.mxu0 %v9088
        %9090 = vmatprep.subr.mxu0 0.0
        %9091 = vmatpush1.msra.mxu0 0.0
        %9092 = vmatprep.subr.mxu0 0.0
        %9093 = vmatpush1.msra.mxu0 0.0
        %9094 = vmatprep.subr.mxu0 0.0
        %9095 = vmatpush1.msra.mxu0 0.0
        %9096 = vmatprep.subr.mxu0 0.0
        %9097 = vmatpush1.msra.mxu0 0.0
        %9098 = vmatprep.subr.mxu0 0.0
        %9099 = vmatpush1.msra.mxu0 0.0
        %9100 = vmatprep.subr.mxu0 0.0
        %9101 = vmatpush1.msra.mxu0 0.0
        %9102 = vmatprep.subr.mxu0 0.0
        %9103 = vmatpush1.msra.mxu0 0.0
        %9104 = vmatprep.subr.mxu0 0.0
        %9105 = vmatpush1.msra.mxu0 0.0
        %9106 = vmatprep.subr.mxu0 0.0
        %9107 = vmatpush1.msra.mxu0 0.0
        %9108 = vmatprep.subr.mxu0 0.0
        %9109 = vmatpush1.msra.mxu0 0.0
        %9110 = vmatprep.subr.mxu0 0.0
        %9111 = vmatpush1.msra.mxu0 0.0
        %9112 = vmatprep.subr.mxu0 0.0
        %9113 = vmatpush1.msra.mxu0 0.0
        %9114 = vmatprep.subr.mxu0 0.0
        %9115 = vmatpush1.msra.mxu0 0.0
        %9116 = vmatprep.subr.mxu0 0.0
        %9117 = vmatpush1.msra.mxu0 0.0
        %9118 = vmatprep.subr.mxu0 0.0
        %9119 = vmatpush1.msra.mxu0 0.0
        %9120 = vmatprep.subr.mxu0 0.0
        %9121 = vmatpush1.msra.mxu0 0.0
        %9122 = vmatprep.subr.mxu0 0.0
        %9123 = vmatpush1.msra.mxu0 0.0
        %9124 = vmatprep.subr.mxu0 0.0
        %9125 = vmatpush1.msra.mxu0 0.0
        %9126 = vmatprep.subr.mxu0 0.0
        %9127 = vmatpush1.msra.mxu0 0.0
        %9128 = vmatprep.subr.mxu0 0.0
        %9129 = vmatpush1.msra.mxu0 0.0
        %9130 = vmatprep.subr.mxu0 0.0
        %9131 = vmatpush1.msra.mxu0 0.0
        %9132 = vmatprep.subr.mxu0 0.0
        %9133 = vmatpush1.msra.mxu0 0.0
        %9134 = vmatprep.subr.mxu0 0.0
        %9135 = vmatpush1.msra.mxu0 0.0
        %9136 = vmatprep.subr.mxu0 0.0
        %9137 = vmatpush1.msra.mxu0 0.0
        %9138 = vmatprep.subr.mxu0 0.0
        %9139 = vmatpush1.msra.mxu0 0.0
        %9140 = vmatprep.subr.mxu0 0.0
        %9141 = vmatpush1.msra.mxu0 0.0
        %9142 = vmatprep.subr.mxu0 0.0
        %9143 = vmatpush1.msra.mxu0 0.0
        %9144 = vmatprep.subr.mxu0 0.0
        %9145 = vmatpush1.msra.mxu0 0.0
        %9146 = vmatprep.subr.mxu0 0.0
        %9147 = vmatpush1.msra.mxu0 0.0
        %9148 = vmatprep.subr.mxu0 0.0
        %9149 = vmatpush1.msra.mxu0 0.0
        %9150 = vmatprep.subr.mxu0 0.0
        %9151 = vmatpush1.msra.mxu0 0.0
        %9152 = vmatprep.mubr.f32.mxu0 0.0
        %v9153 = vand.u32 %v7446, 4294901760
        %v9154 = vsub.f32 %v7446, %v9153
        %9155 = vmatmul.mubr.f32.gmra.mrb[0].mxu0 %v9154
        %v9156 = vpop.f32.mrb[0].mxu0
        %v9157 = vadd.f32 %v9077, %v9156
        %v9158 = vpop.f32.mrb[0].mxu0
        %9159 = vmatprep.mubr.f32.mxu0 0.0
        %v9160 = vand.u32 %v7449, 4294901760
        %v9161 = vsub.f32 %v7449, %v9160
        %9162 = vmatmul.mubr.f32.gmra.mrb[0].mxu0 %v9161
        %v9163 = vpop.f32.mrb[0].mxu0
        %v9164 = vadd.f32 %v9083, %v9163
        %v9165 = vpop.f32.mrb[0].mxu0
        %9166 = vdwg.mxu0
        %9167 = vmatprep.subr.mxu0 0.0
        %v9168 = vand.u32 %v1913, 4294901760
        %9169 = vmatpush1.msra.mxu0 %v9168
        %9170 = vmatprep.subr.mxu0 0.0
        %9171 = vmatpush1.msra.mxu0 0.0
        %9172 = vmatprep.subr.mxu0 0.0
        %9173 = vmatpush1.msra.mxu0 0.0
        %9174 = vmatprep.subr.mxu0 0.0
        %9175 = vmatpush1.msra.mxu0 0.0
        %9176 = vmatprep.subr.mxu0 0.0
        %9177 = vmatpush1.msra.mxu0 0.0
        %9178 = vmatprep.subr.mxu0 0.0
        %9179 = vmatpush1.msra.mxu0 0.0
        %9180 = vmatprep.subr.mxu0 0.0
        %9181 = vmatpush1.msra.mxu0 0.0
        %9182 = vmatprep.subr.mxu0 0.0
        %9183 = vmatpush1.msra.mxu0 0.0
        %9184 = vmatprep.subr.mxu0 0.0
        %9185 = vmatpush1.msra.mxu0 0.0
        %9186 = vmatprep.subr.mxu0 0.0
        %9187 = vmatpush1.msra.mxu0 0.0
        %9188 = vmatprep.subr.mxu0 0.0
        %9189 = vmatpush1.msra.mxu0 0.0
        %9190 = vmatprep.subr.mxu0 0.0
        %9191 = vmatpush1.msra.mxu0 0.0
        %9192 = vmatprep.subr.mxu0 0.0
        %9193 = vmatpush1.msra.mxu0 0.0
        %9194 = vmatprep.subr.mxu0 0.0
        %9195 = vmatpush1.msra.mxu0 0.0
        %9196 = vmatprep.subr.mxu0 0.0
        %9197 = vmatpush1.msra.mxu0 0.0
        %9198 = vmatprep.subr.mxu0 0.0
        %9199 = vmatpush1.msra.mxu0 0.0
        %9200 = vmatprep.subr.mxu0 0.0
        %9201 = vmatpush1.msra.mxu0 0.0
        %9202 = vmatprep.subr.mxu0 0.0
        %9203 = vmatpush1.msra.mxu0 0.0
        %9204 = vmatprep.subr.mxu0 0.0
        %9205 = vmatpush1.msra.mxu0 0.0
        %9206 = vmatprep.subr.mxu0 0.0
        %9207 = vmatpush1.msra.mxu0 0.0
        %9208 = vmatprep.subr.mxu0 0.0
        %9209 = vmatpush1.msra.mxu0 0.0
        %9210 = vmatprep.subr.mxu0 0.0
        %9211 = vmatpush1.msra.mxu0 0.0
        %9212 = vmatprep.subr.mxu0 0.0
        %9213 = vmatpush1.msra.mxu0 0.0
        %9214 = vmatprep.subr.mxu0 0.0
        %9215 = vmatpush1.msra.mxu0 0.0
        %9216 = vmatprep.subr.mxu0 0.0
        %9217 = vmatpush1.msra.mxu0 0.0
        %9218 = vmatprep.subr.mxu0 0.0
        %9219 = vmatpush1.msra.mxu0 0.0
        %9220 = vmatprep.subr.mxu0 0.0
        %9221 = vmatpush1.msra.mxu0 0.0
        %9222 = vmatprep.subr.mxu0 0.0
        %9223 = vmatpush1.msra.mxu0 0.0
        %9224 = vmatprep.subr.mxu0 0.0
        %9225 = vmatpush1.msra.mxu0 0.0
        %9226 = vmatprep.subr.mxu0 0.0
        %9227 = vmatpush1.msra.mxu0 0.0
        %9228 = vmatprep.subr.mxu0 0.0
        %9229 = vmatpush1.msra.mxu0 0.0
        %9230 = vmatprep.subr.mxu0 0.0
        %9231 = vmatpush1.msra.mxu0 0.0
        %9232 = vmatprep.mubr.f32.mxu0 0.0
        %v9233 = vand.u32 %v7446, 4294901760
        %v9234 = vsub.f32 %v7446, %v9233
        %v9235 = vand.u32 %v9234, 4294901760
        %9236 = vmatmul.mubr.f32.gmra.mrb[0].mxu0 %v9235
        %v9237 = vpop.f32.mrb[0].mxu0
        %v9238 = vadd.f32 %v9157, %v9237
        %v9239 = vpop.f32.mrb[0].mxu0
        %9240 = vmatprep.mubr.f32.mxu0 0.0
        %v9241 = vand.u32 %v7449, 4294901760
        %v9242 = vsub.f32 %v7449, %v9241
        %v9243 = vand.u32 %v9242, 4294901760
        %9244 = vmatmul.mubr.f32.gmra.mrb[0].mxu0 %v9243
        %v9245 = vpop.f32.mrb[0].mxu0
        %v9246 = vadd.f32 %v9164, %v9245
        %v9247 = vpop.f32.mrb[0].mxu0
        %9248 = vdwg.mxu0
        %9249 = vmatprep.subr.mxu0 0.0
        %v9250 = vand.u32 %v1913, 4294901760
        %v9251 = vsub.f32 %v1913, %v9250
        %v9252 = vand.u32 %v9251, 4294901760
        %9253 = vmatpush1.msra.mxu0 %v9252
        %9254 = vmatprep.subr.mxu0 0.0
        %9255 = vmatpush1.msra.mxu0 0.0
        %9256 = vmatprep.subr.mxu0 0.0
        %9257 = vmatpush1.msra.mxu0 0.0
        %9258 = vmatprep.subr.mxu0 0.0
        %9259 = vmatpush1.msra.mxu0 0.0
        %9260 = vmatprep.subr.mxu0 0.0
        %9261 = vmatpush1.msra.mxu0 0.0
        %9262 = vmatprep.subr.mxu0 0.0
        %9263 = vmatpush1.msra.mxu0 0.0
        %9264 = vmatprep.subr.mxu0 0.0
        %9265 = vmatpush1.msra.mxu0 0.0
        %9266 = vmatprep.subr.mxu0 0.0
        %9267 = vmatpush1.msra.mxu0 0.0
        %9268 = vmatprep.subr.mxu0 0.0
        %9269 = vmatpush1.msra.mxu0 0.0
        %9270 = vmatprep.subr.mxu0 0.0
        %9271 = vmatpush1.msra.mxu0 0.0
        %9272 = vmatprep.subr.mxu0 0.0
        %9273 = vmatpush1.msra.mxu0 0.0
        %9274 = vmatprep.subr.mxu0 0.0
        %9275 = vmatpush1.msra.mxu0 0.0
        %9276 = vmatprep.subr.mxu0 0.0
        %9277 = vmatpush1.msra.mxu0 0.0
        %9278 = vmatprep.subr.mxu0 0.0
        %9279 = vmatpush1.msra.mxu0 0.0
        %9280 = vmatprep.subr.mxu0 0.0
        %9281 = vmatpush1.msra.mxu0 0.0
        %9282 = vmatprep.subr.mxu0 0.0
        %9283 = vmatpush1.msra.mxu0 0.0
        %9284 = vmatprep.subr.mxu0 0.0
        %9285 = vmatpush1.msra.mxu0 0.0
        %9286 = vmatprep.subr.mxu0 0.0
        %9287 = vmatpush1.msra.mxu0 0.0
        %9288 = vmatprep.subr.mxu0 0.0
        %9289 = vmatpush1.msra.mxu0 0.0
        %9290 = vmatprep.subr.mxu0 0.0
        %9291 = vmatpush1.msra.mxu0 0.0
        %9292 = vmatprep.subr.mxu0 0.0
        %9293 = vmatpush1.msra.mxu0 0.0
        %9294 = vmatprep.subr.mxu0 0.0
        %9295 = vmatpush1.msra.mxu0 0.0
        %9296 = vmatprep.subr.mxu0 0.0
        %9297 = vmatpush1.msra.mxu0 0.0
        %9298 = vmatprep.subr.mxu0 0.0
        %9299 = vmatpush1.msra.mxu0 0.0
        %9300 = vmatprep.subr.mxu0 0.0
        %9301 = vmatpush1.msra.mxu0 0.0
        %9302 = vmatprep.subr.mxu0 0.0
        %9303 = vmatpush1.msra.mxu0 0.0
        %9304 = vmatprep.subr.mxu0 0.0
        %9305 = vmatpush1.msra.mxu0 0.0
        %9306 = vmatprep.subr.mxu0 0.0
        %9307 = vmatpush1.msra.mxu0 0.0
        %9308 = vmatprep.subr.mxu0 0.0
        %9309 = vmatpush1.msra.mxu0 0.0
        %9310 = vmatprep.subr.mxu0 0.0
        %9311 = vmatpush1.msra.mxu0 0.0
        %9312 = vmatprep.subr.mxu0 0.0
        %9313 = vmatpush1.msra.mxu0 0.0
        %9314 = vmatprep.subr.mxu0 0.0
        %9315 = vmatpush1.msra.mxu0 0.0
        %9316 = vmatprep.mubr.f32.mxu0 0.0
        %v9317 = vand.u32 %v7446, 4294901760
        %9318 = vmatmul.mubr.f32.gmra.mrb[0].mxu0 %v9317
        %v9319 = vpop.f32.mrb[0].mxu0
        %v9320 = vadd.f32 %v9238, %v9319
        %v9321 = vpop.f32.mrb[0].mxu0
        %9322 = vmatprep.mubr.f32.mxu0 0.0
        %v9323 = vand.u32 %v7449, 4294901760
        %9324 = vmatmul.mubr.f32.gmra.mrb[0].mxu0 %v9323
        %v9325 = vpop.f32.mrb[0].mxu0
        %v9326 = vadd.f32 %v9246, %v9325
        %v9327 = vpop.f32.mrb[0].mxu0
        %9328 = vdwg.mxu0
        %9329 = vmatprep.subr.mxu0 0.0
        %v9330 = vand.u32 %v1913, 4294901760
        %9331 = vmatpush1.msra.mxu0 %v9330
        %9332 = vmatprep.subr.mxu0 0.0
        %9333 = vmatpush1.msra.mxu0 0.0
        %9334 = vmatprep.subr.mxu0 0.0
        %9335 = vmatpush1.msra.mxu0 0.0
        %9336 = vmatprep.subr.mxu0 0.0
        %9337 = vmatpush1.msra.mxu0 0.0
        %9338 = vmatprep.subr.mxu0 0.0
        %9339 = vmatpush1.msra.mxu0 0.0
        %9340 = vmatprep.subr.mxu0 0.0
        %9341 = vmatpush1.msra.mxu0 0.0
        %9342 = vmatprep.subr.mxu0 0.0
        %9343 = vmatpush1.msra.mxu0 0.0
        %9344 = vmatprep.subr.mxu0 0.0
        %9345 = vmatpush1.msra.mxu0 0.0
        %9346 = vmatprep.subr.mxu0 0.0
        %9347 = vmatpush1.msra.mxu0 0.0
        %9348 = vmatprep.subr.mxu0 0.0
        %9349 = vmatpush1.msra.mxu0 0.0
        %9350 = vmatprep.subr.mxu0 0.0
        %9351 = vmatpush1.msra.mxu0 0.0
        %9352 = vmatprep.subr.mxu0 0.0
        %9353 = vmatpush1.msra.mxu0 0.0
        %9354 = vmatprep.subr.mxu0 0.0
        %9355 = vmatpush1.msra.mxu0 0.0
        %9356 = vmatprep.subr.mxu0 0.0
        %9357 = vmatpush1.msra.mxu0 0.0
        %9358 = vmatprep.subr.mxu0 0.0
        %9359 = vmatpush1.msra.mxu0 0.0
        %9360 = vmatprep.subr.mxu0 0.0
        %9361 = vmatpush1.msra.mxu0 0.0
        %9362 = vmatprep.subr.mxu0 0.0
        %9363 = vmatpush1.msra.mxu0 0.0
        %9364 = vmatprep.subr.mxu0 0.0
        %9365 = vmatpush1.msra.mxu0 0.0
        %9366 = vmatprep.subr.mxu0 0.0
        %9367 = vmatpush1.msra.mxu0 0.0
        %9368 = vmatprep.subr.mxu0 0.0
        %9369 = vmatpush1.msra.mxu0 0.0
        %9370 = vmatprep.subr.mxu0 0.0
        %9371 = vmatpush1.msra.mxu0 0.0
        %9372 = vmatprep.subr.mxu0 0.0
        %9373 = vmatpush1.msra.mxu0 0.0
        %9374 = vmatprep.subr.mxu0 0.0
        %9375 = vmatpush1.msra.mxu0 0.0
        %9376 = vmatprep.subr.mxu0 0.0
        %9377 = vmatpush1.msra.mxu0 0.0
        %9378 = vmatprep.subr.mxu0 0.0
        %9379 = vmatpush1.msra.mxu0 0.0
        %9380 = vmatprep.subr.mxu0 0.0
        %9381 = vmatpush1.msra.mxu0 0.0
        %9382 = vmatprep.subr.mxu0 0.0
        %9383 = vmatpush1.msra.mxu0 0.0
        %9384 = vmatprep.subr.mxu0 0.0
        %9385 = vmatpush1.msra.mxu0 0.0
        %9386 = vmatprep.subr.mxu0 0.0
        %9387 = vmatpush1.msra.mxu0 0.0
        %9388 = vmatprep.subr.mxu0 0.0
        %9389 = vmatpush1.msra.mxu0 0.0
        %9390 = vmatprep.subr.mxu0 0.0
        %9391 = vmatpush1.msra.mxu0 0.0
        %9392 = vmatprep.subr.mxu0 0.0
        %9393 = vmatpush1.msra.mxu0 0.0
        %9394 = vmatprep.mubr.f32.mxu0 0.0
        %v9395 = vand.u32 %v7446, 4294901760
        %9396 = vmatmul.mubr.f32.gmra.mrb[0].mxu0 %v9395
        %v9397 = vpop.f32.mrb[0].mxu0
        %v9398 = vadd.f32 %v9320, %v9397
        %v9399 = vpop.f32.mrb[0].mxu0
        %9400 = vmatprep.mubr.f32.mxu0 0.0
        %v9401 = vand.u32 %v7449, 4294901760
        %9402 = vmatmul.mubr.f32.gmra.mrb[0].mxu0 %v9401
        %v9403 = vpop.f32.mrb[0].mxu0
        %v9404 = vadd.f32 %v9326, %v9403
        %v9405 = vpop.f32.mrb[0].mxu0
        %9406 = vdwg.mxu0
        %9407 = vmatprep.subr.mxu0 0.0
        %v9408 = vand.u32 %v1919, 4294901760
        %9409 = vmatpush1.msra.mxu0 %v9408
        %9410 = vmatprep.subr.mxu0 0.0
        %9411 = vmatpush1.msra.mxu0 0.0
        %9412 = vmatprep.subr.mxu0 0.0
        %9413 = vmatpush1.msra.mxu0 0.0
        %9414 = vmatprep.subr.mxu0 0.0
        %9415 = vmatpush1.msra.mxu0 0.0
        %9416 = vmatprep.subr.mxu0 0.0
        %9417 = vmatpush1.msra.mxu0 0.0
        %9418 = vmatprep.subr.mxu0 0.0
        %9419 = vmatpush1.msra.mxu0 0.0
        %9420 = vmatprep.subr.mxu0 0.0
        %9421 = vmatpush1.msra.mxu0 0.0
        %9422 = vmatprep.subr.mxu0 0.0
        %9423 = vmatpush1.msra.mxu0 0.0
        %9424 = vmatprep.subr.mxu0 0.0
        %9425 = vmatpush1.msra.mxu0 0.0
        %9426 = vmatprep.subr.mxu0 0.0
        %9427 = vmatpush1.msra.mxu0 0.0
        %9428 = vmatprep.subr.mxu0 0.0
        %9429 = vmatpush1.msra.mxu0 0.0
        %9430 = vmatprep.subr.mxu0 0.0
        %9431 = vmatpush1.msra.mxu0 0.0
        %9432 = vmatprep.subr.mxu0 0.0
        %9433 = vmatpush1.msra.mxu0 0.0
        %9434 = vmatprep.subr.mxu0 0.0
        %9435 = vmatpush1.msra.mxu0 0.0
        %9436 = vmatprep.subr.mxu0 0.0
        %9437 = vmatpush1.msra.mxu0 0.0
        %9438 = vmatprep.subr.mxu0 0.0
        %9439 = vmatpush1.msra.mxu0 0.0
        %9440 = vmatprep.subr.mxu0 0.0
        %9441 = vmatpush1.msra.mxu0 0.0
        %9442 = vmatprep.subr.mxu0 0.0
        %9443 = vmatpush1.msra.mxu0 0.0
        %9444 = vmatprep.subr.mxu0 0.0
        %9445 = vmatpush1.msra.mxu0 0.0
        %9446 = vmatprep.subr.mxu0 0.0
        %9447 = vmatpush1.msra.mxu0 0.0
        %9448 = vmatprep.subr.mxu0 0.0
        %9449 = vmatpush1.msra.mxu0 0.0
        %9450 = vmatprep.subr.mxu0 0.0
        %9451 = vmatpush1.msra.mxu0 0.0
        %9452 = vmatprep.subr.mxu0 0.0
        %9453 = vmatpush1.msra.mxu0 0.0
        %9454 = vmatprep.subr.mxu0 0.0
        %9455 = vmatpush1.msra.mxu0 0.0
        %9456 = vmatprep.subr.mxu0 0.0
        %9457 = vmatpush1.msra.mxu0 0.0
        %9458 = vmatprep.subr.mxu0 0.0
        %9459 = vmatpush1.msra.mxu0 0.0
        %9460 = vmatprep.subr.mxu0 0.0
        %9461 = vmatpush1.msra.mxu0 0.0
        %9462 = vmatprep.subr.mxu0 0.0
        %9463 = vmatpush1.msra.mxu0 0.0
        %9464 = vmatprep.subr.mxu0 0.0
        %9465 = vmatpush1.msra.mxu0 0.0
        %9466 = vmatprep.subr.mxu0 0.0
        %9467 = vmatpush1.msra.mxu0 0.0
        %9468 = vmatprep.subr.mxu0 0.0
        %9469 = vmatpush1.msra.mxu0 0.0
        %9470 = vmatprep.subr.mxu0 0.0
        %9471 = vmatpush1.msra.mxu0 0.0
        %9472 = vmatprep.mubr.f32.mxu0 0.0
        %v9473 = vand.u32 %v7446, 4294901760
        %v9474 = vsub.f32 %v7446, %v9473
        %v9475 = vand.u32 %v9474, 4294901760
        %v9476 = vsub.f32 %v9474, %v9475
        %v9477 = vand.u32 %v9476, 4294901760
        %9478 = vmatmul.mubr.f32.gmra.mrb[0].mxu0 %v9477
        %v9479 = vpop.f32.mrb[0].mxu0
        %v9480 = vadd.f32 %v5969, %v9479
        %v9481 = vpop.f32.mrb[0].mxu0
        %9482 = vmatprep.mubr.f32.mxu0 0.0
        %v9483 = vand.u32 %v7449, 4294901760
        %v9484 = vsub.f32 %v7449, %v9483
        %v9485 = vand.u32 %v9484, 4294901760
        %v9486 = vsub.f32 %v9484, %v9485
        %v9487 = vand.u32 %v9486, 4294901760
        %9488 = vmatmul.mubr.f32.gmra.mrb[0].mxu0 %v9487
        %v9489 = vpop.f32.mrb[0].mxu0
        %v9490 = vadd.f32 %v5975, %v9489
        %v9491 = vpop.f32.mrb[0].mxu0
        %9492 = vdwg.mxu0
        %9493 = vmatprep.subr.mxu0 0.0
        %v9494 = vand.u32 %v1919, 4294901760
        %v9495 = vsub.f32 %v1919, %v9494
        %v9496 = vand.u32 %v9495, 4294901760
        %v9497 = vsub.f32 %v9495, %v9496
        %v9498 = vand.u32 %v9497, 4294901760
        %9499 = vmatpush1.msra.mxu0 %v9498
        %9500 = vmatprep.subr.mxu0 0.0
        %9501 = vmatpush1.msra.mxu0 0.0
        %9502 = vmatprep.subr.mxu0 0.0
        %9503 = vmatpush1.msra.mxu0 0.0
        %9504 = vmatprep.subr.mxu0 0.0
        %9505 = vmatpush1.msra.mxu0 0.0
        %9506 = vmatprep.subr.mxu0 0.0
        %9507 = vmatpush1.msra.mxu0 0.0
        %9508 = vmatprep.subr.mxu0 0.0
        %9509 = vmatpush1.msra.mxu0 0.0
        %9510 = vmatprep.subr.mxu0 0.0
        %9511 = vmatpush1.msra.mxu0 0.0
        %9512 = vmatprep.subr.mxu0 0.0
        %9513 = vmatpush1.msra.mxu0 0.0
        %9514 = vmatprep.subr.mxu0 0.0
        %9515 = vmatpush1.msra.mxu0 0.0
        %9516 = vmatprep.subr.mxu0 0.0
        %9517 = vmatpush1.msra.mxu0 0.0
        %9518 = vmatprep.subr.mxu0 0.0
        %9519 = vmatpush1.msra.mxu0 0.0
        %9520 = vmatprep.subr.mxu0 0.0
        %9521 = vmatpush1.msra.mxu0 0.0
        %9522 = vmatprep.subr.mxu0 0.0
        %9523 = vmatpush1.msra.mxu0 0.0
        %9524 = vmatprep.subr.mxu0 0.0
        %9525 = vmatpush1.msra.mxu0 0.0
        %9526 = vmatprep.subr.mxu0 0.0
        %9527 = vmatpush1.msra.mxu0 0.0
        %9528 = vmatprep.subr.mxu0 0.0
        %9529 = vmatpush1.msra.mxu0 0.0
        %9530 = vmatprep.subr.mxu0 0.0
        %9531 = vmatpush1.msra.mxu0 0.0
        %9532 = vmatprep.subr.mxu0 0.0
        %9533 = vmatpush1.msra.mxu0 0.0
        %9534 = vmatprep.subr.mxu0 0.0
        %9535 = vmatpush1.msra.mxu0 0.0
        %9536 = vmatprep.subr.mxu0 0.0
        %9537 = vmatpush1.msra.mxu0 0.0
        %9538 = vmatprep.subr.mxu0 0.0
        %9539 = vmatpush1.msra.mxu0 0.0
        %9540 = vmatprep.subr.mxu0 0.0
        %9541 = vmatpush1.msra.mxu0 0.0
        %9542 = vmatprep.subr.mxu0 0.0
        %9543 = vmatpush1.msra.mxu0 0.0
        %9544 = vmatprep.subr.mxu0 0.0
        %9545 = vmatpush1.msra.mxu0 0.0
        %9546 = vmatprep.subr.mxu0 0.0
        %9547 = vmatpush1.msra.mxu0 0.0
        %9548 = vmatprep.subr.mxu0 0.0
        %9549 = vmatpush1.msra.mxu0 0.0
        %9550 = vmatprep.subr.mxu0 0.0
        %9551 = vmatpush1.msra.mxu0 0.0
        %9552 = vmatprep.subr.mxu0 0.0
        %9553 = vmatpush1.msra.mxu0 0.0
        %9554 = vmatprep.subr.mxu0 0.0
        %9555 = vmatpush1.msra.mxu0 0.0
        %9556 = vmatprep.subr.mxu0 0.0
        %9557 = vmatpush1.msra.mxu0 0.0
        %9558 = vmatprep.subr.mxu0 0.0
        %9559 = vmatpush1.msra.mxu0 0.0
        %9560 = vmatprep.subr.mxu0 0.0
        %9561 = vmatpush1.msra.mxu0 0.0
        %9562 = vmatprep.mubr.f32.mxu0 0.0
        %v9563 = vand.u32 %v7446, 4294901760
        %9564 = vmatmul.mubr.f32.gmra.mrb[0].mxu0 %v9563
        %v9565 = vpop.f32.mrb[0].mxu0
        %v9566 = vadd.f32 %v9480, %v9565
        %v9567 = vpop.f32.mrb[0].mxu0
        %9568 = vmatprep.mubr.f32.mxu0 0.0
        %v9569 = vand.u32 %v7449, 4294901760
        %9570 = vmatmul.mubr.f32.gmra.mrb[0].mxu0 %v9569
        %v9571 = vpop.f32.mrb[0].mxu0
        %v9572 = vadd.f32 %v9490, %v9571
        %v9573 = vpop.f32.mrb[0].mxu0
        %9574 = vdwg.mxu0
        %9575 = vmatprep.subr.mxu0 0.0
        %v9576 = vand.u32 %v1919, 4294901760
        %v9577 = vsub.f32 %v1919, %v9576
        %9578 = vmatpush1.msra.mxu0 %v9577
        %9579 = vmatprep.subr.mxu0 0.0
        %9580 = vmatpush1.msra.mxu0 0.0
        %9581 = vmatprep.subr.mxu0 0.0
        %9582 = vmatpush1.msra.mxu0 0.0
        %9583 = vmatprep.subr.mxu0 0.0
        %9584 = vmatpush1.msra.mxu0 0.0
        %9585 = vmatprep.subr.mxu0 0.0
        %9586 = vmatpush1.msra.mxu0 0.0
        %9587 = vmatprep.subr.mxu0 0.0
        %9588 = vmatpush1.msra.mxu0 0.0
        %9589 = vmatprep.subr.mxu0 0.0
        %9590 = vmatpush1.msra.mxu0 0.0
        %9591 = vmatprep.subr.mxu0 0.0
        %9592 = vmatpush1.msra.mxu0 0.0
        %9593 = vmatprep.subr.mxu0 0.0
        %9594 = vmatpush1.msra.mxu0 0.0
        %9595 = vmatprep.subr.mxu0 0.0
        %9596 = vmatpush1.msra.mxu0 0.0
        %9597 = vmatprep.subr.mxu0 0.0
        %9598 = vmatpush1.msra.mxu0 0.0
        %9599 = vmatprep.subr.mxu0 0.0
        %9600 = vmatpush1.msra.mxu0 0.0
        %9601 = vmatprep.subr.mxu0 0.0
        %9602 = vmatpush1.msra.mxu0 0.0
        %9603 = vmatprep.subr.mxu0 0.0
        %9604 = vmatpush1.msra.mxu0 0.0
        %9605 = vmatprep.subr.mxu0 0.0
        %9606 = vmatpush1.msra.mxu0 0.0
        %9607 = vmatprep.subr.mxu0 0.0
        %9608 = vmatpush1.msra.mxu0 0.0
        %9609 = vmatprep.subr.mxu0 0.0
        %9610 = vmatpush1.msra.mxu0 0.0
        %9611 = vmatprep.subr.mxu0 0.0
        %9612 = vmatpush1.msra.mxu0 0.0
        %9613 = vmatprep.subr.mxu0 0.0
        %9614 = vmatpush1.msra.mxu0 0.0
        %9615 = vmatprep.subr.mxu0 0.0
        %9616 = vmatpush1.msra.mxu0 0.0
        %9617 = vmatprep.subr.mxu0 0.0
        %9618 = vmatpush1.msra.mxu0 0.0
        %9619 = vmatprep.subr.mxu0 0.0
        %9620 = vmatpush1.msra.mxu0 0.0
        %9621 = vmatprep.subr.mxu0 0.0
        %9622 = vmatpush1.msra.mxu0 0.0
        %9623 = vmatprep.subr.mxu0 0.0
        %9624 = vmatpush1.msra.mxu0 0.0
        %9625 = vmatprep.subr.mxu0 0.0
        %9626 = vmatpush1.msra.mxu0 0.0
        %9627 = vmatprep.subr.mxu0 0.0
        %9628 = vmatpush1.msra.mxu0 0.0
        %9629 = vmatprep.subr.mxu0 0.0
        %9630 = vmatpush1.msra.mxu0 0.0
        %9631 = vmatprep.subr.mxu0 0.0
        %9632 = vmatpush1.msra.mxu0 0.0
        %9633 = vmatprep.subr.mxu0 0.0
        %9634 = vmatpush1.msra.mxu0 0.0
        %9635 = vmatprep.subr.mxu0 0.0
        %9636 = vmatpush1.msra.mxu0 0.0
        %9637 = vmatprep.subr.mxu0 0.0
        %9638 = vmatpush1.msra.mxu0 0.0
        %9639 = vmatprep.subr.mxu0 0.0
        %9640 = vmatpush1.msra.mxu0 0.0
        %9641 = vmatprep.mubr.f32.mxu0 0.0
        %v9642 = vand.u32 %v7446, 4294901760
        %v9643 = vsub.f32 %v7446, %v9642
        %9644 = vmatmul.mubr.f32.gmra.mrb[0].mxu0 %v9643
        %v9645 = vpop.f32.mrb[0].mxu0
        %v9646 = vadd.f32 %v9566, %v9645
        %v9647 = vpop.f32.mrb[0].mxu0
        %9648 = vmatprep.mubr.f32.mxu0 0.0
        %v9649 = vand.u32 %v7449, 4294901760
        %v9650 = vsub.f32 %v7449, %v9649
        %9651 = vmatmul.mubr.f32.gmra.mrb[0].mxu0 %v9650
        %v9652 = vpop.f32.mrb[0].mxu0
        %v9653 = vadd.f32 %v9572, %v9652
        %v9654 = vpop.f32.mrb[0].mxu0
        %9655 = vdwg.mxu0
        %9656 = vmatprep.subr.mxu0 0.0
        %v9657 = vand.u32 %v1919, 4294901760
        %9658 = vmatpush1.msra.mxu0 %v9657
        %9659 = vmatprep.subr.mxu0 0.0
        %9660 = vmatpush1.msra.mxu0 0.0
        %9661 = vmatprep.subr.mxu0 0.0
        %9662 = vmatpush1.msra.mxu0 0.0
        %9663 = vmatprep.subr.mxu0 0.0
        %9664 = vmatpush1.msra.mxu0 0.0
        %9665 = vmatprep.subr.mxu0 0.0
        %9666 = vmatpush1.msra.mxu0 0.0
        %9667 = vmatprep.subr.mxu0 0.0
        %9668 = vmatpush1.msra.mxu0 0.0
        %9669 = vmatprep.subr.mxu0 0.0
        %9670 = vmatpush1.msra.mxu0 0.0
        %9671 = vmatprep.subr.mxu0 0.0
        %9672 = vmatpush1.msra.mxu0 0.0
        %9673 = vmatprep.subr.mxu0 0.0
        %9674 = vmatpush1.msra.mxu0 0.0
        %9675 = vmatprep.subr.mxu0 0.0
        %9676 = vmatpush1.msra.mxu0 0.0
        %9677 = vmatprep.subr.mxu0 0.0
        %9678 = vmatpush1.msra.mxu0 0.0
        %9679 = vmatprep.subr.mxu0 0.0
        %9680 = vmatpush1.msra.mxu0 0.0
        %9681 = vmatprep.subr.mxu0 0.0
        %9682 = vmatpush1.msra.mxu0 0.0
        %9683 = vmatprep.subr.mxu0 0.0
        %9684 = vmatpush1.msra.mxu0 0.0
        %9685 = vmatprep.subr.mxu0 0.0
        %9686 = vmatpush1.msra.mxu0 0.0
        %9687 = vmatprep.subr.mxu0 0.0
        %9688 = vmatpush1.msra.mxu0 0.0
        %9689 = vmatprep.subr.mxu0 0.0
        %9690 = vmatpush1.msra.mxu0 0.0
        %9691 = vmatprep.subr.mxu0 0.0
        %9692 = vmatpush1.msra.mxu0 0.0
        %9693 = vmatprep.subr.mxu0 0.0
        %9694 = vmatpush1.msra.mxu0 0.0
        %9695 = vmatprep.subr.mxu0 0.0
        %9696 = vmatpush1.msra.mxu0 0.0
        %9697 = vmatprep.subr.mxu0 0.0
        %9698 = vmatpush1.msra.mxu0 0.0
        %9699 = vmatprep.subr.mxu0 0.0
        %9700 = vmatpush1.msra.mxu0 0.0
        %9701 = vmatprep.subr.mxu0 0.0
        %9702 = vmatpush1.msra.mxu0 0.0
        %9703 = vmatprep.subr.mxu0 0.0
        %9704 = vmatpush1.msra.mxu0 0.0
        %9705 = vmatprep.subr.mxu0 0.0
        %9706 = vmatpush1.msra.mxu0 0.0
        %9707 = vmatprep.subr.mxu0 0.0
        %9708 = vmatpush1.msra.mxu0 0.0
        %9709 = vmatprep.subr.mxu0 0.0
        %9710 = vmatpush1.msra.mxu0 0.0
        %9711 = vmatprep.subr.mxu0 0.0
        %9712 = vmatpush1.msra.mxu0 0.0
        %9713 = vmatprep.subr.mxu0 0.0
        %9714 = vmatpush1.msra.mxu0 0.0
        %9715 = vmatprep.subr.mxu0 0.0
        %9716 = vmatpush1.msra.mxu0 0.0
        %9717 = vmatprep.subr.mxu0 0.0
        %9718 = vmatpush1.msra.mxu0 0.0
        %9719 = vmatprep.subr.mxu0 0.0
        %9720 = vmatpush1.msra.mxu0 0.0
        %9721 = vmatprep.mubr.f32.mxu0 0.0
        %v9722 = vand.u32 %v7446, 4294901760
        %v9723 = vsub.f32 %v7446, %v9722
        %v9724 = vand.u32 %v9723, 4294901760
        %9725 = vmatmul.mubr.f32.gmra.mrb[0].mxu0 %v9724
        %v9726 = vpop.f32.mrb[0].mxu0
        %v9727 = vadd.f32 %v9646, %v9726
        %v9728 = vpop.f32.mrb[0].mxu0
        %9729 = vmatprep.mubr.f32.mxu0 0.0
        %v9730 = vand.u32 %v7449, 4294901760
        %v9731 = vsub.f32 %v7449, %v9730
        %v9732 = vand.u32 %v9731, 4294901760
        %9733 = vmatmul.mubr.f32.gmra.mrb[0].mxu0 %v9732
        %v9734 = vpop.f32.mrb[0].mxu0
        %v9735 = vadd.f32 %v9653, %v9734
        %v9736 = vpop.f32.mrb[0].mxu0
        %9737 = vdwg.mxu0
        %9738 = vmatprep.subr.mxu0 0.0
        %v9739 = vand.u32 %v1919, 4294901760
        %v9740 = vsub.f32 %v1919, %v9739
        %v9741 = vand.u32 %v9740, 4294901760
        %9742 = vmatpush1.msra.mxu0 %v9741
        %9743 = vmatprep.subr.mxu0 0.0
        %9744 = vmatpush1.msra.mxu0 0.0
        %9745 = vmatprep.subr.mxu0 0.0
        %9746 = vmatpush1.msra.mxu0 0.0
        %9747 = vmatprep.subr.mxu0 0.0
        %9748 = vmatpush1.msra.mxu0 0.0
        %9749 = vmatprep.subr.mxu0 0.0
        %9750 = vmatpush1.msra.mxu0 0.0
        %9751 = vmatprep.subr.mxu0 0.0
        %9752 = vmatpush1.msra.mxu0 0.0
        %9753 = vmatprep.subr.mxu0 0.0
        %9754 = vmatpush1.msra.mxu0 0.0
        %9755 = vmatprep.subr.mxu0 0.0
        %9756 = vmatpush1.msra.mxu0 0.0
        %9757 = vmatprep.subr.mxu0 0.0
        %9758 = vmatpush1.msra.mxu0 0.0
        %9759 = vmatprep.subr.mxu0 0.0
        %9760 = vmatpush1.msra.mxu0 0.0
        %9761 = vmatprep.subr.mxu0 0.0
        %9762 = vmatpush1.msra.mxu0 0.0
        %9763 = vmatprep.subr.mxu0 0.0
        %9764 = vmatpush1.msra.mxu0 0.0
        %9765 = vmatprep.subr.mxu0 0.0
        %9766 = vmatpush1.msra.mxu0 0.0
        %9767 = vmatprep.subr.mxu0 0.0
        %9768 = vmatpush1.msra.mxu0 0.0
        %9769 = vmatprep.subr.mxu0 0.0
        %9770 = vmatpush1.msra.mxu0 0.0
        %9771 = vmatprep.subr.mxu0 0.0
        %9772 = vmatpush1.msra.mxu0 0.0
        %9773 = vmatprep.subr.mxu0 0.0
        %9774 = vmatpush1.msra.mxu0 0.0
        %9775 = vmatprep.subr.mxu0 0.0
        %9776 = vmatpush1.msra.mxu0 0.0
        %9777 = vmatprep.subr.mxu0 0.0
        %9778 = vmatpush1.msra.mxu0 0.0
        %9779 = vmatprep.subr.mxu0 0.0
        %9780 = vmatpush1.msra.mxu0 0.0
        %9781 = vmatprep.subr.mxu0 0.0
        %9782 = vmatpush1.msra.mxu0 0.0
        %9783 = vmatprep.subr.mxu0 0.0
        %9784 = vmatpush1.msra.mxu0 0.0
        %9785 = vmatprep.subr.mxu0 0.0
        %9786 = vmatpush1.msra.mxu0 0.0
        %9787 = vmatprep.subr.mxu0 0.0
        %9788 = vmatpush1.msra.mxu0 0.0
        %9789 = vmatprep.subr.mxu0 0.0
        %9790 = vmatpush1.msra.mxu0 0.0
        %9791 = vmatprep.subr.mxu0 0.0
        %9792 = vmatpush1.msra.mxu0 0.0
        %9793 = vmatprep.subr.mxu0 0.0
        %9794 = vmatpush1.msra.mxu0 0.0
        %9795 = vmatprep.subr.mxu0 0.0
        %9796 = vmatpush1.msra.mxu0 0.0
        %9797 = vmatprep.subr.mxu0 0.0
        %9798 = vmatpush1.msra.mxu0 0.0
        %9799 = vmatprep.subr.mxu0 0.0
        %9800 = vmatpush1.msra.mxu0 0.0
        %9801 = vmatprep.subr.mxu0 0.0
        %9802 = vmatpush1.msra.mxu0 0.0
        %9803 = vmatprep.subr.mxu0 0.0
        %9804 = vmatpush1.msra.mxu0 0.0
        %9805 = vmatprep.mubr.f32.mxu0 0.0
        %v9806 = vand.u32 %v7446, 4294901760
        %9807 = vmatmul.mubr.f32.gmra.mrb[0].mxu0 %v9806
        %v9808 = vpop.f32.mrb[0].mxu0
        %v9809 = vadd.f32 %v9727, %v9808
        %v9810 = vpop.f32.mrb[0].mxu0
        %9811 = vmatprep.mubr.f32.mxu0 0.0
        %v9812 = vand.u32 %v7449, 4294901760
        %9813 = vmatmul.mubr.f32.gmra.mrb[0].mxu0 %v9812
        %v9814 = vpop.f32.mrb[0].mxu0
        %v9815 = vadd.f32 %v9735, %v9814
        %v9816 = vpop.f32.mrb[0].mxu0
        %9817 = vdwg.mxu0
        %9818 = vmatprep.subr.mxu0 0.0
        %v9819 = vand.u32 %v1919, 4294901760
        %9820 = vmatpush1.msra.mxu0 %v9819
        %9821 = vmatprep.subr.mxu0 0.0
        %9822 = vmatpush1.msra.mxu0 0.0
        %9823 = vmatprep.subr.mxu0 0.0
        %9824 = vmatpush1.msra.mxu0 0.0
        %9825 = vmatprep.subr.mxu0 0.0
        %9826 = vmatpush1.msra.mxu0 0.0
        %9827 = vmatprep.subr.mxu0 0.0
        %9828 = vmatpush1.msra.mxu0 0.0
        %9829 = vmatprep.subr.mxu0 0.0
        %9830 = vmatpush1.msra.mxu0 0.0
        %9831 = vmatprep.subr.mxu0 0.0
        %9832 = vmatpush1.msra.mxu0 0.0
        %9833 = vmatprep.subr.mxu0 0.0
        %9834 = vmatpush1.msra.mxu0 0.0
        %9835 = vmatprep.subr.mxu0 0.0
        %9836 = vmatpush1.msra.mxu0 0.0
        %9837 = vmatprep.subr.mxu0 0.0
        %9838 = vmatpush1.msra.mxu0 0.0
        %9839 = vmatprep.subr.mxu0 0.0
        %9840 = vmatpush1.msra.mxu0 0.0
        %9841 = vmatprep.subr.mxu0 0.0
        %9842 = vmatpush1.msra.mxu0 0.0
        %9843 = vmatprep.subr.mxu0 0.0
        %9844 = vmatpush1.msra.mxu0 0.0
        %9845 = vmatprep.subr.mxu0 0.0
        %9846 = vmatpush1.msra.mxu0 0.0
        %9847 = vmatprep.subr.mxu0 0.0
        %9848 = vmatpush1.msra.mxu0 0.0
        %9849 = vmatprep.subr.mxu0 0.0
        %9850 = vmatpush1.msra.mxu0 0.0
        %9851 = vmatprep.subr.mxu0 0.0
        %9852 = vmatpush1.msra.mxu0 0.0
        %9853 = vmatprep.subr.mxu0 0.0
        %9854 = vmatpush1.msra.mxu0 0.0
        %9855 = vmatprep.subr.mxu0 0.0
        %9856 = vmatpush1.msra.mxu0 0.0
        %9857 = vmatprep.subr.mxu0 0.0
        %9858 = vmatpush1.msra.mxu0 0.0
        %9859 = vmatprep.subr.mxu0 0.0
        %9860 = vmatpush1.msra.mxu0 0.0
        %9861 = vmatprep.subr.mxu0 0.0
        %9862 = vmatpush1.msra.mxu0 0.0
        %9863 = vmatprep.subr.mxu0 0.0
        %9864 = vmatpush1.msra.mxu0 0.0
        %9865 = vmatprep.subr.mxu0 0.0
        %9866 = vmatpush1.msra.mxu0 0.0
        %9867 = vmatprep.subr.mxu0 0.0
        %9868 = vmatpush1.msra.mxu0 0.0
        %9869 = vmatprep.subr.mxu0 0.0
        %9870 = vmatpush1.msra.mxu0 0.0
        %9871 = vmatprep.subr.mxu0 0.0
        %9872 = vmatpush1.msra.mxu0 0.0
        %9873 = vmatprep.subr.mxu0 0.0
        %9874 = vmatpush1.msra.mxu0 0.0
        %9875 = vmatprep.subr.mxu0 0.0
        %9876 = vmatpush1.msra.mxu0 0.0
        %9877 = vmatprep.subr.mxu0 0.0
        %9878 = vmatpush1.msra.mxu0 0.0
        %9879 = vmatprep.subr.mxu0 0.0
        %9880 = vmatpush1.msra.mxu0 0.0
        %9881 = vmatprep.subr.mxu0 0.0
        %9882 = vmatpush1.msra.mxu0 0.0
        %9883 = vmatprep.mubr.f32.mxu0 0.0
        %v9884 = vand.u32 %v7446, 4294901760
        %9885 = vmatmul.mubr.f32.gmra.mrb[0].mxu0 %v9884
        %v9886 = vpop.f32.mrb[0].mxu0
        %v9887 = vadd.f32 %v9809, %v9886
        %v9888 = vpop.f32.mrb[0].mxu0
        %9889 = vmatprep.mubr.f32.mxu0 0.0
        %v9890 = vand.u32 %v7449, 4294901760
        %9891 = vmatmul.mubr.f32.gmra.mrb[0].mxu0 %v9890
        %v9892 = vpop.f32.mrb[0].mxu0
        %v9893 = vadd.f32 %v9815, %v9892
        %v9894 = vpop.f32.mrb[0].mxu0
        %9895 = vdwg.mxu0
        %9896 = vmatprep.subr.mxu0 0.0
        %v9897 = vand.u32 %v1925, 4294901760
        %9898 = vmatpush1.msra.mxu0 %v9897
        %9899 = vmatprep.subr.mxu0 0.0
        %9900 = vmatpush1.msra.mxu0 0.0
        %9901 = vmatprep.subr.mxu0 0.0
        %9902 = vmatpush1.msra.mxu0 0.0
        %9903 = vmatprep.subr.mxu0 0.0
        %9904 = vmatpush1.msra.mxu0 0.0
        %9905 = vmatprep.subr.mxu0 0.0
        %9906 = vmatpush1.msra.mxu0 0.0
        %9907 = vmatprep.subr.mxu0 0.0
        %9908 = vmatpush1.msra.mxu0 0.0
        %9909 = vmatprep.subr.mxu0 0.0
        %9910 = vmatpush1.msra.mxu0 0.0
        %9911 = vmatprep.subr.mxu0 0.0
        %9912 = vmatpush1.msra.mxu0 0.0
        %9913 = vmatprep.subr.mxu0 0.0
        %9914 = vmatpush1.msra.mxu0 0.0
        %9915 = vmatprep.subr.mxu0 0.0
        %9916 = vmatpush1.msra.mxu0 0.0
        %9917 = vmatprep.subr.mxu0 0.0
        %9918 = vmatpush1.msra.mxu0 0.0
        %9919 = vmatprep.subr.mxu0 0.0
        %9920 = vmatpush1.msra.mxu0 0.0
        %9921 = vmatprep.subr.mxu0 0.0
        %9922 = vmatpush1.msra.mxu0 0.0
        %9923 = vmatprep.subr.mxu0 0.0
        %9924 = vmatpush1.msra.mxu0 0.0
        %9925 = vmatprep.subr.mxu0 0.0
        %9926 = vmatpush1.msra.mxu0 0.0
        %9927 = vmatprep.subr.mxu0 0.0
        %9928 = vmatpush1.msra.mxu0 0.0
        %9929 = vmatprep.subr.mxu0 0.0
        %9930 = vmatpush1.msra.mxu0 0.0
        %9931 = vmatprep.subr.mxu0 0.0
        %9932 = vmatpush1.msra.mxu0 0.0
        %9933 = vmatprep.subr.mxu0 0.0
        %9934 = vmatpush1.msra.mxu0 0.0
        %9935 = vmatprep.subr.mxu0 0.0
        %9936 = vmatpush1.msra.mxu0 0.0
        %9937 = vmatprep.subr.mxu0 0.0
        %9938 = vmatpush1.msra.mxu0 0.0
        %9939 = vmatprep.subr.mxu0 0.0
        %9940 = vmatpush1.msra.mxu0 0.0
        %9941 = vmatprep.subr.mxu0 0.0
        %9942 = vmatpush1.msra.mxu0 0.0
        %9943 = vmatprep.subr.mxu0 0.0
        %9944 = vmatpush1.msra.mxu0 0.0
        %9945 = vmatprep.subr.mxu0 0.0
        %9946 = vmatpush1.msra.mxu0 0.0
        %9947 = vmatprep.subr.mxu0 0.0
        %9948 = vmatpush1.msra.mxu0 0.0
        %9949 = vmatprep.subr.mxu0 0.0
        %9950 = vmatpush1.msra.mxu0 0.0
        %9951 = vmatprep.subr.mxu0 0.0
        %9952 = vmatpush1.msra.mxu0 0.0
        %9953 = vmatprep.subr.mxu0 0.0
        %9954 = vmatpush1.msra.mxu0 0.0
        %9955 = vmatprep.subr.mxu0 0.0
        %9956 = vmatpush1.msra.mxu0 0.0
        %9957 = vmatprep.subr.mxu0 0.0
        %9958 = vmatpush1.msra.mxu0 0.0
        %9959 = vmatprep.subr.mxu0 0.0
        %9960 = vmatpush1.msra.mxu0 0.0
        %9961 = vmatprep.mubr.f32.mxu0 0.0
        %v9962 = vand.u32 %v7446, 4294901760
        %v9963 = vsub.f32 %v7446, %v9962
        %v9964 = vand.u32 %v9963, 4294901760
        %v9965 = vsub.f32 %v9963, %v9964
        %v9966 = vand.u32 %v9965, 4294901760
        %9967 = vmatmul.mubr.f32.gmra.mrb[0].mxu0 %v9966
        %v9968 = vpop.f32.mrb[0].mxu0
        %v9969 = vadd.f32 %v6458, %v9968
        %v9970 = vpop.f32.mrb[0].mxu0
        %9971 = vmatprep.mubr.f32.mxu0 0.0
        %v9972 = vand.u32 %v7449, 4294901760
        %v9973 = vsub.f32 %v7449, %v9972
        %v9974 = vand.u32 %v9973, 4294901760
        %v9975 = vsub.f32 %v9973, %v9974
        %v9976 = vand.u32 %v9975, 4294901760
        %9977 = vmatmul.mubr.f32.gmra.mrb[0].mxu0 %v9976
        %v9978 = vpop.f32.mrb[0].mxu0
        %v9979 = vadd.f32 %v6464, %v9978
        %v9980 = vpop.f32.mrb[0].mxu0
        %9981 = vdwg.mxu0
        %9982 = vmatprep.subr.mxu0 0.0
        %v9983 = vand.u32 %v1925, 4294901760
        %v9984 = vsub.f32 %v1925, %v9983
        %v9985 = vand.u32 %v9984, 4294901760
        %v9986 = vsub.f32 %v9984, %v9985
        %v9987 = vand.u32 %v9986, 4294901760
        %9988 = vmatpush1.msra.mxu0 %v9987
        %9989 = vmatprep.subr.mxu0 0.0
        %9990 = vmatpush1.msra.mxu0 0.0
        %9991 = vmatprep.subr.mxu0 0.0
        %9992 = vmatpush1.msra.mxu0 0.0
        %9993 = vmatprep.subr.mxu0 0.0
        %9994 = vmatpush1.msra.mxu0 0.0
        %9995 = vmatprep.subr.mxu0 0.0
        %9996 = vmatpush1.msra.mxu0 0.0
        %9997 = vmatprep.subr.mxu0 0.0
        %9998 = vmatpush1.msra.mxu0 0.0
        %9999 = vmatprep.subr.mxu0 0.0
        %10000 = vmatpush1.msra.mxu0 0.0
        %10001 = vmatprep.subr.mxu0 0.0
        %10002 = vmatpush1.msra.mxu0 0.0
        %10003 = vmatprep.subr.mxu0 0.0
        %10004 = vmatpush1.msra.mxu0 0.0
        %10005 = vmatprep.subr.mxu0 0.0
        %10006 = vmatpush1.msra.mxu0 0.0
        %10007 = vmatprep.subr.mxu0 0.0
        %10008 = vmatpush1.msra.mxu0 0.0
        %10009 = vmatprep.subr.mxu0 0.0
        %10010 = vmatpush1.msra.mxu0 0.0
        %10011 = vmatprep.subr.mxu0 0.0
        %10012 = vmatpush1.msra.mxu0 0.0
        %10013 = vmatprep.subr.mxu0 0.0
        %10014 = vmatpush1.msra.mxu0 0.0
        %10015 = vmatprep.subr.mxu0 0.0
        %10016 = vmatpush1.msra.mxu0 0.0
        %10017 = vmatprep.subr.mxu0 0.0
        %10018 = vmatpush1.msra.mxu0 0.0
        %10019 = vmatprep.subr.mxu0 0.0
        %10020 = vmatpush1.msra.mxu0 0.0
        %10021 = vmatprep.subr.mxu0 0.0
        %10022 = vmatpush1.msra.mxu0 0.0
        %10023 = vmatprep.subr.mxu0 0.0
        %10024 = vmatpush1.msra.mxu0 0.0
        %10025 = vmatprep.subr.mxu0 0.0
        %10026 = vmatpush1.msra.mxu0 0.0
        %10027 = vmatprep.subr.mxu0 0.0
        %10028 = vmatpush1.msra.mxu0 0.0
        %10029 = vmatprep.subr.mxu0 0.0
        %10030 = vmatpush1.msra.mxu0 0.0
        %10031 = vmatprep.subr.mxu0 0.0
        %10032 = vmatpush1.msra.mxu0 0.0
        %10033 = vmatprep.subr.mxu0 0.0
        %10034 = vmatpush1.msra.mxu0 0.0
        %10035 = vmatprep.subr.mxu0 0.0
        %10036 = vmatpush1.msra.mxu0 0.0
        %10037 = vmatprep.subr.mxu0 0.0
        %10038 = vmatpush1.msra.mxu0 0.0
        %10039 = vmatprep.subr.mxu0 0.0
        %10040 = vmatpush1.msra.mxu0 0.0
        %10041 = vmatprep.subr.mxu0 0.0
        %10042 = vmatpush1.msra.mxu0 0.0
        %10043 = vmatprep.subr.mxu0 0.0
        %10044 = vmatpush1.msra.mxu0 0.0
        %10045 = vmatprep.subr.mxu0 0.0
        %10046 = vmatpush1.msra.mxu0 0.0
        %10047 = vmatprep.subr.mxu0 0.0
        %10048 = vmatpush1.msra.mxu0 0.0
        %10049 = vmatprep.subr.mxu0 0.0
        %10050 = vmatpush1.msra.mxu0 0.0
        %10051 = vmatprep.mubr.f32.mxu0 0.0
        %v10052 = vand.u32 %v7446, 4294901760
        %10053 = vmatmul.mubr.f32.gmra.mrb[0].mxu0 %v10052
        %v10054 = vpop.f32.mrb[0].mxu0
        %v10055 = vadd.f32 %v9969, %v10054
        %v10056 = vpop.f32.mrb[0].mxu0
        %10057 = vmatprep.mubr.f32.mxu0 0.0
        %v10058 = vand.u32 %v7449, 4294901760
        %10059 = vmatmul.mubr.f32.gmra.mrb[0].mxu0 %v10058
        %v10060 = vpop.f32.mrb[0].mxu0
        %v10061 = vadd.f32 %v9979, %v10060
        %v10062 = vpop.f32.mrb[0].mxu0
        %10063 = vdwg.mxu0
        %10064 = vmatprep.subr.mxu0 0.0
        %v10065 = vand.u32 %v1925, 4294901760
        %v10066 = vsub.f32 %v1925, %v10065
        %10067 = vmatpush1.msra.mxu0 %v10066
        %10068 = vmatprep.subr.mxu0 0.0
        %10069 = vmatpush1.msra.mxu0 0.0
        %10070 = vmatprep.subr.mxu0 0.0
        %10071 = vmatpush1.msra.mxu0 0.0
        %10072 = vmatprep.subr.mxu0 0.0
        %10073 = vmatpush1.msra.mxu0 0.0
        %10074 = vmatprep.subr.mxu0 0.0
        %10075 = vmatpush1.msra.mxu0 0.0
        %10076 = vmatprep.subr.mxu0 0.0
        %10077 = vmatpush1.msra.mxu0 0.0
        %10078 = vmatprep.subr.mxu0 0.0
        %10079 = vmatpush1.msra.mxu0 0.0
        %10080 = vmatprep.subr.mxu0 0.0
        %10081 = vmatpush1.msra.mxu0 0.0
        %10082 = vmatprep.subr.mxu0 0.0
        %10083 = vmatpush1.msra.mxu0 0.0
        %10084 = vmatprep.subr.mxu0 0.0
        %10085 = vmatpush1.msra.mxu0 0.0
        %10086 = vmatprep.subr.mxu0 0.0
        %10087 = vmatpush1.msra.mxu0 0.0
        %10088 = vmatprep.subr.mxu0 0.0
        %10089 = vmatpush1.msra.mxu0 0.0
        %10090 = vmatprep.subr.mxu0 0.0
        %10091 = vmatpush1.msra.mxu0 0.0
        %10092 = vmatprep.subr.mxu0 0.0
        %10093 = vmatpush1.msra.mxu0 0.0
        %10094 = vmatprep.subr.mxu0 0.0
        %10095 = vmatpush1.msra.mxu0 0.0
        %10096 = vmatprep.subr.mxu0 0.0
        %10097 = vmatpush1.msra.mxu0 0.0
        %10098 = vmatprep.subr.mxu0 0.0
        %10099 = vmatpush1.msra.mxu0 0.0
        %10100 = vmatprep.subr.mxu0 0.0
        %10101 = vmatpush1.msra.mxu0 0.0
        %10102 = vmatprep.subr.mxu0 0.0
        %10103 = vmatpush1.msra.mxu0 0.0
        %10104 = vmatprep.subr.mxu0 0.0
        %10105 = vmatpush1.msra.mxu0 0.0
        %10106 = vmatprep.subr.mxu0 0.0
        %10107 = vmatpush1.msra.mxu0 0.0
        %10108 = vmatprep.subr.mxu0 0.0
        %10109 = vmatpush1.msra.mxu0 0.0
        %10110 = vmatprep.subr.mxu0 0.0
        %10111 = vmatpush1.msra.mxu0 0.0
        %10112 = vmatprep.subr.mxu0 0.0
        %10113 = vmatpush1.msra.mxu0 0.0
        %10114 = vmatprep.subr.mxu0 0.0
        %10115 = vmatpush1.msra.mxu0 0.0
        %10116 = vmatprep.subr.mxu0 0.0
        %10117 = vmatpush1.msra.mxu0 0.0
        %10118 = vmatprep.subr.mxu0 0.0
        %10119 = vmatpush1.msra.mxu0 0.0
        %10120 = vmatprep.subr.mxu0 0.0
        %10121 = vmatpush1.msra.mxu0 0.0
        %10122 = vmatprep.subr.mxu0 0.0
        %10123 = vmatpush1.msra.mxu0 0.0
        %10124 = vmatprep.subr.mxu0 0.0
        %10125 = vmatpush1.msra.mxu0 0.0
        %10126 = vmatprep.subr.mxu0 0.0
        %10127 = vmatpush1.msra.mxu0 0.0
        %10128 = vmatprep.subr.mxu0 0.0
        %10129 = vmatpush1.msra.mxu0 0.0
        %10130 = vmatprep.mubr.f32.mxu0 0.0
        %v10131 = vand.u32 %v7446, 4294901760
        %v10132 = vsub.f32 %v7446, %v10131
        %10133 = vmatmul.mubr.f32.gmra.mrb[0].mxu0 %v10132
        %v10134 = vpop.f32.mrb[0].mxu0
        %v10135 = vadd.f32 %v10055, %v10134
        %v10136 = vpop.f32.mrb[0].mxu0
        %10137 = vmatprep.mubr.f32.mxu0 0.0
        %v10138 = vand.u32 %v7449, 4294901760
        %v10139 = vsub.f32 %v7449, %v10138
        %10140 = vmatmul.mubr.f32.gmra.mrb[0].mxu0 %v10139
        %v10141 = vpop.f32.mrb[0].mxu0
        %v10142 = vadd.f32 %v10061, %v10141
        %v10143 = vpop.f32.mrb[0].mxu0
        %10144 = vdwg.mxu0
        %10145 = vmatprep.subr.mxu0 0.0
        %v10146 = vand.u32 %v1925, 4294901760
        %10147 = vmatpush1.msra.mxu0 %v10146
        %10148 = vmatprep.subr.mxu0 0.0
        %10149 = vmatpush1.msra.mxu0 0.0
        %10150 = vmatprep.subr.mxu0 0.0
        %10151 = vmatpush1.msra.mxu0 0.0
        %10152 = vmatprep.subr.mxu0 0.0
        %10153 = vmatpush1.msra.mxu0 0.0
        %10154 = vmatprep.subr.mxu0 0.0
        %10155 = vmatpush1.msra.mxu0 0.0
        %10156 = vmatprep.subr.mxu0 0.0
        %10157 = vmatpush1.msra.mxu0 0.0
        %10158 = vmatprep.subr.mxu0 0.0
        %10159 = vmatpush1.msra.mxu0 0.0
        %10160 = vmatprep.subr.mxu0 0.0
        %10161 = vmatpush1.msra.mxu0 0.0
        %10162 = vmatprep.subr.mxu0 0.0
        %10163 = vmatpush1.msra.mxu0 0.0
        %10164 = vmatprep.subr.mxu0 0.0
        %10165 = vmatpush1.msra.mxu0 0.0
        %10166 = vmatprep.subr.mxu0 0.0
        %10167 = vmatpush1.msra.mxu0 0.0
        %10168 = vmatprep.subr.mxu0 0.0
        %10169 = vmatpush1.msra.mxu0 0.0
        %10170 = vmatprep.subr.mxu0 0.0
        %10171 = vmatpush1.msra.mxu0 0.0
        %10172 = vmatprep.subr.mxu0 0.0
        %10173 = vmatpush1.msra.mxu0 0.0
        %10174 = vmatprep.subr.mxu0 0.0
        %10175 = vmatpush1.msra.mxu0 0.0
        %10176 = vmatprep.subr.mxu0 0.0
        %10177 = vmatpush1.msra.mxu0 0.0
        %10178 = vmatprep.subr.mxu0 0.0
        %10179 = vmatpush1.msra.mxu0 0.0
        %10180 = vmatprep.subr.mxu0 0.0
        %10181 = vmatpush1.msra.mxu0 0.0
        %10182 = vmatprep.subr.mxu0 0.0
        %10183 = vmatpush1.msra.mxu0 0.0
        %10184 = vmatprep.subr.mxu0 0.0
        %10185 = vmatpush1.msra.mxu0 0.0
        %10186 = vmatprep.subr.mxu0 0.0
        %10187 = vmatpush1.msra.mxu0 0.0
        %10188 = vmatprep.subr.mxu0 0.0
        %10189 = vmatpush1.msra.mxu0 0.0
        %10190 = vmatprep.subr.mxu0 0.0
        %10191 = vmatpush1.msra.mxu0 0.0
        %10192 = vmatprep.subr.mxu0 0.0
        %10193 = vmatpush1.msra.mxu0 0.0
        %10194 = vmatprep.subr.mxu0 0.0
        %10195 = vmatpush1.msra.mxu0 0.0
        %10196 = vmatprep.subr.mxu0 0.0
        %10197 = vmatpush1.msra.mxu0 0.0
        %10198 = vmatprep.subr.mxu0 0.0
        %10199 = vmatpush1.msra.mxu0 0.0
        %10200 = vmatprep.subr.mxu0 0.0
        %10201 = vmatpush1.msra.mxu0 0.0
        %10202 = vmatprep.subr.mxu0 0.0
        %10203 = vmatpush1.msra.mxu0 0.0
        %10204 = vmatprep.subr.mxu0 0.0
        %10205 = vmatpush1.msra.mxu0 0.0
        %10206 = vmatprep.subr.mxu0 0.0
        %10207 = vmatpush1.msra.mxu0 0.0
        %10208 = vmatprep.subr.mxu0 0.0
        %10209 = vmatpush1.msra.mxu0 0.0
        %10210 = vmatprep.mubr.f32.mxu0 0.0
        %v10211 = vand.u32 %v7446, 4294901760
        %v10212 = vsub.f32 %v7446, %v10211
        %v10213 = vand.u32 %v10212, 4294901760
        %10214 = vmatmul.mubr.f32.gmra.mrb[0].mxu0 %v10213
        %v10215 = vpop.f32.mrb[0].mxu0
        %v10216 = vadd.f32 %v10135, %v10215
        %v10217 = vpop.f32.mrb[0].mxu0
        %10218 = vmatprep.mubr.f32.mxu0 0.0
        %v10219 = vand.u32 %v7449, 4294901760
        %v10220 = vsub.f32 %v7449, %v10219
        %v10221 = vand.u32 %v10220, 4294901760
        %10222 = vmatmul.mubr.f32.gmra.mrb[0].mxu0 %v10221
        %v10223 = vpop.f32.mrb[0].mxu0
        %v10224 = vadd.f32 %v10142, %v10223
        %v10225 = vpop.f32.mrb[0].mxu0
        %10226 = vdwg.mxu0
        %10227 = vmatprep.subr.mxu0 0.0
        %v10228 = vand.u32 %v1925, 4294901760
        %v10229 = vsub.f32 %v1925, %v10228
        %v10230 = vand.u32 %v10229, 4294901760
        %10231 = vmatpush1.msra.mxu0 %v10230
        %10232 = vmatprep.subr.mxu0 0.0
        %10233 = vmatpush1.msra.mxu0 0.0
        %10234 = vmatprep.subr.mxu0 0.0
        %10235 = vmatpush1.msra.mxu0 0.0
        %10236 = vmatprep.subr.mxu0 0.0
        %10237 = vmatpush1.msra.mxu0 0.0
        %10238 = vmatprep.subr.mxu0 0.0
        %10239 = vmatpush1.msra.mxu0 0.0
        %10240 = vmatprep.subr.mxu0 0.0
        %10241 = vmatpush1.msra.mxu0 0.0
        %10242 = vmatprep.subr.mxu0 0.0
        %10243 = vmatpush1.msra.mxu0 0.0
        %10244 = vmatprep.subr.mxu0 0.0
        %10245 = vmatpush1.msra.mxu0 0.0
        %10246 = vmatprep.subr.mxu0 0.0
        %10247 = vmatpush1.msra.mxu0 0.0
        %10248 = vmatprep.subr.mxu0 0.0
        %10249 = vmatpush1.msra.mxu0 0.0
        %10250 = vmatprep.subr.mxu0 0.0
        %10251 = vmatpush1.msra.mxu0 0.0
        %10252 = vmatprep.subr.mxu0 0.0
        %10253 = vmatpush1.msra.mxu0 0.0
        %10254 = vmatprep.subr.mxu0 0.0
        %10255 = vmatpush1.msra.mxu0 0.0
        %10256 = vmatprep.subr.mxu0 0.0
        %10257 = vmatpush1.msra.mxu0 0.0
        %10258 = vmatprep.subr.mxu0 0.0
        %10259 = vmatpush1.msra.mxu0 0.0
        %10260 = vmatprep.subr.mxu0 0.0
        %10261 = vmatpush1.msra.mxu0 0.0
        %10262 = vmatprep.subr.mxu0 0.0
        %10263 = vmatpush1.msra.mxu0 0.0
        %10264 = vmatprep.subr.mxu0 0.0
        %10265 = vmatpush1.msra.mxu0 0.0
        %10266 = vmatprep.subr.mxu0 0.0
        %10267 = vmatpush1.msra.mxu0 0.0
        %10268 = vmatprep.subr.mxu0 0.0
        %10269 = vmatpush1.msra.mxu0 0.0
        %10270 = vmatprep.subr.mxu0 0.0
        %10271 = vmatpush1.msra.mxu0 0.0
        %10272 = vmatprep.subr.mxu0 0.0
        %10273 = vmatpush1.msra.mxu0 0.0
        %10274 = vmatprep.subr.mxu0 0.0
        %10275 = vmatpush1.msra.mxu0 0.0
        %10276 = vmatprep.subr.mxu0 0.0
        %10277 = vmatpush1.msra.mxu0 0.0
        %10278 = vmatprep.subr.mxu0 0.0
        %10279 = vmatpush1.msra.mxu0 0.0
        %10280 = vmatprep.subr.mxu0 0.0
        %10281 = vmatpush1.msra.mxu0 0.0
        %10282 = vmatprep.subr.mxu0 0.0
        %10283 = vmatpush1.msra.mxu0 0.0
        %10284 = vmatprep.subr.mxu0 0.0
        %10285 = vmatpush1.msra.mxu0 0.0
        %10286 = vmatprep.subr.mxu0 0.0
        %10287 = vmatpush1.msra.mxu0 0.0
        %10288 = vmatprep.subr.mxu0 0.0
        %10289 = vmatpush1.msra.mxu0 0.0
        %10290 = vmatprep.subr.mxu0 0.0
        %10291 = vmatpush1.msra.mxu0 0.0
        %10292 = vmatprep.subr.mxu0 0.0
        %10293 = vmatpush1.msra.mxu0 0.0
        %10294 = vmatprep.mubr.f32.mxu0 0.0
        %v10295 = vand.u32 %v7446, 4294901760
        %10296 = vmatmul.mubr.f32.gmra.mrb[0].mxu0 %v10295
        %v10297 = vpop.f32.mrb[0].mxu0
        %v10298 = vadd.f32 %v10216, %v10297
        %v10299 = vpop.f32.mrb[0].mxu0
        %10300 = vmatprep.mubr.f32.mxu0 0.0
        %v10301 = vand.u32 %v7449, 4294901760
        %10302 = vmatmul.mubr.f32.gmra.mrb[0].mxu0 %v10301
        %v10303 = vpop.f32.mrb[0].mxu0
        %v10304 = vadd.f32 %v10224, %v10303
        %v10305 = vpop.f32.mrb[0].mxu0
        %10306 = vdwg.mxu0
        %10307 = vmatprep.subr.mxu0 0.0
        %v10308 = vand.u32 %v1925, 4294901760
        %10309 = vmatpush1.msra.mxu0 %v10308
        %10310 = vmatprep.subr.mxu0 0.0
        %10311 = vmatpush1.msra.mxu0 0.0
        %10312 = vmatprep.subr.mxu0 0.0
        %10313 = vmatpush1.msra.mxu0 0.0
        %10314 = vmatprep.subr.mxu0 0.0
        %10315 = vmatpush1.msra.mxu0 0.0
        %10316 = vmatprep.subr.mxu0 0.0
        %10317 = vmatpush1.msra.mxu0 0.0
        %10318 = vmatprep.subr.mxu0 0.0
        %10319 = vmatpush1.msra.mxu0 0.0
        %10320 = vmatprep.subr.mxu0 0.0
        %10321 = vmatpush1.msra.mxu0 0.0
        %10322 = vmatprep.subr.mxu0 0.0
        %10323 = vmatpush1.msra.mxu0 0.0
        %10324 = vmatprep.subr.mxu0 0.0
        %10325 = vmatpush1.msra.mxu0 0.0
        %10326 = vmatprep.subr.mxu0 0.0
        %10327 = vmatpush1.msra.mxu0 0.0
        %10328 = vmatprep.subr.mxu0 0.0
        %10329 = vmatpush1.msra.mxu0 0.0
        %10330 = vmatprep.subr.mxu0 0.0
        %10331 = vmatpush1.msra.mxu0 0.0
        %10332 = vmatprep.subr.mxu0 0.0
        %10333 = vmatpush1.msra.mxu0 0.0
        %10334 = vmatprep.subr.mxu0 0.0
        %10335 = vmatpush1.msra.mxu0 0.0
        %10336 = vmatprep.subr.mxu0 0.0
        %10337 = vmatpush1.msra.mxu0 0.0
        %10338 = vmatprep.subr.mxu0 0.0
        %10339 = vmatpush1.msra.mxu0 0.0
        %10340 = vmatprep.subr.mxu0 0.0
        %10341 = vmatpush1.msra.mxu0 0.0
        %10342 = vmatprep.subr.mxu0 0.0
        %10343 = vmatpush1.msra.mxu0 0.0
        %10344 = vmatprep.subr.mxu0 0.0
        %10345 = vmatpush1.msra.mxu0 0.0
        %10346 = vmatprep.subr.mxu0 0.0
        %10347 = vmatpush1.msra.mxu0 0.0
        %10348 = vmatprep.subr.mxu0 0.0
        %10349 = vmatpush1.msra.mxu0 0.0
        %10350 = vmatprep.subr.mxu0 0.0
        %10351 = vmatpush1.msra.mxu0 0.0
        %10352 = vmatprep.subr.mxu0 0.0
        %10353 = vmatpush1.msra.mxu0 0.0
        %10354 = vmatprep.subr.mxu0 0.0
        %10355 = vmatpush1.msra.mxu0 0.0
        %10356 = vmatprep.subr.mxu0 0.0
        %10357 = vmatpush1.msra.mxu0 0.0
        %10358 = vmatprep.subr.mxu0 0.0
        %10359 = vmatpush1.msra.mxu0 0.0
        %10360 = vmatprep.subr.mxu0 0.0
        %10361 = vmatpush1.msra.mxu0 0.0
        %10362 = vmatprep.subr.mxu0 0.0
        %10363 = vmatpush1.msra.mxu0 0.0
        %10364 = vmatprep.subr.mxu0 0.0
        %10365 = vmatpush1.msra.mxu0 0.0
        %10366 = vmatprep.subr.mxu0 0.0
        %10367 = vmatpush1.msra.mxu0 0.0
        %10368 = vmatprep.subr.mxu0 0.0
        %10369 = vmatpush1.msra.mxu0 0.0
        %10370 = vmatprep.subr.mxu0 0.0
        %10371 = vmatpush1.msra.mxu0 0.0
        %10372 = vmatprep.mubr.f32.mxu0 0.0
        %v10373 = vand.u32 %v7446, 4294901760
        %10374 = vmatmul.mubr.f32.gmra.mrb[0].mxu0 %v10373
        %v10375 = vpop.f32.mrb[0].mxu0
        %v10376 = vadd.f32 %v10298, %v10375
        %v10377 = vpop.f32.mrb[0].mxu0
        %10378 = vmatprep.mubr.f32.mxu0 0.0
        %v10379 = vand.u32 %v7449, 4294901760
        %10380 = vmatmul.mubr.f32.gmra.mrb[0].mxu0 %v10379
        %v10381 = vpop.f32.mrb[0].mxu0
        %v10382 = vadd.f32 %v10304, %v10381
        %v10383 = vpop.f32.mrb[0].mxu0
        %10384 = vdwg.mxu0
        %10385 = vmatprep.subr.mxu0 0.0
        %v10386 = vand.u32 %v1931, 4294901760
        %10387 = vmatpush1.msra.mxu0 %v10386
        %10388 = vmatprep.subr.mxu0 0.0
        %10389 = vmatpush1.msra.mxu0 0.0
        %10390 = vmatprep.subr.mxu0 0.0
        %10391 = vmatpush1.msra.mxu0 0.0
        %10392 = vmatprep.subr.mxu0 0.0
        %10393 = vmatpush1.msra.mxu0 0.0
        %10394 = vmatprep.subr.mxu0 0.0
        %10395 = vmatpush1.msra.mxu0 0.0
        %10396 = vmatprep.subr.mxu0 0.0
        %10397 = vmatpush1.msra.mxu0 0.0
        %10398 = vmatprep.subr.mxu0 0.0
        %10399 = vmatpush1.msra.mxu0 0.0
        %10400 = vmatprep.subr.mxu0 0.0
        %10401 = vmatpush1.msra.mxu0 0.0
        %10402 = vmatprep.subr.mxu0 0.0
        %10403 = vmatpush1.msra.mxu0 0.0
        %10404 = vmatprep.subr.mxu0 0.0
        %10405 = vmatpush1.msra.mxu0 0.0
        %10406 = vmatprep.subr.mxu0 0.0
        %10407 = vmatpush1.msra.mxu0 0.0
        %10408 = vmatprep.subr.mxu0 0.0
        %10409 = vmatpush1.msra.mxu0 0.0
        %10410 = vmatprep.subr.mxu0 0.0
        %10411 = vmatpush1.msra.mxu0 0.0
        %10412 = vmatprep.subr.mxu0 0.0
        %10413 = vmatpush1.msra.mxu0 0.0
        %10414 = vmatprep.subr.mxu0 0.0
        %10415 = vmatpush1.msra.mxu0 0.0
        %10416 = vmatprep.subr.mxu0 0.0
        %10417 = vmatpush1.msra.mxu0 0.0
        %10418 = vmatprep.subr.mxu0 0.0
        %10419 = vmatpush1.msra.mxu0 0.0
        %10420 = vmatprep.subr.mxu0 0.0
        %10421 = vmatpush1.msra.mxu0 0.0
        %10422 = vmatprep.subr.mxu0 0.0
        %10423 = vmatpush1.msra.mxu0 0.0
        %10424 = vmatprep.subr.mxu0 0.0
        %10425 = vmatpush1.msra.mxu0 0.0
        %10426 = vmatprep.subr.mxu0 0.0
        %10427 = vmatpush1.msra.mxu0 0.0
        %10428 = vmatprep.subr.mxu0 0.0
        %10429 = vmatpush1.msra.mxu0 0.0
        %10430 = vmatprep.subr.mxu0 0.0
        %10431 = vmatpush1.msra.mxu0 0.0
        %10432 = vmatprep.subr.mxu0 0.0
        %10433 = vmatpush1.msra.mxu0 0.0
        %10434 = vmatprep.subr.mxu0 0.0
        %10435 = vmatpush1.msra.mxu0 0.0
        %10436 = vmatprep.subr.mxu0 0.0
        %10437 = vmatpush1.msra.mxu0 0.0
        %10438 = vmatprep.subr.mxu0 0.0
        %10439 = vmatpush1.msra.mxu0 0.0
        %10440 = vmatprep.subr.mxu0 0.0
        %10441 = vmatpush1.msra.mxu0 0.0
        %10442 = vmatprep.subr.mxu0 0.0
        %10443 = vmatpush1.msra.mxu0 0.0
        %10444 = vmatprep.subr.mxu0 0.0
        %10445 = vmatpush1.msra.mxu0 0.0
        %10446 = vmatprep.subr.mxu0 0.0
        %10447 = vmatpush1.msra.mxu0 0.0
        %10448 = vmatprep.subr.mxu0 0.0
        %10449 = vmatpush1.msra.mxu0 0.0
        %10450 = vmatprep.mubr.f32.mxu0 0.0
        %v10451 = vand.u32 %v7446, 4294901760
        %v10452 = vsub.f32 %v7446, %v10451
        %v10453 = vand.u32 %v10452, 4294901760
        %v10454 = vsub.f32 %v10452, %v10453
        %v10455 = vand.u32 %v10454, 4294901760
        %10456 = vmatmul.mubr.f32.gmra.mrb[0].mxu0 %v10455
        %v10457 = vpop.f32.mrb[0].mxu0
        %v10458 = vadd.f32 %v6947, %v10457
        %v10459 = vpop.f32.mrb[0].mxu0
        %10460 = vmatprep.mubr.f32.mxu0 0.0
        %v10461 = vand.u32 %v7449, 4294901760
        %v10462 = vsub.f32 %v7449, %v10461
        %v10463 = vand.u32 %v10462, 4294901760
        %v10464 = vsub.f32 %v10462, %v10463
        %v10465 = vand.u32 %v10464, 4294901760
        %10466 = vmatmul.mubr.f32.gmra.mrb[0].mxu0 %v10465
        %v10467 = vpop.f32.mrb[0].mxu0
        %v10468 = vadd.f32 %v6953, %v10467
        %v10469 = vpop.f32.mrb[0].mxu0
        %10470 = vdwg.mxu0
        %10471 = vmatprep.subr.mxu0 0.0
        %v10472 = vand.u32 %v1931, 4294901760
        %v10473 = vsub.f32 %v1931, %v10472
        %v10474 = vand.u32 %v10473, 4294901760
        %v10475 = vsub.f32 %v10473, %v10474
        %v10476 = vand.u32 %v10475, 4294901760
        %10477 = vmatpush1.msra.mxu0 %v10476
        %10478 = vmatprep.subr.mxu0 0.0
        %10479 = vmatpush1.msra.mxu0 0.0
        %10480 = vmatprep.subr.mxu0 0.0
        %10481 = vmatpush1.msra.mxu0 0.0
        %10482 = vmatprep.subr.mxu0 0.0
        %10483 = vmatpush1.msra.mxu0 0.0
        %10484 = vmatprep.subr.mxu0 0.0
        %10485 = vmatpush1.msra.mxu0 0.0
        %10486 = vmatprep.subr.mxu0 0.0
        %10487 = vmatpush1.msra.mxu0 0.0
        %10488 = vmatprep.subr.mxu0 0.0
        %10489 = vmatpush1.msra.mxu0 0.0
        %10490 = vmatprep.subr.mxu0 0.0
        %10491 = vmatpush1.msra.mxu0 0.0
        %10492 = vmatprep.subr.mxu0 0.0
        %10493 = vmatpush1.msra.mxu0 0.0
        %10494 = vmatprep.subr.mxu0 0.0
        %10495 = vmatpush1.msra.mxu0 0.0
        %10496 = vmatprep.subr.mxu0 0.0
        %10497 = vmatpush1.msra.mxu0 0.0
        %10498 = vmatprep.subr.mxu0 0.0
        %10499 = vmatpush1.msra.mxu0 0.0
        %10500 = vmatprep.subr.mxu0 0.0
        %10501 = vmatpush1.msra.mxu0 0.0
        %10502 = vmatprep.subr.mxu0 0.0
        %10503 = vmatpush1.msra.mxu0 0.0
        %10504 = vmatprep.subr.mxu0 0.0
        %10505 = vmatpush1.msra.mxu0 0.0
        %10506 = vmatprep.subr.mxu0 0.0
        %10507 = vmatpush1.msra.mxu0 0.0
        %10508 = vmatprep.subr.mxu0 0.0
        %10509 = vmatpush1.msra.mxu0 0.0
        %10510 = vmatprep.subr.mxu0 0.0
        %10511 = vmatpush1.msra.mxu0 0.0
        %10512 = vmatprep.subr.mxu0 0.0
        %10513 = vmatpush1.msra.mxu0 0.0
        %10514 = vmatprep.subr.mxu0 0.0
        %10515 = vmatpush1.msra.mxu0 0.0
        %10516 = vmatprep.subr.mxu0 0.0
        %10517 = vmatpush1.msra.mxu0 0.0
        %10518 = vmatprep.subr.mxu0 0.0
        %10519 = vmatpush1.msra.mxu0 0.0
        %10520 = vmatprep.subr.mxu0 0.0
        %10521 = vmatpush1.msra.mxu0 0.0
        %10522 = vmatprep.subr.mxu0 0.0
        %10523 = vmatpush1.msra.mxu0 0.0
        %10524 = vmatprep.subr.mxu0 0.0
        %10525 = vmatpush1.msra.mxu0 0.0
        %10526 = vmatprep.subr.mxu0 0.0
        %10527 = vmatpush1.msra.mxu0 0.0
        %10528 = vmatprep.subr.mxu0 0.0
        %10529 = vmatpush1.msra.mxu0 0.0
        %10530 = vmatprep.subr.mxu0 0.0
        %10531 = vmatpush1.msra.mxu0 0.0
        %10532 = vmatprep.subr.mxu0 0.0
        %10533 = vmatpush1.msra.mxu0 0.0
        %10534 = vmatprep.subr.mxu0 0.0
        %10535 = vmatpush1.msra.mxu0 0.0
        %10536 = vmatprep.subr.mxu0 0.0
        %10537 = vmatpush1.msra.mxu0 0.0
        %10538 = vmatprep.subr.mxu0 0.0
        %10539 = vmatpush1.msra.mxu0 0.0
        %10540 = vmatprep.mubr.f32.mxu0 0.0
        %v10541 = vand.u32 %v7446, 4294901760
        %10542 = vmatmul.mubr.f32.gmra.mrb[0].mxu0 %v10541
        %v10543 = vpop.f32.mrb[0].mxu0
        %v10544 = vadd.f32 %v10458, %v10543
        %v10545 = vpop.f32.mrb[0].mxu0
        %10546 = vmatprep.mubr.f32.mxu0 0.0
        %v10547 = vand.u32 %v7449, 4294901760
        %10548 = vmatmul.mubr.f32.gmra.mrb[0].mxu0 %v10547
        %v10549 = vpop.f32.mrb[0].mxu0
        %v10550 = vadd.f32 %v10468, %v10549
        %v10551 = vpop.f32.mrb[0].mxu0
        %10552 = vdwg.mxu0
        %10553 = vmatprep.subr.mxu0 0.0
        %v10554 = vand.u32 %v1931, 4294901760
        %v10555 = vsub.f32 %v1931, %v10554
        %10556 = vmatpush1.msra.mxu0 %v10555
        %10557 = vmatprep.subr.mxu0 0.0
        %10558 = vmatpush1.msra.mxu0 0.0
        %10559 = vmatprep.subr.mxu0 0.0
        %10560 = vmatpush1.msra.mxu0 0.0
        %10561 = vmatprep.subr.mxu0 0.0
        %10562 = vmatpush1.msra.mxu0 0.0
        %10563 = vmatprep.subr.mxu0 0.0
        %10564 = vmatpush1.msra.mxu0 0.0
        %10565 = vmatprep.subr.mxu0 0.0
        %10566 = vmatpush1.msra.mxu0 0.0
        %10567 = vmatprep.subr.mxu0 0.0
        %10568 = vmatpush1.msra.mxu0 0.0
        %10569 = vmatprep.subr.mxu0 0.0
        %10570 = vmatpush1.msra.mxu0 0.0
        %10571 = vmatprep.subr.mxu0 0.0
        %10572 = vmatpush1.msra.mxu0 0.0
        %10573 = vmatprep.subr.mxu0 0.0
        %10574 = vmatpush1.msra.mxu0 0.0
        %10575 = vmatprep.subr.mxu0 0.0
        %10576 = vmatpush1.msra.mxu0 0.0
        %10577 = vmatprep.subr.mxu0 0.0
        %10578 = vmatpush1.msra.mxu0 0.0
        %10579 = vmatprep.subr.mxu0 0.0
        %10580 = vmatpush1.msra.mxu0 0.0
        %10581 = vmatprep.subr.mxu0 0.0
        %10582 = vmatpush1.msra.mxu0 0.0
        %10583 = vmatprep.subr.mxu0 0.0
        %10584 = vmatpush1.msra.mxu0 0.0
        %10585 = vmatprep.subr.mxu0 0.0
        %10586 = vmatpush1.msra.mxu0 0.0
        %10587 = vmatprep.subr.mxu0 0.0
        %10588 = vmatpush1.msra.mxu0 0.0
        %10589 = vmatprep.subr.mxu0 0.0
        %10590 = vmatpush1.msra.mxu0 0.0
        %10591 = vmatprep.subr.mxu0 0.0
        %10592 = vmatpush1.msra.mxu0 0.0
        %10593 = vmatprep.subr.mxu0 0.0
        %10594 = vmatpush1.msra.mxu0 0.0
        %10595 = vmatprep.subr.mxu0 0.0
        %10596 = vmatpush1.msra.mxu0 0.0
        %10597 = vmatprep.subr.mxu0 0.0
        %10598 = vmatpush1.msra.mxu0 0.0
        %10599 = vmatprep.subr.mxu0 0.0
        %10600 = vmatpush1.msra.mxu0 0.0
        %10601 = vmatprep.subr.mxu0 0.0
        %10602 = vmatpush1.msra.mxu0 0.0
        %10603 = vmatprep.subr.mxu0 0.0
        %10604 = vmatpush1.msra.mxu0 0.0
        %10605 = vmatprep.subr.mxu0 0.0
        %10606 = vmatpush1.msra.mxu0 0.0
        %10607 = vmatprep.subr.mxu0 0.0
        %10608 = vmatpush1.msra.mxu0 0.0
        %10609 = vmatprep.subr.mxu0 0.0
        %10610 = vmatpush1.msra.mxu0 0.0
        %10611 = vmatprep.subr.mxu0 0.0
        %10612 = vmatpush1.msra.mxu0 0.0
        %10613 = vmatprep.subr.mxu0 0.0
        %10614 = vmatpush1.msra.mxu0 0.0
        %10615 = vmatprep.subr.mxu0 0.0
        %10616 = vmatpush1.msra.mxu0 0.0
        %10617 = vmatprep.subr.mxu0 0.0
        %10618 = vmatpush1.msra.mxu0 0.0
        %10619 = vmatprep.mubr.f32.mxu0 0.0
        %v10620 = vand.u32 %v7446, 4294901760
        %v10621 = vsub.f32 %v7446, %v10620
        %10622 = vmatmul.mubr.f32.gmra.mrb[0].mxu0 %v10621
        %v10623 = vpop.f32.mrb[0].mxu0
        %v10624 = vadd.f32 %v10544, %v10623
        %v10625 = vpop.f32.mrb[0].mxu0
        %10626 = vmatprep.mubr.f32.mxu0 0.0
        %v10627 = vand.u32 %v7449, 4294901760
        %v10628 = vsub.f32 %v7449, %v10627
        %10629 = vmatmul.mubr.f32.gmra.mrb[0].mxu0 %v10628
        %v10630 = vpop.f32.mrb[0].mxu0
        %v10631 = vadd.f32 %v10550, %v10630
        %v10632 = vpop.f32.mrb[0].mxu0
        %10633 = vdwg.mxu0
        %10634 = vmatprep.subr.mxu0 0.0
        %v10635 = vand.u32 %v1931, 4294901760
        %10636 = vmatpush1.msra.mxu0 %v10635
        %10637 = vmatprep.subr.mxu0 0.0
        %10638 = vmatpush1.msra.mxu0 0.0
        %10639 = vmatprep.subr.mxu0 0.0
        %10640 = vmatpush1.msra.mxu0 0.0
        %10641 = vmatprep.subr.mxu0 0.0
        %10642 = vmatpush1.msra.mxu0 0.0
        %10643 = vmatprep.subr.mxu0 0.0
        %10644 = vmatpush1.msra.mxu0 0.0
        %10645 = vmatprep.subr.mxu0 0.0
        %10646 = vmatpush1.msra.mxu0 0.0
        %10647 = vmatprep.subr.mxu0 0.0
        %10648 = vmatpush1.msra.mxu0 0.0
        %10649 = vmatprep.subr.mxu0 0.0
        %10650 = vmatpush1.msra.mxu0 0.0
        %10651 = vmatprep.subr.mxu0 0.0
        %10652 = vmatpush1.msra.mxu0 0.0
        %10653 = vmatprep.subr.mxu0 0.0
        %10654 = vmatpush1.msra.mxu0 0.0
        %10655 = vmatprep.subr.mxu0 0.0
        %10656 = vmatpush1.msra.mxu0 0.0
        %10657 = vmatprep.subr.mxu0 0.0
        %10658 = vmatpush1.msra.mxu0 0.0
        %10659 = vmatprep.subr.mxu0 0.0
        %10660 = vmatpush1.msra.mxu0 0.0
        %10661 = vmatprep.subr.mxu0 0.0
        %10662 = vmatpush1.msra.mxu0 0.0
        %10663 = vmatprep.subr.mxu0 0.0
        %10664 = vmatpush1.msra.mxu0 0.0
        %10665 = vmatprep.subr.mxu0 0.0
        %10666 = vmatpush1.msra.mxu0 0.0
        %10667 = vmatprep.subr.mxu0 0.0
        %10668 = vmatpush1.msra.mxu0 0.0
        %10669 = vmatprep.subr.mxu0 0.0
        %10670 = vmatpush1.msra.mxu0 0.0
        %10671 = vmatprep.subr.mxu0 0.0
        %10672 = vmatpush1.msra.mxu0 0.0
        %10673 = vmatprep.subr.mxu0 0.0
        %10674 = vmatpush1.msra.mxu0 0.0
        %10675 = vmatprep.subr.mxu0 0.0
        %10676 = vmatpush1.msra.mxu0 0.0
        %10677 = vmatprep.subr.mxu0 0.0
        %10678 = vmatpush1.msra.mxu0 0.0
        %10679 = vmatprep.subr.mxu0 0.0
        %10680 = vmatpush1.msra.mxu0 0.0
        %10681 = vmatprep.subr.mxu0 0.0
        %10682 = vmatpush1.msra.mxu0 0.0
        %10683 = vmatprep.subr.mxu0 0.0
        %10684 = vmatpush1.msra.mxu0 0.0
        %10685 = vmatprep.subr.mxu0 0.0
        %10686 = vmatpush1.msra.mxu0 0.0
        %10687 = vmatprep.subr.mxu0 0.0
        %10688 = vmatpush1.msra.mxu0 0.0
        %10689 = vmatprep.subr.mxu0 0.0
        %10690 = vmatpush1.msra.mxu0 0.0
        %10691 = vmatprep.subr.mxu0 0.0
        %10692 = vmatpush1.msra.mxu0 0.0
        %10693 = vmatprep.subr.mxu0 0.0
        %10694 = vmatpush1.msra.mxu0 0.0
        %10695 = vmatprep.subr.mxu0 0.0
        %10696 = vmatpush1.msra.mxu0 0.0
        %10697 = vmatprep.subr.mxu0 0.0
        %10698 = vmatpush1.msra.mxu0 0.0
        %10699 = vmatprep.mubr.f32.mxu0 0.0
        %v10700 = vand.u32 %v7446, 4294901760
        %v10701 = vsub.f32 %v7446, %v10700
        %v10702 = vand.u32 %v10701, 4294901760
        %10703 = vmatmul.mubr.f32.gmra.mrb[0].mxu0 %v10702
        %v10704 = vpop.f32.mrb[0].mxu0
        %v10705 = vadd.f32 %v10624, %v10704
        %v10706 = vpop.f32.mrb[0].mxu0
        %10707 = vmatprep.mubr.f32.mxu0 0.0
        %v10708 = vand.u32 %v7449, 4294901760
        %v10709 = vsub.f32 %v7449, %v10708
        %v10710 = vand.u32 %v10709, 4294901760
        %10711 = vmatmul.mubr.f32.gmra.mrb[0].mxu0 %v10710
        %v10712 = vpop.f32.mrb[0].mxu0
        %v10713 = vadd.f32 %v10631, %v10712
        %v10714 = vpop.f32.mrb[0].mxu0
        %10715 = vdwg.mxu0
        %10716 = vmatprep.subr.mxu0 0.0
        %v10717 = vand.u32 %v1931, 4294901760
        %v10718 = vsub.f32 %v1931, %v10717
        %v10719 = vand.u32 %v10718, 4294901760
        %10720 = vmatpush1.msra.mxu0 %v10719
        %10721 = vmatprep.subr.mxu0 0.0
        %10722 = vmatpush1.msra.mxu0 0.0
        %10723 = vmatprep.subr.mxu0 0.0
        %10724 = vmatpush1.msra.mxu0 0.0
        %10725 = vmatprep.subr.mxu0 0.0
        %10726 = vmatpush1.msra.mxu0 0.0
        %10727 = vmatprep.subr.mxu0 0.0
        %10728 = vmatpush1.msra.mxu0 0.0
        %10729 = vmatprep.subr.mxu0 0.0
        %10730 = vmatpush1.msra.mxu0 0.0
        %10731 = vmatprep.subr.mxu0 0.0
        %10732 = vmatpush1.msra.mxu0 0.0
        %10733 = vmatprep.subr.mxu0 0.0
        %10734 = vmatpush1.msra.mxu0 0.0
        %10735 = vmatprep.subr.mxu0 0.0
        %10736 = vmatpush1.msra.mxu0 0.0
        %10737 = vmatprep.subr.mxu0 0.0
        %10738 = vmatpush1.msra.mxu0 0.0
        %10739 = vmatprep.subr.mxu0 0.0
        %10740 = vmatpush1.msra.mxu0 0.0
        %10741 = vmatprep.subr.mxu0 0.0
        %10742 = vmatpush1.msra.mxu0 0.0
        %10743 = vmatprep.subr.mxu0 0.0
        %10744 = vmatpush1.msra.mxu0 0.0
        %10745 = vmatprep.subr.mxu0 0.0
        %10746 = vmatpush1.msra.mxu0 0.0
        %10747 = vmatprep.subr.mxu0 0.0
        %10748 = vmatpush1.msra.mxu0 0.0
        %10749 = vmatprep.subr.mxu0 0.0
        %10750 = vmatpush1.msra.mxu0 0.0
        %10751 = vmatprep.subr.mxu0 0.0
        %10752 = vmatpush1.msra.mxu0 0.0
        %10753 = vmatprep.subr.mxu0 0.0
        %10754 = vmatpush1.msra.mxu0 0.0
        %10755 = vmatprep.subr.mxu0 0.0
        %10756 = vmatpush1.msra.mxu0 0.0
        %10757 = vmatprep.subr.mxu0 0.0
        %10758 = vmatpush1.msra.mxu0 0.0
        %10759 = vmatprep.subr.mxu0 0.0
        %10760 = vmatpush1.msra.mxu0 0.0
        %10761 = vmatprep.subr.mxu0 0.0
        %10762 = vmatpush1.msra.mxu0 0.0
        %10763 = vmatprep.subr.mxu0 0.0
        %10764 = vmatpush1.msra.mxu0 0.0
        %10765 = vmatprep.subr.mxu0 0.0
        %10766 = vmatpush1.msra.mxu0 0.0
        %10767 = vmatprep.subr.mxu0 0.0
        %10768 = vmatpush1.msra.mxu0 0.0
        %10769 = vmatprep.subr.mxu0 0.0
        %10770 = vmatpush1.msra.mxu0 0.0
        %10771 = vmatprep.subr.mxu0 0.0
        %10772 = vmatpush1.msra.mxu0 0.0
        %10773 = vmatprep.subr.mxu0 0.0
        %10774 = vmatpush1.msra.mxu0 0.0
        %10775 = vmatprep.subr.mxu0 0.0
        %10776 = vmatpush1.msra.mxu0 0.0
        %10777 = vmatprep.subr.mxu0 0.0
        %10778 = vmatpush1.msra.mxu0 0.0
        %10779 = vmatprep.subr.mxu0 0.0
        %10780 = vmatpush1.msra.mxu0 0.0
        %10781 = vmatprep.subr.mxu0 0.0
        %10782 = vmatpush1.msra.mxu0 0.0
        %10783 = vmatprep.mubr.f32.mxu0 0.0
        %v10784 = vand.u32 %v7446, 4294901760
        %10785 = vmatmul.mubr.f32.gmra.mrb[0].mxu0 %v10784
        %v10786 = vpop.f32.mrb[0].mxu0
        %v10787 = vadd.f32 %v10705, %v10786
        %v10788 = vpop.f32.mrb[0].mxu0
        %10789 = vmatprep.mubr.f32.mxu0 0.0
        %v10790 = vand.u32 %v7449, 4294901760
        %10791 = vmatmul.mubr.f32.gmra.mrb[0].mxu0 %v10790
        %v10792 = vpop.f32.mrb[0].mxu0
        %v10793 = vadd.f32 %v10713, %v10792
        %v10794 = vpop.f32.mrb[0].mxu0
        %10795 = vdwg.mxu0
        %10796 = vmatprep.subr.mxu0 0.0
        %v10797 = vand.u32 %v1931, 4294901760
        %10798 = vmatpush1.msra.mxu0 %v10797
        %10799 = vmatprep.subr.mxu0 0.0
        %10800 = vmatpush1.msra.mxu0 0.0
        %10801 = vmatprep.subr.mxu0 0.0
        %10802 = vmatpush1.msra.mxu0 0.0
        %10803 = vmatprep.subr.mxu0 0.0
        %10804 = vmatpush1.msra.mxu0 0.0
        %10805 = vmatprep.subr.mxu0 0.0
        %10806 = vmatpush1.msra.mxu0 0.0
        %10807 = vmatprep.subr.mxu0 0.0
        %10808 = vmatpush1.msra.mxu0 0.0
        %10809 = vmatprep.subr.mxu0 0.0
        %10810 = vmatpush1.msra.mxu0 0.0
        %10811 = vmatprep.subr.mxu0 0.0
        %10812 = vmatpush1.msra.mxu0 0.0
        %10813 = vmatprep.subr.mxu0 0.0
        %10814 = vmatpush1.msra.mxu0 0.0
        %10815 = vmatprep.subr.mxu0 0.0
        %10816 = vmatpush1.msra.mxu0 0.0
        %10817 = vmatprep.subr.mxu0 0.0
        %10818 = vmatpush1.msra.mxu0 0.0
        %10819 = vmatprep.subr.mxu0 0.0
        %10820 = vmatpush1.msra.mxu0 0.0
        %10821 = vmatprep.subr.mxu0 0.0
        %10822 = vmatpush1.msra.mxu0 0.0
        %10823 = vmatprep.subr.mxu0 0.0
        %10824 = vmatpush1.msra.mxu0 0.0
        %10825 = vmatprep.subr.mxu0 0.0
        %10826 = vmatpush1.msra.mxu0 0.0
        %10827 = vmatprep.subr.mxu0 0.0
        %10828 = vmatpush1.msra.mxu0 0.0
        %10829 = vmatprep.subr.mxu0 0.0
        %10830 = vmatpush1.msra.mxu0 0.0
        %10831 = vmatprep.subr.mxu0 0.0
        %10832 = vmatpush1.msra.mxu0 0.0
        %10833 = vmatprep.subr.mxu0 0.0
        %10834 = vmatpush1.msra.mxu0 0.0
        %10835 = vmatprep.subr.mxu0 0.0
        %10836 = vmatpush1.msra.mxu0 0.0
        %10837 = vmatprep.subr.mxu0 0.0
        %10838 = vmatpush1.msra.mxu0 0.0
        %10839 = vmatprep.subr.mxu0 0.0
        %10840 = vmatpush1.msra.mxu0 0.0
        %10841 = vmatprep.subr.mxu0 0.0
        %10842 = vmatpush1.msra.mxu0 0.0
        %10843 = vmatprep.subr.mxu0 0.0
        %10844 = vmatpush1.msra.mxu0 0.0
        %10845 = vmatprep.subr.mxu0 0.0
        %10846 = vmatpush1.msra.mxu0 0.0
        %10847 = vmatprep.subr.mxu0 0.0
        %10848 = vmatpush1.msra.mxu0 0.0
        %10849 = vmatprep.subr.mxu0 0.0
        %10850 = vmatpush1.msra.mxu0 0.0
        %10851 = vmatprep.subr.mxu0 0.0
        %10852 = vmatpush1.msra.mxu0 0.0
        %10853 = vmatprep.subr.mxu0 0.0
        %10854 = vmatpush1.msra.mxu0 0.0
        %10855 = vmatprep.subr.mxu0 0.0
        %10856 = vmatpush1.msra.mxu0 0.0
        %10857 = vmatprep.subr.mxu0 0.0
        %10858 = vmatpush1.msra.mxu0 0.0
        %10859 = vmatprep.subr.mxu0 0.0
        %10860 = vmatpush1.msra.mxu0 0.0
        %10861 = vmatprep.mubr.f32.mxu0 0.0
        %v10862 = vand.u32 %v7446, 4294901760
        %10863 = vmatmul.mubr.f32.gmra.mrb[0].mxu0 %v10862
        %v10864 = vpop.f32.mrb[0].mxu0
        %v10865 = vadd.f32 %v10787, %v10864
        %v10866 = vpop.f32.mrb[0].mxu0
        %10867 = vmatprep.mubr.f32.mxu0 0.0
        %v10868 = vand.u32 %v7449, 4294901760
        %10869 = vmatmul.mubr.f32.gmra.mrb[0].mxu0 %v10868
        %v10870 = vpop.f32.mrb[0].mxu0
        %v10871 = vadd.f32 %v10793, %v10870
        %v10872 = vpop.f32.mrb[0].mxu0
        %10873 = vdwg.mxu0
        %10874 = vmatprep.subr.mxu0 0.0
        %v10875 = vand.u32 %v1937, 4294901760
        %10876 = vmatpush1.msra.mxu0 %v10875
        %10877 = vmatprep.subr.mxu0 0.0
        %10878 = vmatpush1.msra.mxu0 0.0
        %10879 = vmatprep.subr.mxu0 0.0
        %10880 = vmatpush1.msra.mxu0 0.0
        %10881 = vmatprep.subr.mxu0 0.0
        %10882 = vmatpush1.msra.mxu0 0.0
        %10883 = vmatprep.subr.mxu0 0.0
        %10884 = vmatpush1.msra.mxu0 0.0
        %10885 = vmatprep.subr.mxu0 0.0
        %10886 = vmatpush1.msra.mxu0 0.0
        %10887 = vmatprep.subr.mxu0 0.0
        %10888 = vmatpush1.msra.mxu0 0.0
        %10889 = vmatprep.subr.mxu0 0.0
        %10890 = vmatpush1.msra.mxu0 0.0
        %10891 = vmatprep.subr.mxu0 0.0
        %10892 = vmatpush1.msra.mxu0 0.0
        %10893 = vmatprep.subr.mxu0 0.0
        %10894 = vmatpush1.msra.mxu0 0.0
        %10895 = vmatprep.subr.mxu0 0.0
        %10896 = vmatpush1.msra.mxu0 0.0
        %10897 = vmatprep.subr.mxu0 0.0
        %10898 = vmatpush1.msra.mxu0 0.0
        %10899 = vmatprep.subr.mxu0 0.0
        %10900 = vmatpush1.msra.mxu0 0.0
        %10901 = vmatprep.subr.mxu0 0.0
        %10902 = vmatpush1.msra.mxu0 0.0
        %10903 = vmatprep.subr.mxu0 0.0
        %10904 = vmatpush1.msra.mxu0 0.0
        %10905 = vmatprep.subr.mxu0 0.0
        %10906 = vmatpush1.msra.mxu0 0.0
        %10907 = vmatprep.subr.mxu0 0.0
        %10908 = vmatpush1.msra.mxu0 0.0
        %10909 = vmatprep.subr.mxu0 0.0
        %10910 = vmatpush1.msra.mxu0 0.0
        %10911 = vmatprep.subr.mxu0 0.0
        %10912 = vmatpush1.msra.mxu0 0.0
        %10913 = vmatprep.subr.mxu0 0.0
        %10914 = vmatpush1.msra.mxu0 0.0
        %10915 = vmatprep.subr.mxu0 0.0
        %10916 = vmatpush1.msra.mxu0 0.0
        %10917 = vmatprep.subr.mxu0 0.0
        %10918 = vmatpush1.msra.mxu0 0.0
        %10919 = vmatprep.subr.mxu0 0.0
        %10920 = vmatpush1.msra.mxu0 0.0
        %10921 = vmatprep.subr.mxu0 0.0
        %10922 = vmatpush1.msra.mxu0 0.0
        %10923 = vmatprep.subr.mxu0 0.0
        %10924 = vmatpush1.msra.mxu0 0.0
        %10925 = vmatprep.subr.mxu0 0.0
        %10926 = vmatpush1.msra.mxu0 0.0
        %10927 = vmatprep.subr.mxu0 0.0
        %10928 = vmatpush1.msra.mxu0 0.0
        %10929 = vmatprep.subr.mxu0 0.0
        %10930 = vmatpush1.msra.mxu0 0.0
        %10931 = vmatprep.subr.mxu0 0.0
        %10932 = vmatpush1.msra.mxu0 0.0
        %10933 = vmatprep.subr.mxu0 0.0
        %10934 = vmatpush1.msra.mxu0 0.0
        %10935 = vmatprep.subr.mxu0 0.0
        %10936 = vmatpush1.msra.mxu0 0.0
        %10937 = vmatprep.subr.mxu0 0.0
        %10938 = vmatpush1.msra.mxu0 0.0
        %10939 = vmatprep.mubr.f32.mxu0 0.0
        %v10940 = vand.u32 %v7446, 4294901760
        %v10941 = vsub.f32 %v7446, %v10940
        %v10942 = vand.u32 %v10941, 4294901760
        %v10943 = vsub.f32 %v10941, %v10942
        %v10944 = vand.u32 %v10943, 4294901760
        %10945 = vmatmul.mubr.f32.gmra.mrb[0].mxu0 %v10944
        %v10946 = vpop.f32.mrb[0].mxu0
        %v10947 = vadd.f32 %v7436, %v10946
        %v10948 = vpop.f32.mrb[0].mxu0
        %10949 = vmatprep.mubr.f32.mxu0 0.0
        %v10950 = vand.u32 %v7449, 4294901760
        %v10951 = vsub.f32 %v7449, %v10950
        %v10952 = vand.u32 %v10951, 4294901760
        %v10953 = vsub.f32 %v10951, %v10952
        %v10954 = vand.u32 %v10953, 4294901760
        %10955 = vmatmul.mubr.f32.gmra.mrb[0].mxu0 %v10954
        %v10956 = vpop.f32.mrb[0].mxu0
        %v10957 = vadd.f32 %v7442, %v10956
        %v10958 = vpop.f32.mrb[0].mxu0
        %10959 = vdwg.mxu0
        %10960 = vmatprep.subr.mxu0 0.0
        %v10961 = vand.u32 %v1937, 4294901760
        %v10962 = vsub.f32 %v1937, %v10961
        %v10963 = vand.u32 %v10962, 4294901760
        %v10964 = vsub.f32 %v10962, %v10963
        %v10965 = vand.u32 %v10964, 4294901760
        %10966 = vmatpush1.msra.mxu0 %v10965
        %10967 = vmatprep.subr.mxu0 0.0
        %10968 = vmatpush1.msra.mxu0 0.0
        %10969 = vmatprep.subr.mxu0 0.0
        %10970 = vmatpush1.msra.mxu0 0.0
        %10971 = vmatprep.subr.mxu0 0.0
        %10972 = vmatpush1.msra.mxu0 0.0
        %10973 = vmatprep.subr.mxu0 0.0
        %10974 = vmatpush1.msra.mxu0 0.0
        %10975 = vmatprep.subr.mxu0 0.0
        %10976 = vmatpush1.msra.mxu0 0.0
        %10977 = vmatprep.subr.mxu0 0.0
        %10978 = vmatpush1.msra.mxu0 0.0
        %10979 = vmatprep.subr.mxu0 0.0
        %10980 = vmatpush1.msra.mxu0 0.0
        %10981 = vmatprep.subr.mxu0 0.0
        %10982 = vmatpush1.msra.mxu0 0.0
        %10983 = vmatprep.subr.mxu0 0.0
        %10984 = vmatpush1.msra.mxu0 0.0
        %10985 = vmatprep.subr.mxu0 0.0
        %10986 = vmatpush1.msra.mxu0 0.0
        %10987 = vmatprep.subr.mxu0 0.0
        %10988 = vmatpush1.msra.mxu0 0.0
        %10989 = vmatprep.subr.mxu0 0.0
        %10990 = vmatpush1.msra.mxu0 0.0
        %10991 = vmatprep.subr.mxu0 0.0
        %10992 = vmatpush1.msra.mxu0 0.0
        %10993 = vmatprep.subr.mxu0 0.0
        %10994 = vmatpush1.msra.mxu0 0.0
        %10995 = vmatprep.subr.mxu0 0.0
        %10996 = vmatpush1.msra.mxu0 0.0
        %10997 = vmatprep.subr.mxu0 0.0
        %10998 = vmatpush1.msra.mxu0 0.0
        %10999 = vmatprep.subr.mxu0 0.0
        %11000 = vmatpush1.msra.mxu0 0.0
        %11001 = vmatprep.subr.mxu0 0.0
        %11002 = vmatpush1.msra.mxu0 0.0
        %11003 = vmatprep.subr.mxu0 0.0
        %11004 = vmatpush1.msra.mxu0 0.0
        %11005 = vmatprep.subr.mxu0 0.0
        %11006 = vmatpush1.msra.mxu0 0.0
        %11007 = vmatprep.subr.mxu0 0.0
        %11008 = vmatpush1.msra.mxu0 0.0
        %11009 = vmatprep.subr.mxu0 0.0
        %11010 = vmatpush1.msra.mxu0 0.0
        %11011 = vmatprep.subr.mxu0 0.0
        %11012 = vmatpush1.msra.mxu0 0.0
        %11013 = vmatprep.subr.mxu0 0.0
        %11014 = vmatpush1.msra.mxu0 0.0
        %11015 = vmatprep.subr.mxu0 0.0
        %11016 = vmatpush1.msra.mxu0 0.0
        %11017 = vmatprep.subr.mxu0 0.0
        %11018 = vmatpush1.msra.mxu0 0.0
        %11019 = vmatprep.subr.mxu0 0.0
        %11020 = vmatpush1.msra.mxu0 0.0
        %11021 = vmatprep.subr.mxu0 0.0
        %11022 = vmatpush1.msra.mxu0 0.0
        %11023 = vmatprep.subr.mxu0 0.0
        %11024 = vmatpush1.msra.mxu0 0.0
        %11025 = vmatprep.subr.mxu0 0.0
        %11026 = vmatpush1.msra.mxu0 0.0
        %11027 = vmatprep.subr.mxu0 0.0
        %11028 = vmatpush1.msra.mxu0 0.0
        %11029 = vmatprep.mubr.f32.mxu0 0.0
        %v11030 = vand.u32 %v7446, 4294901760
        %11031 = vmatmul.mubr.f32.gmra.mrb[0].mxu0 %v11030
        %v11032 = vpop.f32.mrb[0].mxu0
        %v11033 = vadd.f32 %v10947, %v11032
        %v11034 = vpop.f32.mrb[0].mxu0
        %11035 = vmatprep.mubr.f32.mxu0 0.0
        %v11036 = vand.u32 %v7449, 4294901760
        %11037 = vmatmul.mubr.f32.gmra.mrb[0].mxu0 %v11036
        %v11038 = vpop.f32.mrb[0].mxu0
        %v11039 = vadd.f32 %v10957, %v11038
        %v11040 = vpop.f32.mrb[0].mxu0
        %11041 = vdwg.mxu0
        %11042 = vmatprep.subr.mxu0 0.0
        %v11043 = vand.u32 %v1937, 4294901760
        %v11044 = vsub.f32 %v1937, %v11043
        %11045 = vmatpush1.msra.mxu0 %v11044
        %11046 = vmatprep.subr.mxu0 0.0
        %11047 = vmatpush1.msra.mxu0 0.0
        %11048 = vmatprep.subr.mxu0 0.0
        %11049 = vmatpush1.msra.mxu0 0.0
        %11050 = vmatprep.subr.mxu0 0.0
        %11051 = vmatpush1.msra.mxu0 0.0
        %11052 = vmatprep.subr.mxu0 0.0
        %11053 = vmatpush1.msra.mxu0 0.0
        %11054 = vmatprep.subr.mxu0 0.0
        %11055 = vmatpush1.msra.mxu0 0.0
        %11056 = vmatprep.subr.mxu0 0.0
        %11057 = vmatpush1.msra.mxu0 0.0
        %11058 = vmatprep.subr.mxu0 0.0
        %11059 = vmatpush1.msra.mxu0 0.0
        %11060 = vmatprep.subr.mxu0 0.0
        %11061 = vmatpush1.msra.mxu0 0.0
        %11062 = vmatprep.subr.mxu0 0.0
        %11063 = vmatpush1.msra.mxu0 0.0
        %11064 = vmatprep.subr.mxu0 0.0
        %11065 = vmatpush1.msra.mxu0 0.0
        %11066 = vmatprep.subr.mxu0 0.0
        %11067 = vmatpush1.msra.mxu0 0.0
        %11068 = vmatprep.subr.mxu0 0.0
        %11069 = vmatpush1.msra.mxu0 0.0
        %11070 = vmatprep.subr.mxu0 0.0
        %11071 = vmatpush1.msra.mxu0 0.0
        %11072 = vmatprep.subr.mxu0 0.0
        %11073 = vmatpush1.msra.mxu0 0.0
        %11074 = vmatprep.subr.mxu0 0.0
        %11075 = vmatpush1.msra.mxu0 0.0
        %11076 = vmatprep.subr.mxu0 0.0
        %11077 = vmatpush1.msra.mxu0 0.0
        %11078 = vmatprep.subr.mxu0 0.0
        %11079 = vmatpush1.msra.mxu0 0.0
        %11080 = vmatprep.subr.mxu0 0.0
        %11081 = vmatpush1.msra.mxu0 0.0
        %11082 = vmatprep.subr.mxu0 0.0
        %11083 = vmatpush1.msra.mxu0 0.0
        %11084 = vmatprep.subr.mxu0 0.0
        %11085 = vmatpush1.msra.mxu0 0.0
        %11086 = vmatprep.subr.mxu0 0.0
        %11087 = vmatpush1.msra.mxu0 0.0
        %11088 = vmatprep.subr.mxu0 0.0
        %11089 = vmatpush1.msra.mxu0 0.0
        %11090 = vmatprep.subr.mxu0 0.0
        %11091 = vmatpush1.msra.mxu0 0.0
        %11092 = vmatprep.subr.mxu0 0.0
        %11093 = vmatpush1.msra.mxu0 0.0
        %11094 = vmatprep.subr.mxu0 0.0
        %11095 = vmatpush1.msra.mxu0 0.0
        %11096 = vmatprep.subr.mxu0 0.0
        %11097 = vmatpush1.msra.mxu0 0.0
        %11098 = vmatprep.subr.mxu0 0.0
        %11099 = vmatpush1.msra.mxu0 0.0
        %11100 = vmatprep.subr.mxu0 0.0
        %11101 = vmatpush1.msra.mxu0 0.0
        %11102 = vmatprep.subr.mxu0 0.0
        %11103 = vmatpush1.msra.mxu0 0.0
        %11104 = vmatprep.subr.mxu0 0.0
        %11105 = vmatpush1.msra.mxu0 0.0
        %11106 = vmatprep.subr.mxu0 0.0
        %11107 = vmatpush1.msra.mxu0 0.0
        %11108 = vmatprep.mubr.f32.mxu0 0.0
        %v11109 = vand.u32 %v7446, 4294901760
        %v11110 = vsub.f32 %v7446, %v11109
        %11111 = vmatmul.mubr.f32.gmra.mrb[0].mxu0 %v11110
        %v11112 = vpop.f32.mrb[0].mxu0
        %v11113 = vadd.f32 %v11033, %v11112
        %v11114 = vpop.f32.mrb[0].mxu0
        %11115 = vmatprep.mubr.f32.mxu0 0.0
        %v11116 = vand.u32 %v7449, 4294901760
        %v11117 = vsub.f32 %v7449, %v11116
        %11118 = vmatmul.mubr.f32.gmra.mrb[0].mxu0 %v11117
        %v11119 = vpop.f32.mrb[0].mxu0
        %v11120 = vadd.f32 %v11039, %v11119
        %v11121 = vpop.f32.mrb[0].mxu0
        %11122 = vdwg.mxu0
        %11123 = vmatprep.subr.mxu0 0.0
        %v11124 = vand.u32 %v1937, 4294901760
        %11125 = vmatpush1.msra.mxu0 %v11124
        %11126 = vmatprep.subr.mxu0 0.0
        %11127 = vmatpush1.msra.mxu0 0.0
        %11128 = vmatprep.subr.mxu0 0.0
        %11129 = vmatpush1.msra.mxu0 0.0
        %11130 = vmatprep.subr.mxu0 0.0
        %11131 = vmatpush1.msra.mxu0 0.0
        %11132 = vmatprep.subr.mxu0 0.0
        %11133 = vmatpush1.msra.mxu0 0.0
        %11134 = vmatprep.subr.mxu0 0.0
        %11135 = vmatpush1.msra.mxu0 0.0
        %11136 = vmatprep.subr.mxu0 0.0
        %11137 = vmatpush1.msra.mxu0 0.0
        %11138 = vmatprep.subr.mxu0 0.0
        %11139 = vmatpush1.msra.mxu0 0.0
        %11140 = vmatprep.subr.mxu0 0.0
        %11141 = vmatpush1.msra.mxu0 0.0
        %11142 = vmatprep.subr.mxu0 0.0
        %11143 = vmatpush1.msra.mxu0 0.0
        %11144 = vmatprep.subr.mxu0 0.0
        %11145 = vmatpush1.msra.mxu0 0.0
        %11146 = vmatprep.subr.mxu0 0.0
        %11147 = vmatpush1.msra.mxu0 0.0
        %11148 = vmatprep.subr.mxu0 0.0
        %11149 = vmatpush1.msra.mxu0 0.0
        %11150 = vmatprep.subr.mxu0 0.0
        %11151 = vmatpush1.msra.mxu0 0.0
        %11152 = vmatprep.subr.mxu0 0.0
        %11153 = vmatpush1.msra.mxu0 0.0
        %11154 = vmatprep.subr.mxu0 0.0
        %11155 = vmatpush1.msra.mxu0 0.0
        %11156 = vmatprep.subr.mxu0 0.0
        %11157 = vmatpush1.msra.mxu0 0.0
        %11158 = vmatprep.subr.mxu0 0.0
        %11159 = vmatpush1.msra.mxu0 0.0
        %11160 = vmatprep.subr.mxu0 0.0
        %11161 = vmatpush1.msra.mxu0 0.0
        %11162 = vmatprep.subr.mxu0 0.0
        %11163 = vmatpush1.msra.mxu0 0.0
        %11164 = vmatprep.subr.mxu0 0.0
        %11165 = vmatpush1.msra.mxu0 0.0
        %11166 = vmatprep.subr.mxu0 0.0
        %11167 = vmatpush1.msra.mxu0 0.0
        %11168 = vmatprep.subr.mxu0 0.0
        %11169 = vmatpush1.msra.mxu0 0.0
        %11170 = vmatprep.subr.mxu0 0.0
        %11171 = vmatpush1.msra.mxu0 0.0
        %11172 = vmatprep.subr.mxu0 0.0
        %11173 = vmatpush1.msra.mxu0 0.0
        %11174 = vmatprep.subr.mxu0 0.0
        %11175 = vmatpush1.msra.mxu0 0.0
        %11176 = vmatprep.subr.mxu0 0.0
        %11177 = vmatpush1.msra.mxu0 0.0
        %11178 = vmatprep.subr.mxu0 0.0
        %11179 = vmatpush1.msra.mxu0 0.0
        %11180 = vmatprep.subr.mxu0 0.0
        %11181 = vmatpush1.msra.mxu0 0.0
        %11182 = vmatprep.subr.mxu0 0.0
        %11183 = vmatpush1.msra.mxu0 0.0
        %11184 = vmatprep.subr.mxu0 0.0
        %11185 = vmatpush1.msra.mxu0 0.0
        %11186 = vmatprep.subr.mxu0 0.0
        %11187 = vmatpush1.msra.mxu0 0.0
        %11188 = vmatprep.mubr.f32.mxu0 0.0
        %v11189 = vand.u32 %v7446, 4294901760
        %v11190 = vsub.f32 %v7446, %v11189
        %v11191 = vand.u32 %v11190, 4294901760
        %11192 = vmatmul.mubr.f32.gmra.mrb[0].mxu0 %v11191
        %v11193 = vpop.f32.mrb[0].mxu0
        %v11194 = vadd.f32 %v11113, %v11193
        %v11195 = vpop.f32.mrb[0].mxu0
        %11196 = vmatprep.mubr.f32.mxu0 0.0
        %v11197 = vand.u32 %v7449, 4294901760
        %v11198 = vsub.f32 %v7449, %v11197
        %v11199 = vand.u32 %v11198, 4294901760
        %11200 = vmatmul.mubr.f32.gmra.mrb[0].mxu0 %v11199
        %v11201 = vpop.f32.mrb[0].mxu0
        %v11202 = vadd.f32 %v11120, %v11201
        %v11203 = vpop.f32.mrb[0].mxu0
        %11204 = vdwg.mxu0
        %11205 = vmatprep.subr.mxu0 0.0
        %v11206 = vand.u32 %v1937, 4294901760
        %v11207 = vsub.f32 %v1937, %v11206
        %v11208 = vand.u32 %v11207, 4294901760
        %11209 = vmatpush1.msra.mxu0 %v11208
        %11210 = vmatprep.subr.mxu0 0.0
        %11211 = vmatpush1.msra.mxu0 0.0
        %11212 = vmatprep.subr.mxu0 0.0
        %11213 = vmatpush1.msra.mxu0 0.0
        %11214 = vmatprep.subr.mxu0 0.0
        %11215 = vmatpush1.msra.mxu0 0.0
        %11216 = vmatprep.subr.mxu0 0.0
        %11217 = vmatpush1.msra.mxu0 0.0
        %11218 = vmatprep.subr.mxu0 0.0
        %11219 = vmatpush1.msra.mxu0 0.0
        %11220 = vmatprep.subr.mxu0 0.0
        %11221 = vmatpush1.msra.mxu0 0.0
        %11222 = vmatprep.subr.mxu0 0.0
        %11223 = vmatpush1.msra.mxu0 0.0
        %11224 = vmatprep.subr.mxu0 0.0
        %11225 = vmatpush1.msra.mxu0 0.0
        %11226 = vmatprep.subr.mxu0 0.0
        %11227 = vmatpush1.msra.mxu0 0.0
        %11228 = vmatprep.subr.mxu0 0.0
        %11229 = vmatpush1.msra.mxu0 0.0
        %11230 = vmatprep.subr.mxu0 0.0
        %11231 = vmatpush1.msra.mxu0 0.0
        %11232 = vmatprep.subr.mxu0 0.0
        %11233 = vmatpush1.msra.mxu0 0.0
        %11234 = vmatprep.subr.mxu0 0.0
        %11235 = vmatpush1.msra.mxu0 0.0
        %11236 = vmatprep.subr.mxu0 0.0
        %11237 = vmatpush1.msra.mxu0 0.0
        %11238 = vmatprep.subr.mxu0 0.0
        %11239 = vmatpush1.msra.mxu0 0.0
        %11240 = vmatprep.subr.mxu0 0.0
        %11241 = vmatpush1.msra.mxu0 0.0
        %11242 = vmatprep.subr.mxu0 0.0
        %11243 = vmatpush1.msra.mxu0 0.0
        %11244 = vmatprep.subr.mxu0 0.0
        %11245 = vmatpush1.msra.mxu0 0.0
        %11246 = vmatprep.subr.mxu0 0.0
        %11247 = vmatpush1.msra.mxu0 0.0
        %11248 = vmatprep.subr.mxu0 0.0
        %11249 = vmatpush1.msra.mxu0 0.0
        %11250 = vmatprep.subr.mxu0 0.0
        %11251 = vmatpush1.msra.mxu0 0.0
        %11252 = vmatprep.subr.mxu0 0.0
        %11253 = vmatpush1.msra.mxu0 0.0
        %11254 = vmatprep.subr.mxu0 0.0
        %11255 = vmatpush1.msra.mxu0 0.0
        %11256 = vmatprep.subr.mxu0 0.0
        %11257 = vmatpush1.msra.mxu0 0.0
        %11258 = vmatprep.subr.mxu0 0.0
        %11259 = vmatpush1.msra.mxu0 0.0
        %11260 = vmatprep.subr.mxu0 0.0
        %11261 = vmatpush1.msra.mxu0 0.0
        %11262 = vmatprep.subr.mxu0 0.0
        %11263 = vmatpush1.msra.mxu0 0.0
        %11264 = vmatprep.subr.mxu0 0.0
        %11265 = vmatpush1.msra.mxu0 0.0
        %11266 = vmatprep.subr.mxu0 0.0
        %11267 = vmatpush1.msra.mxu0 0.0
        %11268 = vmatprep.subr.mxu0 0.0
        %11269 = vmatpush1.msra.mxu0 0.0
        %11270 = vmatprep.subr.mxu0 0.0
        %11271 = vmatpush1.msra.mxu0 0.0
        %11272 = vmatprep.mubr.f32.mxu0 0.0
        %v11273 = vand.u32 %v7446, 4294901760
        %11274 = vmatmul.mubr.f32.gmra.mrb[0].mxu0 %v11273
        %v11275 = vpop.f32.mrb[0].mxu0
        %v11276 = vadd.f32 %v11194, %v11275
        %v11277 = vpop.f32.mrb[0].mxu0
        %11278 = vmatprep.mubr.f32.mxu0 0.0
        %v11279 = vand.u32 %v7449, 4294901760
        %11280 = vmatmul.mubr.f32.gmra.mrb[0].mxu0 %v11279
        %v11281 = vpop.f32.mrb[0].mxu0
        %v11282 = vadd.f32 %v11202, %v11281
        %v11283 = vpop.f32.mrb[0].mxu0
        %11284 = vdwg.mxu0
        %11285 = vmatprep.subr.mxu0 0.0
        %v11286 = vand.u32 %v1937, 4294901760
        %11287 = vmatpush1.msra.mxu0 %v11286
        %11288 = vmatprep.subr.mxu0 0.0
        %11289 = vmatpush1.msra.mxu0 0.0
        %11290 = vmatprep.subr.mxu0 0.0
        %11291 = vmatpush1.msra.mxu0 0.0
        %11292 = vmatprep.subr.mxu0 0.0
        %11293 = vmatpush1.msra.mxu0 0.0
        %11294 = vmatprep.subr.mxu0 0.0
        %11295 = vmatpush1.msra.mxu0 0.0
        %11296 = vmatprep.subr.mxu0 0.0
        %11297 = vmatpush1.msra.mxu0 0.0
        %11298 = vmatprep.subr.mxu0 0.0
        %11299 = vmatpush1.msra.mxu0 0.0
        %11300 = vmatprep.subr.mxu0 0.0
        %11301 = vmatpush1.msra.mxu0 0.0
        %11302 = vmatprep.subr.mxu0 0.0
        %11303 = vmatpush1.msra.mxu0 0.0
        %11304 = vmatprep.subr.mxu0 0.0
        %11305 = vmatpush1.msra.mxu0 0.0
        %11306 = vmatprep.subr.mxu0 0.0
        %11307 = vmatpush1.msra.mxu0 0.0
        %11308 = vmatprep.subr.mxu0 0.0
        %11309 = vmatpush1.msra.mxu0 0.0
        %11310 = vmatprep.subr.mxu0 0.0
        %11311 = vmatpush1.msra.mxu0 0.0
        %11312 = vmatprep.subr.mxu0 0.0
        %11313 = vmatpush1.msra.mxu0 0.0
        %11314 = vmatprep.subr.mxu0 0.0
        %11315 = vmatpush1.msra.mxu0 0.0
        %11316 = vmatprep.subr.mxu0 0.0
        %11317 = vmatpush1.msra.mxu0 0.0
        %11318 = vmatprep.subr.mxu0 0.0
        %11319 = vmatpush1.msra.mxu0 0.0
        %11320 = vmatprep.subr.mxu0 0.0
        %11321 = vmatpush1.msra.mxu0 0.0
        %11322 = vmatprep.subr.mxu0 0.0
        %11323 = vmatpush1.msra.mxu0 0.0
        %11324 = vmatprep.subr.mxu0 0.0
        %11325 = vmatpush1.msra.mxu0 0.0
        %11326 = vmatprep.subr.mxu0 0.0
        %11327 = vmatpush1.msra.mxu0 0.0
        %11328 = vmatprep.subr.mxu0 0.0
        %11329 = vmatpush1.msra.mxu0 0.0
        %11330 = vmatprep.subr.mxu0 0.0
        %11331 = vmatpush1.msra.mxu0 0.0
        %11332 = vmatprep.subr.mxu0 0.0
        %11333 = vmatpush1.msra.mxu0 0.0
        %11334 = vmatprep.subr.mxu0 0.0
        %11335 = vmatpush1.msra.mxu0 0.0
        %11336 = vmatprep.subr.mxu0 0.0
        %11337 = vmatpush1.msra.mxu0 0.0
        %11338 = vmatprep.subr.mxu0 0.0
        %11339 = vmatpush1.msra.mxu0 0.0
        %11340 = vmatprep.subr.mxu0 0.0
        %11341 = vmatpush1.msra.mxu0 0.0
        %11342 = vmatprep.subr.mxu0 0.0
        %11343 = vmatpush1.msra.mxu0 0.0
        %11344 = vmatprep.subr.mxu0 0.0
        %11345 = vmatpush1.msra.mxu0 0.0
        %11346 = vmatprep.subr.mxu0 0.0
        %11347 = vmatpush1.msra.mxu0 0.0
        %11348 = vmatprep.subr.mxu0 0.0
        %11349 = vmatpush1.msra.mxu0 0.0
        %11350 = vmatprep.mubr.f32.mxu0 0.0
        %v11351 = vand.u32 %v7446, 4294901760
        %11352 = vmatmul.mubr.f32.gmra.mrb[0].mxu0 %v11351
        %v11353 = vpop.f32.mrb[0].mxu0
        %v11354 = vadd.f32 %v11276, %v11353
        %v11355 = vpop.f32.mrb[0].mxu0
        %11356 = vmatprep.mubr.f32.mxu0 0.0
        %v11357 = vand.u32 %v7449, 4294901760
        %11358 = vmatmul.mubr.f32.gmra.mrb[0].mxu0 %v11357
        %v11359 = vpop.f32.mrb[0].mxu0
        %v11360 = vadd.f32 %v11282, %v11359
        %v11361 = vpop.f32.mrb[0].mxu0
        %11362 = vdwg.mxu0
        %vm11363 = vcmask 261120
        %11364 = vst.msk [vmem:[%s344] sm:$0xff] %vm11363, %v7931
        %11365 = vst.msk [vmem:[%s344 + $0x8] sm:$0xff] %vm11363, %v7937
        %11366 = vst.msk [vmem:[%s344 + $0x10] sm:$0xff] %vm11363, %v8420
        %11367 = vst.msk [vmem:[%s344 + $0x18] sm:$0xff] %vm11363, %v8426
        %11368 = vst.msk [vmem:[%s344 + $0x20] sm:$0xff] %vm11363, %v8909
        %11369 = vst.msk [vmem:[%s344 + $0x28] sm:$0xff] %vm11363, %v8915
        %11370 = vst.msk [vmem:[%s344 + $0x30] sm:$0xff] %vm11363, %v9398
        %11371 = vst.msk [vmem:[%s344 + $0x38] sm:$0xff] %vm11363, %v9404
        %11372 = vst.msk [vmem:[%s344 + $0x40] sm:$0xff] %vm11363, %v9887
        %11373 = vst.msk [vmem:[%s344 + $0x48] sm:$0xff] %vm11363, %v9893
        %11374 = vst.msk [vmem:[%s344 + $0x50] sm:$0xff] %vm11363, %v10376
        %11375 = vst.msk [vmem:[%s344 + $0x58] sm:$0xff] %vm11363, %v10382
        %11376 = vst.msk [vmem:[%s344 + $0x60] sm:$0xff] %vm11363, %v10865
        %11377 = vst.msk [vmem:[%s344 + $0x68] sm:$0xff] %vm11363, %v10871
        %11378 = vst.msk [vmem:[%s344 + $0x70] sm:$0xff] %vm11363, %v11354
        %11379 = vst.msk [vmem:[%s344 + $0x78] sm:$0xff] %vm11363, %v11360
        %s11380 = sand.u32 %s109, 1
        %s11381 = scalar_lea.sflag [#allocation4], %s11380
        %s11382 = sand.u32 %s109, 1
        %s11383 = smul.addr %s11382, 128
        %s11384 = scalar_lea.vmem [#allocation3], %s11383
        // Predicated region
        $region71: #{tpu_custom_call.1} parent=65 // pred_check
          %p11385 = pneg %p119
        $region72: #{tpu_custom_call.1} parent=65 // pred_check_branch
          %11387 = sbr.rel (%p11385) target = $region74
        $region73: #{tpu_custom_call.1} parent=65 // pred_region
          #allocation6 [shape = 'u32[6]{0}', space=smem, size = 0x18, scoped, tag = 'DMA stride descriptor']
          %s11388 = smul.u32 2, %s22
          %s11390 = ssub.s32 2048, 2048
          %11391 = vsyncadd %s11381, %s11390
          %s11392 = smul.addr %s21, 32
          %s11393 = sadd.s32 %s11388, %s11392
          %s11394 = smul.addr %s11393, 128
          %s11395 = scalar_lea.hbm %s3, %s11394
          %s11397 = sshll.u32 1, 14
          %s11398 = sxor.u32 4294967295, %s11397
          %s11401 = sshll.u32 7, 18
          %s11402 = sxor.u32 4294967295, %s11401
          %s11403 = sand.u32 0, %s11402
          %s11405 = sor.u32 %s11403, 0
          %s11407 = sshll.u32 3, 24
          %s11408 = sxor.u32 4294967295, %s11407
          %s11409 = sand.u32 %s11405, %s11408
          %s11411 = sor.u32 %s11409, 0
          %s11412 = sshll.u32 %s11384, 4
          %s11413 = int_to_ptr.vmem [resolvable:$true] %s11412
          %11419 = sst [smem:[#allocation6]] 256
          %s11420 = scalar_lea.smem [#allocation6], 1
          %11421 = sst [smem:[%s11420]] 512
          %s11422 = scalar_lea.smem [#allocation6], 2
          %11423 = sst [smem:[%s11422]] 2
          %s11424 = scalar_lea.smem [#allocation6], 3
          %11425 = sst [smem:[%s11424]] 128
          %s11426 = scalar_lea.smem [#allocation6], 4
          %11427 = sst [smem:[%s11426]] 128
          %s11428 = scalar_lea.smem [#allocation6], 5
          %11429 = sst [smem:[%s11428]] 8
          %11431 = dma.general %s11413, 2048, %s11395, %s11381, [#allocation5], [#allocation6], %s11411, 0
        $region74: #{tpu_custom_call.1} parent=65 // pred_fallthru
          _
      $region66: #{tpu_custom_call.1} parent=5 // pred_fallthru
        _
      %p11432 = scmp.le.s32.totalorder 2, %s12
      // Predicated region
      $region75: #{tpu_custom_call.1} parent=5 // pred_check
        %p11433 = pneg %p11432
      $region76: #{tpu_custom_call.1} parent=5 // pred_check_branch
        %11435 = sbr.rel (%p11433) target = $region78
      $region77: #{tpu_custom_call.1} parent=5 // pred_region
        %s11436 = ssub.s32 %s12, 2
        // Predicated region
        $region79: #{tpu_custom_call.1} parent=77 // pred_check
          %p11437 = pneg %p125
        $region80: #{tpu_custom_call.1} parent=77 // pred_check_branch
          %11439 = sbr.rel (%p11437) target = $region82
        $region81: #{tpu_custom_call.1} parent=77 // pred_region
          %s11440 = sand.u32 %s110, 1
          %s11441 = scalar_lea.sflag [#allocation4], %s11440
          %s11442 = sand.u32 %s110, 1
          %s11443 = smul.addr %s11442, 128
          %s11444 = scalar_lea.vmem [#allocation3], %s11443
          %11445 = dma.done %s11441, 2048
        $region82: #{tpu_custom_call.1} parent=77 // pred_fallthru
          _
      $region78: #{tpu_custom_call.1} parent=5 // pred_fallthru
        _
    $region6: #{tpu_custom_call.1} parent=1 // loop_footer
      %s16 = sadd.s32 1, %s12
    $region7: #{tpu_custom_call.1} parent=1 // loop_footer_branch
      %11 = sbr.rel target = $region3
    $region8: #{tpu_custom_call.1} parent=1 // loop_exit
      _
    %11446 = vsyncpa [#allocation4], 1
    %s11447 = scalar_lea.sflag [#allocation4], 1
    %11448 = vsyncpa %s11447, 1

</llo_original>
